<compile_context>
chip_gen: v7x
topology: tpu7x:2x2x1
jax: 0.10.0
libtpu: 0.0.40
codegen_flags: <defaults>
</compile_context>

<pallas_src>
import jax
import jax.numpy as jnp
from jax import lax
from jax.experimental import pallas as pl
from jax.experimental.pallas import tpu as pltpu


# ---------------------------------------------------------------------------
# helpers
# ---------------------------------------------------------------------------
def _default_compute_dtype():
    """bf16 matmul operands on v6e/v7x, f32 elsewhere (per perf review)."""
    try:
        kind = jax.devices()[0].device_kind.lower()
    except Exception:
        return jnp.float32
    if ("v6" in kind) or ("v7" in kind) or ("tpu7" in kind):
        return jnp.bfloat16
    return jnp.float32


# ---------------------------------------------------------------------------
# fused ASPP kernel: all branches + concat + projection, one image per step
# ---------------------------------------------------------------------------
def _aspp_fused(x_pad, w1, s1, w3, s3, w_pool, s_pool, wp, s_proj, *,
                H, W, R, rates, compute_dtype):
    B, Hp, Wp, Cin = x_pad.shape
    Cout = w1.shape[-1]
    n_rates = len(rates)
    HW = H * W
    cdt = compute_dtype
    inv_hw = 1.0 / float(HW)

    def kernel(x_ref, w1_ref, s1_ref, w3_ref, s3_ref, wpool_ref, spool_ref,
               wp_ref, sproj_ref, o_ref):
        xw = x_ref[0]                                        # (Hp, Wp, Cin)

        # center (valid) window, pixels-as-rows / channels-as-lanes
        xv = xw[R:R + H, R:R + W, :].reshape(HW, Cin)        # (HW, Cin)

        # ---- branch 0: 1x1 conv + BN + ReLU, immediately projected ---------
        b0 = jnp.maximum(
            jnp.dot(xv, w1_ref[...], preferred_element_type=jnp.float32)
            + s1_ref[...], 0.0)                              # (HW, Cout) f32
        acc = jnp.dot(b0.astype(cdt), wp_ref[0],
                      preferred_element_type=jnp.float32)    # register accumulator

        # ---- dilated 3x3 branches: ONE im2col matmul per rate (K = 9*Cin) --
        for ri, rate in enumerate(rates):
            cols = []
            for ky in range(3):
                for kx in range(3):
                    y0 = R + (ky - 1) * rate
                    x0 = R + (kx - 1) * rate
                    cols.append(xw[y0:y0 + H, x0:x0 + W, :])   # (H, W, Cin)
            patch = jnp.concatenate(cols, axis=-1)             # (H, W, 9*Cin)
            patch = patch.reshape(HW, 9 * Cin)                 # (HW, 9*Cin)
            br = jnp.maximum(
                jnp.dot(patch, w3_ref[ri],
                        preferred_element_type=jnp.float32) + s3_ref[ri], 0.0)
            acc = acc + jnp.dot(br.astype(cdt), wp_ref[ri + 1],
                                preferred_element_type=jnp.float32)

        # ---- pooling branch: global mean -> 1x1 conv + BN + ReLU -> project
        pooled = jnp.sum(xv.astype(jnp.float32), axis=0, keepdims=True) * inv_hw
        hp = jnp.maximum(
            jnp.dot(pooled.astype(cdt), wpool_ref[...],
                    preferred_element_type=jnp.float32) + spool_ref[...], 0.0)
        pbias = jnp.dot(hp.astype(cdt), wp_ref[n_rates + 1],
                        preferred_element_type=jnp.float32)   # (1, Cout)

        # ---- projection BN shift + ReLU; single lane-dense store -----------
        o_ref[0] = jnp.maximum(acc + sproj_ref[...] + pbias, 0.0).astype(o_ref.dtype)

    # VMEM budget (window + double-buffered output block + weights), with slack.
    itemsize = jnp.dtype(cdt).itemsize
    win_bytes = Hp * Wp * Cin * itemsize
    out_bytes = HW * Cout * 4
    w_bytes = (w1.size + w3.size + w_pool.size + wp.size) * itemsize + \
              (s1.size + s3.size + s_pool.size + s_proj.size) * 4
    est = 2 * (win_bytes + out_bytes + w_bytes) + (4 << 20)
    vmem_limit = int(min(max(est, 16 << 20), 48 << 20))   # stays sane on v7x's 64 MiB

    return pl.pallas_call(
        kernel,
        out_shape=jax.ShapeDtypeStruct((B, HW, Cout), jnp.float32),
        grid=(B,),
        in_specs=[
            pl.BlockSpec((1, Hp, Wp, Cin), lambda b: (b, 0, 0, 0)),      # padded image
            pl.BlockSpec((Cin, Cout), lambda b: (0, 0)),                 # w1 (BN-folded)
            pl.BlockSpec((1, Cout), lambda b: (0, 0)),                   # shift1
            pl.BlockSpec((n_rates, 9 * Cin, Cout), lambda b: (0, 0, 0)), # im2col 3x3 weights
            pl.BlockSpec((n_rates, 1, Cout), lambda b: (0, 0, 0)),       # shift3
            pl.BlockSpec((Cin, Cout), lambda b: (0, 0)),                 # pool conv weight
            pl.BlockSpec((1, Cout), lambda b: (0, 0)),                   # pool shift
            pl.BlockSpec((n_rates + 2, Cout, Cout), lambda b: (0, 0, 0)),# projection blocks
            pl.BlockSpec((1, Cout), lambda b: (0, 0)),                   # projection shift
        ],
        out_specs=pl.BlockSpec((1, HW, Cout), lambda b: (b, 0, 0)),
        compiler_params=pltpu.CompilerParams(
            dimension_semantics=("parallel",),      # batch steps independent (v7x dual-TC)
            vmem_limit_bytes=vmem_limit),
    )(x_pad, w1, s1, w3, s3, w_pool, s_pool, wp, s_proj)


# ---------------------------------------------------------------------------
# wrapper
# ---------------------------------------------------------------------------
def aspp_forward(x_nchw, params, rates, *, compute_dtype=None):
    """Eval-mode ASPP forward: (B, Cin, H, W) -> (B, Cout, H, W)."""
    B, Cin, H, W = x_nchw.shape
    rates = tuple(rates)
    R = max(rates)
    n_rates = len(rates)
    Cout = params["w1"].shape[-1]
    cdt = compute_dtype if compute_dtype is not None else _default_compute_dtype()

    # ---- fold BatchNorm scale into conv weights; keep per-channel shifts ----
    w1 = (params["w1"] * params["bn1_scale"]).astype(cdt)                # (Cin, Cout)
    s1 = params["bn1_shift"].astype(jnp.float32)                         # (1, Cout)

    w3 = jnp.stack(
        [(params["w3"][i] * params["bn3_scale"][i]).reshape(9 * Cin, Cout)
         for i in range(n_rates)], axis=0).astype(cdt)                   # (n_rates, 9*Cin, Cout)
    s3 = jnp.stack(list(params["bn3_shift"]), axis=0).astype(jnp.float32)  # (n_rates, 1, Cout)

    w_pool = (params["w_pool"] * params["bnp_scale"]).astype(cdt)        # (Cin, Cout)
    s_pool = params["bnp_shift"].astype(jnp.float32)                     # (1, Cout)

    n_br = n_rates + 2
    wp = (params["w_proj"] * params["bnproj_scale"]).reshape(
        n_br, Cout, Cout).astype(cdt)                                    # (n_br, Cout, Cout)
    s_proj = params["bnproj_shift"].astype(jnp.float32)                  # (1, Cout)

    # ---- NHWC channels-last, single max-rate zero pad (smaller-rate taps read
    #      zeros in the extra pad, matching padding=rate) ----------------------
    x_nhwc = jnp.transpose(x_nchw, (0, 2, 3, 1)).astype(cdt)             # (B, H, W, Cin)
    x_pad = jnp.pad(x_nhwc, ((0, 0), (R, R), (R, R), (0, 0)))            # (B, Hp, Wp, Cin)

    # NOTE: one whole padded image per grid step (th = H per the review). For very
    # large H*Cin one would tile H and hoist the pooled mean out of the kernel.
    out = _aspp_fused(x_pad, w1, s1, w3, s3, w_pool, s_pool, wp, s_proj,
                      H=H, W=W, R=R, rates=rates, compute_dtype=cdt)

    # TODO(synk): nn.Dropout(0.5) is identity in eval mode; training-mode (RNG)
    # dropout is not implemented.
    return out.reshape(B, H, W, Cout).transpose(0, 3, 1, 2).astype(jnp.float32)


# ---------------------------------------------------------------------------
# plain-XLA reference (for the in-script correctness check)
# ---------------------------------------------------------------------------
def aspp_reference(x_nchw, params, rates):
    hp = lax.Precision.HIGHEST
    x = jnp.transpose(x_nchw, (0, 2, 3, 1))                              # NHWC
    B, H, W, Cin = x.shape
    outs = []

    y = jnp.einsum("bhwc,cd->bhwd", x, params["w1"], precision=hp)
    outs.append(jnp.maximum(y * params["bn1_scale"] + params["bn1_shift"], 0.0))

    for i, r in enumerate(rates):
        y = lax.conv_general_dilated(
            x, params["w3"][i], window_strides=(1, 1),
            padding=((r, r), (r, r)), rhs_dilation=(r, r),
            dimension_numbers=("NHWC", "HWIO", "NHWC"), precision=hp)
        outs.append(jnp.maximum(y * params["bn3_scale"][i] + params["bn3_shift"][i], 0.0))

    p = jnp.mean(x, axis=(1, 2), keepdims=True)                          # (B,1,1,Cin)
    y = jnp.einsum("bhwc,cd->bhwd", p, params["w_pool"], precision=hp)
    y = jnp.maximum(y * params["bnp_scale"] + params["bnp_shift"], 0.0)
    outs.append(jnp.broadcast_to(y, (B, H, W, y.shape[-1])))

    cat = jnp.concatenate(outs, axis=-1)
    y = jnp.einsum("bhwc,cd->bhwd", cat, params["w_proj"], precision=hp)
    y = jnp.maximum(y * params["bnproj_scale"] + params["bnproj_shift"], 0.0)
    return jnp.transpose(y, (0, 3, 1, 2))


# ---------------------------------------------------------------------------
# deterministic synthetic parameters
# ---------------------------------------------------------------------------
def init_params(key, Cin, Cout, rates):
    n_branches = len(rates) + 2
    keys = iter(jax.random.split(key, 16))

    def conv_w(k, fan_in, shape):
        return jax.random.normal(k, shape, jnp.float32) * jnp.sqrt(2.0 / fan_in)

    def bn(k, C):
        k1, k2, k3, k4 = jax.random.split(k, 4)
        gamma = jax.random.uniform(k1, (1, C), jnp.float32, 0.5, 1.5)
        beta = jax.random.normal(k2, (1, C), jnp.float32) * 0.1
        mean = jax.random.normal(k3, (1, C), jnp.float32) * 0.1
        var = jax.random.uniform(k4, (1, C), jnp.float32, 0.5, 1.5)
        eps = 1e-5
        scale = gamma / jnp.sqrt(var + eps)
        shift = beta - mean * scale
        return scale, shift

    p = {}
    p["w1"] = conv_w(next(keys), Cin, (Cin, Cout))
    p["bn1_scale"], p["bn1_shift"] = bn(next(keys), Cout)
    p["w3"] = [conv_w(next(keys), 9 * Cin, (3, 3, Cin, Cout)) for _ in rates]
    bn3 = [bn(next(keys), Cout) for _ in rates]
    p["bn3_scale"] = [s for s, _ in bn3]
    p["bn3_shift"] = [t for _, t in bn3]
    p["w_pool"] = conv_w(next(keys), Cin, (Cin, Cout))
    p["bnp_scale"], p["bnp_shift"] = bn(next(keys), Cout)
    p["w_proj"] = conv_w(next(keys), n_branches * Cout, (n_branches * Cout, Cout))
    p["bnproj_scale"], p["bnproj_shift"] = bn(next(keys), Cout)
    return p


# ---------------------------------------------------------------------------
if __name__ == "__main__":
    key = jax.random.PRNGKey(0)
    k_params, k_x = jax.random.split(key)

    B, Cin, H, W = 2, 4, 16, 16       # small NCHW input, PyTorch convention
    Cout = 128                        # ASPP out_channels
    rates = (6, 12, 18)               # atrous_rates

    params = init_params(k_params, Cin, Cout, rates)
    x = jax.random.normal(k_x, (B, Cin, H, W), jnp.float32)

    # main run: auto compute dtype (bf16 on v6e/v7x, f32 on v5e/others)
    y = aspp_forward(x, params, rates)
    y = jax.block_until_ready(y)
    assert y.shape == (B, Cout, H, W), y.shape
    assert bool(jnp.all(jnp.isfinite(y)))
    assert bool(jnp.all(y >= 0.0))    # ends with ReLU

    # correctness check of the f32 kernel path against a plain-XLA reference
    y32 = jax.block_until_ready(aspp_forward(x, params, rates,
                                             compute_dtype=jnp.float32))
    y_ref = jax.block_until_ready(aspp_reference(x, params, rates))
    rel_err = float(jnp.max(jnp.abs(y32 - y_ref)) /
                    (jnp.max(jnp.abs(y_ref)) + 1e-6))
    assert rel_err < 2e-2, f"mismatch vs reference: rel_err={rel_err}"

    print("KERNEL_OK")
</pallas_src>

<mosaic_0001>
module attributes {stable_mosaic.version = 11 : i64} {
  func.func @kernel(%arg0: i32, %arg1: memref<1x52x52x4xf32, #tpu.memory_space<vmem>>, %arg2: memref<4x128xf32, #tpu.memory_space<vmem>>, %arg3: memref<1x128xf32, #tpu.memory_space<vmem>>, %arg4: memref<3x36x128xf32, #tpu.memory_space<vmem>>, %arg5: memref<3x1x128xf32, #tpu.memory_space<vmem>>, %arg6: memref<4x128xf32, #tpu.memory_space<vmem>>, %arg7: memref<1x128xf32, #tpu.memory_space<vmem>>, %arg8: memref<5x128x128xf32, #tpu.memory_space<vmem>>, %arg9: memref<1x128xf32, #tpu.memory_space<vmem>>, %arg10: memref<1x256x128xf32, #tpu.memory_space<vmem>>) attributes {dimension_semantics = [#tpu.dimension_semantics<parallel>], iteration_bounds = array<i64: 2>, scalar_prefetch = 0 : i64, scratch_operands = 0 : i64, tpu.core_type = #tpu.core_type<tc>, window_params = [{transform_indices = @transform_0, window_bounds = array<i64: 1, 52, 52, 4>}, {pipeline_mode = #tpu.pipeline_mode<synchronous>, transform_indices = @transform_1, window_bounds = array<i64: 4, 128>}, {pipeline_mode = #tpu.pipeline_mode<synchronous>, transform_indices = @transform_2, window_bounds = array<i64: 1, 128>}, {pipeline_mode = #tpu.pipeline_mode<synchronous>, transform_indices = @transform_3, window_bounds = array<i64: 3, 36, 128>}, {pipeline_mode = #tpu.pipeline_mode<synchronous>, transform_indices = @transform_4, window_bounds = array<i64: 3, 1, 128>}, {pipeline_mode = #tpu.pipeline_mode<synchronous>, transform_indices = @transform_5, window_bounds = array<i64: 4, 128>}, {pipeline_mode = #tpu.pipeline_mode<synchronous>, transform_indices = @transform_6, window_bounds = array<i64: 1, 128>}, {pipeline_mode = #tpu.pipeline_mode<synchronous>, transform_indices = @transform_7, window_bounds = array<i64: 5, 128, 128>}, {pipeline_mode = #tpu.pipeline_mode<synchronous>, transform_indices = @transform_8, window_bounds = array<i64: 1, 128>}, {transform_indices = @transform_9, window_bounds = array<i64: 1, 256, 128>}]} {
    %c0 = arith.constant 0 : index
    %c0_0 = arith.constant 0 : index
    %c0_1 = arith.constant 0 : index
    %c0_2 = arith.constant 0 : index
    %0 = vector.load %arg1[%c0, %c0_0, %c0_1, %c0_2] : memref<1x52x52x4xf32, #tpu.memory_space<vmem>>, vector<1x52x52x4xf32>
    %1 = vector.shape_cast %0 : vector<1x52x52x4xf32> to vector<52x52x4xf32>
    %2 = vector.extract_strided_slice %1 {offsets = [18, 18, 0], sizes = [16, 16, 4], strides = [1, 1, 1]} : vector<52x52x4xf32> to vector<16x16x4xf32>
    %3 = vector.shape_cast %2 : vector<16x16x4xf32> to vector<256x4xf32>
    %c0_3 = arith.constant 0 : index
    %c0_4 = arith.constant 0 : index
    %4 = vector.load %arg2[%c0_3, %c0_4] : memref<4x128xf32, #tpu.memory_space<vmem>>, vector<4x128xf32>
    %cst = arith.constant dense<0.000000e+00> : vector<256x128xf32>
    %5 = tpu.matmul %3, %4, %cst {dimension_numbers = #tpu.dot_dimension_numbers<[1], [0], [0], [1], [0, 0, 1, 1], [], []>} : vector<256x4xf32>, vector<4x128xf32>, vector<256x128xf32> -> vector<256x128xf32>
    %c0_5 = arith.constant 0 : index
    %c0_6 = arith.constant 0 : index
    %6 = vector.load %arg3[%c0_5, %c0_6] : memref<1x128xf32, #tpu.memory_space<vmem>>, vector<1x128xf32>
    %7 = vector.broadcast %6 : vector<1x128xf32> to vector<256x128xf32>
    %8 = arith.addf %5, %7 : vector<256x128xf32>
    %cst_7 = arith.constant 0.000000e+00 : f32
    %9 = vector.broadcast %cst_7 : f32 to vector<256x128xf32>
    %10 = arith.maximumf %8, %9 : vector<256x128xf32>
    %c0_8 = arith.constant 0 : index
    %c0_9 = arith.constant 0 : index
    %c0_10 = arith.constant 0 : index
    %11 = vector.load %arg8[%c0_8, %c0_9, %c0_10] : memref<5x128x128xf32, #tpu.memory_space<vmem>>, vector<1x128x128xf32>
    %12 = vector.shape_cast %11 : vector<1x128x128xf32> to vector<128x128xf32>
    %cst_11 = arith.constant dense<0.000000e+00> : vector<256x128xf32>
    %13 = tpu.matmul %10, %12, %cst_11 {dimension_numbers = #tpu.dot_dimension_numbers<[1], [0], [0], [1], [0, 0, 1, 1], [], []>} : vector<256x128xf32>, vector<128x128xf32>, vector<256x128xf32> -> vector<256x128xf32>
    %14 = vector.extract_strided_slice %1 {offsets = [12, 12, 0], sizes = [16, 16, 4], strides = [1, 1, 1]} : vector<52x52x4xf32> to vector<16x16x4xf32>
    %15 = vector.extract_strided_slice %1 {offsets = [12, 18, 0], sizes = [16, 16, 4], strides = [1, 1, 1]} : vector<52x52x4xf32> to vector<16x16x4xf32>
    %16 = vector.extract_strided_slice %1 {offsets = [12, 24, 0], sizes = [16, 16, 4], strides = [1, 1, 1]} : vector<52x52x4xf32> to vector<16x16x4xf32>
    %17 = vector.extract_strided_slice %1 {offsets = [18, 12, 0], sizes = [16, 16, 4], strides = [1, 1, 1]} : vector<52x52x4xf32> to vector<16x16x4xf32>
    %18 = vector.extract_strided_slice %1 {offsets = [18, 18, 0], sizes = [16, 16, 4], strides = [1, 1, 1]} : vector<52x52x4xf32> to vector<16x16x4xf32>
    %19 = vector.extract_strided_slice %1 {offsets = [18, 24, 0], sizes = [16, 16, 4], strides = [1, 1, 1]} : vector<52x52x4xf32> to vector<16x16x4xf32>
    %20 = vector.extract_strided_slice %1 {offsets = [24, 12, 0], sizes = [16, 16, 4], strides = [1, 1, 1]} : vector<52x52x4xf32> to vector<16x16x4xf32>
    %21 = vector.extract_strided_slice %1 {offsets = [24, 18, 0], sizes = [16, 16, 4], strides = [1, 1, 1]} : vector<52x52x4xf32> to vector<16x16x4xf32>
    %22 = vector.extract_strided_slice %1 {offsets = [24, 24, 0], sizes = [16, 16, 4], strides = [1, 1, 1]} : vector<52x52x4xf32> to vector<16x16x4xf32>
    %23 = tpu.concatenate %14, %15, %16, %17, %18, %19, %20, %21, %22 in 2 : vector<16x16x4xf32>, vector<16x16x4xf32>, vector<16x16x4xf32>, vector<16x16x4xf32>, vector<16x16x4xf32>, vector<16x16x4xf32>, vector<16x16x4xf32>, vector<16x16x4xf32>, vector<16x16x4xf32> -> vector<16x16x36xf32>
    %24 = vector.shape_cast %23 : vector<16x16x36xf32> to vector<256x36xf32>
    %c0_12 = arith.constant 0 : index
    %c0_13 = arith.constant 0 : index
    %c0_14 = arith.constant 0 : index
    %25 = vector.load %arg4[%c0_12, %c0_13, %c0_14] : memref<3x36x128xf32, #tpu.memory_space<vmem>>, vector<1x36x128xf32>
    %26 = vector.shape_cast %25 : vector<1x36x128xf32> to vector<36x128xf32>
    %cst_15 = arith.constant dense<0.000000e+00> : vector<256x128xf32>
    %27 = tpu.matmul %24, %26, %cst_15 {dimension_numbers = #tpu.dot_dimension_numbers<[1], [0], [0], [1], [0, 0, 1, 1], [], []>} : vector<256x36xf32>, vector<36x128xf32>, vector<256x128xf32> -> vector<256x128xf32>
    %c0_16 = arith.constant 0 : index
    %c0_17 = arith.constant 0 : index
    %c0_18 = arith.constant 0 : index
    %28 = vector.load %arg5[%c0_16, %c0_17, %c0_18] : memref<3x1x128xf32, #tpu.memory_space<vmem>>, vector<1x1x128xf32>
    %29 = vector.shape_cast %28 : vector<1x1x128xf32> to vector<1x128xf32>
    %30 = vector.broadcast %29 : vector<1x128xf32> to vector<256x128xf32>
    %31 = arith.addf %27, %30 : vector<256x128xf32>
    %cst_19 = arith.constant 0.000000e+00 : f32
    %32 = vector.broadcast %cst_19 : f32 to vector<256x128xf32>
    %33 = arith.maximumf %31, %32 : vector<256x128xf32>
    %c1 = arith.constant 1 : index
    %c0_20 = arith.constant 0 : index
    %c0_21 = arith.constant 0 : index
    %34 = vector.load %arg8[%c1, %c0_20, %c0_21] : memref<5x128x128xf32, #tpu.memory_space<vmem>>, vector<1x128x128xf32>
    %35 = vector.shape_cast %34 : vector<1x128x128xf32> to vector<128x128xf32>
    %cst_22 = arith.constant dense<0.000000e+00> : vector<256x128xf32>
    %36 = tpu.matmul %33, %35, %cst_22 {dimension_numbers = #tpu.dot_dimension_numbers<[1], [0], [0], [1], [0, 0, 1, 1], [], []>} : vector<256x128xf32>, vector<128x128xf32>, vector<256x128xf32> -> vector<256x128xf32>
    %37 = arith.addf %13, %36 : vector<256x128xf32>
    %38 = vector.extract_strided_slice %1 {offsets = [6, 6, 0], sizes = [16, 16, 4], strides = [1, 1, 1]} : vector<52x52x4xf32> to vector<16x16x4xf32>
    %39 = vector.extract_strided_slice %1 {offsets = [6, 18, 0], sizes = [16, 16, 4], strides = [1, 1, 1]} : vector<52x52x4xf32> to vector<16x16x4xf32>
    %40 = vector.extract_strided_slice %1 {offsets = [6, 30, 0], sizes = [16, 16, 4], strides = [1, 1, 1]} : vector<52x52x4xf32> to vector<16x16x4xf32>
    %41 = vector.extract_strided_slice %1 {offsets = [18, 6, 0], sizes = [16, 16, 4], strides = [1, 1, 1]} : vector<52x52x4xf32> to vector<16x16x4xf32>
    %42 = vector.extract_strided_slice %1 {offsets = [18, 18, 0], sizes = [16, 16, 4], strides = [1, 1, 1]} : vector<52x52x4xf32> to vector<16x16x4xf32>
    %43 = vector.extract_strided_slice %1 {offsets = [18, 30, 0], sizes = [16, 16, 4], strides = [1, 1, 1]} : vector<52x52x4xf32> to vector<16x16x4xf32>
    %44 = vector.extract_strided_slice %1 {offsets = [30, 6, 0], sizes = [16, 16, 4], strides = [1, 1, 1]} : vector<52x52x4xf32> to vector<16x16x4xf32>
    %45 = vector.extract_strided_slice %1 {offsets = [30, 18, 0], sizes = [16, 16, 4], strides = [1, 1, 1]} : vector<52x52x4xf32> to vector<16x16x4xf32>
    %46 = vector.extract_strided_slice %1 {offsets = [30, 30, 0], sizes = [16, 16, 4], strides = [1, 1, 1]} : vector<52x52x4xf32> to vector<16x16x4xf32>
    %47 = tpu.concatenate %38, %39, %40, %41, %42, %43, %44, %45, %46 in 2 : vector<16x16x4xf32>, vector<16x16x4xf32>, vector<16x16x4xf32>, vector<16x16x4xf32>, vector<16x16x4xf32>, vector<16x16x4xf32>, vector<16x16x4xf32>, vector<16x16x4xf32>, vector<16x16x4xf32> -> vector<16x16x36xf32>
    %48 = vector.shape_cast %47 : vector<16x16x36xf32> to vector<256x36xf32>
    %c1_23 = arith.constant 1 : index
    %c0_24 = arith.constant 0 : index
    %c0_25 = arith.constant 0 : index
    %49 = vector.load %arg4[%c1_23, %c0_24, %c0_25] : memref<3x36x128xf32, #tpu.memory_space<vmem>>, vector<1x36x128xf32>
    %50 = vector.shape_cast %49 : vector<1x36x128xf32> to vector<36x128xf32>
    %cst_26 = arith.constant dense<0.000000e+00> : vector<256x128xf32>
    %51 = tpu.matmul %48, %50, %cst_26 {dimension_numbers = #tpu.dot_dimension_numbers<[1], [0], [0], [1], [0, 0, 1, 1], [], []>} : vector<256x36xf32>, vector<36x128xf32>, vector<256x128xf32> -> vector<256x128xf32>
    %c1_27 = arith.constant 1 : index
    %c0_28 = arith.constant 0 : index
    %c0_29 = arith.constant 0 : index
    %52 = vector.load %arg5[%c1_27, %c0_28, %c0_29] : memref<3x1x128xf32, #tpu.memory_space<vmem>>, vector<1x1x128xf32>
    %53 = vector.shape_cast %52 : vector<1x1x128xf32> to vector<1x128xf32>
    %54 = vector.broadcast %53 : vector<1x128xf32> to vector<256x128xf32>
    %55 = arith.addf %51, %54 : vector<256x128xf32>
    %cst_30 = arith.constant 0.000000e+00 : f32
    %56 = vector.broadcast %cst_30 : f32 to vector<256x128xf32>
    %57 = arith.maximumf %55, %56 : vector<256x128xf32>
    %c2 = arith.constant 2 : index
    %c0_31 = arith.constant 0 : index
    %c0_32 = arith.constant 0 : index
    %58 = vector.load %arg8[%c2, %c0_31, %c0_32] : memref<5x128x128xf32, #tpu.memory_space<vmem>>, vector<1x128x128xf32>
    %59 = vector.shape_cast %58 : vector<1x128x128xf32> to vector<128x128xf32>
    %cst_33 = arith.constant dense<0.000000e+00> : vector<256x128xf32>
    %60 = tpu.matmul %57, %59, %cst_33 {dimension_numbers = #tpu.dot_dimension_numbers<[1], [0], [0], [1], [0, 0, 1, 1], [], []>} : vector<256x128xf32>, vector<128x128xf32>, vector<256x128xf32> -> vector<256x128xf32>
    %61 = arith.addf %37, %60 : vector<256x128xf32>
    %62 = vector.extract_strided_slice %1 {offsets = [0, 0, 0], sizes = [16, 16, 4], strides = [1, 1, 1]} : vector<52x52x4xf32> to vector<16x16x4xf32>
    %63 = vector.extract_strided_slice %1 {offsets = [0, 18, 0], sizes = [16, 16, 4], strides = [1, 1, 1]} : vector<52x52x4xf32> to vector<16x16x4xf32>
    %64 = vector.extract_strided_slice %1 {offsets = [0, 36, 0], sizes = [16, 16, 4], strides = [1, 1, 1]} : vector<52x52x4xf32> to vector<16x16x4xf32>
    %65 = vector.extract_strided_slice %1 {offsets = [18, 0, 0], sizes = [16, 16, 4], strides = [1, 1, 1]} : vector<52x52x4xf32> to vector<16x16x4xf32>
    %66 = vector.extract_strided_slice %1 {offsets = [18, 18, 0], sizes = [16, 16, 4], strides = [1, 1, 1]} : vector<52x52x4xf32> to vector<16x16x4xf32>
    %67 = vector.extract_strided_slice %1 {offsets = [18, 36, 0], sizes = [16, 16, 4], strides = [1, 1, 1]} : vector<52x52x4xf32> to vector<16x16x4xf32>
    %68 = vector.extract_strided_slice %1 {offsets = [36, 0, 0], sizes = [16, 16, 4], strides = [1, 1, 1]} : vector<52x52x4xf32> to vector<16x16x4xf32>
    %69 = vector.extract_strided_slice %1 {offsets = [36, 18, 0], sizes = [16, 16, 4], strides = [1, 1, 1]} : vector<52x52x4xf32> to vector<16x16x4xf32>
    %70 = vector.extract_strided_slice %1 {offsets = [36, 36, 0], sizes = [16, 16, 4], strides = [1, 1, 1]} : vector<52x52x4xf32> to vector<16x16x4xf32>
    %71 = tpu.concatenate %62, %63, %64, %65, %66, %67, %68, %69, %70 in 2 : vector<16x16x4xf32>, vector<16x16x4xf32>, vector<16x16x4xf32>, vector<16x16x4xf32>, vector<16x16x4xf32>, vector<16x16x4xf32>, vector<16x16x4xf32>, vector<16x16x4xf32>, vector<16x16x4xf32> -> vector<16x16x36xf32>
    %72 = vector.shape_cast %71 : vector<16x16x36xf32> to vector<256x36xf32>
    %c2_34 = arith.constant 2 : index
    %c0_35 = arith.constant 0 : index
    %c0_36 = arith.constant 0 : index
    %73 = vector.load %arg4[%c2_34, %c0_35, %c0_36] : memref<3x36x128xf32, #tpu.memory_space<vmem>>, vector<1x36x128xf32>
    %74 = vector.shape_cast %73 : vector<1x36x128xf32> to vector<36x128xf32>
    %cst_37 = arith.constant dense<0.000000e+00> : vector<256x128xf32>
    %75 = tpu.matmul %72, %74, %cst_37 {dimension_numbers = #tpu.dot_dimension_numbers<[1], [0], [0], [1], [0, 0, 1, 1], [], []>} : vector<256x36xf32>, vector<36x128xf32>, vector<256x128xf32> -> vector<256x128xf32>
    %c2_38 = arith.constant 2 : index
    %c0_39 = arith.constant 0 : index
    %c0_40 = arith.constant 0 : index
    %76 = vector.load %arg5[%c2_38, %c0_39, %c0_40] : memref<3x1x128xf32, #tpu.memory_space<vmem>>, vector<1x1x128xf32>
    %77 = vector.shape_cast %76 : vector<1x1x128xf32> to vector<1x128xf32>
    %78 = vector.broadcast %77 : vector<1x128xf32> to vector<256x128xf32>
    %79 = arith.addf %75, %78 : vector<256x128xf32>
    %cst_41 = arith.constant 0.000000e+00 : f32
    %80 = vector.broadcast %cst_41 : f32 to vector<256x128xf32>
    %81 = arith.maximumf %79, %80 : vector<256x128xf32>
    %c3 = arith.constant 3 : index
    %c0_42 = arith.constant 0 : index
    %c0_43 = arith.constant 0 : index
    %82 = vector.load %arg8[%c3, %c0_42, %c0_43] : memref<5x128x128xf32, #tpu.memory_space<vmem>>, vector<1x128x128xf32>
    %83 = vector.shape_cast %82 : vector<1x128x128xf32> to vector<128x128xf32>
    %cst_44 = arith.constant dense<0.000000e+00> : vector<256x128xf32>
    %84 = tpu.matmul %81, %83, %cst_44 {dimension_numbers = #tpu.dot_dimension_numbers<[1], [0], [0], [1], [0, 0, 1, 1], [], []>} : vector<256x128xf32>, vector<128x128xf32>, vector<256x128xf32> -> vector<256x128xf32>
    %85 = arith.addf %61, %84 : vector<256x128xf32>
    %cst_45 = arith.constant dense<0.000000e+00> : vector<4xf32>
    %86 = vector.multi_reduction <add>, %3, %cst_45 [0] : vector<256x4xf32> to vector<4xf32>
    %87 = vector.shape_cast %86 : vector<4xf32> to vector<1x4xf32>
    %cst_46 = arith.constant 3.906250e-03 : f32
    %88 = vector.broadcast %cst_46 : f32 to vector<1x4xf32>
    %89 = arith.mulf %87, %88 : vector<1x4xf32>
    %c0_47 = arith.constant 0 : index
    %c0_48 = arith.constant 0 : index
    %90 = vector.load %arg6[%c0_47, %c0_48] : memref<4x128xf32, #tpu.memory_space<vmem>>, vector<4x128xf32>
    %cst_49 = arith.constant dense<0.000000e+00> : vector<1x128xf32>
    %91 = tpu.matmul %89, %90, %cst_49 {dimension_numbers = #tpu.dot_dimension_numbers<[1], [0], [0], [1], [0, 0, 1, 1], [], []>} : vector<1x4xf32>, vector<4x128xf32>, vector<1x128xf32> -> vector<1x128xf32>
    %c0_50 = arith.constant 0 : index
    %c0_51 = arith.constant 0 : index
    %92 = vector.load %arg7[%c0_50, %c0_51] : memref<1x128xf32, #tpu.memory_space<vmem>>, vector<1x128xf32>
    %93 = arith.addf %91, %92 : vector<1x128xf32>
    %cst_52 = arith.constant 0.000000e+00 : f32
    %94 = vector.broadcast %cst_52 : f32 to vector<1x128xf32>
    %95 = arith.maximumf %93, %94 : vector<1x128xf32>
    %c4 = arith.constant 4 : index
    %c0_53 = arith.constant 0 : index
    %c0_54 = arith.constant 0 : index
    %96 = vector.load %arg8[%c4, %c0_53, %c0_54] : memref<5x128x128xf32, #tpu.memory_space<vmem>>, vector<1x128x128xf32>
    %97 = vector.shape_cast %96 : vector<1x128x128xf32> to vector<128x128xf32>
    %cst_55 = arith.constant dense<0.000000e+00> : vector<1x128xf32>
    %98 = tpu.matmul %95, %97, %cst_55 {dimension_numbers = #tpu.dot_dimension_numbers<[1], [0], [0], [1], [0, 0, 1, 1], [], []>} : vector<1x128xf32>, vector<128x128xf32>, vector<1x128xf32> -> vector<1x128xf32>
    %c0_56 = arith.constant 0 : index
    %c0_57 = arith.constant 0 : index
    %99 = vector.load %arg9[%c0_56, %c0_57] : memref<1x128xf32, #tpu.memory_space<vmem>>, vector<1x128xf32>
    %100 = vector.broadcast %99 : vector<1x128xf32> to vector<256x128xf32>
    %101 = arith.addf %85, %100 : vector<256x128xf32>
    %102 = vector.broadcast %98 : vector<1x128xf32> to vector<256x128xf32>
    %103 = arith.addf %101, %102 : vector<256x128xf32>
    %cst_58 = arith.constant 0.000000e+00 : f32
    %104 = vector.broadcast %cst_58 : f32 to vector<256x128xf32>
    %105 = arith.maximumf %103, %104 : vector<256x128xf32>
    %c0_59 = arith.constant 0 : index
    %c0_60 = arith.constant 0 : index
    %c0_61 = arith.constant 0 : index
    %106 = vector.load %arg10[%c0_59, %c0_60, %c0_61] : memref<1x256x128xf32, #tpu.memory_space<vmem>>, vector<1x256x128xf32>
    %107 = vector.shape_cast %106 : vector<1x256x128xf32> to vector<256x128xf32>
    %108 = vector.shape_cast %105 : vector<256x128xf32> to vector<1x256x128xf32>
    tpu.vector_store %arg10[%c0_59, %c0_60, %c0_61], %108 {strides = array<i32>} : memref<1x256x128xf32, #tpu.memory_space<vmem>>, vector<1x256x128xf32>,
    return
  }
  func.func @transform_0(%arg0: i32) -> (i32, i32, i32, i32) {
    %c0_i32 = arith.constant 0 : i32
    %c0_i32_0 = arith.constant 0 : i32
    %c0_i32_1 = arith.constant 0 : i32
    %c0_i32_2 = arith.constant 0 : i32
    return %arg0, %c0_i32, %c0_i32_0, %c0_i32_1 : i32, i32, i32, i32
  }
  func.func @transform_1(%arg0: i32) -> (i32, i32) {
    %c0_i32 = arith.constant 0 : i32
    %c0_i32_0 = arith.constant 0 : i32
    %c0_i32_1 = arith.constant 0 : i32
    return %c0_i32, %c0_i32_0 : i32, i32
  }
  func.func @transform_2(%arg0: i32) -> (i32, i32) {
    %c0_i32 = arith.constant 0 : i32
    %c0_i32_0 = arith.constant 0 : i32
    %c0_i32_1 = arith.constant 0 : i32
    return %c0_i32, %c0_i32_0 : i32, i32
  }
  func.func @transform_3(%arg0: i32) -> (i32, i32, i32) {
    %c0_i32 = arith.constant 0 : i32
    %c0_i32_0 = arith.constant 0 : i32
    %c0_i32_1 = arith.constant 0 : i32
    %c0_i32_2 = arith.constant 0 : i32
    return %c0_i32, %c0_i32_0, %c0_i32_1 : i32, i32, i32
  }
  func.func @transform_4(%arg0: i32) -> (i32, i32, i32) {
    %c0_i32 = arith.constant 0 : i32
    %c0_i32_0 = arith.constant 0 : i32
    %c0_i32_1 = arith.constant 0 : i32
    %c0_i32_2 = arith.constant 0 : i32
    return %c0_i32, %c0_i32_0, %c0_i32_1 : i32, i32, i32
  }
  func.func @transform_5(%arg0: i32) -> (i32, i32) {
    %c0_i32 = arith.constant 0 : i32
    %c0_i32_0 = arith.constant 0 : i32
    %c0_i32_1 = arith.constant 0 : i32
    return %c0_i32, %c0_i32_0 : i32, i32
  }
  func.func @transform_6(%arg0: i32) -> (i32, i32) {
    %c0_i32 = arith.constant 0 : i32
    %c0_i32_0 = arith.constant 0 : i32
    %c0_i32_1 = arith.constant 0 : i32
    return %c0_i32, %c0_i32_0 : i32, i32
  }
  func.func @transform_7(%arg0: i32) -> (i32, i32, i32) {
    %c0_i32 = arith.constant 0 : i32
    %c0_i32_0 = arith.constant 0 : i32
    %c0_i32_1 = arith.constant 0 : i32
    %c0_i32_2 = arith.constant 0 : i32
    return %c0_i32, %c0_i32_0, %c0_i32_1 : i32, i32, i32
  }
  func.func @transform_8(%arg0: i32) -> (i32, i32) {
    %c0_i32 = arith.constant 0 : i32
    %c0_i32_0 = arith.constant 0 : i32
    %c0_i32_1 = arith.constant 0 : i32
    return %c0_i32, %c0_i32_0 : i32, i32
  }
  func.func @transform_9(%arg0: i32) -> (i32, i32, i32) {
    %c0_i32 = arith.constant 0 : i32
    %c0_i32_0 = arith.constant 0 : i32
    %c0_i32_1 = arith.constant 0 : i32
    return %arg0, %c0_i32, %c0_i32_0 : i32, i32, i32
  }
}

</mosaic_0001>

<llo_original>
// kernel: tpu_custom_call.1
$region0: #{tpu_custom_call.1}
  #allocation0 [shape = 'u32[]', space=smem, size = 0x4, offset = 0x4, fixed_abs, tag = 'smem constant byte address 0x4 - core index']
  #allocation1 [shape = 'u32[144,128]{1,0:T(1,128)}', space=vmem, size = 0x12000, scoped, tag = 'internal scratch']
  %s0 = inlined_call_operand.vmem [shape: f32[2,52,52,4], index: 0, kind: input, shape index: {}]
  %s1 = inlined_call_operand.vmem [shape: f32[4,128], index: 1, kind: input, shape index: {}]
  %s2 = inlined_call_operand.vmem [shape: f32[1,128], index: 2, kind: input, shape index: {}]
  %s3 = inlined_call_operand.vmem [shape: f32[3,36,128], index: 3, kind: input, shape index: {}]
  %s4 = inlined_call_operand.vmem [shape: f32[3,1,128], index: 4, kind: input, shape index: {}]
  %s5 = inlined_call_operand.vmem [shape: f32[4,128], index: 5, kind: input, shape index: {}]
  %s6 = inlined_call_operand.vmem [shape: f32[1,128], index: 6, kind: input, shape index: {}]
  %s7 = inlined_call_operand.vmem [shape: f32[5,128,128], index: 7, kind: input, shape index: {}]
  %s8 = inlined_call_operand.vmem [shape: f32[1,128], index: 8, kind: input, shape index: {}]
  %s9 = inlined_call_operand.hbm [shape: f32[2,256,128], index: 9, kind: output, shape index: {}]
  %s10 = sld [smem:[#allocation0]]
  $region69: #{tpu_custom_call.1} parent=0
    _
  %s12 = ssub.s32 1, %s10
  %s13 = scalar_select 0, %s12, %s10
  $region1: #{tpu_custom_call.1} parent=0
    #allocation2 [shape = 'u8[262144]{0}', space=vmem, size = 0x40000, scoped, tag = 'output window, operand 0']
    #allocation3 [shape = 's32[2]{0}', space=sflag, size = 0x8, scoped, tag = 'scoped memory for tpu_custom_call.1']
    %14 = vsyncpa [#allocation3], 0
    %s15 = scalar_lea.sflag [#allocation3], 1
    %16 = vsyncpa %s15, 0
    loop: start=0, step=1, limit=4
    $region2: #{tpu_custom_call.1} parent=1 // loop_pre_header
      _
    $region3: #{tpu_custom_call.1} parent=1 // loop_header
      %s18 = sphi 0, %s22
      %p19 = scmp.ge.s32.totalorder %s18, 4
      %s28 = sphi 0, %s30
      %s31 = sphi 0, %s28
      %s32 = sphi 0, %s31
      %s48 = sphi 0, %s32
      %s52 = sphi 0, %s52
      %s54 = sphi 0, %s52
      %s55 = sphi 0, %s54
      %s69 = sphi 0, %s55
      %s73 = sphi 0, %s73
      %s75 = sphi 0, %s73
      %s76 = sphi 0, %s75
      %s90 = sphi 0, %s76
      %s94 = sphi 0, %s94
      %s96 = sphi 0, %s94
      %s97 = sphi 0, %s96
      %s111 = sphi 0, %s97
      %s115 = sphi 0, %s115
      %s117 = sphi 0, %s115
      %s118 = sphi 0, %s117
      %s132 = sphi 0, %s118
      %s136 = sphi 0, %s136
      %s138 = sphi 0, %s136
      %s139 = sphi 0, %s138
      %s153 = sphi 0, %s139
      %s157 = sphi 0, %s157
      %s159 = sphi 0, %s157
      %s160 = sphi 0, %s159
      %s174 = sphi 0, %s160
      %s178 = sphi 0, %s178
      %s180 = sphi 0, %s178
      %s181 = sphi 0, %s180
      %s195 = sphi 0, %s181
      %s199 = sphi 0, %s199
      %s201 = sphi 0, %s199
      %s202 = sphi 0, %s201
      %s216 = sphi 0, %s202
      %s222 = sphi 0, %s224
      %s225 = sphi 0, %s222
      %s226 = sphi 0, %s225
      %s242 = sphi 0, %s226
    $region4: #{tpu_custom_call.1} parent=1 // loop_header_branch
      %21 = sbr.rel (%p19) target = $region8
    $region5: #{tpu_custom_call.1} parent=1 // loop_body
      %s23 = ssub.s32 %s18, 1
      %s24 = ssub.s32 %s18, 2
      %s25 = sadd.s32 %s18, 1
      %s26 = ssub.s32 %s18, %s25
      %p27 = scmp.eq.s32.totalorder %s26, 0
      %s29 = sadd.s32 %s28, 1
      %s30 = scalar_select %p27, %s28, %s29
      %p33 = pneg %p27
      %p34 = scmp.eq.s32.totalorder %s18, 1
      %p35 = por %p33, %p34
      %p36 = scmp.ne.s32.totalorder %s28, %s31
      %p37 = scmp.eq.s32.totalorder %s18, 0
      %p38 = por %p36, %p37
      %p39 = scmp.ne.s32.totalorder %s28, %s31
      %p40 = scmp.eq.s32.totalorder %s23, 1
      %p41 = por %p39, %p40
      %p42 = scmp.ne.s32.totalorder %s31, %s32
      %p43 = scmp.eq.s32.totalorder %s23, 0
      %p44 = por %p42, %p43
      %p45 = scmp.ne.s32.totalorder %s31, %s32
      %p46 = scmp.eq.s32.totalorder %s24, 1
      %p47 = por %p45, %p46
      %p49 = scmp.ne.s32.totalorder %s32, %s48
      %p50 = scmp.eq.s32.totalorder %s24, 0
      %p51 = por %p49, %p50
      %s53 = sadd.s32 %s52, 1
      %p56 = scmp.eq.s32.totalorder %s18, 1
      %p57 = scmp.ne.s32.totalorder %s52, %s54
      %p58 = scmp.eq.s32.totalorder %s18, 0
      %p59 = por %p57, %p58
      %p60 = scmp.ne.s32.totalorder %s52, %s54
      %p61 = scmp.eq.s32.totalorder %s23, 1
      %p62 = por %p60, %p61
      %p63 = scmp.ne.s32.totalorder %s54, %s55
      %p64 = scmp.eq.s32.totalorder %s23, 0
      %p65 = por %p63, %p64
      %p66 = scmp.ne.s32.totalorder %s54, %s55
      %p67 = scmp.eq.s32.totalorder %s24, 1
      %p68 = por %p66, %p67
      %p70 = scmp.ne.s32.totalorder %s55, %s69
      %p71 = scmp.eq.s32.totalorder %s24, 0
      %p72 = por %p70, %p71
      %s74 = sadd.s32 %s73, 1
      %p77 = scmp.eq.s32.totalorder %s18, 1
      %p78 = scmp.ne.s32.totalorder %s73, %s75
      %p79 = scmp.eq.s32.totalorder %s18, 0
      %p80 = por %p78, %p79
      %p81 = scmp.ne.s32.totalorder %s73, %s75
      %p82 = scmp.eq.s32.totalorder %s23, 1
      %p83 = por %p81, %p82
      %p84 = scmp.ne.s32.totalorder %s75, %s76
      %p85 = scmp.eq.s32.totalorder %s23, 0
      %p86 = por %p84, %p85
      %p87 = scmp.ne.s32.totalorder %s75, %s76
      %p88 = scmp.eq.s32.totalorder %s24, 1
      %p89 = por %p87, %p88
      %p91 = scmp.ne.s32.totalorder %s76, %s90
      %p92 = scmp.eq.s32.totalorder %s24, 0
      %p93 = por %p91, %p92
      %s95 = sadd.s32 %s94, 1
      %p98 = scmp.eq.s32.totalorder %s18, 1
      %p99 = scmp.ne.s32.totalorder %s94, %s96
      %p100 = scmp.eq.s32.totalorder %s18, 0
      %p101 = por %p99, %p100
      %p102 = scmp.ne.s32.totalorder %s94, %s96
      %p103 = scmp.eq.s32.totalorder %s23, 1
      %p104 = por %p102, %p103
      %p105 = scmp.ne.s32.totalorder %s96, %s97
      %p106 = scmp.eq.s32.totalorder %s23, 0
      %p107 = por %p105, %p106
      %p108 = scmp.ne.s32.totalorder %s96, %s97
      %p109 = scmp.eq.s32.totalorder %s24, 1
      %p110 = por %p108, %p109
      %p112 = scmp.ne.s32.totalorder %s97, %s111
      %p113 = scmp.eq.s32.totalorder %s24, 0
      %p114 = por %p112, %p113
      %s116 = sadd.s32 %s115, 1
      %p119 = scmp.eq.s32.totalorder %s18, 1
      %p120 = scmp.ne.s32.totalorder %s115, %s117
      %p121 = scmp.eq.s32.totalorder %s18, 0
      %p122 = por %p120, %p121
      %p123 = scmp.ne.s32.totalorder %s115, %s117
      %p124 = scmp.eq.s32.totalorder %s23, 1
      %p125 = por %p123, %p124
      %p126 = scmp.ne.s32.totalorder %s117, %s118
      %p127 = scmp.eq.s32.totalorder %s23, 0
      %p128 = por %p126, %p127
      %p129 = scmp.ne.s32.totalorder %s117, %s118
      %p130 = scmp.eq.s32.totalorder %s24, 1
      %p131 = por %p129, %p130
      %p133 = scmp.ne.s32.totalorder %s118, %s132
      %p134 = scmp.eq.s32.totalorder %s24, 0
      %p135 = por %p133, %p134
      %s137 = sadd.s32 %s136, 1
      %p140 = scmp.eq.s32.totalorder %s18, 1
      %p141 = scmp.ne.s32.totalorder %s136, %s138
      %p142 = scmp.eq.s32.totalorder %s18, 0
      %p143 = por %p141, %p142
      %p144 = scmp.ne.s32.totalorder %s136, %s138
      %p145 = scmp.eq.s32.totalorder %s23, 1
      %p146 = por %p144, %p145
      %p147 = scmp.ne.s32.totalorder %s138, %s139
      %p148 = scmp.eq.s32.totalorder %s23, 0
      %p149 = por %p147, %p148
      %p150 = scmp.ne.s32.totalorder %s138, %s139
      %p151 = scmp.eq.s32.totalorder %s24, 1
      %p152 = por %p150, %p151
      %p154 = scmp.ne.s32.totalorder %s139, %s153
      %p155 = scmp.eq.s32.totalorder %s24, 0
      %p156 = por %p154, %p155
      %s158 = sadd.s32 %s157, 1
      %p161 = scmp.eq.s32.totalorder %s18, 1
      %p162 = scmp.ne.s32.totalorder %s157, %s159
      %p163 = scmp.eq.s32.totalorder %s18, 0
      %p164 = por %p162, %p163
      %p165 = scmp.ne.s32.totalorder %s157, %s159
      %p166 = scmp.eq.s32.totalorder %s23, 1
      %p167 = por %p165, %p166
      %p168 = scmp.ne.s32.totalorder %s159, %s160
      %p169 = scmp.eq.s32.totalorder %s23, 0
      %p170 = por %p168, %p169
      %p171 = scmp.ne.s32.totalorder %s159, %s160
      %p172 = scmp.eq.s32.totalorder %s24, 1
      %p173 = por %p171, %p172
      %p175 = scmp.ne.s32.totalorder %s160, %s174
      %p176 = scmp.eq.s32.totalorder %s24, 0
      %p177 = por %p175, %p176
      %s179 = sadd.s32 %s178, 1
      %p182 = scmp.eq.s32.totalorder %s18, 1
      %p183 = scmp.ne.s32.totalorder %s178, %s180
      %p184 = scmp.eq.s32.totalorder %s18, 0
      %p185 = por %p183, %p184
      %p186 = scmp.ne.s32.totalorder %s178, %s180
      %p187 = scmp.eq.s32.totalorder %s23, 1
      %p188 = por %p186, %p187
      %p189 = scmp.ne.s32.totalorder %s180, %s181
      %p190 = scmp.eq.s32.totalorder %s23, 0
      %p191 = por %p189, %p190
      %p192 = scmp.ne.s32.totalorder %s180, %s181
      %p193 = scmp.eq.s32.totalorder %s24, 1
      %p194 = por %p192, %p193
      %p196 = scmp.ne.s32.totalorder %s181, %s195
      %p197 = scmp.eq.s32.totalorder %s24, 0
      %p198 = por %p196, %p197
      %s200 = sadd.s32 %s199, 1
      %p203 = scmp.eq.s32.totalorder %s18, 1
      %p204 = scmp.ne.s32.totalorder %s199, %s201
      %p205 = scmp.eq.s32.totalorder %s18, 0
      %p206 = por %p204, %p205
      %p207 = scmp.ne.s32.totalorder %s199, %s201
      %p208 = scmp.eq.s32.totalorder %s23, 1
      %p209 = por %p207, %p208
      %p210 = scmp.ne.s32.totalorder %s201, %s202
      %p211 = scmp.eq.s32.totalorder %s23, 0
      %p212 = por %p210, %p211
      %p213 = scmp.ne.s32.totalorder %s201, %s202
      %p214 = scmp.eq.s32.totalorder %s24, 1
      %p215 = por %p213, %p214
      %p217 = scmp.ne.s32.totalorder %s202, %s216
      %p218 = scmp.eq.s32.totalorder %s24, 0
      %p219 = por %p217, %p218
      %s220 = ssub.s32 %s18, %s25
      %p221 = scmp.eq.s32.totalorder %s220, 0
      %s223 = sadd.s32 %s222, 1
      %s224 = scalar_select %p221, %s222, %s223
      %p227 = pneg %p221
      %p228 = scmp.eq.s32.totalorder %s18, 1
      %p229 = por %p227, %p228
      %p230 = scmp.ne.s32.totalorder %s222, %s225
      %p231 = scmp.eq.s32.totalorder %s18, 0
      %p232 = por %p230, %p231
      %p233 = scmp.ne.s32.totalorder %s222, %s225
      %p234 = scmp.eq.s32.totalorder %s23, 1
      %p235 = por %p233, %p234
      %p236 = scmp.ne.s32.totalorder %s225, %s226
      %p237 = scmp.eq.s32.totalorder %s23, 0
      %p238 = por %p236, %p237
      %p239 = scmp.ne.s32.totalorder %s225, %s226
      %p240 = scmp.eq.s32.totalorder %s24, 1
      %p241 = por %p239, %p240
      %p243 = scmp.ne.s32.totalorder %s226, %s242
      %p244 = scmp.eq.s32.totalorder %s24, 0
      %p245 = por %p243, %p244
      %p246 = scmp.le.s32.totalorder 1, %s18
      %p247 = scmp.lt.s32.totalorder %s18, 3
      %p248 = pnand %p246, %p247
      %p249 = pneg %p248
      // Predicated region
      $region9: #{tpu_custom_call.1} parent=5 // pred_check
        _
      $region10: #{tpu_custom_call.1} parent=5 // pred_check_branch
        %251 = sbr.rel (%p248) target = $region12
      $region11: #{tpu_custom_call.1} parent=5 // pred_region
        %s252 = ssub.s32 %s18, 1
        // Predicated region
        $region13: #{tpu_custom_call.1} parent=11 // pred_check
          %p253 = pneg %p65
        $region14: #{tpu_custom_call.1} parent=11 // pred_check_branch
          %255 = sbr.rel (%p253) target = $region16
        $region15: #{tpu_custom_call.1} parent=11 // pred_region
          _
        $region16: #{tpu_custom_call.1} parent=11 // pred_fallthru
          _
        // Predicated region
        $region17: #{tpu_custom_call.1} parent=11 // pred_check
          %p256 = pneg %p86
        $region18: #{tpu_custom_call.1} parent=11 // pred_check_branch
          %258 = sbr.rel (%p256) target = $region20
        $region19: #{tpu_custom_call.1} parent=11 // pred_region
          _
        $region20: #{tpu_custom_call.1} parent=11 // pred_fallthru
          _
        // Predicated region
        $region21: #{tpu_custom_call.1} parent=11 // pred_check
          %p259 = pneg %p107
        $region22: #{tpu_custom_call.1} parent=11 // pred_check_branch
          %261 = sbr.rel (%p259) target = $region24
        $region23: #{tpu_custom_call.1} parent=11 // pred_region
          _
        $region24: #{tpu_custom_call.1} parent=11 // pred_fallthru
          _
        // Predicated region
        $region25: #{tpu_custom_call.1} parent=11 // pred_check
          %p262 = pneg %p128
        $region26: #{tpu_custom_call.1} parent=11 // pred_check_branch
          %264 = sbr.rel (%p262) target = $region28
        $region27: #{tpu_custom_call.1} parent=11 // pred_region
          _
        $region28: #{tpu_custom_call.1} parent=11 // pred_fallthru
          _
        // Predicated region
        $region29: #{tpu_custom_call.1} parent=11 // pred_check
          %p265 = pneg %p149
        $region30: #{tpu_custom_call.1} parent=11 // pred_check_branch
          %267 = sbr.rel (%p265) target = $region32
        $region31: #{tpu_custom_call.1} parent=11 // pred_region
          _
        $region32: #{tpu_custom_call.1} parent=11 // pred_fallthru
          _
        // Predicated region
        $region33: #{tpu_custom_call.1} parent=11 // pred_check
          %p268 = pneg %p170
        $region34: #{tpu_custom_call.1} parent=11 // pred_check_branch
          %270 = sbr.rel (%p268) target = $region36
        $region35: #{tpu_custom_call.1} parent=11 // pred_region
          _
        $region36: #{tpu_custom_call.1} parent=11 // pred_fallthru
          _
        // Predicated region
        $region37: #{tpu_custom_call.1} parent=11 // pred_check
          %p271 = pneg %p191
        $region38: #{tpu_custom_call.1} parent=11 // pred_check_branch
          %273 = sbr.rel (%p271) target = $region40
        $region39: #{tpu_custom_call.1} parent=11 // pred_region
          _
        $region40: #{tpu_custom_call.1} parent=11 // pred_fallthru
          _
        // Predicated region
        $region41: #{tpu_custom_call.1} parent=11 // pred_check
          %p274 = pneg %p212
        $region42: #{tpu_custom_call.1} parent=11 // pred_check_branch
          %276 = sbr.rel (%p274) target = $region44
        $region43: #{tpu_custom_call.1} parent=11 // pred_region
          _
        $region44: #{tpu_custom_call.1} parent=11 // pred_fallthru
          _
      $region12: #{tpu_custom_call.1} parent=5 // pred_fallthru
        _
      %p277 = scmp.lt.s32.totalorder %s18, 2
      // Predicated region
      $region45: #{tpu_custom_call.1} parent=5 // pred_check
        %p278 = pneg %p277
      $region46: #{tpu_custom_call.1} parent=5 // pred_check_branch
        %280 = sbr.rel (%p278) target = $region48
      $region47: #{tpu_custom_call.1} parent=5 // pred_region
        // Predicated region
        $region49: #{tpu_custom_call.1} parent=47 // pred_check
          %p281 = pneg %p38
        $region50: #{tpu_custom_call.1} parent=47 // pred_check_branch
          %283 = sbr.rel (%p281) target = $region52
        $region51: #{tpu_custom_call.1} parent=47 // pred_region
          %p284 = scmp.lt.s32.totalorder %s18, 1
          %s285 = scalar_select %p284, %s18, 1
          %s286 = smul.addr %s285, 364
          %s287 = smul.addr %s286, 8
          %s288 = scalar_lea.vmem %s0, %s287
        $region52: #{tpu_custom_call.1} parent=47 // pred_fallthru
          _
      $region48: #{tpu_custom_call.1} parent=5 // pred_fallthru
        _
      %p289 = scmp.le.s32.totalorder 1, %s18
      %p290 = scmp.lt.s32.totalorder %s18, 3
      %p291 = pnand %p289, %p290
      %p292 = pneg %p291
      // Predicated region
      $region53: #{tpu_custom_call.1} parent=5 // pred_check
        _
      $region54: #{tpu_custom_call.1} parent=5 // pred_check_branch
        %294 = sbr.rel (%p291) target = $region56
      $region55: #{tpu_custom_call.1} parent=5 // pred_region
        %s295 = ssub.s32 %s18, 1
        %p296 = scmp.lt.s32.totalorder %s23, 1
        %s297 = scalar_select %p296, %s23, 1
        %s298 = smul.addr %s297, 364
        %s299 = smul.addr %s298, 8
        %s300 = scalar_lea.vmem %s0, %s299
        %p301 = pneg %p44
        %p302 = pneg %p41
        %p303 = pneg %p65
        %p304 = pneg %p62
        %p305 = pneg %p86
        %p306 = pneg %p83
        %p307 = pneg %p107
        %p308 = pneg %p104
        %p309 = pneg %p128
        %p310 = pneg %p125
        %p311 = pneg %p149
        %p312 = pneg %p146
        %p313 = pneg %p170
        %p314 = pneg %p167
        %p315 = pneg %p191
        %p316 = pneg %p188
        %p317 = pneg %p212
        %p318 = pneg %p209
        %p319 = pneg %p238
        %p320 = pneg %p235
        %s321 = sand.u32 %s225, 1
        %s322 = scalar_lea.sflag [#allocation3], %s321
        %s323 = sand.u32 %s225, 1
        %s324 = smul.addr %s323, 256
        %s325 = scalar_lea.vmem [#allocation2], %s324
        %p326 = scmp.lt.s32.totalorder %s23, 1
        %s327 = scalar_select %p326, %s23, 1
        %s328 = smul.addr %s327, 364
        %s329 = smul.addr %s328, 8
        %s330 = scalar_lea.vmem %s0, %s329
        %v331 = vld [vmem:[%s330] sm:$0xff]
        %v332 = vld [vmem:[%s330 + $0x8] sm:$0xff]
        %v333 = vld [vmem:[%s330 + $0x10] sm:$0xff]
        %v334 = vld [vmem:[%s330 + $0x18] sm:$0xff]
        %v335 = vld [vmem:[%s330 + $0x20] sm:$0xff]
        %v336 = vld [vmem:[%s330 + $0x28] sm:$0xff]
        %v337 = vld [vmem:[%s330 + $0x30] sm:$0xf]
        %v338 = vld [vmem:[%s330 + $0x38] sm:$0xff]
        %v339 = vld [vmem:[%s330 + $0x40] sm:$0xff]
        %v340 = vld [vmem:[%s330 + $0x48] sm:$0xff]
        %v341 = vld [vmem:[%s330 + $0x50] sm:$0xff]
        %v342 = vld [vmem:[%s330 + $0x58] sm:$0xff]
        %v343 = vld [vmem:[%s330 + $0x60] sm:$0xff]
        %v344 = vld [vmem:[%s330 + $0x68] sm:$0xf]
        %v345 = vld [vmem:[%s330 + $0x70] sm:$0xff]
        %v346 = vld [vmem:[%s330 + $0x78] sm:$0xff]
        %v347 = vld [vmem:[%s330 + $0x80] sm:$0xff]
        %v348 = vld [vmem:[%s330 + $0x88] sm:$0xff]
        %v349 = vld [vmem:[%s330 + $0x90] sm:$0xff]
        %v350 = vld [vmem:[%s330 + $0x98] sm:$0xff]
        %v351 = vld [vmem:[%s330 + $0xa0] sm:$0xf]
        %v352 = vld [vmem:[%s330 + $0xa8] sm:$0xff]
        %v353 = vld [vmem:[%s330 + $0xb0] sm:$0xff]
        %v354 = vld [vmem:[%s330 + $0xb8] sm:$0xff]
        %v355 = vld [vmem:[%s330 + $0xc0] sm:$0xff]
        %v356 = vld [vmem:[%s330 + $0xc8] sm:$0xff]
        %v357 = vld [vmem:[%s330 + $0xd0] sm:$0xff]
        %v358 = vld [vmem:[%s330 + $0xd8] sm:$0xf]
        %v359 = vld [vmem:[%s330 + $0xe0] sm:$0xff]
        %v360 = vld [vmem:[%s330 + $0xe8] sm:$0xff]
        %v361 = vld [vmem:[%s330 + $0xf0] sm:$0xff]
        %v362 = vld [vmem:[%s330 + $0xf8] sm:$0xff]
        %v363 = vld [vmem:[%s330 + $0x100] sm:$0xff]
        %v364 = vld [vmem:[%s330 + $0x108] sm:$0xff]
        %v365 = vld [vmem:[%s330 + $0x110] sm:$0xf]
        %v366 = vld [vmem:[%s330 + $0x118] sm:$0xff]
        %v367 = vld [vmem:[%s330 + $0x120] sm:$0xff]
        %v368 = vld [vmem:[%s330 + $0x128] sm:$0xff]
        %v369 = vld [vmem:[%s330 + $0x130] sm:$0xff]
        %v370 = vld [vmem:[%s330 + $0x138] sm:$0xff]
        %v371 = vld [vmem:[%s330 + $0x140] sm:$0xff]
        %v372 = vld [vmem:[%s330 + $0x148] sm:$0xf]
        %v373 = vld [vmem:[%s330 + $0x150] sm:$0xff]
        %v374 = vld [vmem:[%s330 + $0x158] sm:$0xff]
        %v375 = vld [vmem:[%s330 + $0x160] sm:$0xff]
        %v376 = vld [vmem:[%s330 + $0x168] sm:$0xff]
        %v377 = vld [vmem:[%s330 + $0x170] sm:$0xff]
        %v378 = vld [vmem:[%s330 + $0x178] sm:$0xff]
        %v379 = vld [vmem:[%s330 + $0x180] sm:$0xf]
        %v380 = vld [vmem:[%s330 + $0x188] sm:$0xff]
        %v381 = vld [vmem:[%s330 + $0x190] sm:$0xff]
        %v382 = vld [vmem:[%s330 + $0x198] sm:$0xff]
        %v383 = vld [vmem:[%s330 + $0x1a0] sm:$0xff]
        %v384 = vld [vmem:[%s330 + $0x1a8] sm:$0xff]
        %v385 = vld [vmem:[%s330 + $0x1b0] sm:$0xff]
        %v386 = vld [vmem:[%s330 + $0x1b8] sm:$0xf]
        %v387 = vld [vmem:[%s330 + $0x1c0] sm:$0xff]
        %v388 = vld [vmem:[%s330 + $0x1c8] sm:$0xff]
        %v389 = vld [vmem:[%s330 + $0x1d0] sm:$0xff]
        %v390 = vld [vmem:[%s330 + $0x1d8] sm:$0xff]
        %v391 = vld [vmem:[%s330 + $0x1e0] sm:$0xff]
        %v392 = vld [vmem:[%s330 + $0x1e8] sm:$0xff]
        %v393 = vld [vmem:[%s330 + $0x1f0] sm:$0xf]
        %v394 = vld [vmem:[%s330 + $0x1f8] sm:$0xff]
        %v395 = vld [vmem:[%s330 + $0x200] sm:$0xff]
        %v396 = vld [vmem:[%s330 + $0x208] sm:$0xff]
        %v397 = vld [vmem:[%s330 + $0x210] sm:$0xff]
        %v398 = vld [vmem:[%s330 + $0x218] sm:$0xff]
        %v399 = vld [vmem:[%s330 + $0x220] sm:$0xff]
        %v400 = vld [vmem:[%s330 + $0x228] sm:$0xf]
        %v401 = vld [vmem:[%s330 + $0x230] sm:$0xff]
        %v402 = vld [vmem:[%s330 + $0x238] sm:$0xff]
        %v403 = vld [vmem:[%s330 + $0x240] sm:$0xff]
        %v404 = vld [vmem:[%s330 + $0x248] sm:$0xff]
        %v405 = vld [vmem:[%s330 + $0x250] sm:$0xff]
        %v406 = vld [vmem:[%s330 + $0x258] sm:$0xff]
        %v407 = vld [vmem:[%s330 + $0x260] sm:$0xf]
        %v408 = vld [vmem:[%s330 + $0x268] sm:$0xff]
        %v409 = vld [vmem:[%s330 + $0x270] sm:$0xff]
        %v410 = vld [vmem:[%s330 + $0x278] sm:$0xff]
        %v411 = vld [vmem:[%s330 + $0x280] sm:$0xff]
        %v412 = vld [vmem:[%s330 + $0x288] sm:$0xff]
        %v413 = vld [vmem:[%s330 + $0x290] sm:$0xff]
        %v414 = vld [vmem:[%s330 + $0x298] sm:$0xf]
        %v415 = vld [vmem:[%s330 + $0x2a0] sm:$0xff]
        %v416 = vld [vmem:[%s330 + $0x2a8] sm:$0xff]
        %v417 = vld [vmem:[%s330 + $0x2b0] sm:$0xff]
        %v418 = vld [vmem:[%s330 + $0x2b8] sm:$0xff]
        %v419 = vld [vmem:[%s330 + $0x2c0] sm:$0xff]
        %v420 = vld [vmem:[%s330 + $0x2c8] sm:$0xff]
        %v421 = vld [vmem:[%s330 + $0x2d0] sm:$0xf]
        %v422 = vld [vmem:[%s330 + $0x2d8] sm:$0xff]
        %v423 = vld [vmem:[%s330 + $0x2e0] sm:$0xff]
        %v424 = vld [vmem:[%s330 + $0x2e8] sm:$0xff]
        %v425 = vld [vmem:[%s330 + $0x2f0] sm:$0xff]
        %v426 = vld [vmem:[%s330 + $0x2f8] sm:$0xff]
        %v427 = vld [vmem:[%s330 + $0x300] sm:$0xff]
        %v428 = vld [vmem:[%s330 + $0x308] sm:$0xf]
        %v429 = vld [vmem:[%s330 + $0x310] sm:$0xff]
        %v430 = vld [vmem:[%s330 + $0x318] sm:$0xff]
        %v431 = vld [vmem:[%s330 + $0x320] sm:$0xff]
        %v432 = vld [vmem:[%s330 + $0x328] sm:$0xff]
        %v433 = vld [vmem:[%s330 + $0x330] sm:$0xff]
        %v434 = vld [vmem:[%s330 + $0x338] sm:$0xff]
        %v435 = vld [vmem:[%s330 + $0x340] sm:$0xf]
        %v436 = vld [vmem:[%s330 + $0x348] sm:$0xff]
        %v437 = vld [vmem:[%s330 + $0x350] sm:$0xff]
        %v438 = vld [vmem:[%s330 + $0x358] sm:$0xff]
        %v439 = vld [vmem:[%s330 + $0x360] sm:$0xff]
        %v440 = vld [vmem:[%s330 + $0x368] sm:$0xff]
        %v441 = vld [vmem:[%s330 + $0x370] sm:$0xff]
        %v442 = vld [vmem:[%s330 + $0x378] sm:$0xf]
        %v443 = vld [vmem:[%s330 + $0x380] sm:$0xff]
        %v444 = vld [vmem:[%s330 + $0x388] sm:$0xff]
        %v445 = vld [vmem:[%s330 + $0x390] sm:$0xff]
        %v446 = vld [vmem:[%s330 + $0x398] sm:$0xff]
        %v447 = vld [vmem:[%s330 + $0x3a0] sm:$0xff]
        %v448 = vld [vmem:[%s330 + $0x3a8] sm:$0xff]
        %v449 = vld [vmem:[%s330 + $0x3b8] sm:$0xff]
        %v450 = vld [vmem:[%s330 + $0x3c0] sm:$0xff]
        %v451 = vld [vmem:[%s330 + $0x3c8] sm:$0xff]
        %v452 = vld [vmem:[%s330 + $0x3d0] sm:$0xff]
        %v453 = vld [vmem:[%s330 + $0x3d8] sm:$0xff]
        %v454 = vld [vmem:[%s330 + $0x3e0] sm:$0xff]
        %v455 = vld [vmem:[%s330 + $0x3f0] sm:$0xff]
        %v456 = vld [vmem:[%s330 + $0x3f8] sm:$0xff]
        %v457 = vld [vmem:[%s330 + $0x400] sm:$0xff]
        %v458 = vld [vmem:[%s330 + $0x408] sm:$0xff]
        %v459 = vld [vmem:[%s330 + $0x410] sm:$0xff]
        %v460 = vld [vmem:[%s330 + $0x418] sm:$0xff]
        %v461 = vld [vmem:[%s330 + $0x420] sm:$0xf]
        %v462 = vld [vmem:[%s330 + $0x428] sm:$0xff]
        %v463 = vld [vmem:[%s330 + $0x430] sm:$0xff]
        %v464 = vld [vmem:[%s330 + $0x438] sm:$0xff]
        %v465 = vld [vmem:[%s330 + $0x440] sm:$0xff]
        %v466 = vld [vmem:[%s330 + $0x448] sm:$0xff]
        %v467 = vld [vmem:[%s330 + $0x450] sm:$0xff]
        %v468 = vld [vmem:[%s330 + $0x458] sm:$0xf]
        %v469 = vld [vmem:[%s330 + $0x460] sm:$0xff]
        %v470 = vld [vmem:[%s330 + $0x468] sm:$0xff]
        %v471 = vld [vmem:[%s330 + $0x470] sm:$0xff]
        %v472 = vld [vmem:[%s330 + $0x478] sm:$0xff]
        %v473 = vld [vmem:[%s330 + $0x480] sm:$0xff]
        %v474 = vld [vmem:[%s330 + $0x488] sm:$0xff]
        %v475 = vld [vmem:[%s330 + $0x490] sm:$0xf]
        %v476 = vld [vmem:[%s330 + $0x498] sm:$0xff]
        %v477 = vld [vmem:[%s330 + $0x4a0] sm:$0xff]
        %v478 = vld [vmem:[%s330 + $0x4a8] sm:$0xff]
        %v479 = vld [vmem:[%s330 + $0x4b0] sm:$0xff]
        %v480 = vld [vmem:[%s330 + $0x4b8] sm:$0xff]
        %v481 = vld [vmem:[%s330 + $0x4c0] sm:$0xff]
        %v482 = vld [vmem:[%s330 + $0x4c8] sm:$0xf]
        %v483 = vld [vmem:[%s330 + $0x4d0] sm:$0xff]
        %v484 = vld [vmem:[%s330 + $0x4d8] sm:$0xff]
        %v485 = vld [vmem:[%s330 + $0x4e0] sm:$0xff]
        %v486 = vld [vmem:[%s330 + $0x4e8] sm:$0xff]
        %v487 = vld [vmem:[%s330 + $0x4f0] sm:$0xff]
        %v488 = vld [vmem:[%s330 + $0x4f8] sm:$0xff]
        %v489 = vld [vmem:[%s330 + $0x500] sm:$0xf]
        %v490 = vld [vmem:[%s330 + $0x508] sm:$0xff]
        %v491 = vld [vmem:[%s330 + $0x510] sm:$0xff]
        %v492 = vld [vmem:[%s330 + $0x518] sm:$0xff]
        %v493 = vld [vmem:[%s330 + $0x520] sm:$0xff]
        %v494 = vld [vmem:[%s330 + $0x528] sm:$0xff]
        %v495 = vld [vmem:[%s330 + $0x530] sm:$0xff]
        %v496 = vld [vmem:[%s330 + $0x538] sm:$0xf]
        %v497 = vld [vmem:[%s330 + $0x540] sm:$0xff]
        %v498 = vld [vmem:[%s330 + $0x548] sm:$0xff]
        %v499 = vld [vmem:[%s330 + $0x550] sm:$0xff]
        %v500 = vld [vmem:[%s330 + $0x558] sm:$0xff]
        %v501 = vld [vmem:[%s330 + $0x560] sm:$0xff]
        %v502 = vld [vmem:[%s330 + $0x568] sm:$0xff]
        %v503 = vld [vmem:[%s330 + $0x570] sm:$0xf]
        %v504 = vld [vmem:[%s330 + $0x578] sm:$0xff]
        %v505 = vld [vmem:[%s330 + $0x580] sm:$0xff]
        %v506 = vld [vmem:[%s330 + $0x588] sm:$0xff]
        %v507 = vld [vmem:[%s330 + $0x590] sm:$0xff]
        %v508 = vld [vmem:[%s330 + $0x598] sm:$0xff]
        %v509 = vld [vmem:[%s330 + $0x5a0] sm:$0xff]
        %v510 = vld [vmem:[%s330 + $0x5a8] sm:$0xf]
        %v511 = vld [vmem:[%s330 + $0x5b0] sm:$0xff]
        %v512 = vld [vmem:[%s330 + $0x5b8] sm:$0xff]
        %v513 = vld [vmem:[%s330 + $0x5c0] sm:$0xff]
        %v514 = vld [vmem:[%s330 + $0x5c8] sm:$0xff]
        %v515 = vld [vmem:[%s330 + $0x5d0] sm:$0xff]
        %v516 = vld [vmem:[%s330 + $0x5d8] sm:$0xff]
        %v517 = vld [vmem:[%s330 + $0x5e0] sm:$0xf]
        %v518 = vld [vmem:[%s330 + $0x5e8] sm:$0xff]
        %v519 = vld [vmem:[%s330 + $0x5f0] sm:$0xff]
        %v520 = vld [vmem:[%s330 + $0x5f8] sm:$0xff]
        %v521 = vld [vmem:[%s330 + $0x600] sm:$0xff]
        %v522 = vld [vmem:[%s330 + $0x608] sm:$0xff]
        %v523 = vld [vmem:[%s330 + $0x610] sm:$0xff]
        %v524 = vld [vmem:[%s330 + $0x618] sm:$0xf]
        %v525 = vld [vmem:[%s330 + $0x620] sm:$0xff]
        %v526 = vld [vmem:[%s330 + $0x628] sm:$0xff]
        %v527 = vld [vmem:[%s330 + $0x630] sm:$0xff]
        %v528 = vld [vmem:[%s330 + $0x638] sm:$0xff]
        %v529 = vld [vmem:[%s330 + $0x640] sm:$0xff]
        %v530 = vld [vmem:[%s330 + $0x648] sm:$0xff]
        %v531 = vld [vmem:[%s330 + $0x650] sm:$0xf]
        %v532 = vld [vmem:[%s330 + $0x658] sm:$0xff]
        %v533 = vld [vmem:[%s330 + $0x660] sm:$0xff]
        %v534 = vld [vmem:[%s330 + $0x668] sm:$0xff]
        %v535 = vld [vmem:[%s330 + $0x670] sm:$0xff]
        %v536 = vld [vmem:[%s330 + $0x678] sm:$0xff]
        %v537 = vld [vmem:[%s330 + $0x680] sm:$0xff]
        %v538 = vld [vmem:[%s330 + $0x688] sm:$0xf]
        %v539 = vld [vmem:[%s330 + $0x690] sm:$0xff]
        %v540 = vld [vmem:[%s330 + $0x698] sm:$0xff]
        %v541 = vld [vmem:[%s330 + $0x6a0] sm:$0xff]
        %v542 = vld [vmem:[%s330 + $0x6a8] sm:$0xff]
        %v543 = vld [vmem:[%s330 + $0x6b0] sm:$0xff]
        %v544 = vld [vmem:[%s330 + $0x6b8] sm:$0xff]
        %v545 = vld [vmem:[%s330 + $0x6c0] sm:$0xf]
        %v546 = vld [vmem:[%s330 + $0x6c8] sm:$0xff]
        %v547 = vld [vmem:[%s330 + $0x6d0] sm:$0xff]
        %v548 = vld [vmem:[%s330 + $0x6d8] sm:$0xff]
        %v549 = vld [vmem:[%s330 + $0x6e0] sm:$0xff]
        %v550 = vld [vmem:[%s330 + $0x6e8] sm:$0xff]
        %v551 = vld [vmem:[%s330 + $0x6f0] sm:$0xff]
        %v552 = vld [vmem:[%s330 + $0x6f8] sm:$0xf]
        %v553 = vld [vmem:[%s330 + $0x700] sm:$0xff]
        %v554 = vld [vmem:[%s330 + $0x708] sm:$0xff]
        %v555 = vld [vmem:[%s330 + $0x710] sm:$0xff]
        %v556 = vld [vmem:[%s330 + $0x718] sm:$0xff]
        %v557 = vld [vmem:[%s330 + $0x720] sm:$0xff]
        %v558 = vld [vmem:[%s330 + $0x728] sm:$0xff]
        %v559 = vld [vmem:[%s330 + $0x730] sm:$0xf]
        %v560 = vld [vmem:[%s330 + $0x738] sm:$0xff]
        %v561 = vld [vmem:[%s330 + $0x740] sm:$0xff]
        %v562 = vld [vmem:[%s330 + $0x748] sm:$0xff]
        %v563 = vld [vmem:[%s330 + $0x750] sm:$0xff]
        %v564 = vld [vmem:[%s330 + $0x758] sm:$0xff]
        %v565 = vld [vmem:[%s330 + $0x760] sm:$0xff]
        %v566 = vld [vmem:[%s330 + $0x768] sm:$0xf]
        %v567 = vld [vmem:[%s330 + $0x770] sm:$0xff]
        %v568 = vld [vmem:[%s330 + $0x778] sm:$0xff]
        %v569 = vld [vmem:[%s330 + $0x780] sm:$0xff]
        %v570 = vld [vmem:[%s330 + $0x788] sm:$0xff]
        %v571 = vld [vmem:[%s330 + $0x790] sm:$0xff]
        %v572 = vld [vmem:[%s330 + $0x798] sm:$0xff]
        %v573 = vld [vmem:[%s330 + $0x7a8] sm:$0xff]
        %v574 = vld [vmem:[%s330 + $0x7b0] sm:$0xff]
        %v575 = vld [vmem:[%s330 + $0x7b8] sm:$0xff]
        %v576 = vld [vmem:[%s330 + $0x7c0] sm:$0xff]
        %v577 = vld [vmem:[%s330 + $0x7c8] sm:$0xff]
        %v578 = vld [vmem:[%s330 + $0x7d0] sm:$0xff]
        %v579 = vld [vmem:[%s330 + $0x7e0] sm:$0xff]
        %v580 = vld [vmem:[%s330 + $0x7e8] sm:$0xff]
        %v581 = vld [vmem:[%s330 + $0x7f0] sm:$0xff]
        %v582 = vld [vmem:[%s330 + $0x7f8] sm:$0xff]
        %v583 = vld [vmem:[%s330 + $0x800] sm:$0xff]
        %v584 = vld [vmem:[%s330 + $0x808] sm:$0xff]
        %v585 = vld [vmem:[%s330 + $0x810] sm:$0xf]
        %v586 = vld [vmem:[%s330 + $0x818] sm:$0xff]
        %v587 = vld [vmem:[%s330 + $0x820] sm:$0xff]
        %v588 = vld [vmem:[%s330 + $0x828] sm:$0xff]
        %v589 = vld [vmem:[%s330 + $0x830] sm:$0xff]
        %v590 = vld [vmem:[%s330 + $0x838] sm:$0xff]
        %v591 = vld [vmem:[%s330 + $0x840] sm:$0xff]
        %v592 = vld [vmem:[%s330 + $0x848] sm:$0xf]
        %v593 = vld [vmem:[%s330 + $0x850] sm:$0xff]
        %v594 = vld [vmem:[%s330 + $0x858] sm:$0xff]
        %v595 = vld [vmem:[%s330 + $0x860] sm:$0xff]
        %v596 = vld [vmem:[%s330 + $0x868] sm:$0xff]
        %v597 = vld [vmem:[%s330 + $0x870] sm:$0xff]
        %v598 = vld [vmem:[%s330 + $0x878] sm:$0xff]
        %v599 = vld [vmem:[%s330 + $0x880] sm:$0xf]
        %v600 = vld [vmem:[%s330 + $0x888] sm:$0xff]
        %v601 = vld [vmem:[%s330 + $0x890] sm:$0xff]
        %v602 = vld [vmem:[%s330 + $0x898] sm:$0xff]
        %v603 = vld [vmem:[%s330 + $0x8a0] sm:$0xff]
        %v604 = vld [vmem:[%s330 + $0x8a8] sm:$0xff]
        %v605 = vld [vmem:[%s330 + $0x8b0] sm:$0xff]
        %v606 = vld [vmem:[%s330 + $0x8b8] sm:$0xf]
        %v607 = vld [vmem:[%s330 + $0x8c0] sm:$0xff]
        %v608 = vld [vmem:[%s330 + $0x8c8] sm:$0xff]
        %v609 = vld [vmem:[%s330 + $0x8d0] sm:$0xff]
        %v610 = vld [vmem:[%s330 + $0x8d8] sm:$0xff]
        %v611 = vld [vmem:[%s330 + $0x8e0] sm:$0xff]
        %v612 = vld [vmem:[%s330 + $0x8e8] sm:$0xff]
        %v613 = vld [vmem:[%s330 + $0x8f0] sm:$0xf]
        %v614 = vld [vmem:[%s330 + $0x8f8] sm:$0xff]
        %v615 = vld [vmem:[%s330 + $0x900] sm:$0xff]
        %v616 = vld [vmem:[%s330 + $0x908] sm:$0xff]
        %v617 = vld [vmem:[%s330 + $0x910] sm:$0xff]
        %v618 = vld [vmem:[%s330 + $0x918] sm:$0xff]
        %v619 = vld [vmem:[%s330 + $0x920] sm:$0xff]
        %v620 = vld [vmem:[%s330 + $0x928] sm:$0xf]
        %v621 = vld [vmem:[%s330 + $0x930] sm:$0xff]
        %v622 = vld [vmem:[%s330 + $0x938] sm:$0xff]
        %v623 = vld [vmem:[%s330 + $0x940] sm:$0xff]
        %v624 = vld [vmem:[%s330 + $0x948] sm:$0xff]
        %v625 = vld [vmem:[%s330 + $0x950] sm:$0xff]
        %v626 = vld [vmem:[%s330 + $0x958] sm:$0xff]
        %v627 = vld [vmem:[%s330 + $0x960] sm:$0xf]
        %v628 = vld [vmem:[%s330 + $0x968] sm:$0xff]
        %v629 = vld [vmem:[%s330 + $0x970] sm:$0xff]
        %v630 = vld [vmem:[%s330 + $0x978] sm:$0xff]
        %v631 = vld [vmem:[%s330 + $0x980] sm:$0xff]
        %v632 = vld [vmem:[%s330 + $0x988] sm:$0xff]
        %v633 = vld [vmem:[%s330 + $0x990] sm:$0xff]
        %v634 = vld [vmem:[%s330 + $0x998] sm:$0xf]
        %v635 = vld [vmem:[%s330 + $0x9a0] sm:$0xff]
        %v636 = vld [vmem:[%s330 + $0x9a8] sm:$0xff]
        %v637 = vld [vmem:[%s330 + $0x9b0] sm:$0xff]
        %v638 = vld [vmem:[%s330 + $0x9b8] sm:$0xff]
        %v639 = vld [vmem:[%s330 + $0x9c0] sm:$0xff]
        %v640 = vld [vmem:[%s330 + $0x9c8] sm:$0xff]
        %v641 = vld [vmem:[%s330 + $0x9d0] sm:$0xf]
        %v642 = vld [vmem:[%s330 + $0x9d8] sm:$0xff]
        %v643 = vld [vmem:[%s330 + $0x9e0] sm:$0xff]
        %v644 = vld [vmem:[%s330 + $0x9e8] sm:$0xff]
        %v645 = vld [vmem:[%s330 + $0x9f0] sm:$0xff]
        %v646 = vld [vmem:[%s330 + $0x9f8] sm:$0xff]
        %v647 = vld [vmem:[%s330 + $0xa00] sm:$0xff]
        %v648 = vld [vmem:[%s330 + $0xa08] sm:$0xf]
        %v649 = vld [vmem:[%s330 + $0xa10] sm:$0xff]
        %v650 = vld [vmem:[%s330 + $0xa18] sm:$0xff]
        %v651 = vld [vmem:[%s330 + $0xa20] sm:$0xff]
        %v652 = vld [vmem:[%s330 + $0xa28] sm:$0xff]
        %v653 = vld [vmem:[%s330 + $0xa30] sm:$0xff]
        %v654 = vld [vmem:[%s330 + $0xa38] sm:$0xff]
        %v655 = vld [vmem:[%s330 + $0xa40] sm:$0xf]
        %v656 = vld [vmem:[%s330 + $0xa48] sm:$0xff]
        %v657 = vld [vmem:[%s330 + $0xa50] sm:$0xff]
        %v658 = vld [vmem:[%s330 + $0xa58] sm:$0xff]
        %v659 = vld [vmem:[%s330 + $0xa60] sm:$0xff]
        %v660 = vld [vmem:[%s330 + $0xa68] sm:$0xff]
        %v661 = vld [vmem:[%s330 + $0xa70] sm:$0xff]
        %v662 = vld [vmem:[%s330 + $0xa78] sm:$0xf]
        %v663 = vld [vmem:[%s330 + $0xa80] sm:$0xff]
        %v664 = vld [vmem:[%s330 + $0xa88] sm:$0xff]
        %v665 = vld [vmem:[%s330 + $0xa90] sm:$0xff]
        %v666 = vld [vmem:[%s330 + $0xa98] sm:$0xff]
        %v667 = vld [vmem:[%s330 + $0xaa0] sm:$0xff]
        %v668 = vld [vmem:[%s330 + $0xaa8] sm:$0xff]
        %v669 = vld [vmem:[%s330 + $0xab0] sm:$0xf]
        %v670 = vld [vmem:[%s330 + $0xab8] sm:$0xff]
        %v671 = vld [vmem:[%s330 + $0xac0] sm:$0xff]
        %v672 = vld [vmem:[%s330 + $0xac8] sm:$0xff]
        %v673 = vld [vmem:[%s330 + $0xad0] sm:$0xff]
        %v674 = vld [vmem:[%s330 + $0xad8] sm:$0xff]
        %v675 = vld [vmem:[%s330 + $0xae0] sm:$0xff]
        %v676 = vld [vmem:[%s330 + $0xae8] sm:$0xf]
        %v677 = vld [vmem:[%s330 + $0xaf0] sm:$0xff]
        %v678 = vld [vmem:[%s330 + $0xaf8] sm:$0xff]
        %v679 = vld [vmem:[%s330 + $0xb00] sm:$0xff]
        %v680 = vld [vmem:[%s330 + $0xb08] sm:$0xff]
        %v681 = vld [vmem:[%s330 + $0xb10] sm:$0xff]
        %v682 = vld [vmem:[%s330 + $0xb18] sm:$0xff]
        %v683 = vld [vmem:[%s330 + $0xb20] sm:$0xf]
        %v684 = vld [vmem:[%s330 + $0xb28] sm:$0xff]
        %v685 = vld [vmem:[%s330 + $0xb30] sm:$0xff]
        %v686 = vld [vmem:[%s330 + $0xb38] sm:$0xff]
        %v687 = vld [vmem:[%s330 + $0xb40] sm:$0xff]
        %v688 = vld [vmem:[%s330 + $0xb48] sm:$0xff]
        %v689 = vld [vmem:[%s330 + $0xb50] sm:$0xff]
        %v690 = vld [vmem:[%s330 + $0xb58] sm:$0xf]
        %vm739 = vcmask 1045504
        %v740 = vrot.slane %v457, 2
        %v741 = vrot.slane %v458, 2
        %v742 = vsel %vm739, %v740, %v741
        %v743 = vrot.slane %v459, 2
        %v744 = vsel %vm739, %v741, %v743
        %v745 = vrot.slane %v464, 2
        %v746 = vrot.slane %v465, 2
        %v747 = vsel %vm739, %v745, %v746
        %v748 = vrot.slane %v466, 2
        %v749 = vsel %vm739, %v746, %v748
        %v750 = vrot.slane %v471, 2
        %v751 = vrot.slane %v472, 2
        %v752 = vsel %vm739, %v750, %v751
        %v753 = vrot.slane %v473, 2
        %v754 = vsel %vm739, %v751, %v753
        %v755 = vrot.slane %v478, 2
        %v756 = vrot.slane %v479, 2
        %v757 = vsel %vm739, %v755, %v756
        %v758 = vrot.slane %v480, 2
        %v759 = vsel %vm739, %v756, %v758
        %v760 = vrot.slane %v485, 2
        %v761 = vrot.slane %v486, 2
        %v762 = vsel %vm739, %v760, %v761
        %v763 = vrot.slane %v487, 2
        %v764 = vsel %vm739, %v761, %v763
        %v765 = vrot.slane %v492, 2
        %v766 = vrot.slane %v493, 2
        %v767 = vsel %vm739, %v765, %v766
        %v768 = vrot.slane %v494, 2
        %v769 = vsel %vm739, %v766, %v768
        %v770 = vrot.slane %v499, 2
        %v771 = vrot.slane %v500, 2
        %v772 = vsel %vm739, %v770, %v771
        %v773 = vrot.slane %v501, 2
        %v774 = vsel %vm739, %v771, %v773
        %v775 = vrot.slane %v506, 2
        %v776 = vrot.slane %v507, 2
        %v777 = vsel %vm739, %v775, %v776
        %v778 = vrot.slane %v508, 2
        %v779 = vsel %vm739, %v776, %v778
        %v780 = vrot.slane %v513, 2
        %v781 = vrot.slane %v514, 2
        %v782 = vsel %vm739, %v780, %v781
        %v783 = vrot.slane %v515, 2
        %v784 = vsel %vm739, %v781, %v783
        %v785 = vrot.slane %v520, 2
        %v786 = vrot.slane %v521, 2
        %v787 = vsel %vm739, %v785, %v786
        %v788 = vrot.slane %v522, 2
        %v789 = vsel %vm739, %v786, %v788
        %v790 = vrot.slane %v527, 2
        %v791 = vrot.slane %v528, 2
        %v792 = vsel %vm739, %v790, %v791
        %v793 = vrot.slane %v529, 2
        %v794 = vsel %vm739, %v791, %v793
        %v795 = vrot.slane %v534, 2
        %v796 = vrot.slane %v535, 2
        %v797 = vsel %vm739, %v795, %v796
        %v798 = vrot.slane %v536, 2
        %v799 = vsel %vm739, %v796, %v798
        %v800 = vrot.slane %v541, 2
        %v801 = vrot.slane %v542, 2
        %v802 = vsel %vm739, %v800, %v801
        %v803 = vrot.slane %v543, 2
        %v804 = vsel %vm739, %v801, %v803
        %v805 = vrot.slane %v548, 2
        %v806 = vrot.slane %v549, 2
        %v807 = vsel %vm739, %v805, %v806
        %v808 = vrot.slane %v550, 2
        %v809 = vsel %vm739, %v806, %v808
        %v810 = vrot.slane %v555, 2
        %v811 = vrot.slane %v556, 2
        %v812 = vsel %vm739, %v810, %v811
        %v813 = vrot.slane %v557, 2
        %v814 = vsel %vm739, %v811, %v813
        %v815 = vrot.slane %v562, 2
        %v816 = vrot.slane %v563, 2
        %v817 = vsel %vm739, %v815, %v816
        %v818 = vrot.slane %v564, 2
        %v819 = vsel %vm739, %v816, %v818
        %v852 = vld [vmem:[%s1] sm:$0xf]
        %v853 = vld [vmem:[%s2] sm:$0x1]
        %v855 = vlaneseq
        %v856 = vshrl.u32 %v855, 7
        %v857 = vsub.s32 0, %v856
        %v858 = vrot.slane %v853, %v857
        %vm860 = vcmask 31744
        %v861 = vsel %vm860, %v742, 0
        %v863 = vsel %vm860, %v744, 0
        %v865 = vsel %vm860, %v747, 0
        %v867 = vsel %vm860, %v749, 0
        %v869 = vsel %vm860, %v752, 0
        %v871 = vsel %vm860, %v754, 0
        %v873 = vsel %vm860, %v757, 0
        %v875 = vsel %vm860, %v759, 0
        %v877 = vsel %vm860, %v762, 0
        %v879 = vsel %vm860, %v764, 0
        %v881 = vsel %vm860, %v767, 0
        %v883 = vsel %vm860, %v769, 0
        %v885 = vsel %vm860, %v772, 0
        %v887 = vsel %vm860, %v774, 0
        %v889 = vsel %vm860, %v777, 0
        %v891 = vsel %vm860, %v779, 0
        %v893 = vsel %vm860, %v782, 0
        %v895 = vsel %vm860, %v784, 0
        %v897 = vsel %vm860, %v787, 0
        %v899 = vsel %vm860, %v789, 0
        %v901 = vsel %vm860, %v792, 0
        %v903 = vsel %vm860, %v794, 0
        %v905 = vsel %vm860, %v797, 0
        %v907 = vsel %vm860, %v799, 0
        %v909 = vsel %vm860, %v802, 0
        %v911 = vsel %vm860, %v804, 0
        %v913 = vsel %vm860, %v807, 0
        %v915 = vsel %vm860, %v809, 0
        %v917 = vsel %vm860, %v812, 0
        %v919 = vsel %vm860, %v814, 0
        %v921 = vsel %vm860, %v817, 0
        %v923 = vsel %vm860, %v819, 0
        %vm925 = vcmask 1043456
        %v927 = vsel %vm925, %v852, 0
        %929 = vmatprep.subr.mxu0 0.0
        %930 = vmatpush1.msra.mxu0 %v927
        %931 = vmatprep.subr.mxu0 0.0
        %932 = vmatpush1.msra.mxu0 0.0
        %933 = vmatprep.subr.mxu0 0.0
        %934 = vmatpush1.msra.mxu0 0.0
        %935 = vmatprep.subr.mxu0 0.0
        %936 = vmatpush1.msra.mxu0 0.0
        %937 = vmatprep.subr.mxu0 0.0
        %938 = vmatpush1.msra.mxu0 0.0
        %939 = vmatprep.subr.mxu0 0.0
        %940 = vmatpush1.msra.mxu0 0.0
        %941 = vmatprep.subr.mxu0 0.0
        %942 = vmatpush1.msra.mxu0 0.0
        %943 = vmatprep.subr.mxu0 0.0
        %944 = vmatpush1.msra.mxu0 0.0
        %945 = vmatprep.subr.mxu0 0.0
        %946 = vmatpush1.msra.mxu0 0.0
        %947 = vmatprep.subr.mxu0 0.0
        %948 = vmatpush1.msra.mxu0 0.0
        %949 = vmatprep.subr.mxu0 0.0
        %950 = vmatpush1.msra.mxu0 0.0
        %951 = vmatprep.subr.mxu0 0.0
        %952 = vmatpush1.msra.mxu0 0.0
        %953 = vmatprep.subr.mxu0 0.0
        %954 = vmatpush1.msra.mxu0 0.0
        %955 = vmatprep.subr.mxu0 0.0
        %956 = vmatpush1.msra.mxu0 0.0
        %957 = vmatprep.subr.mxu0 0.0
        %958 = vmatpush1.msra.mxu0 0.0
        %959 = vmatprep.subr.mxu0 0.0
        %960 = vmatpush1.msra.mxu0 0.0
        %961 = vmatprep.subr.mxu0 0.0
        %962 = vmatpush1.msra.mxu0 0.0
        %963 = vmatprep.subr.mxu0 0.0
        %964 = vmatpush1.msra.mxu0 0.0
        %965 = vmatprep.subr.mxu0 0.0
        %966 = vmatpush1.msra.mxu0 0.0
        %967 = vmatprep.subr.mxu0 0.0
        %968 = vmatpush1.msra.mxu0 0.0
        %969 = vmatprep.subr.mxu0 0.0
        %970 = vmatpush1.msra.mxu0 0.0
        %971 = vmatprep.subr.mxu0 0.0
        %972 = vmatpush1.msra.mxu0 0.0
        %973 = vmatprep.subr.mxu0 0.0
        %974 = vmatpush1.msra.mxu0 0.0
        %975 = vmatprep.subr.mxu0 0.0
        %976 = vmatpush1.msra.mxu0 0.0
        %977 = vmatprep.subr.mxu0 0.0
        %978 = vmatpush1.msra.mxu0 0.0
        %979 = vmatprep.subr.mxu0 0.0
        %980 = vmatpush1.msra.mxu0 0.0
        %981 = vmatprep.subr.mxu0 0.0
        %982 = vmatpush1.msra.mxu0 0.0
        %983 = vmatprep.subr.mxu0 0.0
        %984 = vmatpush1.msra.mxu0 0.0
        %985 = vmatprep.subr.mxu0 0.0
        %986 = vmatpush1.msra.mxu0 0.0
        %987 = vmatprep.subr.mxu0 0.0
        %988 = vmatpush1.msra.mxu0 0.0
        %989 = vmatprep.subr.mxu0 0.0
        %990 = vmatpush1.msra.mxu0 0.0
        %991 = vmatprep.subr.mxu0 0.0
        %992 = vmatpush1.msra.mxu0 0.0
        %993 = vmatprep.mubr.f32.mxu0 0.0
        %994 = vmatmul.mubr.f32.gmra.mrb[0].mxu0 %v861
        %v995 = vpop.f32.mrb[0].mxu0
        %v996 = vadd.f32 %v858, %v995
        %v997 = vpop.f32.mrb[0].mxu0
        %998 = vmatprep.mubr.f32.mxu0 0.0
        %999 = vmatmul.mubr.f32.gmra.mrb[0].mxu0 %v863
        %v1000 = vpop.f32.mrb[0].mxu0
        %v1001 = vadd.f32 %v858, %v1000
        %v1002 = vpop.f32.mrb[0].mxu0
        %1003 = vmatprep.mubr.f32.mxu0 0.0
        %1004 = vmatmul.mubr.f32.gmra.mrb[0].mxu0 %v865
        %v1005 = vpop.f32.mrb[0].mxu0
        %v1006 = vadd.f32 %v858, %v1005
        %v1007 = vpop.f32.mrb[0].mxu0
        %1008 = vmatprep.mubr.f32.mxu0 0.0
        %1009 = vmatmul.mubr.f32.gmra.mrb[0].mxu0 %v867
        %v1010 = vpop.f32.mrb[0].mxu0
        %v1011 = vadd.f32 %v858, %v1010
        %v1012 = vpop.f32.mrb[0].mxu0
        %1013 = vmatprep.mubr.f32.mxu0 0.0
        %1014 = vmatmul.mubr.f32.gmra.mrb[0].mxu0 %v869
        %v1015 = vpop.f32.mrb[0].mxu0
        %v1016 = vadd.f32 %v858, %v1015
        %v1017 = vpop.f32.mrb[0].mxu0
        %1018 = vmatprep.mubr.f32.mxu0 0.0
        %1019 = vmatmul.mubr.f32.gmra.mrb[0].mxu0 %v871
        %v1020 = vpop.f32.mrb[0].mxu0
        %v1021 = vadd.f32 %v858, %v1020
        %v1022 = vpop.f32.mrb[0].mxu0
        %1023 = vmatprep.mubr.f32.mxu0 0.0
        %1024 = vmatmul.mubr.f32.gmra.mrb[0].mxu0 %v873
        %v1025 = vpop.f32.mrb[0].mxu0
        %v1026 = vadd.f32 %v858, %v1025
        %v1027 = vpop.f32.mrb[0].mxu0
        %1028 = vmatprep.mubr.f32.mxu0 0.0
        %1029 = vmatmul.mubr.f32.gmra.mrb[0].mxu0 %v875
        %v1030 = vpop.f32.mrb[0].mxu0
        %v1031 = vadd.f32 %v858, %v1030
        %v1032 = vpop.f32.mrb[0].mxu0
        %1033 = vmatprep.mubr.f32.mxu0 0.0
        %1034 = vmatmul.mubr.f32.gmra.mrb[0].mxu0 %v877
        %v1035 = vpop.f32.mrb[0].mxu0
        %v1036 = vadd.f32 %v858, %v1035
        %v1037 = vpop.f32.mrb[0].mxu0
        %1038 = vmatprep.mubr.f32.mxu0 0.0
        %1039 = vmatmul.mubr.f32.gmra.mrb[0].mxu0 %v879
        %v1040 = vpop.f32.mrb[0].mxu0
        %v1041 = vadd.f32 %v858, %v1040
        %v1042 = vpop.f32.mrb[0].mxu0
        %1043 = vmatprep.mubr.f32.mxu0 0.0
        %1044 = vmatmul.mubr.f32.gmra.mrb[0].mxu0 %v881
        %v1045 = vpop.f32.mrb[0].mxu0
        %v1046 = vadd.f32 %v858, %v1045
        %v1047 = vpop.f32.mrb[0].mxu0
        %1048 = vmatprep.mubr.f32.mxu0 0.0
        %1049 = vmatmul.mubr.f32.gmra.mrb[0].mxu0 %v883
        %v1050 = vpop.f32.mrb[0].mxu0
        %v1051 = vadd.f32 %v858, %v1050
        %v1052 = vpop.f32.mrb[0].mxu0
        %1053 = vmatprep.mubr.f32.mxu0 0.0
        %1054 = vmatmul.mubr.f32.gmra.mrb[0].mxu0 %v885
        %v1055 = vpop.f32.mrb[0].mxu0
        %v1056 = vadd.f32 %v858, %v1055
        %v1057 = vpop.f32.mrb[0].mxu0
        %1058 = vmatprep.mubr.f32.mxu0 0.0
        %1059 = vmatmul.mubr.f32.gmra.mrb[0].mxu0 %v887
        %v1060 = vpop.f32.mrb[0].mxu0
        %v1061 = vadd.f32 %v858, %v1060
        %v1062 = vpop.f32.mrb[0].mxu0
        %1063 = vmatprep.mubr.f32.mxu0 0.0
        %1064 = vmatmul.mubr.f32.gmra.mrb[0].mxu0 %v889
        %v1065 = vpop.f32.mrb[0].mxu0
        %v1066 = vadd.f32 %v858, %v1065
        %v1067 = vpop.f32.mrb[0].mxu0
        %1068 = vmatprep.mubr.f32.mxu0 0.0
        %1069 = vmatmul.mubr.f32.gmra.mrb[0].mxu0 %v891
        %v1070 = vpop.f32.mrb[0].mxu0
        %v1071 = vadd.f32 %v858, %v1070
        %v1072 = vpop.f32.mrb[0].mxu0
        %1073 = vmatprep.mubr.f32.mxu0 0.0
        %1074 = vmatmul.mubr.f32.gmra.mrb[0].mxu0 %v893
        %v1075 = vpop.f32.mrb[0].mxu0
        %v1076 = vadd.f32 %v858, %v1075
        %v1077 = vpop.f32.mrb[0].mxu0
        %1078 = vmatprep.mubr.f32.mxu0 0.0
        %1079 = vmatmul.mubr.f32.gmra.mrb[0].mxu0 %v895
        %v1080 = vpop.f32.mrb[0].mxu0
        %v1081 = vadd.f32 %v858, %v1080
        %v1082 = vpop.f32.mrb[0].mxu0
        %1083 = vmatprep.mubr.f32.mxu0 0.0
        %1084 = vmatmul.mubr.f32.gmra.mrb[0].mxu0 %v897
        %v1085 = vpop.f32.mrb[0].mxu0
        %v1086 = vadd.f32 %v858, %v1085
        %v1087 = vpop.f32.mrb[0].mxu0
        %1088 = vmatprep.mubr.f32.mxu0 0.0
        %1089 = vmatmul.mubr.f32.gmra.mrb[0].mxu0 %v899
        %v1090 = vpop.f32.mrb[0].mxu0
        %v1091 = vadd.f32 %v858, %v1090
        %v1092 = vpop.f32.mrb[0].mxu0
        %1093 = vmatprep.mubr.f32.mxu0 0.0
        %1094 = vmatmul.mubr.f32.gmra.mrb[0].mxu0 %v901
        %v1095 = vpop.f32.mrb[0].mxu0
        %v1096 = vadd.f32 %v858, %v1095
        %v1097 = vpop.f32.mrb[0].mxu0
        %1098 = vmatprep.mubr.f32.mxu0 0.0
        %1099 = vmatmul.mubr.f32.gmra.mrb[0].mxu0 %v903
        %v1100 = vpop.f32.mrb[0].mxu0
        %v1101 = vadd.f32 %v858, %v1100
        %v1102 = vpop.f32.mrb[0].mxu0
        %1103 = vmatprep.mubr.f32.mxu0 0.0
        %1104 = vmatmul.mubr.f32.gmra.mrb[0].mxu0 %v905
        %v1105 = vpop.f32.mrb[0].mxu0
        %v1106 = vadd.f32 %v858, %v1105
        %v1107 = vpop.f32.mrb[0].mxu0
        %1108 = vmatprep.mubr.f32.mxu0 0.0
        %1109 = vmatmul.mubr.f32.gmra.mrb[0].mxu0 %v907
        %v1110 = vpop.f32.mrb[0].mxu0
        %v1111 = vadd.f32 %v858, %v1110
        %v1112 = vpop.f32.mrb[0].mxu0
        %1113 = vmatprep.mubr.f32.mxu0 0.0
        %1114 = vmatmul.mubr.f32.gmra.mrb[0].mxu0 %v909
        %v1115 = vpop.f32.mrb[0].mxu0
        %v1116 = vadd.f32 %v858, %v1115
        %v1117 = vpop.f32.mrb[0].mxu0
        %1118 = vmatprep.mubr.f32.mxu0 0.0
        %1119 = vmatmul.mubr.f32.gmra.mrb[0].mxu0 %v911
        %v1120 = vpop.f32.mrb[0].mxu0
        %v1121 = vadd.f32 %v858, %v1120
        %v1122 = vpop.f32.mrb[0].mxu0
        %1123 = vmatprep.mubr.f32.mxu0 0.0
        %1124 = vmatmul.mubr.f32.gmra.mrb[0].mxu0 %v913
        %v1125 = vpop.f32.mrb[0].mxu0
        %v1126 = vadd.f32 %v858, %v1125
        %v1127 = vpop.f32.mrb[0].mxu0
        %1128 = vmatprep.mubr.f32.mxu0 0.0
        %1129 = vmatmul.mubr.f32.gmra.mrb[0].mxu0 %v915
        %v1130 = vpop.f32.mrb[0].mxu0
        %v1131 = vadd.f32 %v858, %v1130
        %v1132 = vpop.f32.mrb[0].mxu0
        %1133 = vmatprep.mubr.f32.mxu0 0.0
        %1134 = vmatmul.mubr.f32.gmra.mrb[0].mxu0 %v917
        %v1135 = vpop.f32.mrb[0].mxu0
        %v1136 = vadd.f32 %v858, %v1135
        %v1137 = vpop.f32.mrb[0].mxu0
        %1138 = vmatprep.mubr.f32.mxu0 0.0
        %1139 = vmatmul.mubr.f32.gmra.mrb[0].mxu0 %v919
        %v1140 = vpop.f32.mrb[0].mxu0
        %v1141 = vadd.f32 %v858, %v1140
        %v1142 = vpop.f32.mrb[0].mxu0
        %1143 = vmatprep.mubr.f32.mxu0 0.0
        %1144 = vmatmul.mubr.f32.gmra.mrb[0].mxu0 %v921
        %v1145 = vpop.f32.mrb[0].mxu0
        %v1146 = vadd.f32 %v858, %v1145
        %v1147 = vpop.f32.mrb[0].mxu0
        %1148 = vmatprep.mubr.f32.mxu0 0.0
        %1149 = vmatmul.mubr.f32.gmra.mrb[0].mxu0 %v923
        %v1150 = vpop.f32.mrb[0].mxu0
        %v1151 = vadd.f32 %v858, %v1150
        %v1152 = vpop.f32.mrb[0].mxu0
        %1153 = vdwg.mxu0
        %v1154 = vmax.f32 %v996, 0.0
        %v1155 = vmax.f32 %v1001, 0.0
        %v1156 = vmax.f32 %v1006, 0.0
        %v1157 = vmax.f32 %v1011, 0.0
        %v1158 = vmax.f32 %v1016, 0.0
        %v1159 = vmax.f32 %v1021, 0.0
        %v1160 = vmax.f32 %v1026, 0.0
        %v1161 = vmax.f32 %v1031, 0.0
        %v1162 = vmax.f32 %v1036, 0.0
        %v1163 = vmax.f32 %v1041, 0.0
        %v1164 = vmax.f32 %v1046, 0.0
        %v1165 = vmax.f32 %v1051, 0.0
        %v1166 = vmax.f32 %v1056, 0.0
        %v1167 = vmax.f32 %v1061, 0.0
        %v1168 = vmax.f32 %v1066, 0.0
        %v1169 = vmax.f32 %v1071, 0.0
        %v1170 = vmax.f32 %v1076, 0.0
        %v1171 = vmax.f32 %v1081, 0.0
        %v1172 = vmax.f32 %v1086, 0.0
        %v1173 = vmax.f32 %v1091, 0.0
        %v1174 = vmax.f32 %v1096, 0.0
        %v1175 = vmax.f32 %v1101, 0.0
        %v1176 = vmax.f32 %v1106, 0.0
        %v1177 = vmax.f32 %v1111, 0.0
        %v1178 = vmax.f32 %v1116, 0.0
        %v1179 = vmax.f32 %v1121, 0.0
        %v1180 = vmax.f32 %v1126, 0.0
        %v1181 = vmax.f32 %v1131, 0.0
        %v1182 = vmax.f32 %v1136, 0.0
        %v1183 = vmax.f32 %v1141, 0.0
        %v1184 = vmax.f32 %v1146, 0.0
        %v1185 = vmax.f32 %v1151, 0.0
        %v1186 = vld [vmem:[%s7] sm:$0xff]
        %v1187 = vld [vmem:[%s7 + $0x8] sm:$0xff]
        %v1188 = vld [vmem:[%s7 + $0x10] sm:$0xff]
        %v1189 = vld [vmem:[%s7 + $0x18] sm:$0xff]
        %v1190 = vld [vmem:[%s7 + $0x20] sm:$0xff]
        %v1191 = vld [vmem:[%s7 + $0x28] sm:$0xff]
        %v1192 = vld [vmem:[%s7 + $0x30] sm:$0xff]
        %v1193 = vld [vmem:[%s7 + $0x38] sm:$0xff]
        %v1194 = vld [vmem:[%s7 + $0x40] sm:$0xff]
        %v1195 = vld [vmem:[%s7 + $0x48] sm:$0xff]
        %v1196 = vld [vmem:[%s7 + $0x50] sm:$0xff]
        %v1197 = vld [vmem:[%s7 + $0x58] sm:$0xff]
        %v1198 = vld [vmem:[%s7 + $0x60] sm:$0xff]
        %v1199 = vld [vmem:[%s7 + $0x68] sm:$0xff]
        %v1200 = vld [vmem:[%s7 + $0x70] sm:$0xff]
        %v1201 = vld [vmem:[%s7 + $0x78] sm:$0xff]
        %vm1220 = vcmask 1041408
        %v1221 = vrot.slane %v417, 6
        %v1222 = vrot.slane %v418, 6
        %v1223 = vsel %vm1220, %v1221, %v1222
        %v1224 = vrot.slane %v419, 6
        %v1225 = vsel %vm1220, %v1222, %v1224
        %v1226 = vrot.slane %v424, 6
        %v1227 = vrot.slane %v425, 6
        %v1228 = vsel %vm1220, %v1226, %v1227
        %v1229 = vrot.slane %v426, 6
        %v1230 = vsel %vm1220, %v1227, %v1229
        %v1231 = vrot.slane %v431, 6
        %v1232 = vrot.slane %v432, 6
        %v1233 = vsel %vm1220, %v1231, %v1232
        %v1234 = vrot.slane %v433, 6
        %v1235 = vsel %vm1220, %v1232, %v1234
        %v1236 = vrot.slane %v438, 6
        %v1237 = vrot.slane %v439, 6
        %v1238 = vsel %vm1220, %v1236, %v1237
        %v1239 = vrot.slane %v440, 6
        %v1240 = vsel %vm1220, %v1237, %v1239
        %v1241 = vrot.slane %v445, 6
        %v1242 = vrot.slane %v446, 6
        %v1243 = vsel %vm1220, %v1241, %v1242
        %v1244 = vrot.slane %v447, 6
        %v1245 = vsel %vm1220, %v1242, %v1244
        %v1246 = vrot.slane %v451, 6
        %v1247 = vrot.slane %v452, 6
        %v1248 = vsel %vm1220, %v1246, %v1247
        %v1249 = vrot.slane %v453, 6
        %v1250 = vsel %vm1220, %v1247, %v1249
        %v1251 = vrot.slane %v457, 6
        %v1252 = vrot.slane %v458, 6
        %v1253 = vsel %vm1220, %v1251, %v1252
        %v1254 = vrot.slane %v459, 6
        %v1255 = vsel %vm1220, %v1252, %v1254
        %v1256 = vrot.slane %v464, 6
        %v1257 = vrot.slane %v465, 6
        %v1258 = vsel %vm1220, %v1256, %v1257
        %v1259 = vrot.slane %v466, 6
        %v1260 = vsel %vm1220, %v1257, %v1259
        %v1261 = vrot.slane %v471, 6
        %v1262 = vrot.slane %v472, 6
        %v1263 = vsel %vm1220, %v1261, %v1262
        %v1264 = vrot.slane %v473, 6
        %v1265 = vsel %vm1220, %v1262, %v1264
        %v1266 = vrot.slane %v478, 6
        %v1267 = vrot.slane %v479, 6
        %v1268 = vsel %vm1220, %v1266, %v1267
        %v1269 = vrot.slane %v480, 6
        %v1270 = vsel %vm1220, %v1267, %v1269
        %v1271 = vrot.slane %v485, 6
        %v1272 = vrot.slane %v486, 6
        %v1273 = vsel %vm1220, %v1271, %v1272
        %v1274 = vrot.slane %v487, 6
        %v1275 = vsel %vm1220, %v1272, %v1274
        %v1276 = vrot.slane %v492, 6
        %v1277 = vrot.slane %v493, 6
        %v1278 = vsel %vm1220, %v1276, %v1277
        %v1279 = vrot.slane %v494, 6
        %v1280 = vsel %vm1220, %v1277, %v1279
        %v1281 = vrot.slane %v499, 6
        %v1282 = vrot.slane %v500, 6
        %v1283 = vsel %vm1220, %v1281, %v1282
        %v1284 = vrot.slane %v501, 6
        %v1285 = vsel %vm1220, %v1282, %v1284
        %v1286 = vrot.slane %v506, 6
        %v1287 = vrot.slane %v507, 6
        %v1288 = vsel %vm1220, %v1286, %v1287
        %v1289 = vrot.slane %v508, 6
        %v1290 = vsel %vm1220, %v1287, %v1289
        %v1291 = vrot.slane %v513, 6
        %v1292 = vrot.slane %v514, 6
        %v1293 = vsel %vm1220, %v1291, %v1292
        %v1294 = vrot.slane %v515, 6
        %v1295 = vsel %vm1220, %v1292, %v1294
        %v1296 = vrot.slane %v520, 6
        %v1297 = vrot.slane %v521, 6
        %v1298 = vsel %vm1220, %v1296, %v1297
        %v1299 = vrot.slane %v522, 6
        %v1300 = vsel %vm1220, %v1297, %v1299
        %1301 = vrot.lane.b32.xlu0 %v1221, 4
        %v1302 = vpop.permute.xlu0 %1301
        %1303 = vrot.lane.b32.xlu0 %v1223, 4
        %v1304 = vpop.permute.xlu0 %1303
        %1305 = vrot.lane.b32.xlu0 %v1225, 4
        %v1306 = vpop.permute.xlu0 %1305
        %1307 = vrot.lane.b32.xlu0 %v1226, 4
        %v1308 = vpop.permute.xlu0 %1307
        %1309 = vrot.lane.b32.xlu0 %v1228, 4
        %v1310 = vpop.permute.xlu0 %1309
        %1311 = vrot.lane.b32.xlu0 %v1230, 4
        %v1312 = vpop.permute.xlu0 %1311
        %1313 = vrot.lane.b32.xlu0 %v1231, 4
        %v1314 = vpop.permute.xlu0 %1313
        %1315 = vrot.lane.b32.xlu0 %v1233, 4
        %v1316 = vpop.permute.xlu0 %1315
        %1317 = vrot.lane.b32.xlu0 %v1235, 4
        %v1318 = vpop.permute.xlu0 %1317
        %1319 = vrot.lane.b32.xlu0 %v1236, 4
        %v1320 = vpop.permute.xlu0 %1319
        %1321 = vrot.lane.b32.xlu0 %v1238, 4
        %v1322 = vpop.permute.xlu0 %1321
        %1323 = vrot.lane.b32.xlu0 %v1240, 4
        %v1324 = vpop.permute.xlu0 %1323
        %1325 = vrot.lane.b32.xlu0 %v1241, 4
        %v1326 = vpop.permute.xlu0 %1325
        %1327 = vrot.lane.b32.xlu0 %v1243, 4
        %v1328 = vpop.permute.xlu0 %1327
        %1329 = vrot.lane.b32.xlu0 %v1245, 4
        %v1330 = vpop.permute.xlu0 %1329
        %1331 = vrot.lane.b32.xlu0 %v1246, 4
        %v1332 = vpop.permute.xlu0 %1331
        %1333 = vrot.lane.b32.xlu0 %v1248, 4
        %v1334 = vpop.permute.xlu0 %1333
        %1335 = vrot.lane.b32.xlu0 %v1250, 4
        %v1336 = vpop.permute.xlu0 %1335
        %1337 = vrot.lane.b32.xlu0 %v1251, 4
        %v1338 = vpop.permute.xlu0 %1337
        %1339 = vrot.lane.b32.xlu0 %v1253, 4
        %v1340 = vpop.permute.xlu0 %1339
        %1341 = vrot.lane.b32.xlu0 %v1255, 4
        %v1342 = vpop.permute.xlu0 %1341
        %1343 = vrot.lane.b32.xlu0 %v1256, 4
        %v1344 = vpop.permute.xlu0 %1343
        %1345 = vrot.lane.b32.xlu0 %v1258, 4
        %v1346 = vpop.permute.xlu0 %1345
        %1347 = vrot.lane.b32.xlu0 %v1260, 4
        %v1348 = vpop.permute.xlu0 %1347
        %1349 = vrot.lane.b32.xlu0 %v1261, 4
        %v1350 = vpop.permute.xlu0 %1349
        %1351 = vrot.lane.b32.xlu0 %v1263, 4
        %v1352 = vpop.permute.xlu0 %1351
        %1353 = vrot.lane.b32.xlu0 %v1265, 4
        %v1354 = vpop.permute.xlu0 %1353
        %1355 = vrot.lane.b32.xlu0 %v1266, 4
        %v1356 = vpop.permute.xlu0 %1355
        %1357 = vrot.lane.b32.xlu0 %v1268, 4
        %v1358 = vpop.permute.xlu0 %1357
        %1359 = vrot.lane.b32.xlu0 %v1270, 4
        %v1360 = vpop.permute.xlu0 %1359
        %1361 = vrot.lane.b32.xlu0 %v1271, 4
        %v1362 = vpop.permute.xlu0 %1361
        %1363 = vrot.lane.b32.xlu0 %v1273, 4
        %v1364 = vpop.permute.xlu0 %1363
        %1365 = vrot.lane.b32.xlu0 %v1275, 4
        %v1366 = vpop.permute.xlu0 %1365
        %1367 = vrot.lane.b32.xlu0 %v1276, 4
        %v1368 = vpop.permute.xlu0 %1367
        %1369 = vrot.lane.b32.xlu0 %v1278, 4
        %v1370 = vpop.permute.xlu0 %1369
        %1371 = vrot.lane.b32.xlu0 %v1280, 4
        %v1372 = vpop.permute.xlu0 %1371
        %1373 = vrot.lane.b32.xlu0 %v1281, 4
        %v1374 = vpop.permute.xlu0 %1373
        %1375 = vrot.lane.b32.xlu0 %v1283, 4
        %v1376 = vpop.permute.xlu0 %1375
        %1377 = vrot.lane.b32.xlu0 %v1285, 4
        %v1378 = vpop.permute.xlu0 %1377
        %1379 = vrot.lane.b32.xlu0 %v1286, 4
        %v1380 = vpop.permute.xlu0 %1379
        %1381 = vrot.lane.b32.xlu0 %v1288, 4
        %v1382 = vpop.permute.xlu0 %1381
        %1383 = vrot.lane.b32.xlu0 %v1290, 4
        %v1384 = vpop.permute.xlu0 %1383
        %1385 = vrot.lane.b32.xlu0 %v1291, 4
        %v1386 = vpop.permute.xlu0 %1385
        %1387 = vrot.lane.b32.xlu0 %v1293, 4
        %v1388 = vpop.permute.xlu0 %1387
        %1389 = vrot.lane.b32.xlu0 %v1295, 4
        %v1390 = vpop.permute.xlu0 %1389
        %1391 = vrot.lane.b32.xlu0 %v1296, 4
        %v1392 = vpop.permute.xlu0 %1391
        %1393 = vrot.lane.b32.xlu0 %v1298, 4
        %v1394 = vpop.permute.xlu0 %1393
        %1395 = vrot.lane.b32.xlu0 %v1300, 4
        %v1396 = vpop.permute.xlu0 %1395
        %v1445 = vrot.slane %v418, 4
        %v1446 = vrot.slane %v419, 4
        %v1447 = vsel %vm925, %v1445, %v1446
        %v1448 = vrot.slane %v425, 4
        %v1449 = vrot.slane %v426, 4
        %v1450 = vsel %vm925, %v1448, %v1449
        %v1451 = vrot.slane %v432, 4
        %v1452 = vrot.slane %v433, 4
        %v1453 = vsel %vm925, %v1451, %v1452
        %v1454 = vrot.slane %v439, 4
        %v1455 = vrot.slane %v440, 4
        %v1456 = vsel %vm925, %v1454, %v1455
        %v1457 = vrot.slane %v446, 4
        %v1458 = vrot.slane %v447, 4
        %v1459 = vsel %vm925, %v1457, %v1458
        %v1460 = vrot.slane %v452, 4
        %v1461 = vrot.slane %v453, 4
        %v1462 = vsel %vm925, %v1460, %v1461
        %v1463 = vrot.slane %v458, 4
        %v1464 = vrot.slane %v459, 4
        %v1465 = vsel %vm925, %v1463, %v1464
        %v1466 = vrot.slane %v465, 4
        %v1467 = vrot.slane %v466, 4
        %v1468 = vsel %vm925, %v1466, %v1467
        %v1469 = vrot.slane %v472, 4
        %v1470 = vrot.slane %v473, 4
        %v1471 = vsel %vm925, %v1469, %v1470
        %v1472 = vrot.slane %v479, 4
        %v1473 = vrot.slane %v480, 4
        %v1474 = vsel %vm925, %v1472, %v1473
        %v1475 = vrot.slane %v486, 4
        %v1476 = vrot.slane %v487, 4
        %v1477 = vsel %vm925, %v1475, %v1476
        %v1478 = vrot.slane %v493, 4
        %v1479 = vrot.slane %v494, 4
        %v1480 = vsel %vm925, %v1478, %v1479
        %v1481 = vrot.slane %v500, 4
        %v1482 = vrot.slane %v501, 4
        %v1483 = vsel %vm925, %v1481, %v1482
        %v1484 = vrot.slane %v507, 4
        %v1485 = vrot.slane %v508, 4
        %v1486 = vsel %vm925, %v1484, %v1485
        %v1487 = vrot.slane %v514, 4
        %v1488 = vrot.slane %v515, 4
        %v1489 = vsel %vm925, %v1487, %v1488
        %v1490 = vrot.slane %v521, 4
        %v1491 = vrot.slane %v522, 4
        %v1492 = vsel %vm925, %v1490, %v1491
        %1493 = vrot.lane.b32.xlu0 %v1445, 8
        %v1494 = vpop.permute.xlu0 %1493
        %1495 = vrot.lane.b32.xlu0 %v1447, 8
        %v1496 = vpop.permute.xlu0 %1495
        %1497 = vrot.lane.b32.xlu0 %v1446, 8
        %v1498 = vpop.permute.xlu0 %1497
        %1499 = vrot.lane.b32.xlu0 %v1448, 8
        %v1500 = vpop.permute.xlu0 %1499
        %1501 = vrot.lane.b32.xlu0 %v1450, 8
        %v1502 = vpop.permute.xlu0 %1501
        %1503 = vrot.lane.b32.xlu0 %v1449, 8
        %v1504 = vpop.permute.xlu0 %1503
        %1505 = vrot.lane.b32.xlu0 %v1451, 8
        %v1506 = vpop.permute.xlu0 %1505
        %1507 = vrot.lane.b32.xlu0 %v1453, 8
        %v1508 = vpop.permute.xlu0 %1507
        %1509 = vrot.lane.b32.xlu0 %v1452, 8
        %v1510 = vpop.permute.xlu0 %1509
        %1511 = vrot.lane.b32.xlu0 %v1454, 8
        %v1512 = vpop.permute.xlu0 %1511
        %1513 = vrot.lane.b32.xlu0 %v1456, 8
        %v1514 = vpop.permute.xlu0 %1513
        %1515 = vrot.lane.b32.xlu0 %v1455, 8
        %v1516 = vpop.permute.xlu0 %1515
        %1517 = vrot.lane.b32.xlu0 %v1457, 8
        %v1518 = vpop.permute.xlu0 %1517
        %1519 = vrot.lane.b32.xlu0 %v1459, 8
        %v1520 = vpop.permute.xlu0 %1519
        %1521 = vrot.lane.b32.xlu0 %v1458, 8
        %v1522 = vpop.permute.xlu0 %1521
        %1523 = vrot.lane.b32.xlu0 %v1460, 8
        %v1524 = vpop.permute.xlu0 %1523
        %1525 = vrot.lane.b32.xlu0 %v1462, 8
        %v1526 = vpop.permute.xlu0 %1525
        %1527 = vrot.lane.b32.xlu0 %v1461, 8
        %v1528 = vpop.permute.xlu0 %1527
        %1529 = vrot.lane.b32.xlu0 %v1463, 8
        %v1530 = vpop.permute.xlu0 %1529
        %1531 = vrot.lane.b32.xlu0 %v1465, 8
        %v1532 = vpop.permute.xlu0 %1531
        %1533 = vrot.lane.b32.xlu0 %v1464, 8
        %v1534 = vpop.permute.xlu0 %1533
        %1535 = vrot.lane.b32.xlu0 %v1466, 8
        %v1536 = vpop.permute.xlu0 %1535
        %1537 = vrot.lane.b32.xlu0 %v1468, 8
        %v1538 = vpop.permute.xlu0 %1537
        %1539 = vrot.lane.b32.xlu0 %v1467, 8
        %v1540 = vpop.permute.xlu0 %1539
        %1541 = vrot.lane.b32.xlu0 %v1469, 8
        %v1542 = vpop.permute.xlu0 %1541
        %1543 = vrot.lane.b32.xlu0 %v1471, 8
        %v1544 = vpop.permute.xlu0 %1543
        %1545 = vrot.lane.b32.xlu0 %v1470, 8
        %v1546 = vpop.permute.xlu0 %1545
        %1547 = vrot.lane.b32.xlu0 %v1472, 8
        %v1548 = vpop.permute.xlu0 %1547
        %1549 = vrot.lane.b32.xlu0 %v1474, 8
        %v1550 = vpop.permute.xlu0 %1549
        %1551 = vrot.lane.b32.xlu0 %v1473, 8
        %v1552 = vpop.permute.xlu0 %1551
        %1553 = vrot.lane.b32.xlu0 %v1475, 8
        %v1554 = vpop.permute.xlu0 %1553
        %1555 = vrot.lane.b32.xlu0 %v1477, 8
        %v1556 = vpop.permute.xlu0 %1555
        %1557 = vrot.lane.b32.xlu0 %v1476, 8
        %v1558 = vpop.permute.xlu0 %1557
        %1559 = vrot.lane.b32.xlu0 %v1478, 8
        %v1560 = vpop.permute.xlu0 %1559
        %1561 = vrot.lane.b32.xlu0 %v1480, 8
        %v1562 = vpop.permute.xlu0 %1561
        %1563 = vrot.lane.b32.xlu0 %v1479, 8
        %v1564 = vpop.permute.xlu0 %1563
        %1565 = vrot.lane.b32.xlu0 %v1481, 8
        %v1566 = vpop.permute.xlu0 %1565
        %1567 = vrot.lane.b32.xlu0 %v1483, 8
        %v1568 = vpop.permute.xlu0 %1567
        %1569 = vrot.lane.b32.xlu0 %v1482, 8
        %v1570 = vpop.permute.xlu0 %1569
        %1571 = vrot.lane.b32.xlu0 %v1484, 8
        %v1572 = vpop.permute.xlu0 %1571
        %1573 = vrot.lane.b32.xlu0 %v1486, 8
        %v1574 = vpop.permute.xlu0 %1573
        %1575 = vrot.lane.b32.xlu0 %v1485, 8
        %v1576 = vpop.permute.xlu0 %1575
        %1577 = vrot.lane.b32.xlu0 %v1487, 8
        %v1578 = vpop.permute.xlu0 %1577
        %1579 = vrot.lane.b32.xlu0 %v1489, 8
        %v1580 = vpop.permute.xlu0 %1579
        %1581 = vrot.lane.b32.xlu0 %v1488, 8
        %v1582 = vpop.permute.xlu0 %1581
        %1583 = vrot.lane.b32.xlu0 %v1490, 8
        %v1584 = vpop.permute.xlu0 %1583
        %1585 = vrot.lane.b32.xlu0 %v1492, 8
        %v1586 = vpop.permute.xlu0 %1585
        %1587 = vrot.lane.b32.xlu0 %v1491, 8
        %v1588 = vpop.permute.xlu0 %1587
        %1653 = vrot.lane.b32.xlu0 %v456, 12
        %v1654 = vpop.permute.xlu0 %1653
        %1655 = vrot.lane.b32.xlu0 %v457, 12
        %v1656 = vpop.permute.xlu0 %1655
        %1657 = vrot.lane.b32.xlu0 %v458, 12
        %v1658 = vpop.permute.xlu0 %1657
        %1659 = vrot.lane.b32.xlu0 %v463, 12
        %v1660 = vpop.permute.xlu0 %1659
        %1661 = vrot.lane.b32.xlu0 %v464, 12
        %v1662 = vpop.permute.xlu0 %1661
        %1663 = vrot.lane.b32.xlu0 %v465, 12
        %v1664 = vpop.permute.xlu0 %1663
        %1665 = vrot.lane.b32.xlu0 %v470, 12
        %v1666 = vpop.permute.xlu0 %1665
        %1667 = vrot.lane.b32.xlu0 %v471, 12
        %v1668 = vpop.permute.xlu0 %1667
        %1669 = vrot.lane.b32.xlu0 %v472, 12
        %v1670 = vpop.permute.xlu0 %1669
        %1671 = vrot.lane.b32.xlu0 %v477, 12
        %v1672 = vpop.permute.xlu0 %1671
        %1673 = vrot.lane.b32.xlu0 %v478, 12
        %v1674 = vpop.permute.xlu0 %1673
        %1675 = vrot.lane.b32.xlu0 %v479, 12
        %v1676 = vpop.permute.xlu0 %1675
        %1677 = vrot.lane.b32.xlu0 %v484, 12
        %v1678 = vpop.permute.xlu0 %1677
        %1679 = vrot.lane.b32.xlu0 %v485, 12
        %v1680 = vpop.permute.xlu0 %1679
        %1681 = vrot.lane.b32.xlu0 %v486, 12
        %v1682 = vpop.permute.xlu0 %1681
        %1683 = vrot.lane.b32.xlu0 %v491, 12
        %v1684 = vpop.permute.xlu0 %1683
        %1685 = vrot.lane.b32.xlu0 %v492, 12
        %v1686 = vpop.permute.xlu0 %1685
        %1687 = vrot.lane.b32.xlu0 %v493, 12
        %v1688 = vpop.permute.xlu0 %1687
        %1689 = vrot.lane.b32.xlu0 %v498, 12
        %v1690 = vpop.permute.xlu0 %1689
        %1691 = vrot.lane.b32.xlu0 %v499, 12
        %v1692 = vpop.permute.xlu0 %1691
        %1693 = vrot.lane.b32.xlu0 %v500, 12
        %v1694 = vpop.permute.xlu0 %1693
        %1695 = vrot.lane.b32.xlu0 %v505, 12
        %v1696 = vpop.permute.xlu0 %1695
        %1697 = vrot.lane.b32.xlu0 %v506, 12
        %v1698 = vpop.permute.xlu0 %1697
        %1699 = vrot.lane.b32.xlu0 %v507, 12
        %v1700 = vpop.permute.xlu0 %1699
        %1701 = vrot.lane.b32.xlu0 %v512, 12
        %v1702 = vpop.permute.xlu0 %1701
        %1703 = vrot.lane.b32.xlu0 %v513, 12
        %v1704 = vpop.permute.xlu0 %1703
        %1705 = vrot.lane.b32.xlu0 %v514, 12
        %v1706 = vpop.permute.xlu0 %1705
        %1707 = vrot.lane.b32.xlu0 %v519, 12
        %v1708 = vpop.permute.xlu0 %1707
        %1709 = vrot.lane.b32.xlu0 %v520, 12
        %v1710 = vpop.permute.xlu0 %1709
        %1711 = vrot.lane.b32.xlu0 %v521, 12
        %v1712 = vpop.permute.xlu0 %1711
        %1713 = vrot.lane.b32.xlu0 %v526, 12
        %v1714 = vpop.permute.xlu0 %1713
        %1715 = vrot.lane.b32.xlu0 %v527, 12
        %v1716 = vpop.permute.xlu0 %1715
        %1717 = vrot.lane.b32.xlu0 %v528, 12
        %v1718 = vpop.permute.xlu0 %1717
        %1719 = vrot.lane.b32.xlu0 %v533, 12
        %v1720 = vpop.permute.xlu0 %1719
        %1721 = vrot.lane.b32.xlu0 %v534, 12
        %v1722 = vpop.permute.xlu0 %1721
        %1723 = vrot.lane.b32.xlu0 %v535, 12
        %v1724 = vpop.permute.xlu0 %1723
        %1725 = vrot.lane.b32.xlu0 %v540, 12
        %v1726 = vpop.permute.xlu0 %1725
        %1727 = vrot.lane.b32.xlu0 %v541, 12
        %v1728 = vpop.permute.xlu0 %1727
        %1729 = vrot.lane.b32.xlu0 %v542, 12
        %v1730 = vpop.permute.xlu0 %1729
        %1731 = vrot.lane.b32.xlu0 %v547, 12
        %v1732 = vpop.permute.xlu0 %1731
        %1733 = vrot.lane.b32.xlu0 %v548, 12
        %v1734 = vpop.permute.xlu0 %1733
        %1735 = vrot.lane.b32.xlu0 %v549, 12
        %v1736 = vpop.permute.xlu0 %1735
        %1737 = vrot.lane.b32.xlu0 %v554, 12
        %v1738 = vpop.permute.xlu0 %1737
        %1739 = vrot.lane.b32.xlu0 %v555, 12
        %v1740 = vpop.permute.xlu0 %1739
        %1741 = vrot.lane.b32.xlu0 %v556, 12
        %v1742 = vpop.permute.xlu0 %1741
        %1743 = vrot.lane.b32.xlu0 %v561, 12
        %v1744 = vpop.permute.xlu0 %1743
        %1745 = vrot.lane.b32.xlu0 %v562, 12
        %v1746 = vpop.permute.xlu0 %1745
        %1747 = vrot.lane.b32.xlu0 %v563, 12
        %v1748 = vpop.permute.xlu0 %1747
        %v1797 = vrot.slane %v527, 6
        %v1798 = vrot.slane %v528, 6
        %v1799 = vsel %vm1220, %v1797, %v1798
        %v1800 = vrot.slane %v529, 6
        %v1801 = vsel %vm1220, %v1798, %v1800
        %v1802 = vrot.slane %v534, 6
        %v1803 = vrot.slane %v535, 6
        %v1804 = vsel %vm1220, %v1802, %v1803
        %v1805 = vrot.slane %v536, 6
        %v1806 = vsel %vm1220, %v1803, %v1805
        %v1807 = vrot.slane %v541, 6
        %v1808 = vrot.slane %v542, 6
        %v1809 = vsel %vm1220, %v1807, %v1808
        %v1810 = vrot.slane %v543, 6
        %v1811 = vsel %vm1220, %v1808, %v1810
        %v1812 = vrot.slane %v548, 6
        %v1813 = vrot.slane %v549, 6
        %v1814 = vsel %vm1220, %v1812, %v1813
        %v1815 = vrot.slane %v550, 6
        %v1816 = vsel %vm1220, %v1813, %v1815
        %v1817 = vrot.slane %v555, 6
        %v1818 = vrot.slane %v556, 6
        %v1819 = vsel %vm1220, %v1817, %v1818
        %v1820 = vrot.slane %v557, 6
        %v1821 = vsel %vm1220, %v1818, %v1820
        %v1822 = vrot.slane %v562, 6
        %v1823 = vrot.slane %v563, 6
        %v1824 = vsel %vm1220, %v1822, %v1823
        %v1825 = vrot.slane %v564, 6
        %v1826 = vsel %vm1220, %v1823, %v1825
        %1827 = vrot.lane.b32.xlu0 %v1251, 16
        %v1828 = vpop.permute.xlu0 %1827
        %1829 = vrot.lane.b32.xlu0 %v1253, 16
        %v1830 = vpop.permute.xlu0 %1829
        %1831 = vrot.lane.b32.xlu0 %v1255, 16
        %v1832 = vpop.permute.xlu0 %1831
        %1833 = vrot.lane.b32.xlu0 %v1256, 16
        %v1834 = vpop.permute.xlu0 %1833
        %1835 = vrot.lane.b32.xlu0 %v1258, 16
        %v1836 = vpop.permute.xlu0 %1835
        %1837 = vrot.lane.b32.xlu0 %v1260, 16
        %v1838 = vpop.permute.xlu0 %1837
        %1839 = vrot.lane.b32.xlu0 %v1261, 16
        %v1840 = vpop.permute.xlu0 %1839
        %1841 = vrot.lane.b32.xlu0 %v1263, 16
        %v1842 = vpop.permute.xlu0 %1841
        %1843 = vrot.lane.b32.xlu0 %v1265, 16
        %v1844 = vpop.permute.xlu0 %1843
        %1845 = vrot.lane.b32.xlu0 %v1266, 16
        %v1846 = vpop.permute.xlu0 %1845
        %1847 = vrot.lane.b32.xlu0 %v1268, 16
        %v1848 = vpop.permute.xlu0 %1847
        %1849 = vrot.lane.b32.xlu0 %v1270, 16
        %v1850 = vpop.permute.xlu0 %1849
        %1851 = vrot.lane.b32.xlu0 %v1271, 16
        %v1852 = vpop.permute.xlu0 %1851
        %1853 = vrot.lane.b32.xlu0 %v1273, 16
        %v1854 = vpop.permute.xlu0 %1853
        %1855 = vrot.lane.b32.xlu0 %v1275, 16
        %v1856 = vpop.permute.xlu0 %1855
        %1857 = vrot.lane.b32.xlu0 %v1276, 16
        %v1858 = vpop.permute.xlu0 %1857
        %1859 = vrot.lane.b32.xlu0 %v1278, 16
        %v1860 = vpop.permute.xlu0 %1859
        %1861 = vrot.lane.b32.xlu0 %v1280, 16
        %v1862 = vpop.permute.xlu0 %1861
        %1863 = vrot.lane.b32.xlu0 %v1281, 16
        %v1864 = vpop.permute.xlu0 %1863
        %1865 = vrot.lane.b32.xlu0 %v1283, 16
        %v1866 = vpop.permute.xlu0 %1865
        %1867 = vrot.lane.b32.xlu0 %v1285, 16
        %v1868 = vpop.permute.xlu0 %1867
        %1869 = vrot.lane.b32.xlu0 %v1286, 16
        %v1870 = vpop.permute.xlu0 %1869
        %1871 = vrot.lane.b32.xlu0 %v1288, 16
        %v1872 = vpop.permute.xlu0 %1871
        %1873 = vrot.lane.b32.xlu0 %v1290, 16
        %v1874 = vpop.permute.xlu0 %1873
        %1875 = vrot.lane.b32.xlu0 %v1291, 16
        %v1876 = vpop.permute.xlu0 %1875
        %1877 = vrot.lane.b32.xlu0 %v1293, 16
        %v1878 = vpop.permute.xlu0 %1877
        %1879 = vrot.lane.b32.xlu0 %v1295, 16
        %v1880 = vpop.permute.xlu0 %1879
        %1881 = vrot.lane.b32.xlu0 %v1296, 16
        %v1882 = vpop.permute.xlu0 %1881
        %1883 = vrot.lane.b32.xlu0 %v1298, 16
        %v1884 = vpop.permute.xlu0 %1883
        %1885 = vrot.lane.b32.xlu0 %v1300, 16
        %v1886 = vpop.permute.xlu0 %1885
        %1887 = vrot.lane.b32.xlu0 %v1797, 16
        %v1888 = vpop.permute.xlu0 %1887
        %1889 = vrot.lane.b32.xlu0 %v1799, 16
        %v1890 = vpop.permute.xlu0 %1889
        %1891 = vrot.lane.b32.xlu0 %v1801, 16
        %v1892 = vpop.permute.xlu0 %1891
        %1893 = vrot.lane.b32.xlu0 %v1802, 16
        %v1894 = vpop.permute.xlu0 %1893
        %1895 = vrot.lane.b32.xlu0 %v1804, 16
        %v1896 = vpop.permute.xlu0 %1895
        %1897 = vrot.lane.b32.xlu0 %v1806, 16
        %v1898 = vpop.permute.xlu0 %1897
        %1899 = vrot.lane.b32.xlu0 %v1807, 16
        %v1900 = vpop.permute.xlu0 %1899
        %1901 = vrot.lane.b32.xlu0 %v1809, 16
        %v1902 = vpop.permute.xlu0 %1901
        %1903 = vrot.lane.b32.xlu0 %v1811, 16
        %v1904 = vpop.permute.xlu0 %1903
        %1905 = vrot.lane.b32.xlu0 %v1812, 16
        %v1906 = vpop.permute.xlu0 %1905
        %1907 = vrot.lane.b32.xlu0 %v1814, 16
        %v1908 = vpop.permute.xlu0 %1907
        %1909 = vrot.lane.b32.xlu0 %v1816, 16
        %v1910 = vpop.permute.xlu0 %1909
        %1911 = vrot.lane.b32.xlu0 %v1817, 16
        %v1912 = vpop.permute.xlu0 %1911
        %1913 = vrot.lane.b32.xlu0 %v1819, 16
        %v1914 = vpop.permute.xlu0 %1913
        %1915 = vrot.lane.b32.xlu0 %v1821, 16
        %v1916 = vpop.permute.xlu0 %1915
        %1917 = vrot.lane.b32.xlu0 %v1822, 16
        %v1918 = vpop.permute.xlu0 %1917
        %1919 = vrot.lane.b32.xlu0 %v1824, 16
        %v1920 = vpop.permute.xlu0 %1919
        %1921 = vrot.lane.b32.xlu0 %v1826, 16
        %v1922 = vpop.permute.xlu0 %1921
        %v1971 = vrot.slane %v528, 4
        %v1972 = vrot.slane %v529, 4
        %v1973 = vsel %vm925, %v1971, %v1972
        %v1974 = vrot.slane %v535, 4
        %v1975 = vrot.slane %v536, 4
        %v1976 = vsel %vm925, %v1974, %v1975
        %v1977 = vrot.slane %v542, 4
        %v1978 = vrot.slane %v543, 4
        %v1979 = vsel %vm925, %v1977, %v1978
        %v1980 = vrot.slane %v549, 4
        %v1981 = vrot.slane %v550, 4
        %v1982 = vsel %vm925, %v1980, %v1981
        %v1983 = vrot.slane %v556, 4
        %v1984 = vrot.slane %v557, 4
        %v1985 = vsel %vm925, %v1983, %v1984
        %v1986 = vrot.slane %v563, 4
        %v1987 = vrot.slane %v564, 4
        %v1988 = vsel %vm925, %v1986, %v1987
        %1989 = vrot.lane.b32.xlu0 %v1463, 20
        %v1990 = vpop.permute.xlu0 %1989
        %1991 = vrot.lane.b32.xlu0 %v1465, 20
        %v1992 = vpop.permute.xlu0 %1991
        %1993 = vrot.lane.b32.xlu0 %v1464, 20
        %v1994 = vpop.permute.xlu0 %1993
        %1995 = vrot.lane.b32.xlu0 %v1466, 20
        %v1996 = vpop.permute.xlu0 %1995
        %1997 = vrot.lane.b32.xlu0 %v1468, 20
        %v1998 = vpop.permute.xlu0 %1997
        %1999 = vrot.lane.b32.xlu0 %v1467, 20
        %v2000 = vpop.permute.xlu0 %1999
        %2001 = vrot.lane.b32.xlu0 %v1469, 20
        %v2002 = vpop.permute.xlu0 %2001
        %2003 = vrot.lane.b32.xlu0 %v1471, 20
        %v2004 = vpop.permute.xlu0 %2003
        %2005 = vrot.lane.b32.xlu0 %v1470, 20
        %v2006 = vpop.permute.xlu0 %2005
        %2007 = vrot.lane.b32.xlu0 %v1472, 20
        %v2008 = vpop.permute.xlu0 %2007
        %2009 = vrot.lane.b32.xlu0 %v1474, 20
        %v2010 = vpop.permute.xlu0 %2009
        %2011 = vrot.lane.b32.xlu0 %v1473, 20
        %v2012 = vpop.permute.xlu0 %2011
        %2013 = vrot.lane.b32.xlu0 %v1475, 20
        %v2014 = vpop.permute.xlu0 %2013
        %2015 = vrot.lane.b32.xlu0 %v1477, 20
        %v2016 = vpop.permute.xlu0 %2015
        %2017 = vrot.lane.b32.xlu0 %v1476, 20
        %v2018 = vpop.permute.xlu0 %2017
        %2019 = vrot.lane.b32.xlu0 %v1478, 20
        %v2020 = vpop.permute.xlu0 %2019
        %2021 = vrot.lane.b32.xlu0 %v1480, 20
        %v2022 = vpop.permute.xlu0 %2021
        %2023 = vrot.lane.b32.xlu0 %v1479, 20
        %v2024 = vpop.permute.xlu0 %2023
        %2025 = vrot.lane.b32.xlu0 %v1481, 20
        %v2026 = vpop.permute.xlu0 %2025
        %2027 = vrot.lane.b32.xlu0 %v1483, 20
        %v2028 = vpop.permute.xlu0 %2027
        %2029 = vrot.lane.b32.xlu0 %v1482, 20
        %v2030 = vpop.permute.xlu0 %2029
        %2031 = vrot.lane.b32.xlu0 %v1484, 20
        %v2032 = vpop.permute.xlu0 %2031
        %2033 = vrot.lane.b32.xlu0 %v1486, 20
        %v2034 = vpop.permute.xlu0 %2033
        %2035 = vrot.lane.b32.xlu0 %v1485, 20
        %v2036 = vpop.permute.xlu0 %2035
        %2037 = vrot.lane.b32.xlu0 %v1487, 20
        %v2038 = vpop.permute.xlu0 %2037
        %2039 = vrot.lane.b32.xlu0 %v1489, 20
        %v2040 = vpop.permute.xlu0 %2039
        %2041 = vrot.lane.b32.xlu0 %v1488, 20
        %v2042 = vpop.permute.xlu0 %2041
        %2043 = vrot.lane.b32.xlu0 %v1490, 20
        %v2044 = vpop.permute.xlu0 %2043
        %2045 = vrot.lane.b32.xlu0 %v1492, 20
        %v2046 = vpop.permute.xlu0 %2045
        %2047 = vrot.lane.b32.xlu0 %v1491, 20
        %v2048 = vpop.permute.xlu0 %2047
        %2049 = vrot.lane.b32.xlu0 %v1971, 20
        %v2050 = vpop.permute.xlu0 %2049
        %2051 = vrot.lane.b32.xlu0 %v1973, 20
        %v2052 = vpop.permute.xlu0 %2051
        %2053 = vrot.lane.b32.xlu0 %v1972, 20
        %v2054 = vpop.permute.xlu0 %2053
        %2055 = vrot.lane.b32.xlu0 %v1974, 20
        %v2056 = vpop.permute.xlu0 %2055
        %2057 = vrot.lane.b32.xlu0 %v1976, 20
        %v2058 = vpop.permute.xlu0 %2057
        %2059 = vrot.lane.b32.xlu0 %v1975, 20
        %v2060 = vpop.permute.xlu0 %2059
        %2061 = vrot.lane.b32.xlu0 %v1977, 20
        %v2062 = vpop.permute.xlu0 %2061
        %2063 = vrot.lane.b32.xlu0 %v1979, 20
        %v2064 = vpop.permute.xlu0 %2063
        %2065 = vrot.lane.b32.xlu0 %v1978, 20
        %v2066 = vpop.permute.xlu0 %2065
        %2067 = vrot.lane.b32.xlu0 %v1980, 20
        %v2068 = vpop.permute.xlu0 %2067
        %2069 = vrot.lane.b32.xlu0 %v1982, 20
        %v2070 = vpop.permute.xlu0 %2069
        %2071 = vrot.lane.b32.xlu0 %v1981, 20
        %v2072 = vpop.permute.xlu0 %2071
        %2073 = vrot.lane.b32.xlu0 %v1983, 20
        %v2074 = vpop.permute.xlu0 %2073
        %2075 = vrot.lane.b32.xlu0 %v1985, 20
        %v2076 = vpop.permute.xlu0 %2075
        %2077 = vrot.lane.b32.xlu0 %v1984, 20
        %v2078 = vpop.permute.xlu0 %2077
        %2079 = vrot.lane.b32.xlu0 %v1986, 20
        %v2080 = vpop.permute.xlu0 %2079
        %2081 = vrot.lane.b32.xlu0 %v1988, 20
        %v2082 = vpop.permute.xlu0 %2081
        %2083 = vrot.lane.b32.xlu0 %v1987, 20
        %v2084 = vpop.permute.xlu0 %2083
        %2151 = vrot.lane.b32.xlu0 %v498, 24
        %v2152 = vpop.permute.xlu0 %2151
        %2153 = vrot.lane.b32.xlu0 %v499, 24
        %v2154 = vpop.permute.xlu0 %2153
        %2155 = vrot.lane.b32.xlu0 %v500, 24
        %v2156 = vpop.permute.xlu0 %2155
        %2157 = vrot.lane.b32.xlu0 %v505, 24
        %v2158 = vpop.permute.xlu0 %2157
        %2159 = vrot.lane.b32.xlu0 %v506, 24
        %v2160 = vpop.permute.xlu0 %2159
        %2161 = vrot.lane.b32.xlu0 %v507, 24
        %v2162 = vpop.permute.xlu0 %2161
        %2163 = vrot.lane.b32.xlu0 %v512, 24
        %v2164 = vpop.permute.xlu0 %2163
        %2165 = vrot.lane.b32.xlu0 %v513, 24
        %v2166 = vpop.permute.xlu0 %2165
        %2167 = vrot.lane.b32.xlu0 %v514, 24
        %v2168 = vpop.permute.xlu0 %2167
        %2169 = vrot.lane.b32.xlu0 %v519, 24
        %v2170 = vpop.permute.xlu0 %2169
        %2171 = vrot.lane.b32.xlu0 %v520, 24
        %v2172 = vpop.permute.xlu0 %2171
        %2173 = vrot.lane.b32.xlu0 %v521, 24
        %v2174 = vpop.permute.xlu0 %2173
        %2175 = vrot.lane.b32.xlu0 %v526, 24
        %v2176 = vpop.permute.xlu0 %2175
        %2177 = vrot.lane.b32.xlu0 %v527, 24
        %v2178 = vpop.permute.xlu0 %2177
        %2179 = vrot.lane.b32.xlu0 %v528, 24
        %v2180 = vpop.permute.xlu0 %2179
        %2181 = vrot.lane.b32.xlu0 %v533, 24
        %v2182 = vpop.permute.xlu0 %2181
        %2183 = vrot.lane.b32.xlu0 %v534, 24
        %v2184 = vpop.permute.xlu0 %2183
        %2185 = vrot.lane.b32.xlu0 %v535, 24
        %v2186 = vpop.permute.xlu0 %2185
        %2187 = vrot.lane.b32.xlu0 %v540, 24
        %v2188 = vpop.permute.xlu0 %2187
        %2189 = vrot.lane.b32.xlu0 %v541, 24
        %v2190 = vpop.permute.xlu0 %2189
        %2191 = vrot.lane.b32.xlu0 %v542, 24
        %v2192 = vpop.permute.xlu0 %2191
        %2193 = vrot.lane.b32.xlu0 %v547, 24
        %v2194 = vpop.permute.xlu0 %2193
        %2195 = vrot.lane.b32.xlu0 %v548, 24
        %v2196 = vpop.permute.xlu0 %2195
        %2197 = vrot.lane.b32.xlu0 %v549, 24
        %v2198 = vpop.permute.xlu0 %2197
        %2199 = vrot.lane.b32.xlu0 %v554, 24
        %v2200 = vpop.permute.xlu0 %2199
        %2201 = vrot.lane.b32.xlu0 %v555, 24
        %v2202 = vpop.permute.xlu0 %2201
        %2203 = vrot.lane.b32.xlu0 %v556, 24
        %v2204 = vpop.permute.xlu0 %2203
        %2205 = vrot.lane.b32.xlu0 %v561, 24
        %v2206 = vpop.permute.xlu0 %2205
        %2207 = vrot.lane.b32.xlu0 %v562, 24
        %v2208 = vpop.permute.xlu0 %2207
        %2209 = vrot.lane.b32.xlu0 %v563, 24
        %v2210 = vpop.permute.xlu0 %2209
        %2211 = vrot.lane.b32.xlu0 %v568, 24
        %v2212 = vpop.permute.xlu0 %2211
        %2213 = vrot.lane.b32.xlu0 %v569, 24
        %v2214 = vpop.permute.xlu0 %2213
        %2215 = vrot.lane.b32.xlu0 %v570, 24
        %v2216 = vpop.permute.xlu0 %2215
        %2217 = vrot.lane.b32.xlu0 %v574, 24
        %v2218 = vpop.permute.xlu0 %2217
        %2219 = vrot.lane.b32.xlu0 %v575, 24
        %v2220 = vpop.permute.xlu0 %2219
        %2221 = vrot.lane.b32.xlu0 %v576, 24
        %v2222 = vpop.permute.xlu0 %2221
        %2223 = vrot.lane.b32.xlu0 %v580, 24
        %v2224 = vpop.permute.xlu0 %2223
        %2225 = vrot.lane.b32.xlu0 %v581, 24
        %v2226 = vpop.permute.xlu0 %2225
        %2227 = vrot.lane.b32.xlu0 %v582, 24
        %v2228 = vpop.permute.xlu0 %2227
        %2229 = vrot.lane.b32.xlu0 %v587, 24
        %v2230 = vpop.permute.xlu0 %2229
        %2231 = vrot.lane.b32.xlu0 %v588, 24
        %v2232 = vpop.permute.xlu0 %2231
        %2233 = vrot.lane.b32.xlu0 %v589, 24
        %v2234 = vpop.permute.xlu0 %2233
        %2235 = vrot.lane.b32.xlu0 %v594, 24
        %v2236 = vpop.permute.xlu0 %2235
        %2237 = vrot.lane.b32.xlu0 %v595, 24
        %v2238 = vpop.permute.xlu0 %2237
        %2239 = vrot.lane.b32.xlu0 %v596, 24
        %v2240 = vpop.permute.xlu0 %2239
        %2241 = vrot.lane.b32.xlu0 %v601, 24
        %v2242 = vpop.permute.xlu0 %2241
        %2243 = vrot.lane.b32.xlu0 %v602, 24
        %v2244 = vpop.permute.xlu0 %2243
        %2245 = vrot.lane.b32.xlu0 %v603, 24
        %v2246 = vpop.permute.xlu0 %2245
        %v2301 = vrot.slane %v569, 6
        %v2302 = vrot.slane %v570, 6
        %v2303 = vsel %vm1220, %v2301, %v2302
        %v2304 = vrot.slane %v571, 6
        %v2305 = vsel %vm1220, %v2302, %v2304
        %v2306 = vrot.slane %v575, 6
        %v2307 = vrot.slane %v576, 6
        %v2308 = vsel %vm1220, %v2306, %v2307
        %v2309 = vrot.slane %v577, 6
        %v2310 = vsel %vm1220, %v2307, %v2309
        %v2311 = vrot.slane %v581, 6
        %v2312 = vrot.slane %v582, 6
        %v2313 = vsel %vm1220, %v2311, %v2312
        %v2314 = vrot.slane %v583, 6
        %v2315 = vsel %vm1220, %v2312, %v2314
        %v2316 = vrot.slane %v588, 6
        %v2317 = vrot.slane %v589, 6
        %v2318 = vsel %vm1220, %v2316, %v2317
        %v2319 = vrot.slane %v590, 6
        %v2320 = vsel %vm1220, %v2317, %v2319
        %v2321 = vrot.slane %v595, 6
        %v2322 = vrot.slane %v596, 6
        %v2323 = vsel %vm1220, %v2321, %v2322
        %v2324 = vrot.slane %v597, 6
        %v2325 = vsel %vm1220, %v2322, %v2324
        %v2326 = vrot.slane %v602, 6
        %v2327 = vrot.slane %v603, 6
        %v2328 = vsel %vm1220, %v2326, %v2327
        %v2329 = vrot.slane %v604, 6
        %v2330 = vsel %vm1220, %v2327, %v2329
        %2331 = vrot.lane.b32.xlu0 %v1281, 28
        %v2332 = vpop.permute.xlu0 %2331
        %2333 = vrot.lane.b32.xlu0 %v1283, 28
        %v2334 = vpop.permute.xlu0 %2333
        %2335 = vrot.lane.b32.xlu0 %v1285, 28
        %v2336 = vpop.permute.xlu0 %2335
        %2337 = vrot.lane.b32.xlu0 %v1286, 28
        %v2338 = vpop.permute.xlu0 %2337
        %2339 = vrot.lane.b32.xlu0 %v1288, 28
        %v2340 = vpop.permute.xlu0 %2339
        %2341 = vrot.lane.b32.xlu0 %v1290, 28
        %v2342 = vpop.permute.xlu0 %2341
        %2343 = vrot.lane.b32.xlu0 %v1291, 28
        %v2344 = vpop.permute.xlu0 %2343
        %2345 = vrot.lane.b32.xlu0 %v1293, 28
        %v2346 = vpop.permute.xlu0 %2345
        %2347 = vrot.lane.b32.xlu0 %v1295, 28
        %v2348 = vpop.permute.xlu0 %2347
        %2349 = vrot.lane.b32.xlu0 %v1296, 28
        %v2350 = vpop.permute.xlu0 %2349
        %2351 = vrot.lane.b32.xlu0 %v1298, 28
        %v2352 = vpop.permute.xlu0 %2351
        %2353 = vrot.lane.b32.xlu0 %v1300, 28
        %v2354 = vpop.permute.xlu0 %2353
        %2355 = vrot.lane.b32.xlu0 %v1797, 28
        %v2356 = vpop.permute.xlu0 %2355
        %2357 = vrot.lane.b32.xlu0 %v1799, 28
        %v2358 = vpop.permute.xlu0 %2357
        %2359 = vrot.lane.b32.xlu0 %v1801, 28
        %v2360 = vpop.permute.xlu0 %2359
        %2361 = vrot.lane.b32.xlu0 %v1802, 28
        %v2362 = vpop.permute.xlu0 %2361
        %2363 = vrot.lane.b32.xlu0 %v1804, 28
        %v2364 = vpop.permute.xlu0 %2363
        %2365 = vrot.lane.b32.xlu0 %v1806, 28
        %v2366 = vpop.permute.xlu0 %2365
        %2367 = vrot.lane.b32.xlu0 %v1807, 28
        %v2368 = vpop.permute.xlu0 %2367
        %2369 = vrot.lane.b32.xlu0 %v1809, 28
        %v2370 = vpop.permute.xlu0 %2369
        %2371 = vrot.lane.b32.xlu0 %v1811, 28
        %v2372 = vpop.permute.xlu0 %2371
        %2373 = vrot.lane.b32.xlu0 %v1812, 28
        %v2374 = vpop.permute.xlu0 %2373
        %2375 = vrot.lane.b32.xlu0 %v1814, 28
        %v2376 = vpop.permute.xlu0 %2375
        %2377 = vrot.lane.b32.xlu0 %v1816, 28
        %v2378 = vpop.permute.xlu0 %2377
        %2379 = vrot.lane.b32.xlu0 %v1817, 28
        %v2380 = vpop.permute.xlu0 %2379
        %2381 = vrot.lane.b32.xlu0 %v1819, 28
        %v2382 = vpop.permute.xlu0 %2381
        %2383 = vrot.lane.b32.xlu0 %v1821, 28
        %v2384 = vpop.permute.xlu0 %2383
        %2385 = vrot.lane.b32.xlu0 %v1822, 28
        %v2386 = vpop.permute.xlu0 %2385
        %2387 = vrot.lane.b32.xlu0 %v1824, 28
        %v2388 = vpop.permute.xlu0 %2387
        %2389 = vrot.lane.b32.xlu0 %v1826, 28
        %v2390 = vpop.permute.xlu0 %2389
        %2391 = vrot.lane.b32.xlu0 %v2301, 28
        %v2392 = vpop.permute.xlu0 %2391
        %2393 = vrot.lane.b32.xlu0 %v2303, 28
        %v2394 = vpop.permute.xlu0 %2393
        %2395 = vrot.lane.b32.xlu0 %v2305, 28
        %v2396 = vpop.permute.xlu0 %2395
        %2397 = vrot.lane.b32.xlu0 %v2306, 28
        %v2398 = vpop.permute.xlu0 %2397
        %2399 = vrot.lane.b32.xlu0 %v2308, 28
        %v2400 = vpop.permute.xlu0 %2399
        %2401 = vrot.lane.b32.xlu0 %v2310, 28
        %v2402 = vpop.permute.xlu0 %2401
        %2403 = vrot.lane.b32.xlu0 %v2311, 28
        %v2404 = vpop.permute.xlu0 %2403
        %2405 = vrot.lane.b32.xlu0 %v2313, 28
        %v2406 = vpop.permute.xlu0 %2405
        %2407 = vrot.lane.b32.xlu0 %v2315, 28
        %v2408 = vpop.permute.xlu0 %2407
        %2409 = vrot.lane.b32.xlu0 %v2316, 28
        %v2410 = vpop.permute.xlu0 %2409
        %2411 = vrot.lane.b32.xlu0 %v2318, 28
        %v2412 = vpop.permute.xlu0 %2411
        %2413 = vrot.lane.b32.xlu0 %v2320, 28
        %v2414 = vpop.permute.xlu0 %2413
        %2415 = vrot.lane.b32.xlu0 %v2321, 28
        %v2416 = vpop.permute.xlu0 %2415
        %2417 = vrot.lane.b32.xlu0 %v2323, 28
        %v2418 = vpop.permute.xlu0 %2417
        %2419 = vrot.lane.b32.xlu0 %v2325, 28
        %v2420 = vpop.permute.xlu0 %2419
        %2421 = vrot.lane.b32.xlu0 %v2326, 28
        %v2422 = vpop.permute.xlu0 %2421
        %2423 = vrot.lane.b32.xlu0 %v2328, 28
        %v2424 = vpop.permute.xlu0 %2423
        %2425 = vrot.lane.b32.xlu0 %v2330, 28
        %v2426 = vpop.permute.xlu0 %2425
        %v2475 = vrot.slane %v570, 4
        %v2476 = vrot.slane %v571, 4
        %v2477 = vsel %vm925, %v2475, %v2476
        %v2478 = vrot.slane %v576, 4
        %v2479 = vrot.slane %v577, 4
        %v2480 = vsel %vm925, %v2478, %v2479
        %v2481 = vrot.slane %v582, 4
        %v2482 = vrot.slane %v583, 4
        %v2483 = vsel %vm925, %v2481, %v2482
        %v2484 = vrot.slane %v589, 4
        %v2485 = vrot.slane %v590, 4
        %v2486 = vsel %vm925, %v2484, %v2485
        %v2487 = vrot.slane %v596, 4
        %v2488 = vrot.slane %v597, 4
        %v2489 = vsel %vm925, %v2487, %v2488
        %v2490 = vrot.slane %v603, 4
        %v2491 = vrot.slane %v604, 4
        %v2492 = vsel %vm925, %v2490, %v2491
        %2493 = vrot.lane.b32.xlu0 %v1481, 32
        %v2494 = vpop.permute.xlu0 %2493
        %2495 = vrot.lane.b32.xlu0 %v1483, 32
        %v2496 = vpop.permute.xlu0 %2495
        %2497 = vrot.lane.b32.xlu0 %v1482, 32
        %v2498 = vpop.permute.xlu0 %2497
        %2499 = vrot.lane.b32.xlu0 %v1484, 32
        %v2500 = vpop.permute.xlu0 %2499
        %2501 = vrot.lane.b32.xlu0 %v1486, 32
        %v2502 = vpop.permute.xlu0 %2501
        %2503 = vrot.lane.b32.xlu0 %v1485, 32
        %v2504 = vpop.permute.xlu0 %2503
        %2505 = vrot.lane.b32.xlu0 %v1487, 32
        %v2506 = vpop.permute.xlu0 %2505
        %2507 = vrot.lane.b32.xlu0 %v1489, 32
        %v2508 = vpop.permute.xlu0 %2507
        %2509 = vrot.lane.b32.xlu0 %v1488, 32
        %v2510 = vpop.permute.xlu0 %2509
        %2511 = vrot.lane.b32.xlu0 %v1490, 32
        %v2512 = vpop.permute.xlu0 %2511
        %2513 = vrot.lane.b32.xlu0 %v1492, 32
        %v2514 = vpop.permute.xlu0 %2513
        %2515 = vrot.lane.b32.xlu0 %v1491, 32
        %v2516 = vpop.permute.xlu0 %2515
        %2517 = vrot.lane.b32.xlu0 %v1971, 32
        %v2518 = vpop.permute.xlu0 %2517
        %2519 = vrot.lane.b32.xlu0 %v1973, 32
        %v2520 = vpop.permute.xlu0 %2519
        %2521 = vrot.lane.b32.xlu0 %v1972, 32
        %v2522 = vpop.permute.xlu0 %2521
        %2523 = vrot.lane.b32.xlu0 %v1974, 32
        %v2524 = vpop.permute.xlu0 %2523
        %2525 = vrot.lane.b32.xlu0 %v1976, 32
        %v2526 = vpop.permute.xlu0 %2525
        %2527 = vrot.lane.b32.xlu0 %v1975, 32
        %v2528 = vpop.permute.xlu0 %2527
        %2529 = vrot.lane.b32.xlu0 %v1977, 32
        %v2530 = vpop.permute.xlu0 %2529
        %2531 = vrot.lane.b32.xlu0 %v1979, 32
        %v2532 = vpop.permute.xlu0 %2531
        %2533 = vrot.lane.b32.xlu0 %v1978, 32
        %v2534 = vpop.permute.xlu0 %2533
        %2535 = vrot.lane.b32.xlu0 %v1980, 32
        %v2536 = vpop.permute.xlu0 %2535
        %2537 = vrot.lane.b32.xlu0 %v1982, 32
        %v2538 = vpop.permute.xlu0 %2537
        %2539 = vrot.lane.b32.xlu0 %v1981, 32
        %v2540 = vpop.permute.xlu0 %2539
        %2541 = vrot.lane.b32.xlu0 %v1983, 32
        %v2542 = vpop.permute.xlu0 %2541
        %2543 = vrot.lane.b32.xlu0 %v1985, 32
        %v2544 = vpop.permute.xlu0 %2543
        %2545 = vrot.lane.b32.xlu0 %v1984, 32
        %v2546 = vpop.permute.xlu0 %2545
        %2547 = vrot.lane.b32.xlu0 %v1986, 32
        %v2548 = vpop.permute.xlu0 %2547
        %2549 = vrot.lane.b32.xlu0 %v1988, 32
        %v2550 = vpop.permute.xlu0 %2549
        %2551 = vrot.lane.b32.xlu0 %v1987, 32
        %v2552 = vpop.permute.xlu0 %2551
        %2553 = vrot.lane.b32.xlu0 %v2475, 32
        %v2554 = vpop.permute.xlu0 %2553
        %2555 = vrot.lane.b32.xlu0 %v2477, 32
        %v2556 = vpop.permute.xlu0 %2555
        %2557 = vrot.lane.b32.xlu0 %v2476, 32
        %v2558 = vpop.permute.xlu0 %2557
        %2559 = vrot.lane.b32.xlu0 %v2478, 32
        %v2560 = vpop.permute.xlu0 %2559
        %2561 = vrot.lane.b32.xlu0 %v2480, 32
        %v2562 = vpop.permute.xlu0 %2561
        %2563 = vrot.lane.b32.xlu0 %v2479, 32
        %v2564 = vpop.permute.xlu0 %2563
        %2565 = vrot.lane.b32.xlu0 %v2481, 32
        %v2566 = vpop.permute.xlu0 %2565
        %2567 = vrot.lane.b32.xlu0 %v2483, 32
        %v2568 = vpop.permute.xlu0 %2567
        %2569 = vrot.lane.b32.xlu0 %v2482, 32
        %v2570 = vpop.permute.xlu0 %2569
        %2571 = vrot.lane.b32.xlu0 %v2484, 32
        %v2572 = vpop.permute.xlu0 %2571
        %2573 = vrot.lane.b32.xlu0 %v2486, 32
        %v2574 = vpop.permute.xlu0 %2573
        %2575 = vrot.lane.b32.xlu0 %v2485, 32
        %v2576 = vpop.permute.xlu0 %2575
        %2577 = vrot.lane.b32.xlu0 %v2487, 32
        %v2578 = vpop.permute.xlu0 %2577
        %2579 = vrot.lane.b32.xlu0 %v2489, 32
        %v2580 = vpop.permute.xlu0 %2579
        %2581 = vrot.lane.b32.xlu0 %v2488, 32
        %v2582 = vpop.permute.xlu0 %2581
        %2583 = vrot.lane.b32.xlu0 %v2490, 32
        %v2584 = vpop.permute.xlu0 %2583
        %2585 = vrot.lane.b32.xlu0 %v2492, 32
        %v2586 = vpop.permute.xlu0 %2585
        %2587 = vrot.lane.b32.xlu0 %v2491, 32
        %v2588 = vpop.permute.xlu0 %2587
        %v2637 = vsel %vm860, %v416, %v1302
        %v2638 = vsel %vm860, %v417, %v1304
        %v2639 = vsel %vm860, %v418, %v1306
        %v2640 = vsel %vm860, %v423, %v1308
        %v2641 = vsel %vm860, %v424, %v1310
        %v2642 = vsel %vm860, %v425, %v1312
        %v2643 = vsel %vm860, %v430, %v1314
        %v2644 = vsel %vm860, %v431, %v1316
        %v2645 = vsel %vm860, %v432, %v1318
        %v2646 = vsel %vm860, %v437, %v1320
        %v2647 = vsel %vm860, %v438, %v1322
        %v2648 = vsel %vm860, %v439, %v1324
        %v2649 = vsel %vm860, %v444, %v1326
        %v2650 = vsel %vm860, %v445, %v1328
        %v2651 = vsel %vm860, %v446, %v1330
        %v2652 = vsel %vm860, %v450, %v1332
        %v2653 = vsel %vm860, %v451, %v1334
        %v2654 = vsel %vm860, %v452, %v1336
        %v2655 = vsel %vm860, %v456, %v1338
        %v2656 = vsel %vm860, %v457, %v1340
        %v2657 = vsel %vm860, %v458, %v1342
        %v2658 = vsel %vm860, %v463, %v1344
        %v2659 = vsel %vm860, %v464, %v1346
        %v2660 = vsel %vm860, %v465, %v1348
        %v2661 = vsel %vm860, %v470, %v1350
        %v2662 = vsel %vm860, %v471, %v1352
        %v2663 = vsel %vm860, %v472, %v1354
        %v2664 = vsel %vm860, %v477, %v1356
        %v2665 = vsel %vm860, %v478, %v1358
        %v2666 = vsel %vm860, %v479, %v1360
        %v2667 = vsel %vm860, %v484, %v1362
        %v2668 = vsel %vm860, %v485, %v1364
        %v2669 = vsel %vm860, %v486, %v1366
        %v2670 = vsel %vm860, %v491, %v1368
        %v2671 = vsel %vm860, %v492, %v1370
        %v2672 = vsel %vm860, %v493, %v1372
        %v2673 = vsel %vm860, %v498, %v1374
        %v2674 = vsel %vm860, %v499, %v1376
        %v2675 = vsel %vm860, %v500, %v1378
        %v2676 = vsel %vm860, %v505, %v1380
        %v2677 = vsel %vm860, %v506, %v1382
        %v2678 = vsel %vm860, %v507, %v1384
        %v2679 = vsel %vm860, %v512, %v1386
        %v2680 = vsel %vm860, %v513, %v1388
        %v2681 = vsel %vm860, %v514, %v1390
        %v2682 = vsel %vm860, %v519, %v1392
        %v2683 = vsel %vm860, %v520, %v1394
        %v2684 = vsel %vm860, %v521, %v1396
        %vm2685 = vcmask 64512
        %v2686 = vsel %vm2685, %v2637, %v1494
        %v2687 = vsel %vm2685, %v2638, %v1496
        %v2688 = vsel %vm2685, %v2639, %v1498
        %v2689 = vsel %vm2685, %v2640, %v1500
        %v2690 = vsel %vm2685, %v2641, %v1502
        %v2691 = vsel %vm2685, %v2642, %v1504
        %v2692 = vsel %vm2685, %v2643, %v1506
        %v2693 = vsel %vm2685, %v2644, %v1508
        %v2694 = vsel %vm2685, %v2645, %v1510
        %v2695 = vsel %vm2685, %v2646, %v1512
        %v2696 = vsel %vm2685, %v2647, %v1514
        %v2697 = vsel %vm2685, %v2648, %v1516
        %v2698 = vsel %vm2685, %v2649, %v1518
        %v2699 = vsel %vm2685, %v2650, %v1520
        %v2700 = vsel %vm2685, %v2651, %v1522
        %v2701 = vsel %vm2685, %v2652, %v1524
        %v2702 = vsel %vm2685, %v2653, %v1526
        %v2703 = vsel %vm2685, %v2654, %v1528
        %v2704 = vsel %vm2685, %v2655, %v1530
        %v2705 = vsel %vm2685, %v2656, %v1532
        %v2706 = vsel %vm2685, %v2657, %v1534
        %v2707 = vsel %vm2685, %v2658, %v1536
        %v2708 = vsel %vm2685, %v2659, %v1538
        %v2709 = vsel %vm2685, %v2660, %v1540
        %v2710 = vsel %vm2685, %v2661, %v1542
        %v2711 = vsel %vm2685, %v2662, %v1544
        %v2712 = vsel %vm2685, %v2663, %v1546
        %v2713 = vsel %vm2685, %v2664, %v1548
        %v2714 = vsel %vm2685, %v2665, %v1550
        %v2715 = vsel %vm2685, %v2666, %v1552
        %v2716 = vsel %vm2685, %v2667, %v1554
        %v2717 = vsel %vm2685, %v2668, %v1556
        %v2718 = vsel %vm2685, %v2669, %v1558
        %v2719 = vsel %vm2685, %v2670, %v1560
        %v2720 = vsel %vm2685, %v2671, %v1562
        %v2721 = vsel %vm2685, %v2672, %v1564
        %v2722 = vsel %vm2685, %v2673, %v1566
        %v2723 = vsel %vm2685, %v2674, %v1568
        %v2724 = vsel %vm2685, %v2675, %v1570
        %v2725 = vsel %vm2685, %v2676, %v1572
        %v2726 = vsel %vm2685, %v2677, %v1574
        %v2727 = vsel %vm2685, %v2678, %v1576
        %v2728 = vsel %vm2685, %v2679, %v1578
        %v2729 = vsel %vm2685, %v2680, %v1580
        %v2730 = vsel %vm2685, %v2681, %v1582
        %v2731 = vsel %vm2685, %v2682, %v1584
        %v2732 = vsel %vm2685, %v2683, %v1586
        %v2733 = vsel %vm2685, %v2684, %v1588
        %vm2734 = vcmask 97280
        %v2735 = vsel %vm2734, %v2686, %v1654
        %v2736 = vsel %vm2734, %v2687, %v1656
        %v2737 = vsel %vm2734, %v2688, %v1658
        %v2738 = vsel %vm2734, %v2689, %v1660
        %v2739 = vsel %vm2734, %v2690, %v1662
        %v2740 = vsel %vm2734, %v2691, %v1664
        %v2741 = vsel %vm2734, %v2692, %v1666
        %v2742 = vsel %vm2734, %v2693, %v1668
        %v2743 = vsel %vm2734, %v2694, %v1670
        %v2744 = vsel %vm2734, %v2695, %v1672
        %v2745 = vsel %vm2734, %v2696, %v1674
        %v2746 = vsel %vm2734, %v2697, %v1676
        %v2747 = vsel %vm2734, %v2698, %v1678
        %v2748 = vsel %vm2734, %v2699, %v1680
        %v2749 = vsel %vm2734, %v2700, %v1682
        %v2750 = vsel %vm2734, %v2701, %v1684
        %v2751 = vsel %vm2734, %v2702, %v1686
        %v2752 = vsel %vm2734, %v2703, %v1688
        %v2753 = vsel %vm2734, %v2704, %v1690
        %v2754 = vsel %vm2734, %v2705, %v1692
        %v2755 = vsel %vm2734, %v2706, %v1694
        %v2756 = vsel %vm2734, %v2707, %v1696
        %v2757 = vsel %vm2734, %v2708, %v1698
        %v2758 = vsel %vm2734, %v2709, %v1700
        %v2759 = vsel %vm2734, %v2710, %v1702
        %v2760 = vsel %vm2734, %v2711, %v1704
        %v2761 = vsel %vm2734, %v2712, %v1706
        %v2762 = vsel %vm2734, %v2713, %v1708
        %v2763 = vsel %vm2734, %v2714, %v1710
        %v2764 = vsel %vm2734, %v2715, %v1712
        %v2765 = vsel %vm2734, %v2716, %v1714
        %v2766 = vsel %vm2734, %v2717, %v1716
        %v2767 = vsel %vm2734, %v2718, %v1718
        %v2768 = vsel %vm2734, %v2719, %v1720
        %v2769 = vsel %vm2734, %v2720, %v1722
        %v2770 = vsel %vm2734, %v2721, %v1724
        %v2771 = vsel %vm2734, %v2722, %v1726
        %v2772 = vsel %vm2734, %v2723, %v1728
        %v2773 = vsel %vm2734, %v2724, %v1730
        %v2774 = vsel %vm2734, %v2725, %v1732
        %v2775 = vsel %vm2734, %v2726, %v1734
        %v2776 = vsel %vm2734, %v2727, %v1736
        %v2777 = vsel %vm2734, %v2728, %v1738
        %v2778 = vsel %vm2734, %v2729, %v1740
        %v2779 = vsel %vm2734, %v2730, %v1742
        %v2780 = vsel %vm2734, %v2731, %v1744
        %v2781 = vsel %vm2734, %v2732, %v1746
        %v2782 = vsel %vm2734, %v2733, %v1748
        %vm2783 = vcmask 130048
        %v2784 = vsel %vm2783, %v2735, %v1828
        %v2785 = vsel %vm2783, %v2736, %v1830
        %v2786 = vsel %vm2783, %v2737, %v1832
        %v2787 = vsel %vm2783, %v2738, %v1834
        %v2788 = vsel %vm2783, %v2739, %v1836
        %v2789 = vsel %vm2783, %v2740, %v1838
        %v2790 = vsel %vm2783, %v2741, %v1840
        %v2791 = vsel %vm2783, %v2742, %v1842
        %v2792 = vsel %vm2783, %v2743, %v1844
        %v2793 = vsel %vm2783, %v2744, %v1846
        %v2794 = vsel %vm2783, %v2745, %v1848
        %v2795 = vsel %vm2783, %v2746, %v1850
        %v2796 = vsel %vm2783, %v2747, %v1852
        %v2797 = vsel %vm2783, %v2748, %v1854
        %v2798 = vsel %vm2783, %v2749, %v1856
        %v2799 = vsel %vm2783, %v2750, %v1858
        %v2800 = vsel %vm2783, %v2751, %v1860
        %v2801 = vsel %vm2783, %v2752, %v1862
        %v2802 = vsel %vm2783, %v2753, %v1864
        %v2803 = vsel %vm2783, %v2754, %v1866
        %v2804 = vsel %vm2783, %v2755, %v1868
        %v2805 = vsel %vm2783, %v2756, %v1870
        %v2806 = vsel %vm2783, %v2757, %v1872
        %v2807 = vsel %vm2783, %v2758, %v1874
        %v2808 = vsel %vm2783, %v2759, %v1876
        %v2809 = vsel %vm2783, %v2760, %v1878
        %v2810 = vsel %vm2783, %v2761, %v1880
        %v2811 = vsel %vm2783, %v2762, %v1882
        %v2812 = vsel %vm2783, %v2763, %v1884
        %v2813 = vsel %vm2783, %v2764, %v1886
        %v2814 = vsel %vm2783, %v2765, %v1888
        %v2815 = vsel %vm2783, %v2766, %v1890
        %v2816 = vsel %vm2783, %v2767, %v1892
        %v2817 = vsel %vm2783, %v2768, %v1894
        %v2818 = vsel %vm2783, %v2769, %v1896
        %v2819 = vsel %vm2783, %v2770, %v1898
        %v2820 = vsel %vm2783, %v2771, %v1900
        %v2821 = vsel %vm2783, %v2772, %v1902
        %v2822 = vsel %vm2783, %v2773, %v1904
        %v2823 = vsel %vm2783, %v2774, %v1906
        %v2824 = vsel %vm2783, %v2775, %v1908
        %v2825 = vsel %vm2783, %v2776, %v1910
        %v2826 = vsel %vm2783, %v2777, %v1912
        %v2827 = vsel %vm2783, %v2778, %v1914
        %v2828 = vsel %vm2783, %v2779, %v1916
        %v2829 = vsel %vm2783, %v2780, %v1918
        %v2830 = vsel %vm2783, %v2781, %v1920
        %v2831 = vsel %vm2783, %v2782, %v1922
        %vm2832 = vcmask 162816
        %v2833 = vsel %vm2832, %v2784, %v1990
        %v2834 = vsel %vm2832, %v2785, %v1992
        %v2835 = vsel %vm2832, %v2786, %v1994
        %v2836 = vsel %vm2832, %v2787, %v1996
        %v2837 = vsel %vm2832, %v2788, %v1998
        %v2838 = vsel %vm2832, %v2789, %v2000
        %v2839 = vsel %vm2832, %v2790, %v2002
        %v2840 = vsel %vm2832, %v2791, %v2004
        %v2841 = vsel %vm2832, %v2792, %v2006
        %v2842 = vsel %vm2832, %v2793, %v2008
        %v2843 = vsel %vm2832, %v2794, %v2010
        %v2844 = vsel %vm2832, %v2795, %v2012
        %v2845 = vsel %vm2832, %v2796, %v2014
        %v2846 = vsel %vm2832, %v2797, %v2016
        %v2847 = vsel %vm2832, %v2798, %v2018
        %v2848 = vsel %vm2832, %v2799, %v2020
        %v2849 = vsel %vm2832, %v2800, %v2022
        %v2850 = vsel %vm2832, %v2801, %v2024
        %v2851 = vsel %vm2832, %v2802, %v2026
        %v2852 = vsel %vm2832, %v2803, %v2028
        %v2853 = vsel %vm2832, %v2804, %v2030
        %v2854 = vsel %vm2832, %v2805, %v2032
        %v2855 = vsel %vm2832, %v2806, %v2034
        %v2856 = vsel %vm2832, %v2807, %v2036
        %v2857 = vsel %vm2832, %v2808, %v2038
        %v2858 = vsel %vm2832, %v2809, %v2040
        %v2859 = vsel %vm2832, %v2810, %v2042
        %v2860 = vsel %vm2832, %v2811, %v2044
        %v2861 = vsel %vm2832, %v2812, %v2046
        %v2862 = vsel %vm2832, %v2813, %v2048
        %v2863 = vsel %vm2832, %v2814, %v2050
        %v2864 = vsel %vm2832, %v2815, %v2052
        %v2865 = vsel %vm2832, %v2816, %v2054
        %v2866 = vsel %vm2832, %v2817, %v2056
        %v2867 = vsel %vm2832, %v2818, %v2058
        %v2868 = vsel %vm2832, %v2819, %v2060
        %v2869 = vsel %vm2832, %v2820, %v2062
        %v2870 = vsel %vm2832, %v2821, %v2064
        %v2871 = vsel %vm2832, %v2822, %v2066
        %v2872 = vsel %vm2832, %v2823, %v2068
        %v2873 = vsel %vm2832, %v2824, %v2070
        %v2874 = vsel %vm2832, %v2825, %v2072
        %v2875 = vsel %vm2832, %v2826, %v2074
        %v2876 = vsel %vm2832, %v2827, %v2076
        %v2877 = vsel %vm2832, %v2828, %v2078
        %v2878 = vsel %vm2832, %v2829, %v2080
        %v2879 = vsel %vm2832, %v2830, %v2082
        %v2880 = vsel %vm2832, %v2831, %v2084
        %vm2881 = vcmask 195584
        %v2882 = vsel %vm2881, %v2833, %v2152
        %v2883 = vsel %vm2881, %v2834, %v2154
        %v2884 = vsel %vm2881, %v2835, %v2156
        %v2885 = vsel %vm2881, %v2836, %v2158
        %v2886 = vsel %vm2881, %v2837, %v2160
        %v2887 = vsel %vm2881, %v2838, %v2162
        %v2888 = vsel %vm2881, %v2839, %v2164
        %v2889 = vsel %vm2881, %v2840, %v2166
        %v2890 = vsel %vm2881, %v2841, %v2168
        %v2891 = vsel %vm2881, %v2842, %v2170
        %v2892 = vsel %vm2881, %v2843, %v2172
        %v2893 = vsel %vm2881, %v2844, %v2174
        %v2894 = vsel %vm2881, %v2845, %v2176
        %v2895 = vsel %vm2881, %v2846, %v2178
        %v2896 = vsel %vm2881, %v2847, %v2180
        %v2897 = vsel %vm2881, %v2848, %v2182
        %v2898 = vsel %vm2881, %v2849, %v2184
        %v2899 = vsel %vm2881, %v2850, %v2186
        %v2900 = vsel %vm2881, %v2851, %v2188
        %v2901 = vsel %vm2881, %v2852, %v2190
        %v2902 = vsel %vm2881, %v2853, %v2192
        %v2903 = vsel %vm2881, %v2854, %v2194
        %v2904 = vsel %vm2881, %v2855, %v2196
        %v2905 = vsel %vm2881, %v2856, %v2198
        %v2906 = vsel %vm2881, %v2857, %v2200
        %v2907 = vsel %vm2881, %v2858, %v2202
        %v2908 = vsel %vm2881, %v2859, %v2204
        %v2909 = vsel %vm2881, %v2860, %v2206
        %v2910 = vsel %vm2881, %v2861, %v2208
        %v2911 = vsel %vm2881, %v2862, %v2210
        %v2912 = vsel %vm2881, %v2863, %v2212
        %v2913 = vsel %vm2881, %v2864, %v2214
        %v2914 = vsel %vm2881, %v2865, %v2216
        %v2915 = vsel %vm2881, %v2866, %v2218
        %v2916 = vsel %vm2881, %v2867, %v2220
        %v2917 = vsel %vm2881, %v2868, %v2222
        %v2918 = vsel %vm2881, %v2869, %v2224
        %v2919 = vsel %vm2881, %v2870, %v2226
        %v2920 = vsel %vm2881, %v2871, %v2228
        %v2921 = vsel %vm2881, %v2872, %v2230
        %v2922 = vsel %vm2881, %v2873, %v2232
        %v2923 = vsel %vm2881, %v2874, %v2234
        %v2924 = vsel %vm2881, %v2875, %v2236
        %v2925 = vsel %vm2881, %v2876, %v2238
        %v2926 = vsel %vm2881, %v2877, %v2240
        %v2927 = vsel %vm2881, %v2878, %v2242
        %v2928 = vsel %vm2881, %v2879, %v2244
        %v2929 = vsel %vm2881, %v2880, %v2246
        %vm2930 = vcmask 228352
        %v2931 = vsel %vm2930, %v2882, %v2332
        %v2932 = vsel %vm2930, %v2883, %v2334
        %v2933 = vsel %vm2930, %v2884, %v2336
        %v2934 = vsel %vm2930, %v2885, %v2338
        %v2935 = vsel %vm2930, %v2886, %v2340
        %v2936 = vsel %vm2930, %v2887, %v2342
        %v2937 = vsel %vm2930, %v2888, %v2344
        %v2938 = vsel %vm2930, %v2889, %v2346
        %v2939 = vsel %vm2930, %v2890, %v2348
        %v2940 = vsel %vm2930, %v2891, %v2350
        %v2941 = vsel %vm2930, %v2892, %v2352
        %v2942 = vsel %vm2930, %v2893, %v2354
        %v2943 = vsel %vm2930, %v2894, %v2356
        %v2944 = vsel %vm2930, %v2895, %v2358
        %v2945 = vsel %vm2930, %v2896, %v2360
        %v2946 = vsel %vm2930, %v2897, %v2362
        %v2947 = vsel %vm2930, %v2898, %v2364
        %v2948 = vsel %vm2930, %v2899, %v2366
        %v2949 = vsel %vm2930, %v2900, %v2368
        %v2950 = vsel %vm2930, %v2901, %v2370
        %v2951 = vsel %vm2930, %v2902, %v2372
        %v2952 = vsel %vm2930, %v2903, %v2374
        %v2953 = vsel %vm2930, %v2904, %v2376
        %v2954 = vsel %vm2930, %v2905, %v2378
        %v2955 = vsel %vm2930, %v2906, %v2380
        %v2956 = vsel %vm2930, %v2907, %v2382
        %v2957 = vsel %vm2930, %v2908, %v2384
        %v2958 = vsel %vm2930, %v2909, %v2386
        %v2959 = vsel %vm2930, %v2910, %v2388
        %v2960 = vsel %vm2930, %v2911, %v2390
        %v2961 = vsel %vm2930, %v2912, %v2392
        %v2962 = vsel %vm2930, %v2913, %v2394
        %v2963 = vsel %vm2930, %v2914, %v2396
        %v2964 = vsel %vm2930, %v2915, %v2398
        %v2965 = vsel %vm2930, %v2916, %v2400
        %v2966 = vsel %vm2930, %v2917, %v2402
        %v2967 = vsel %vm2930, %v2918, %v2404
        %v2968 = vsel %vm2930, %v2919, %v2406
        %v2969 = vsel %vm2930, %v2920, %v2408
        %v2970 = vsel %vm2930, %v2921, %v2410
        %v2971 = vsel %vm2930, %v2922, %v2412
        %v2972 = vsel %vm2930, %v2923, %v2414
        %v2973 = vsel %vm2930, %v2924, %v2416
        %v2974 = vsel %vm2930, %v2925, %v2418
        %v2975 = vsel %vm2930, %v2926, %v2420
        %v2976 = vsel %vm2930, %v2927, %v2422
        %v2977 = vsel %vm2930, %v2928, %v2424
        %v2978 = vsel %vm2930, %v2929, %v2426
        %vm2979 = vcmask 261120
        %v2980 = vsel %vm2979, %v2931, %v2494
        %v2981 = vsel %vm2979, %v2932, %v2496
        %v2982 = vsel %vm2979, %v2933, %v2498
        %v2983 = vsel %vm2979, %v2934, %v2500
        %v2984 = vsel %vm2979, %v2935, %v2502
        %v2985 = vsel %vm2979, %v2936, %v2504
        %v2986 = vsel %vm2979, %v2937, %v2506
        %v2987 = vsel %vm2979, %v2938, %v2508
        %v2988 = vsel %vm2979, %v2939, %v2510
        %v2989 = vsel %vm2979, %v2940, %v2512
        %v2990 = vsel %vm2979, %v2941, %v2514
        %v2991 = vsel %vm2979, %v2942, %v2516
        %v2992 = vsel %vm2979, %v2943, %v2518
        %v2993 = vsel %vm2979, %v2944, %v2520
        %v2994 = vsel %vm2979, %v2945, %v2522
        %v2995 = vsel %vm2979, %v2946, %v2524
        %v2996 = vsel %vm2979, %v2947, %v2526
        %v2997 = vsel %vm2979, %v2948, %v2528
        %v2998 = vsel %vm2979, %v2949, %v2530
        %v2999 = vsel %vm2979, %v2950, %v2532
        %v3000 = vsel %vm2979, %v2951, %v2534
        %v3001 = vsel %vm2979, %v2952, %v2536
        %v3002 = vsel %vm2979, %v2953, %v2538
        %v3003 = vsel %vm2979, %v2954, %v2540
        %v3004 = vsel %vm2979, %v2955, %v2542
        %v3005 = vsel %vm2979, %v2956, %v2544
        %v3006 = vsel %vm2979, %v2957, %v2546
        %v3007 = vsel %vm2979, %v2958, %v2548
        %v3008 = vsel %vm2979, %v2959, %v2550
        %v3009 = vsel %vm2979, %v2960, %v2552
        %v3010 = vsel %vm2979, %v2961, %v2554
        %v3011 = vsel %vm2979, %v2962, %v2556
        %v3012 = vsel %vm2979, %v2963, %v2558
        %v3013 = vsel %vm2979, %v2964, %v2560
        %v3014 = vsel %vm2979, %v2965, %v2562
        %v3015 = vsel %vm2979, %v2966, %v2564
        %v3016 = vsel %vm2979, %v2967, %v2566
        %v3017 = vsel %vm2979, %v2968, %v2568
        %v3018 = vsel %vm2979, %v2969, %v2570
        %v3019 = vsel %vm2979, %v2970, %v2572
        %v3020 = vsel %vm2979, %v2971, %v2574
        %v3021 = vsel %vm2979, %v2972, %v2576
        %v3022 = vsel %vm2979, %v2973, %v2578
        %v3023 = vsel %vm2979, %v2974, %v2580
        %v3024 = vsel %vm2979, %v2975, %v2582
        %v3025 = vsel %vm2979, %v2976, %v2584
        %v3026 = vsel %vm2979, %v2977, %v2586
        %v3027 = vsel %vm2979, %v2978, %v2588
        %v3076 = vrot.slane %v2980, 4
        %v3077 = vrot.slane %v2981, 4
        %v3078 = vsel %vm925, %v3076, %v3077
        %v3079 = vrot.slane %v2982, 4
        %v3080 = vsel %vm925, %v3077, %v3079
        %v3081 = vrot.slane %v2983, 4
        %v3082 = vrot.slane %v2984, 4
        %v3083 = vsel %vm925, %v3081, %v3082
        %v3084 = vrot.slane %v2985, 4
        %v3085 = vsel %vm925, %v3082, %v3084
        %v3086 = vrot.slane %v2986, 4
        %v3087 = vrot.slane %v2987, 4
        %v3088 = vsel %vm925, %v3086, %v3087
        %v3089 = vrot.slane %v2988, 4
        %v3090 = vsel %vm925, %v3087, %v3089
        %v3091 = vrot.slane %v2989, 4
        %v3092 = vrot.slane %v2990, 4
        %v3093 = vsel %vm925, %v3091, %v3092
        %v3094 = vrot.slane %v2991, 4
        %v3095 = vsel %vm925, %v3092, %v3094
        %v3096 = vrot.slane %v2992, 4
        %v3097 = vrot.slane %v2993, 4
        %v3098 = vsel %vm925, %v3096, %v3097
        %v3099 = vrot.slane %v2994, 4
        %v3100 = vsel %vm925, %v3097, %v3099
        %v3101 = vrot.slane %v2995, 4
        %v3102 = vrot.slane %v2996, 4
        %v3103 = vsel %vm925, %v3101, %v3102
        %v3104 = vrot.slane %v2997, 4
        %v3105 = vsel %vm925, %v3102, %v3104
        %v3106 = vrot.slane %v2998, 4
        %v3107 = vrot.slane %v2999, 4
        %v3108 = vsel %vm925, %v3106, %v3107
        %v3109 = vrot.slane %v3000, 4
        %v3110 = vsel %vm925, %v3107, %v3109
        %v3111 = vrot.slane %v3001, 4
        %v3112 = vrot.slane %v3002, 4
        %v3113 = vsel %vm925, %v3111, %v3112
        %v3114 = vrot.slane %v3003, 4
        %v3115 = vsel %vm925, %v3112, %v3114
        %v3116 = vrot.slane %v3004, 4
        %v3117 = vrot.slane %v3005, 4
        %v3118 = vsel %vm925, %v3116, %v3117
        %v3119 = vrot.slane %v3006, 4
        %v3120 = vsel %vm925, %v3117, %v3119
        %v3121 = vrot.slane %v3007, 4
        %v3122 = vrot.slane %v3008, 4
        %v3123 = vsel %vm925, %v3121, %v3122
        %v3124 = vrot.slane %v3009, 4
        %v3125 = vsel %vm925, %v3122, %v3124
        %v3126 = vrot.slane %v3010, 4
        %v3127 = vrot.slane %v3011, 4
        %v3128 = vsel %vm925, %v3126, %v3127
        %v3129 = vrot.slane %v3012, 4
        %v3130 = vsel %vm925, %v3127, %v3129
        %v3131 = vrot.slane %v3013, 4
        %v3132 = vrot.slane %v3014, 4
        %v3133 = vsel %vm925, %v3131, %v3132
        %v3134 = vrot.slane %v3015, 4
        %v3135 = vsel %vm925, %v3132, %v3134
        %v3136 = vrot.slane %v3016, 4
        %v3137 = vrot.slane %v3017, 4
        %v3138 = vsel %vm925, %v3136, %v3137
        %v3139 = vrot.slane %v3018, 4
        %v3140 = vsel %vm925, %v3137, %v3139
        %v3141 = vrot.slane %v3019, 4
        %v3142 = vrot.slane %v3020, 4
        %v3143 = vsel %vm925, %v3141, %v3142
        %v3144 = vrot.slane %v3021, 4
        %v3145 = vsel %vm925, %v3142, %v3144
        %v3146 = vrot.slane %v3022, 4
        %v3147 = vrot.slane %v3023, 4
        %v3148 = vsel %vm925, %v3146, %v3147
        %v3149 = vrot.slane %v3024, 4
        %v3150 = vsel %vm925, %v3147, %v3149
        %v3151 = vrot.slane %v3025, 4
        %v3152 = vrot.slane %v3026, 4
        %v3153 = vsel %vm925, %v3151, %v3152
        %v3154 = vrot.slane %v3027, 4
        %v3155 = vsel %vm925, %v3152, %v3154
        %v3156 = vld [vmem:[%s3] sm:$0xff]
        %v3157 = vld [vmem:[%s3 + $0x8] sm:$0xff]
        %v3158 = vld [vmem:[%s3 + $0x10] sm:$0xff]
        %v3159 = vld [vmem:[%s3 + $0x18] sm:$0xff]
        %v3160 = vld [vmem:[%s3 + $0x20] sm:$0xf]
        %v3161 = vld [vmem:[%s4] sm:$0x1]
        %v3163 = vlaneseq
        %v3164 = vshrl.u32 %v3163, 7
        %v3165 = vsub.s32 0, %v3164
        %v3166 = vrot.slane %v3161, %v3165
        %vm3168 = vcmask 293888
        %v3169 = vsel %vm3168, %v3078, 0
        %v3171 = vsel %vm3168, %v3080, 0
        %v3173 = vsel %vm3168, %v3083, 0
        %v3175 = vsel %vm3168, %v3085, 0
        %v3177 = vsel %vm3168, %v3088, 0
        %v3179 = vsel %vm3168, %v3090, 0
        %v3181 = vsel %vm3168, %v3093, 0
        %v3183 = vsel %vm3168, %v3095, 0
        %v3185 = vsel %vm3168, %v3098, 0
        %v3187 = vsel %vm3168, %v3100, 0
        %v3189 = vsel %vm3168, %v3103, 0
        %v3191 = vsel %vm3168, %v3105, 0
        %v3193 = vsel %vm3168, %v3108, 0
        %v3195 = vsel %vm3168, %v3110, 0
        %v3197 = vsel %vm3168, %v3113, 0
        %v3199 = vsel %vm3168, %v3115, 0
        %v3201 = vsel %vm3168, %v3118, 0
        %v3203 = vsel %vm3168, %v3120, 0
        %v3205 = vsel %vm3168, %v3123, 0
        %v3207 = vsel %vm3168, %v3125, 0
        %v3209 = vsel %vm3168, %v3128, 0
        %v3211 = vsel %vm3168, %v3130, 0
        %v3213 = vsel %vm3168, %v3133, 0
        %v3215 = vsel %vm3168, %v3135, 0
        %v3217 = vsel %vm3168, %v3138, 0
        %v3219 = vsel %vm3168, %v3140, 0
        %v3221 = vsel %vm3168, %v3143, 0
        %v3223 = vsel %vm3168, %v3145, 0
        %v3225 = vsel %vm3168, %v3148, 0
        %v3227 = vsel %vm3168, %v3150, 0
        %v3229 = vsel %vm3168, %v3153, 0
        %v3231 = vsel %vm3168, %v3155, 0
        %v3234 = vsel %vm925, %v3160, 0
        %3236 = vmatprep.subr.mxu0 0.0
        %3237 = vmatpush1.msra.mxu0 %v3156
        %3238 = vmatprep.subr.mxu0 0.0
        %3239 = vmatpush1.msra.mxu0 %v3157
        %3240 = vmatprep.subr.mxu0 0.0
        %3241 = vmatpush1.msra.mxu0 %v3158
        %3242 = vmatprep.subr.mxu0 0.0
        %3243 = vmatpush1.msra.mxu0 %v3159
        %3244 = vmatprep.subr.mxu0 0.0
        %3245 = vmatpush1.msra.mxu0 %v3234
        %3246 = vmatprep.subr.mxu0 0.0
        %3247 = vmatpush1.msra.mxu0 0.0
        %3248 = vmatprep.subr.mxu0 0.0
        %3249 = vmatpush1.msra.mxu0 0.0
        %3250 = vmatprep.subr.mxu0 0.0
        %3251 = vmatpush1.msra.mxu0 0.0
        %3252 = vmatprep.subr.mxu0 0.0
        %3253 = vmatpush1.msra.mxu0 0.0
        %3254 = vmatprep.subr.mxu0 0.0
        %3255 = vmatpush1.msra.mxu0 0.0
        %3256 = vmatprep.subr.mxu0 0.0
        %3257 = vmatpush1.msra.mxu0 0.0
        %3258 = vmatprep.subr.mxu0 0.0
        %3259 = vmatpush1.msra.mxu0 0.0
        %3260 = vmatprep.subr.mxu0 0.0
        %3261 = vmatpush1.msra.mxu0 0.0
        %3262 = vmatprep.subr.mxu0 0.0
        %3263 = vmatpush1.msra.mxu0 0.0
        %3264 = vmatprep.subr.mxu0 0.0
        %3265 = vmatpush1.msra.mxu0 0.0
        %3266 = vmatprep.subr.mxu0 0.0
        %3267 = vmatpush1.msra.mxu0 0.0
        %3268 = vmatprep.subr.mxu0 0.0
        %3269 = vmatpush1.msra.mxu0 0.0
        %3270 = vmatprep.subr.mxu0 0.0
        %3271 = vmatpush1.msra.mxu0 0.0
        %3272 = vmatprep.subr.mxu0 0.0
        %3273 = vmatpush1.msra.mxu0 0.0
        %3274 = vmatprep.subr.mxu0 0.0
        %3275 = vmatpush1.msra.mxu0 0.0
        %3276 = vmatprep.subr.mxu0 0.0
        %3277 = vmatpush1.msra.mxu0 0.0
        %3278 = vmatprep.subr.mxu0 0.0
        %3279 = vmatpush1.msra.mxu0 0.0
        %3280 = vmatprep.subr.mxu0 0.0
        %3281 = vmatpush1.msra.mxu0 0.0
        %3282 = vmatprep.subr.mxu0 0.0
        %3283 = vmatpush1.msra.mxu0 0.0
        %3284 = vmatprep.subr.mxu0 0.0
        %3285 = vmatpush1.msra.mxu0 0.0
        %3286 = vmatprep.subr.mxu0 0.0
        %3287 = vmatpush1.msra.mxu0 0.0
        %3288 = vmatprep.subr.mxu0 0.0
        %3289 = vmatpush1.msra.mxu0 0.0
        %3290 = vmatprep.subr.mxu0 0.0
        %3291 = vmatpush1.msra.mxu0 0.0
        %3292 = vmatprep.subr.mxu0 0.0
        %3293 = vmatpush1.msra.mxu0 0.0
        %3294 = vmatprep.subr.mxu0 0.0
        %3295 = vmatpush1.msra.mxu0 0.0
        %3296 = vmatprep.subr.mxu0 0.0
        %3297 = vmatpush1.msra.mxu0 0.0
        %3298 = vmatprep.subr.mxu0 0.0
        %3299 = vmatpush1.msra.mxu0 0.0
        %3300 = vmatprep.mubr.f32.mxu0 0.0
        %3301 = vmatmul.mubr.f32.gmra.mrb[0].mxu0 %v3169
        %v3302 = vpop.f32.mrb[0].mxu0
        %v3303 = vadd.f32 %v3166, %v3302
        %v3304 = vpop.f32.mrb[0].mxu0
        %3305 = vmatprep.mubr.f32.mxu0 0.0
        %3306 = vmatmul.mubr.f32.gmra.mrb[0].mxu0 %v3171
        %v3307 = vpop.f32.mrb[0].mxu0
        %v3308 = vadd.f32 %v3166, %v3307
        %v3309 = vpop.f32.mrb[0].mxu0
        %3310 = vmatprep.mubr.f32.mxu0 0.0
        %3311 = vmatmul.mubr.f32.gmra.mrb[0].mxu0 %v3173
        %v3312 = vpop.f32.mrb[0].mxu0
        %v3313 = vadd.f32 %v3166, %v3312
        %v3314 = vpop.f32.mrb[0].mxu0
        %3315 = vmatprep.mubr.f32.mxu0 0.0
        %3316 = vmatmul.mubr.f32.gmra.mrb[0].mxu0 %v3175
        %v3317 = vpop.f32.mrb[0].mxu0
        %v3318 = vadd.f32 %v3166, %v3317
        %v3319 = vpop.f32.mrb[0].mxu0
        %3320 = vmatprep.mubr.f32.mxu0 0.0
        %3321 = vmatmul.mubr.f32.gmra.mrb[0].mxu0 %v3177
        %v3322 = vpop.f32.mrb[0].mxu0
        %v3323 = vadd.f32 %v3166, %v3322
        %v3324 = vpop.f32.mrb[0].mxu0
        %3325 = vmatprep.mubr.f32.mxu0 0.0
        %3326 = vmatmul.mubr.f32.gmra.mrb[0].mxu0 %v3179
        %v3327 = vpop.f32.mrb[0].mxu0
        %v3328 = vadd.f32 %v3166, %v3327
        %v3329 = vpop.f32.mrb[0].mxu0
        %3330 = vmatprep.mubr.f32.mxu0 0.0
        %3331 = vmatmul.mubr.f32.gmra.mrb[0].mxu0 %v3181
        %v3332 = vpop.f32.mrb[0].mxu0
        %v3333 = vadd.f32 %v3166, %v3332
        %v3334 = vpop.f32.mrb[0].mxu0
        %3335 = vmatprep.mubr.f32.mxu0 0.0
        %3336 = vmatmul.mubr.f32.gmra.mrb[0].mxu0 %v3183
        %v3337 = vpop.f32.mrb[0].mxu0
        %v3338 = vadd.f32 %v3166, %v3337
        %v3339 = vpop.f32.mrb[0].mxu0
        %3340 = vmatprep.mubr.f32.mxu0 0.0
        %3341 = vmatmul.mubr.f32.gmra.mrb[0].mxu0 %v3185
        %v3342 = vpop.f32.mrb[0].mxu0
        %v3343 = vadd.f32 %v3166, %v3342
        %v3344 = vpop.f32.mrb[0].mxu0
        %3345 = vmatprep.mubr.f32.mxu0 0.0
        %3346 = vmatmul.mubr.f32.gmra.mrb[0].mxu0 %v3187
        %v3347 = vpop.f32.mrb[0].mxu0
        %v3348 = vadd.f32 %v3166, %v3347
        %v3349 = vpop.f32.mrb[0].mxu0
        %3350 = vmatprep.mubr.f32.mxu0 0.0
        %3351 = vmatmul.mubr.f32.gmra.mrb[0].mxu0 %v3189
        %v3352 = vpop.f32.mrb[0].mxu0
        %v3353 = vadd.f32 %v3166, %v3352
        %v3354 = vpop.f32.mrb[0].mxu0
        %3355 = vmatprep.mubr.f32.mxu0 0.0
        %3356 = vmatmul.mubr.f32.gmra.mrb[0].mxu0 %v3191
        %v3357 = vpop.f32.mrb[0].mxu0
        %v3358 = vadd.f32 %v3166, %v3357
        %v3359 = vpop.f32.mrb[0].mxu0
        %3360 = vmatprep.mubr.f32.mxu0 0.0
        %3361 = vmatmul.mubr.f32.gmra.mrb[0].mxu0 %v3193
        %v3362 = vpop.f32.mrb[0].mxu0
        %v3363 = vadd.f32 %v3166, %v3362
        %v3364 = vpop.f32.mrb[0].mxu0
        %3365 = vmatprep.mubr.f32.mxu0 0.0
        %3366 = vmatmul.mubr.f32.gmra.mrb[0].mxu0 %v3195
        %v3367 = vpop.f32.mrb[0].mxu0
        %v3368 = vadd.f32 %v3166, %v3367
        %v3369 = vpop.f32.mrb[0].mxu0
        %3370 = vmatprep.mubr.f32.mxu0 0.0
        %3371 = vmatmul.mubr.f32.gmra.mrb[0].mxu0 %v3197
        %v3372 = vpop.f32.mrb[0].mxu0
        %v3373 = vadd.f32 %v3166, %v3372
        %v3374 = vpop.f32.mrb[0].mxu0
        %3375 = vmatprep.mubr.f32.mxu0 0.0
        %3376 = vmatmul.mubr.f32.gmra.mrb[0].mxu0 %v3199
        %v3377 = vpop.f32.mrb[0].mxu0
        %v3378 = vadd.f32 %v3166, %v3377
        %v3379 = vpop.f32.mrb[0].mxu0
        %3380 = vmatprep.mubr.f32.mxu0 0.0
        %3381 = vmatmul.mubr.f32.gmra.mrb[0].mxu0 %v3201
        %v3382 = vpop.f32.mrb[0].mxu0
        %v3383 = vadd.f32 %v3166, %v3382
        %v3384 = vpop.f32.mrb[0].mxu0
        %3385 = vmatprep.mubr.f32.mxu0 0.0
        %3386 = vmatmul.mubr.f32.gmra.mrb[0].mxu0 %v3203
        %v3387 = vpop.f32.mrb[0].mxu0
        %v3388 = vadd.f32 %v3166, %v3387
        %v3389 = vpop.f32.mrb[0].mxu0
        %3390 = vmatprep.mubr.f32.mxu0 0.0
        %3391 = vmatmul.mubr.f32.gmra.mrb[0].mxu0 %v3205
        %v3392 = vpop.f32.mrb[0].mxu0
        %v3393 = vadd.f32 %v3166, %v3392
        %v3394 = vpop.f32.mrb[0].mxu0
        %3395 = vmatprep.mubr.f32.mxu0 0.0
        %3396 = vmatmul.mubr.f32.gmra.mrb[0].mxu0 %v3207
        %v3397 = vpop.f32.mrb[0].mxu0
        %v3398 = vadd.f32 %v3166, %v3397
        %v3399 = vpop.f32.mrb[0].mxu0
        %3400 = vmatprep.mubr.f32.mxu0 0.0
        %3401 = vmatmul.mubr.f32.gmra.mrb[0].mxu0 %v3209
        %v3402 = vpop.f32.mrb[0].mxu0
        %v3403 = vadd.f32 %v3166, %v3402
        %v3404 = vpop.f32.mrb[0].mxu0
        %3405 = vmatprep.mubr.f32.mxu0 0.0
        %3406 = vmatmul.mubr.f32.gmra.mrb[0].mxu0 %v3211
        %v3407 = vpop.f32.mrb[0].mxu0
        %v3408 = vadd.f32 %v3166, %v3407
        %v3409 = vpop.f32.mrb[0].mxu0
        %3410 = vmatprep.mubr.f32.mxu0 0.0
        %3411 = vmatmul.mubr.f32.gmra.mrb[0].mxu0 %v3213
        %v3412 = vpop.f32.mrb[0].mxu0
        %v3413 = vadd.f32 %v3166, %v3412
        %v3414 = vpop.f32.mrb[0].mxu0
        %3415 = vmatprep.mubr.f32.mxu0 0.0
        %3416 = vmatmul.mubr.f32.gmra.mrb[0].mxu0 %v3215
        %v3417 = vpop.f32.mrb[0].mxu0
        %v3418 = vadd.f32 %v3166, %v3417
        %v3419 = vpop.f32.mrb[0].mxu0
        %3420 = vmatprep.mubr.f32.mxu0 0.0
        %3421 = vmatmul.mubr.f32.gmra.mrb[0].mxu0 %v3217
        %v3422 = vpop.f32.mrb[0].mxu0
        %v3423 = vadd.f32 %v3166, %v3422
        %v3424 = vpop.f32.mrb[0].mxu0
        %3425 = vmatprep.mubr.f32.mxu0 0.0
        %3426 = vmatmul.mubr.f32.gmra.mrb[0].mxu0 %v3219
        %v3427 = vpop.f32.mrb[0].mxu0
        %v3428 = vadd.f32 %v3166, %v3427
        %v3429 = vpop.f32.mrb[0].mxu0
        %3430 = vmatprep.mubr.f32.mxu0 0.0
        %3431 = vmatmul.mubr.f32.gmra.mrb[0].mxu0 %v3221
        %v3432 = vpop.f32.mrb[0].mxu0
        %v3433 = vadd.f32 %v3166, %v3432
        %v3434 = vpop.f32.mrb[0].mxu0
        %3435 = vmatprep.mubr.f32.mxu0 0.0
        %3436 = vmatmul.mubr.f32.gmra.mrb[0].mxu0 %v3223
        %v3437 = vpop.f32.mrb[0].mxu0
        %v3438 = vadd.f32 %v3166, %v3437
        %v3439 = vpop.f32.mrb[0].mxu0
        %3440 = vmatprep.mubr.f32.mxu0 0.0
        %3441 = vmatmul.mubr.f32.gmra.mrb[0].mxu0 %v3225
        %v3442 = vpop.f32.mrb[0].mxu0
        %v3443 = vadd.f32 %v3166, %v3442
        %v3444 = vpop.f32.mrb[0].mxu0
        %3445 = vmatprep.mubr.f32.mxu0 0.0
        %3446 = vmatmul.mubr.f32.gmra.mrb[0].mxu0 %v3227
        %v3447 = vpop.f32.mrb[0].mxu0
        %v3448 = vadd.f32 %v3166, %v3447
        %v3449 = vpop.f32.mrb[0].mxu0
        %3450 = vmatprep.mubr.f32.mxu0 0.0
        %3451 = vmatmul.mubr.f32.gmra.mrb[0].mxu0 %v3229
        %v3452 = vpop.f32.mrb[0].mxu0
        %v3453 = vadd.f32 %v3166, %v3452
        %v3454 = vpop.f32.mrb[0].mxu0
        %3455 = vmatprep.mubr.f32.mxu0 0.0
        %3456 = vmatmul.mubr.f32.gmra.mrb[0].mxu0 %v3231
        %v3457 = vpop.f32.mrb[0].mxu0
        %v3458 = vadd.f32 %v3166, %v3457
        %v3459 = vpop.f32.mrb[0].mxu0
        %3460 = vdwg.mxu0
        %v3461 = vmax.f32 %v3303, 0.0
        %v3462 = vmax.f32 %v3308, 0.0
        %v3463 = vmax.f32 %v3313, 0.0
        %v3464 = vmax.f32 %v3318, 0.0
        %v3465 = vmax.f32 %v3323, 0.0
        %v3466 = vmax.f32 %v3328, 0.0
        %v3467 = vmax.f32 %v3333, 0.0
        %v3468 = vmax.f32 %v3338, 0.0
        %v3469 = vmax.f32 %v3343, 0.0
        %v3470 = vmax.f32 %v3348, 0.0
        %v3471 = vmax.f32 %v3353, 0.0
        %v3472 = vmax.f32 %v3358, 0.0
        %v3473 = vmax.f32 %v3363, 0.0
        %v3474 = vmax.f32 %v3368, 0.0
        %v3475 = vmax.f32 %v3373, 0.0
        %v3476 = vmax.f32 %v3378, 0.0
        %v3477 = vmax.f32 %v3383, 0.0
        %v3478 = vmax.f32 %v3388, 0.0
        %v3479 = vmax.f32 %v3393, 0.0
        %v3480 = vmax.f32 %v3398, 0.0
        %v3481 = vmax.f32 %v3403, 0.0
        %v3482 = vmax.f32 %v3408, 0.0
        %v3483 = vmax.f32 %v3413, 0.0
        %v3484 = vmax.f32 %v3418, 0.0
        %v3485 = vmax.f32 %v3423, 0.0
        %v3486 = vmax.f32 %v3428, 0.0
        %v3487 = vmax.f32 %v3433, 0.0
        %v3488 = vmax.f32 %v3438, 0.0
        %v3489 = vmax.f32 %v3443, 0.0
        %v3490 = vmax.f32 %v3448, 0.0
        %v3491 = vmax.f32 %v3453, 0.0
        %v3492 = vmax.f32 %v3458, 0.0
        %s3493 = scalar_lea.vmem %s7, 128
        %v3494 = vld [vmem:[%s3493] sm:$0xff]
        %v3495 = vld [vmem:[%s3493 + $0x8] sm:$0xff]
        %v3496 = vld [vmem:[%s3493 + $0x10] sm:$0xff]
        %v3497 = vld [vmem:[%s3493 + $0x18] sm:$0xff]
        %v3498 = vld [vmem:[%s3493 + $0x20] sm:$0xff]
        %v3499 = vld [vmem:[%s3493 + $0x28] sm:$0xff]
        %v3500 = vld [vmem:[%s3493 + $0x30] sm:$0xff]
        %v3501 = vld [vmem:[%s3493 + $0x38] sm:$0xff]
        %v3502 = vld [vmem:[%s3493 + $0x40] sm:$0xff]
        %v3503 = vld [vmem:[%s3493 + $0x48] sm:$0xff]
        %v3504 = vld [vmem:[%s3493 + $0x50] sm:$0xff]
        %v3505 = vld [vmem:[%s3493 + $0x58] sm:$0xff]
        %v3506 = vld [vmem:[%s3493 + $0x60] sm:$0xff]
        %v3507 = vld [vmem:[%s3493 + $0x68] sm:$0xff]
        %v3508 = vld [vmem:[%s3493 + $0x70] sm:$0xff]
        %v3509 = vld [vmem:[%s3493 + $0x78] sm:$0xff]
        %3510 = vmatprep.subr.mxu0 0.0
        %3511 = vmatpush1.msra.mxu0 %v3494
        %3512 = vmatprep.subr.mxu0 0.0
        %3513 = vmatpush1.msra.mxu0 %v3495
        %3514 = vmatprep.subr.mxu0 0.0
        %3515 = vmatpush1.msra.mxu0 %v3496
        %3516 = vmatprep.subr.mxu0 0.0
        %3517 = vmatpush1.msra.mxu0 %v3497
        %3518 = vmatprep.subr.mxu0 0.0
        %3519 = vmatpush1.msra.mxu0 %v3498
        %3520 = vmatprep.subr.mxu0 0.0
        %3521 = vmatpush1.msra.mxu0 %v3499
        %3522 = vmatprep.subr.mxu0 0.0
        %3523 = vmatpush1.msra.mxu0 %v3500
        %3524 = vmatprep.subr.mxu0 0.0
        %3525 = vmatpush1.msra.mxu0 %v3501
        %3526 = vmatprep.subr.mxu0 0.0
        %3527 = vmatpush1.msra.mxu0 %v3502
        %3528 = vmatprep.subr.mxu0 0.0
        %3529 = vmatpush1.msra.mxu0 %v3503
        %3530 = vmatprep.subr.mxu0 0.0
        %3531 = vmatpush1.msra.mxu0 %v3504
        %3532 = vmatprep.subr.mxu0 0.0
        %3533 = vmatpush1.msra.mxu0 %v3505
        %3534 = vmatprep.subr.mxu0 0.0
        %3535 = vmatpush1.msra.mxu0 %v3506
        %3536 = vmatprep.subr.mxu0 0.0
        %3537 = vmatpush1.msra.mxu0 %v3507
        %3538 = vmatprep.subr.mxu0 0.0
        %3539 = vmatpush1.msra.mxu0 %v3508
        %3540 = vmatprep.subr.mxu0 0.0
        %3541 = vmatpush1.msra.mxu0 %v3509
        %3542 = vmatprep.subr.mxu0 0.0
        %3543 = vmatpush1.msra.mxu0 0.0
        %3544 = vmatprep.subr.mxu0 0.0
        %3545 = vmatpush1.msra.mxu0 0.0
        %3546 = vmatprep.subr.mxu0 0.0
        %3547 = vmatpush1.msra.mxu0 0.0
        %3548 = vmatprep.subr.mxu0 0.0
        %3549 = vmatpush1.msra.mxu0 0.0
        %3550 = vmatprep.subr.mxu0 0.0
        %3551 = vmatpush1.msra.mxu0 0.0
        %3552 = vmatprep.subr.mxu0 0.0
        %3553 = vmatpush1.msra.mxu0 0.0
        %3554 = vmatprep.subr.mxu0 0.0
        %3555 = vmatpush1.msra.mxu0 0.0
        %3556 = vmatprep.subr.mxu0 0.0
        %3557 = vmatpush1.msra.mxu0 0.0
        %3558 = vmatprep.subr.mxu0 0.0
        %3559 = vmatpush1.msra.mxu0 0.0
        %3560 = vmatprep.subr.mxu0 0.0
        %3561 = vmatpush1.msra.mxu0 0.0
        %3562 = vmatprep.subr.mxu0 0.0
        %3563 = vmatpush1.msra.mxu0 0.0
        %3564 = vmatprep.subr.mxu0 0.0
        %3565 = vmatpush1.msra.mxu0 0.0
        %3566 = vmatprep.subr.mxu0 0.0
        %3567 = vmatpush1.msra.mxu0 0.0
        %3568 = vmatprep.subr.mxu0 0.0
        %3569 = vmatpush1.msra.mxu0 0.0
        %3570 = vmatprep.subr.mxu0 0.0
        %3571 = vmatpush1.msra.mxu0 0.0
        %3572 = vmatprep.subr.mxu0 0.0
        %3573 = vmatpush1.msra.mxu0 0.0
        %3574 = vmatprep.mubr.f32.mxu0 0.0
        %3575 = vmatmul.mubr.f32.gmra.mrb[0].mxu0 %v3461
        %v3576 = vpop.f32.mrb[0].mxu0
        %v3577 = vadd.f32 0.0, %v3576
        %v3578 = vpop.f32.mrb[0].mxu0
        %3579 = vmatprep.mubr.f32.mxu0 0.0
        %3580 = vmatmul.mubr.f32.gmra.mrb[0].mxu0 %v3462
        %v3581 = vpop.f32.mrb[0].mxu0
        %v3582 = vadd.f32 0.0, %v3581
        %v3583 = vpop.f32.mrb[0].mxu0
        %3584 = vmatprep.mubr.f32.mxu0 0.0
        %3585 = vmatmul.mubr.f32.gmra.mrb[0].mxu0 %v3463
        %v3586 = vpop.f32.mrb[0].mxu0
        %v3587 = vadd.f32 0.0, %v3586
        %v3588 = vpop.f32.mrb[0].mxu0
        %3589 = vmatprep.mubr.f32.mxu0 0.0
        %3590 = vmatmul.mubr.f32.gmra.mrb[0].mxu0 %v3464
        %v3591 = vpop.f32.mrb[0].mxu0
        %v3592 = vadd.f32 0.0, %v3591
        %v3593 = vpop.f32.mrb[0].mxu0
        %3594 = vmatprep.mubr.f32.mxu0 0.0
        %3595 = vmatmul.mubr.f32.gmra.mrb[0].mxu0 %v3465
        %v3596 = vpop.f32.mrb[0].mxu0
        %v3597 = vadd.f32 0.0, %v3596
        %v3598 = vpop.f32.mrb[0].mxu0
        %3599 = vmatprep.mubr.f32.mxu0 0.0
        %3600 = vmatmul.mubr.f32.gmra.mrb[0].mxu0 %v3466
        %v3601 = vpop.f32.mrb[0].mxu0
        %v3602 = vadd.f32 0.0, %v3601
        %v3603 = vpop.f32.mrb[0].mxu0
        %3604 = vmatprep.mubr.f32.mxu0 0.0
        %3605 = vmatmul.mubr.f32.gmra.mrb[0].mxu0 %v3467
        %v3606 = vpop.f32.mrb[0].mxu0
        %v3607 = vadd.f32 0.0, %v3606
        %v3608 = vpop.f32.mrb[0].mxu0
        %3609 = vmatprep.mubr.f32.mxu0 0.0
        %3610 = vmatmul.mubr.f32.gmra.mrb[0].mxu0 %v3468
        %v3611 = vpop.f32.mrb[0].mxu0
        %v3612 = vadd.f32 0.0, %v3611
        %v3613 = vpop.f32.mrb[0].mxu0
        %3614 = vmatprep.mubr.f32.mxu0 0.0
        %3615 = vmatmul.mubr.f32.gmra.mrb[0].mxu0 %v3469
        %v3616 = vpop.f32.mrb[0].mxu0
        %v3617 = vadd.f32 0.0, %v3616
        %v3618 = vpop.f32.mrb[0].mxu0
        %3619 = vmatprep.mubr.f32.mxu0 0.0
        %3620 = vmatmul.mubr.f32.gmra.mrb[0].mxu0 %v3470
        %v3621 = vpop.f32.mrb[0].mxu0
        %v3622 = vadd.f32 0.0, %v3621
        %v3623 = vpop.f32.mrb[0].mxu0
        %3624 = vmatprep.mubr.f32.mxu0 0.0
        %3625 = vmatmul.mubr.f32.gmra.mrb[0].mxu0 %v3471
        %v3626 = vpop.f32.mrb[0].mxu0
        %v3627 = vadd.f32 0.0, %v3626
        %v3628 = vpop.f32.mrb[0].mxu0
        %3629 = vmatprep.mubr.f32.mxu0 0.0
        %3630 = vmatmul.mubr.f32.gmra.mrb[0].mxu0 %v3472
        %v3631 = vpop.f32.mrb[0].mxu0
        %v3632 = vadd.f32 0.0, %v3631
        %v3633 = vpop.f32.mrb[0].mxu0
        %3634 = vmatprep.mubr.f32.mxu0 0.0
        %3635 = vmatmul.mubr.f32.gmra.mrb[0].mxu0 %v3473
        %v3636 = vpop.f32.mrb[0].mxu0
        %v3637 = vadd.f32 0.0, %v3636
        %v3638 = vpop.f32.mrb[0].mxu0
        %3639 = vmatprep.mubr.f32.mxu0 0.0
        %3640 = vmatmul.mubr.f32.gmra.mrb[0].mxu0 %v3474
        %v3641 = vpop.f32.mrb[0].mxu0
        %v3642 = vadd.f32 0.0, %v3641
        %v3643 = vpop.f32.mrb[0].mxu0
        %3644 = vmatprep.mubr.f32.mxu0 0.0
        %3645 = vmatmul.mubr.f32.gmra.mrb[0].mxu0 %v3475
        %v3646 = vpop.f32.mrb[0].mxu0
        %v3647 = vadd.f32 0.0, %v3646
        %v3648 = vpop.f32.mrb[0].mxu0
        %3649 = vmatprep.mubr.f32.mxu0 0.0
        %3650 = vmatmul.mubr.f32.gmra.mrb[0].mxu0 %v3476
        %v3651 = vpop.f32.mrb[0].mxu0
        %v3652 = vadd.f32 0.0, %v3651
        %v3653 = vpop.f32.mrb[0].mxu0
        %3654 = vmatprep.mubr.f32.mxu0 0.0
        %3655 = vmatmul.mubr.f32.gmra.mrb[0].mxu0 %v3477
        %v3656 = vpop.f32.mrb[0].mxu0
        %v3657 = vadd.f32 0.0, %v3656
        %v3658 = vpop.f32.mrb[0].mxu0
        %3659 = vmatprep.mubr.f32.mxu0 0.0
        %3660 = vmatmul.mubr.f32.gmra.mrb[0].mxu0 %v3478
        %v3661 = vpop.f32.mrb[0].mxu0
        %v3662 = vadd.f32 0.0, %v3661
        %v3663 = vpop.f32.mrb[0].mxu0
        %3664 = vmatprep.mubr.f32.mxu0 0.0
        %3665 = vmatmul.mubr.f32.gmra.mrb[0].mxu0 %v3479
        %v3666 = vpop.f32.mrb[0].mxu0
        %v3667 = vadd.f32 0.0, %v3666
        %v3668 = vpop.f32.mrb[0].mxu0
        %3669 = vmatprep.mubr.f32.mxu0 0.0
        %3670 = vmatmul.mubr.f32.gmra.mrb[0].mxu0 %v3480
        %v3671 = vpop.f32.mrb[0].mxu0
        %v3672 = vadd.f32 0.0, %v3671
        %v3673 = vpop.f32.mrb[0].mxu0
        %3674 = vmatprep.mubr.f32.mxu0 0.0
        %3675 = vmatmul.mubr.f32.gmra.mrb[0].mxu0 %v3481
        %v3676 = vpop.f32.mrb[0].mxu0
        %v3677 = vadd.f32 0.0, %v3676
        %v3678 = vpop.f32.mrb[0].mxu0
        %3679 = vmatprep.mubr.f32.mxu0 0.0
        %3680 = vmatmul.mubr.f32.gmra.mrb[0].mxu0 %v3482
        %v3681 = vpop.f32.mrb[0].mxu0
        %v3682 = vadd.f32 0.0, %v3681
        %v3683 = vpop.f32.mrb[0].mxu0
        %3684 = vmatprep.mubr.f32.mxu0 0.0
        %3685 = vmatmul.mubr.f32.gmra.mrb[0].mxu0 %v3483
        %v3686 = vpop.f32.mrb[0].mxu0
        %v3687 = vadd.f32 0.0, %v3686
        %v3688 = vpop.f32.mrb[0].mxu0
        %3689 = vmatprep.mubr.f32.mxu0 0.0
        %3690 = vmatmul.mubr.f32.gmra.mrb[0].mxu0 %v3484
        %v3691 = vpop.f32.mrb[0].mxu0
        %v3692 = vadd.f32 0.0, %v3691
        %v3693 = vpop.f32.mrb[0].mxu0
        %3694 = vmatprep.mubr.f32.mxu0 0.0
        %3695 = vmatmul.mubr.f32.gmra.mrb[0].mxu0 %v3485
        %v3696 = vpop.f32.mrb[0].mxu0
        %v3697 = vadd.f32 0.0, %v3696
        %v3698 = vpop.f32.mrb[0].mxu0
        %3699 = vmatprep.mubr.f32.mxu0 0.0
        %3700 = vmatmul.mubr.f32.gmra.mrb[0].mxu0 %v3486
        %v3701 = vpop.f32.mrb[0].mxu0
        %v3702 = vadd.f32 0.0, %v3701
        %v3703 = vpop.f32.mrb[0].mxu0
        %3704 = vmatprep.mubr.f32.mxu0 0.0
        %3705 = vmatmul.mubr.f32.gmra.mrb[0].mxu0 %v3487
        %v3706 = vpop.f32.mrb[0].mxu0
        %v3707 = vadd.f32 0.0, %v3706
        %v3708 = vpop.f32.mrb[0].mxu0
        %3709 = vmatprep.mubr.f32.mxu0 0.0
        %3710 = vmatmul.mubr.f32.gmra.mrb[0].mxu0 %v3488
        %v3711 = vpop.f32.mrb[0].mxu0
        %v3712 = vadd.f32 0.0, %v3711
        %v3713 = vpop.f32.mrb[0].mxu0
        %3714 = vmatprep.mubr.f32.mxu0 0.0
        %3715 = vmatmul.mubr.f32.gmra.mrb[0].mxu0 %v3489
        %v3716 = vpop.f32.mrb[0].mxu0
        %v3717 = vadd.f32 0.0, %v3716
        %v3718 = vpop.f32.mrb[0].mxu0
        %3719 = vmatprep.mubr.f32.mxu0 0.0
        %3720 = vmatmul.mubr.f32.gmra.mrb[0].mxu0 %v3490
        %v3721 = vpop.f32.mrb[0].mxu0
        %v3722 = vadd.f32 0.0, %v3721
        %v3723 = vpop.f32.mrb[0].mxu0
        %3724 = vmatprep.mubr.f32.mxu0 0.0
        %3725 = vmatmul.mubr.f32.gmra.mrb[0].mxu0 %v3491
        %v3726 = vpop.f32.mrb[0].mxu0
        %v3727 = vadd.f32 0.0, %v3726
        %v3728 = vpop.f32.mrb[0].mxu0
        %3729 = vmatprep.mubr.f32.mxu0 0.0
        %3730 = vmatmul.mubr.f32.gmra.mrb[0].mxu0 %v3492
        %v3731 = vpop.f32.mrb[0].mxu0
        %v3732 = vadd.f32 0.0, %v3731
        %v3733 = vpop.f32.mrb[0].mxu0
        %3734 = vdwg.mxu0
        %3735 = vmatprep.subr.mxu0 0.0
        %3736 = vmatpush1.msra.mxu0 %v1186
        %3737 = vmatprep.subr.mxu0 0.0
        %3738 = vmatpush1.msra.mxu0 %v1187
        %3739 = vmatprep.subr.mxu0 0.0
        %3740 = vmatpush1.msra.mxu0 %v1188
        %3741 = vmatprep.subr.mxu0 0.0
        %3742 = vmatpush1.msra.mxu0 %v1189
        %3743 = vmatprep.subr.mxu0 0.0
        %3744 = vmatpush1.msra.mxu0 %v1190
        %3745 = vmatprep.subr.mxu0 0.0
        %3746 = vmatpush1.msra.mxu0 %v1191
        %3747 = vmatprep.subr.mxu0 0.0
        %3748 = vmatpush1.msra.mxu0 %v1192
        %3749 = vmatprep.subr.mxu0 0.0
        %3750 = vmatpush1.msra.mxu0 %v1193
        %3751 = vmatprep.subr.mxu0 0.0
        %3752 = vmatpush1.msra.mxu0 %v1194
        %3753 = vmatprep.subr.mxu0 0.0
        %3754 = vmatpush1.msra.mxu0 %v1195
        %3755 = vmatprep.subr.mxu0 0.0
        %3756 = vmatpush1.msra.mxu0 %v1196
        %3757 = vmatprep.subr.mxu0 0.0
        %3758 = vmatpush1.msra.mxu0 %v1197
        %3759 = vmatprep.subr.mxu0 0.0
        %3760 = vmatpush1.msra.mxu0 %v1198
        %3761 = vmatprep.subr.mxu0 0.0
        %3762 = vmatpush1.msra.mxu0 %v1199
        %3763 = vmatprep.subr.mxu0 0.0
        %3764 = vmatpush1.msra.mxu0 %v1200
        %3765 = vmatprep.subr.mxu0 0.0
        %3766 = vmatpush1.msra.mxu0 %v1201
        %3767 = vmatprep.subr.mxu0 0.0
        %3768 = vmatpush1.msra.mxu0 0.0
        %3769 = vmatprep.subr.mxu0 0.0
        %3770 = vmatpush1.msra.mxu0 0.0
        %3771 = vmatprep.subr.mxu0 0.0
        %3772 = vmatpush1.msra.mxu0 0.0
        %3773 = vmatprep.subr.mxu0 0.0
        %3774 = vmatpush1.msra.mxu0 0.0
        %3775 = vmatprep.subr.mxu0 0.0
        %3776 = vmatpush1.msra.mxu0 0.0
        %3777 = vmatprep.subr.mxu0 0.0
        %3778 = vmatpush1.msra.mxu0 0.0
        %3779 = vmatprep.subr.mxu0 0.0
        %3780 = vmatpush1.msra.mxu0 0.0
        %3781 = vmatprep.subr.mxu0 0.0
        %3782 = vmatpush1.msra.mxu0 0.0
        %3783 = vmatprep.subr.mxu0 0.0
        %3784 = vmatpush1.msra.mxu0 0.0
        %3785 = vmatprep.subr.mxu0 0.0
        %3786 = vmatpush1.msra.mxu0 0.0
        %3787 = vmatprep.subr.mxu0 0.0
        %3788 = vmatpush1.msra.mxu0 0.0
        %3789 = vmatprep.subr.mxu0 0.0
        %3790 = vmatpush1.msra.mxu0 0.0
        %3791 = vmatprep.subr.mxu0 0.0
        %3792 = vmatpush1.msra.mxu0 0.0
        %3793 = vmatprep.subr.mxu0 0.0
        %3794 = vmatpush1.msra.mxu0 0.0
        %3795 = vmatprep.subr.mxu0 0.0
        %3796 = vmatpush1.msra.mxu0 0.0
        %3797 = vmatprep.subr.mxu0 0.0
        %3798 = vmatpush1.msra.mxu0 0.0
        %3799 = vmatprep.mubr.f32.mxu0 0.0
        %3800 = vmatmul.mubr.f32.gmra.mrb[0].mxu0 %v1154
        %v3801 = vpop.f32.mrb[0].mxu0
        %v3802 = vadd.f32 %v3577, %v3801
        %v3803 = vpop.f32.mrb[0].mxu0
        %3804 = vmatprep.mubr.f32.mxu0 0.0
        %3805 = vmatmul.mubr.f32.gmra.mrb[0].mxu0 %v1155
        %v3806 = vpop.f32.mrb[0].mxu0
        %v3807 = vadd.f32 %v3582, %v3806
        %v3808 = vpop.f32.mrb[0].mxu0
        %3809 = vmatprep.mubr.f32.mxu0 0.0
        %3810 = vmatmul.mubr.f32.gmra.mrb[0].mxu0 %v1156
        %v3811 = vpop.f32.mrb[0].mxu0
        %v3812 = vadd.f32 %v3587, %v3811
        %v3813 = vpop.f32.mrb[0].mxu0
        %3814 = vmatprep.mubr.f32.mxu0 0.0
        %3815 = vmatmul.mubr.f32.gmra.mrb[0].mxu0 %v1157
        %v3816 = vpop.f32.mrb[0].mxu0
        %v3817 = vadd.f32 %v3592, %v3816
        %v3818 = vpop.f32.mrb[0].mxu0
        %3819 = vmatprep.mubr.f32.mxu0 0.0
        %3820 = vmatmul.mubr.f32.gmra.mrb[0].mxu0 %v1158
        %v3821 = vpop.f32.mrb[0].mxu0
        %v3822 = vadd.f32 %v3597, %v3821
        %v3823 = vpop.f32.mrb[0].mxu0
        %3824 = vmatprep.mubr.f32.mxu0 0.0
        %3825 = vmatmul.mubr.f32.gmra.mrb[0].mxu0 %v1159
        %v3826 = vpop.f32.mrb[0].mxu0
        %v3827 = vadd.f32 %v3602, %v3826
        %v3828 = vpop.f32.mrb[0].mxu0
        %3829 = vmatprep.mubr.f32.mxu0 0.0
        %3830 = vmatmul.mubr.f32.gmra.mrb[0].mxu0 %v1160
        %v3831 = vpop.f32.mrb[0].mxu0
        %v3832 = vadd.f32 %v3607, %v3831
        %v3833 = vpop.f32.mrb[0].mxu0
        %3834 = vmatprep.mubr.f32.mxu0 0.0
        %3835 = vmatmul.mubr.f32.gmra.mrb[0].mxu0 %v1161
        %v3836 = vpop.f32.mrb[0].mxu0
        %v3837 = vadd.f32 %v3612, %v3836
        %v3838 = vpop.f32.mrb[0].mxu0
        %3839 = vmatprep.mubr.f32.mxu0 0.0
        %3840 = vmatmul.mubr.f32.gmra.mrb[0].mxu0 %v1162
        %v3841 = vpop.f32.mrb[0].mxu0
        %v3842 = vadd.f32 %v3617, %v3841
        %v3843 = vpop.f32.mrb[0].mxu0
        %3844 = vmatprep.mubr.f32.mxu0 0.0
        %3845 = vmatmul.mubr.f32.gmra.mrb[0].mxu0 %v1163
        %v3846 = vpop.f32.mrb[0].mxu0
        %v3847 = vadd.f32 %v3622, %v3846
        %v3848 = vpop.f32.mrb[0].mxu0
        %3849 = vmatprep.mubr.f32.mxu0 0.0
        %3850 = vmatmul.mubr.f32.gmra.mrb[0].mxu0 %v1164
        %v3851 = vpop.f32.mrb[0].mxu0
        %v3852 = vadd.f32 %v3627, %v3851
        %v3853 = vpop.f32.mrb[0].mxu0
        %3854 = vmatprep.mubr.f32.mxu0 0.0
        %3855 = vmatmul.mubr.f32.gmra.mrb[0].mxu0 %v1165
        %v3856 = vpop.f32.mrb[0].mxu0
        %v3857 = vadd.f32 %v3632, %v3856
        %v3858 = vpop.f32.mrb[0].mxu0
        %3859 = vmatprep.mubr.f32.mxu0 0.0
        %3860 = vmatmul.mubr.f32.gmra.mrb[0].mxu0 %v1166
        %v3861 = vpop.f32.mrb[0].mxu0
        %v3862 = vadd.f32 %v3637, %v3861
        %v3863 = vpop.f32.mrb[0].mxu0
        %3864 = vmatprep.mubr.f32.mxu0 0.0
        %3865 = vmatmul.mubr.f32.gmra.mrb[0].mxu0 %v1167
        %v3866 = vpop.f32.mrb[0].mxu0
        %v3867 = vadd.f32 %v3642, %v3866
        %v3868 = vpop.f32.mrb[0].mxu0
        %3869 = vmatprep.mubr.f32.mxu0 0.0
        %3870 = vmatmul.mubr.f32.gmra.mrb[0].mxu0 %v1168
        %v3871 = vpop.f32.mrb[0].mxu0
        %v3872 = vadd.f32 %v3647, %v3871
        %v3873 = vpop.f32.mrb[0].mxu0
        %3874 = vmatprep.mubr.f32.mxu0 0.0
        %3875 = vmatmul.mubr.f32.gmra.mrb[0].mxu0 %v1169
        %v3876 = vpop.f32.mrb[0].mxu0
        %v3877 = vadd.f32 %v3652, %v3876
        %v3878 = vpop.f32.mrb[0].mxu0
        %3879 = vmatprep.mubr.f32.mxu0 0.0
        %3880 = vmatmul.mubr.f32.gmra.mrb[0].mxu0 %v1170
        %v3881 = vpop.f32.mrb[0].mxu0
        %v3882 = vadd.f32 %v3657, %v3881
        %v3883 = vpop.f32.mrb[0].mxu0
        %3884 = vmatprep.mubr.f32.mxu0 0.0
        %3885 = vmatmul.mubr.f32.gmra.mrb[0].mxu0 %v1171
        %v3886 = vpop.f32.mrb[0].mxu0
        %v3887 = vadd.f32 %v3662, %v3886
        %v3888 = vpop.f32.mrb[0].mxu0
        %3889 = vmatprep.mubr.f32.mxu0 0.0
        %3890 = vmatmul.mubr.f32.gmra.mrb[0].mxu0 %v1172
        %v3891 = vpop.f32.mrb[0].mxu0
        %v3892 = vadd.f32 %v3667, %v3891
        %v3893 = vpop.f32.mrb[0].mxu0
        %3894 = vmatprep.mubr.f32.mxu0 0.0
        %3895 = vmatmul.mubr.f32.gmra.mrb[0].mxu0 %v1173
        %v3896 = vpop.f32.mrb[0].mxu0
        %v3897 = vadd.f32 %v3672, %v3896
        %v3898 = vpop.f32.mrb[0].mxu0
        %3899 = vmatprep.mubr.f32.mxu0 0.0
        %3900 = vmatmul.mubr.f32.gmra.mrb[0].mxu0 %v1174
        %v3901 = vpop.f32.mrb[0].mxu0
        %v3902 = vadd.f32 %v3677, %v3901
        %v3903 = vpop.f32.mrb[0].mxu0
        %3904 = vmatprep.mubr.f32.mxu0 0.0
        %3905 = vmatmul.mubr.f32.gmra.mrb[0].mxu0 %v1175
        %v3906 = vpop.f32.mrb[0].mxu0
        %v3907 = vadd.f32 %v3682, %v3906
        %v3908 = vpop.f32.mrb[0].mxu0
        %3909 = vmatprep.mubr.f32.mxu0 0.0
        %3910 = vmatmul.mubr.f32.gmra.mrb[0].mxu0 %v1176
        %v3911 = vpop.f32.mrb[0].mxu0
        %v3912 = vadd.f32 %v3687, %v3911
        %v3913 = vpop.f32.mrb[0].mxu0
        %3914 = vmatprep.mubr.f32.mxu0 0.0
        %3915 = vmatmul.mubr.f32.gmra.mrb[0].mxu0 %v1177
        %v3916 = vpop.f32.mrb[0].mxu0
        %v3917 = vadd.f32 %v3692, %v3916
        %v3918 = vpop.f32.mrb[0].mxu0
        %3919 = vmatprep.mubr.f32.mxu0 0.0
        %3920 = vmatmul.mubr.f32.gmra.mrb[0].mxu0 %v1178
        %v3921 = vpop.f32.mrb[0].mxu0
        %v3922 = vadd.f32 %v3697, %v3921
        %v3923 = vpop.f32.mrb[0].mxu0
        %3924 = vmatprep.mubr.f32.mxu0 0.0
        %3925 = vmatmul.mubr.f32.gmra.mrb[0].mxu0 %v1179
        %v3926 = vpop.f32.mrb[0].mxu0
        %v3927 = vadd.f32 %v3702, %v3926
        %v3928 = vpop.f32.mrb[0].mxu0
        %3929 = vmatprep.mubr.f32.mxu0 0.0
        %3930 = vmatmul.mubr.f32.gmra.mrb[0].mxu0 %v1180
        %v3931 = vpop.f32.mrb[0].mxu0
        %v3932 = vadd.f32 %v3707, %v3931
        %v3933 = vpop.f32.mrb[0].mxu0
        %3934 = vmatprep.mubr.f32.mxu0 0.0
        %3935 = vmatmul.mubr.f32.gmra.mrb[0].mxu0 %v1181
        %v3936 = vpop.f32.mrb[0].mxu0
        %v3937 = vadd.f32 %v3712, %v3936
        %v3938 = vpop.f32.mrb[0].mxu0
        %3939 = vmatprep.mubr.f32.mxu0 0.0
        %3940 = vmatmul.mubr.f32.gmra.mrb[0].mxu0 %v1182
        %v3941 = vpop.f32.mrb[0].mxu0
        %v3942 = vadd.f32 %v3717, %v3941
        %v3943 = vpop.f32.mrb[0].mxu0
        %3944 = vmatprep.mubr.f32.mxu0 0.0
        %3945 = vmatmul.mubr.f32.gmra.mrb[0].mxu0 %v1183
        %v3946 = vpop.f32.mrb[0].mxu0
        %v3947 = vadd.f32 %v3722, %v3946
        %v3948 = vpop.f32.mrb[0].mxu0
        %3949 = vmatprep.mubr.f32.mxu0 0.0
        %3950 = vmatmul.mubr.f32.gmra.mrb[0].mxu0 %v1184
        %v3951 = vpop.f32.mrb[0].mxu0
        %v3952 = vadd.f32 %v3727, %v3951
        %v3953 = vpop.f32.mrb[0].mxu0
        %3954 = vmatprep.mubr.f32.mxu0 0.0
        %3955 = vmatmul.mubr.f32.gmra.mrb[0].mxu0 %v1185
        %v3956 = vpop.f32.mrb[0].mxu0
        %v3957 = vadd.f32 %v3732, %v3956
        %v3958 = vpop.f32.mrb[0].mxu0
        %3959 = vdwg.mxu0
        %v3978 = vrot.slane %v375, 4
        %v3979 = vrot.slane %v376, 4
        %v3980 = vsel %vm925, %v3978, %v3979
        %v3981 = vrot.slane %v377, 4
        %v3982 = vsel %vm925, %v3979, %v3981
        %v3983 = vrot.slane %v382, 4
        %v3984 = vrot.slane %v383, 4
        %v3985 = vsel %vm925, %v3983, %v3984
        %v3986 = vrot.slane %v384, 4
        %v3987 = vsel %vm925, %v3984, %v3986
        %v3988 = vrot.slane %v389, 4
        %v3989 = vrot.slane %v390, 4
        %v3990 = vsel %vm925, %v3988, %v3989
        %v3991 = vrot.slane %v391, 4
        %v3992 = vsel %vm925, %v3989, %v3991
        %v3993 = vrot.slane %v396, 4
        %v3994 = vrot.slane %v397, 4
        %v3995 = vsel %vm925, %v3993, %v3994
        %v3996 = vrot.slane %v398, 4
        %v3997 = vsel %vm925, %v3994, %v3996
        %v3998 = vrot.slane %v403, 4
        %v3999 = vrot.slane %v404, 4
        %v4000 = vsel %vm925, %v3998, %v3999
        %v4001 = vrot.slane %v405, 4
        %v4002 = vsel %vm925, %v3999, %v4001
        %v4003 = vrot.slane %v410, 4
        %v4004 = vrot.slane %v411, 4
        %v4005 = vsel %vm925, %v4003, %v4004
        %v4006 = vrot.slane %v412, 4
        %v4007 = vsel %vm925, %v4004, %v4006
        %v4008 = vrot.slane %v417, 4
        %v4009 = vsel %vm925, %v4008, %v1445
        %v4010 = vrot.slane %v424, 4
        %v4011 = vsel %vm925, %v4010, %v1448
        %v4012 = vrot.slane %v431, 4
        %v4013 = vsel %vm925, %v4012, %v1451
        %v4014 = vrot.slane %v438, 4
        %v4015 = vsel %vm925, %v4014, %v1454
        %v4016 = vrot.slane %v445, 4
        %v4017 = vsel %vm925, %v4016, %v1457
        %v4018 = vrot.slane %v451, 4
        %v4019 = vsel %vm925, %v4018, %v1460
        %v4020 = vrot.slane %v457, 4
        %v4021 = vsel %vm925, %v4020, %v1463
        %v4022 = vrot.slane %v464, 4
        %v4023 = vsel %vm925, %v4022, %v1466
        %v4024 = vrot.slane %v471, 4
        %v4025 = vsel %vm925, %v4024, %v1469
        %v4026 = vrot.slane %v478, 4
        %v4027 = vsel %vm925, %v4026, %v1472
        %4028 = vrot.lane.b32.xlu0 %v3978, 4
        %v4029 = vpop.permute.xlu0 %4028
        %4030 = vrot.lane.b32.xlu0 %v3980, 4
        %v4031 = vpop.permute.xlu0 %4030
        %4032 = vrot.lane.b32.xlu0 %v3982, 4
        %v4033 = vpop.permute.xlu0 %4032
        %4034 = vrot.lane.b32.xlu0 %v3983, 4
        %v4035 = vpop.permute.xlu0 %4034
        %4036 = vrot.lane.b32.xlu0 %v3985, 4
        %v4037 = vpop.permute.xlu0 %4036
        %4038 = vrot.lane.b32.xlu0 %v3987, 4
        %v4039 = vpop.permute.xlu0 %4038
        %4040 = vrot.lane.b32.xlu0 %v3988, 4
        %v4041 = vpop.permute.xlu0 %4040
        %4042 = vrot.lane.b32.xlu0 %v3990, 4
        %v4043 = vpop.permute.xlu0 %4042
        %4044 = vrot.lane.b32.xlu0 %v3992, 4
        %v4045 = vpop.permute.xlu0 %4044
        %4046 = vrot.lane.b32.xlu0 %v3993, 4
        %v4047 = vpop.permute.xlu0 %4046
        %4048 = vrot.lane.b32.xlu0 %v3995, 4
        %v4049 = vpop.permute.xlu0 %4048
        %4050 = vrot.lane.b32.xlu0 %v3997, 4
        %v4051 = vpop.permute.xlu0 %4050
        %4052 = vrot.lane.b32.xlu0 %v3998, 4
        %v4053 = vpop.permute.xlu0 %4052
        %4054 = vrot.lane.b32.xlu0 %v4000, 4
        %v4055 = vpop.permute.xlu0 %4054
        %4056 = vrot.lane.b32.xlu0 %v4002, 4
        %v4057 = vpop.permute.xlu0 %4056
        %4058 = vrot.lane.b32.xlu0 %v4003, 4
        %v4059 = vpop.permute.xlu0 %4058
        %4060 = vrot.lane.b32.xlu0 %v4005, 4
        %v4061 = vpop.permute.xlu0 %4060
        %4062 = vrot.lane.b32.xlu0 %v4007, 4
        %v4063 = vpop.permute.xlu0 %4062
        %4064 = vrot.lane.b32.xlu0 %v4008, 4
        %v4065 = vpop.permute.xlu0 %4064
        %4066 = vrot.lane.b32.xlu0 %v4009, 4
        %v4067 = vpop.permute.xlu0 %4066
        %4068 = vrot.lane.b32.xlu0 %v1447, 4
        %v4069 = vpop.permute.xlu0 %4068
        %4070 = vrot.lane.b32.xlu0 %v4010, 4
        %v4071 = vpop.permute.xlu0 %4070
        %4072 = vrot.lane.b32.xlu0 %v4011, 4
        %v4073 = vpop.permute.xlu0 %4072
        %4074 = vrot.lane.b32.xlu0 %v1450, 4
        %v4075 = vpop.permute.xlu0 %4074
        %4076 = vrot.lane.b32.xlu0 %v4012, 4
        %v4077 = vpop.permute.xlu0 %4076
        %4078 = vrot.lane.b32.xlu0 %v4013, 4
        %v4079 = vpop.permute.xlu0 %4078
        %4080 = vrot.lane.b32.xlu0 %v1453, 4
        %v4081 = vpop.permute.xlu0 %4080
        %4082 = vrot.lane.b32.xlu0 %v4014, 4
        %v4083 = vpop.permute.xlu0 %4082
        %4084 = vrot.lane.b32.xlu0 %v4015, 4
        %v4085 = vpop.permute.xlu0 %4084
        %4086 = vrot.lane.b32.xlu0 %v1456, 4
        %v4087 = vpop.permute.xlu0 %4086
        %4088 = vrot.lane.b32.xlu0 %v4016, 4
        %v4089 = vpop.permute.xlu0 %4088
        %4090 = vrot.lane.b32.xlu0 %v4017, 4
        %v4091 = vpop.permute.xlu0 %4090
        %4092 = vrot.lane.b32.xlu0 %v1459, 4
        %v4093 = vpop.permute.xlu0 %4092
        %4094 = vrot.lane.b32.xlu0 %v4018, 4
        %v4095 = vpop.permute.xlu0 %4094
        %4096 = vrot.lane.b32.xlu0 %v4019, 4
        %v4097 = vpop.permute.xlu0 %4096
        %4098 = vrot.lane.b32.xlu0 %v1462, 4
        %v4099 = vpop.permute.xlu0 %4098
        %4100 = vrot.lane.b32.xlu0 %v4020, 4
        %v4101 = vpop.permute.xlu0 %4100
        %4102 = vrot.lane.b32.xlu0 %v4021, 4
        %v4103 = vpop.permute.xlu0 %4102
        %4104 = vrot.lane.b32.xlu0 %v1465, 4
        %v4105 = vpop.permute.xlu0 %4104
        %4106 = vrot.lane.b32.xlu0 %v4022, 4
        %v4107 = vpop.permute.xlu0 %4106
        %4108 = vrot.lane.b32.xlu0 %v4023, 4
        %v4109 = vpop.permute.xlu0 %4108
        %4110 = vrot.lane.b32.xlu0 %v1468, 4
        %v4111 = vpop.permute.xlu0 %4110
        %4112 = vrot.lane.b32.xlu0 %v4024, 4
        %v4113 = vpop.permute.xlu0 %4112
        %4114 = vrot.lane.b32.xlu0 %v4025, 4
        %v4115 = vpop.permute.xlu0 %4114
        %4116 = vrot.lane.b32.xlu0 %v1471, 4
        %v4117 = vpop.permute.xlu0 %4116
        %4118 = vrot.lane.b32.xlu0 %v4026, 4
        %v4119 = vpop.permute.xlu0 %4118
        %4120 = vrot.lane.b32.xlu0 %v4027, 4
        %v4121 = vpop.permute.xlu0 %4120
        %4122 = vrot.lane.b32.xlu0 %v1474, 4
        %v4123 = vpop.permute.xlu0 %4122
        %4188 = vrot.lane.b32.xlu0 %v376, 8
        %v4189 = vpop.permute.xlu0 %4188
        %4190 = vrot.lane.b32.xlu0 %v377, 8
        %v4191 = vpop.permute.xlu0 %4190
        %4192 = vrot.lane.b32.xlu0 %v378, 8
        %v4193 = vpop.permute.xlu0 %4192
        %4194 = vrot.lane.b32.xlu0 %v383, 8
        %v4195 = vpop.permute.xlu0 %4194
        %4196 = vrot.lane.b32.xlu0 %v384, 8
        %v4197 = vpop.permute.xlu0 %4196
        %4198 = vrot.lane.b32.xlu0 %v385, 8
        %v4199 = vpop.permute.xlu0 %4198
        %4200 = vrot.lane.b32.xlu0 %v390, 8
        %v4201 = vpop.permute.xlu0 %4200
        %4202 = vrot.lane.b32.xlu0 %v391, 8
        %v4203 = vpop.permute.xlu0 %4202
        %4204 = vrot.lane.b32.xlu0 %v392, 8
        %v4205 = vpop.permute.xlu0 %4204
        %4206 = vrot.lane.b32.xlu0 %v397, 8
        %v4207 = vpop.permute.xlu0 %4206
        %4208 = vrot.lane.b32.xlu0 %v398, 8
        %v4209 = vpop.permute.xlu0 %4208
        %4210 = vrot.lane.b32.xlu0 %v399, 8
        %v4211 = vpop.permute.xlu0 %4210
        %4212 = vrot.lane.b32.xlu0 %v404, 8
        %v4213 = vpop.permute.xlu0 %4212
        %4214 = vrot.lane.b32.xlu0 %v405, 8
        %v4215 = vpop.permute.xlu0 %4214
        %4216 = vrot.lane.b32.xlu0 %v406, 8
        %v4217 = vpop.permute.xlu0 %4216
        %4218 = vrot.lane.b32.xlu0 %v411, 8
        %v4219 = vpop.permute.xlu0 %4218
        %4220 = vrot.lane.b32.xlu0 %v412, 8
        %v4221 = vpop.permute.xlu0 %4220
        %4222 = vrot.lane.b32.xlu0 %v413, 8
        %v4223 = vpop.permute.xlu0 %4222
        %4224 = vrot.lane.b32.xlu0 %v418, 8
        %v4225 = vpop.permute.xlu0 %4224
        %4226 = vrot.lane.b32.xlu0 %v419, 8
        %v4227 = vpop.permute.xlu0 %4226
        %4228 = vrot.lane.b32.xlu0 %v420, 8
        %v4229 = vpop.permute.xlu0 %4228
        %4230 = vrot.lane.b32.xlu0 %v425, 8
        %v4231 = vpop.permute.xlu0 %4230
        %4232 = vrot.lane.b32.xlu0 %v426, 8
        %v4233 = vpop.permute.xlu0 %4232
        %4234 = vrot.lane.b32.xlu0 %v427, 8
        %v4235 = vpop.permute.xlu0 %4234
        %4236 = vrot.lane.b32.xlu0 %v432, 8
        %v4237 = vpop.permute.xlu0 %4236
        %4238 = vrot.lane.b32.xlu0 %v433, 8
        %v4239 = vpop.permute.xlu0 %4238
        %4240 = vrot.lane.b32.xlu0 %v434, 8
        %v4241 = vpop.permute.xlu0 %4240
        %4242 = vrot.lane.b32.xlu0 %v439, 8
        %v4243 = vpop.permute.xlu0 %4242
        %4244 = vrot.lane.b32.xlu0 %v440, 8
        %v4245 = vpop.permute.xlu0 %4244
        %4246 = vrot.lane.b32.xlu0 %v441, 8
        %v4247 = vpop.permute.xlu0 %4246
        %4248 = vrot.lane.b32.xlu0 %v446, 8
        %v4249 = vpop.permute.xlu0 %4248
        %4250 = vrot.lane.b32.xlu0 %v447, 8
        %v4251 = vpop.permute.xlu0 %4250
        %4252 = vrot.lane.b32.xlu0 %v448, 8
        %v4253 = vpop.permute.xlu0 %4252
        %4254 = vrot.lane.b32.xlu0 %v452, 8
        %v4255 = vpop.permute.xlu0 %4254
        %4256 = vrot.lane.b32.xlu0 %v453, 8
        %v4257 = vpop.permute.xlu0 %4256
        %4258 = vrot.lane.b32.xlu0 %v454, 8
        %v4259 = vpop.permute.xlu0 %4258
        %4260 = vrot.lane.b32.xlu0 %v458, 8
        %v4261 = vpop.permute.xlu0 %4260
        %4262 = vrot.lane.b32.xlu0 %v459, 8
        %v4263 = vpop.permute.xlu0 %4262
        %4264 = vrot.lane.b32.xlu0 %v460, 8
        %v4265 = vpop.permute.xlu0 %4264
        %4266 = vrot.lane.b32.xlu0 %v465, 8
        %v4267 = vpop.permute.xlu0 %4266
        %4268 = vrot.lane.b32.xlu0 %v466, 8
        %v4269 = vpop.permute.xlu0 %4268
        %4270 = vrot.lane.b32.xlu0 %v467, 8
        %v4271 = vpop.permute.xlu0 %4270
        %4272 = vrot.lane.b32.xlu0 %v472, 8
        %v4273 = vpop.permute.xlu0 %4272
        %4274 = vrot.lane.b32.xlu0 %v473, 8
        %v4275 = vpop.permute.xlu0 %4274
        %4276 = vrot.lane.b32.xlu0 %v474, 8
        %v4277 = vpop.permute.xlu0 %4276
        %4278 = vrot.lane.b32.xlu0 %v479, 8
        %v4279 = vpop.permute.xlu0 %4278
        %4280 = vrot.lane.b32.xlu0 %v480, 8
        %v4281 = vpop.permute.xlu0 %4280
        %4282 = vrot.lane.b32.xlu0 %v481, 8
        %v4283 = vpop.permute.xlu0 %4282
        %4348 = vrot.lane.b32.xlu0 %v455, 12
        %v4349 = vpop.permute.xlu0 %4348
        %4350 = vrot.lane.b32.xlu0 %v462, 12
        %v4351 = vpop.permute.xlu0 %4350
        %4352 = vrot.lane.b32.xlu0 %v469, 12
        %v4353 = vpop.permute.xlu0 %4352
        %4354 = vrot.lane.b32.xlu0 %v476, 12
        %v4355 = vpop.permute.xlu0 %4354
        %4356 = vrot.lane.b32.xlu0 %v483, 12
        %v4357 = vpop.permute.xlu0 %4356
        %4358 = vrot.lane.b32.xlu0 %v490, 12
        %v4359 = vpop.permute.xlu0 %4358
        %4360 = vrot.lane.b32.xlu0 %v497, 12
        %v4361 = vpop.permute.xlu0 %4360
        %4362 = vrot.lane.b32.xlu0 %v504, 12
        %v4363 = vpop.permute.xlu0 %4362
        %4364 = vrot.lane.b32.xlu0 %v511, 12
        %v4365 = vpop.permute.xlu0 %4364
        %4366 = vrot.lane.b32.xlu0 %v518, 12
        %v4367 = vpop.permute.xlu0 %4366
        %4368 = vrot.lane.b32.xlu0 %v525, 12
        %v4369 = vpop.permute.xlu0 %4368
        %4370 = vrot.lane.b32.xlu0 %v532, 12
        %v4371 = vpop.permute.xlu0 %4370
        %4372 = vrot.lane.b32.xlu0 %v539, 12
        %v4373 = vpop.permute.xlu0 %4372
        %4374 = vrot.lane.b32.xlu0 %v546, 12
        %v4375 = vpop.permute.xlu0 %4374
        %4376 = vrot.lane.b32.xlu0 %v553, 12
        %v4377 = vpop.permute.xlu0 %4376
        %4378 = vrot.lane.b32.xlu0 %v560, 12
        %v4379 = vpop.permute.xlu0 %4378
        %v4396 = vrot.slane %v485, 4
        %v4397 = vsel %vm925, %v4396, %v1475
        %v4398 = vrot.slane %v492, 4
        %v4399 = vsel %vm925, %v4398, %v1478
        %v4400 = vrot.slane %v499, 4
        %v4401 = vsel %vm925, %v4400, %v1481
        %v4402 = vrot.slane %v506, 4
        %v4403 = vsel %vm925, %v4402, %v1484
        %v4404 = vrot.slane %v513, 4
        %v4405 = vsel %vm925, %v4404, %v1487
        %v4406 = vrot.slane %v520, 4
        %v4407 = vsel %vm925, %v4406, %v1490
        %v4408 = vrot.slane %v527, 4
        %v4409 = vsel %vm925, %v4408, %v1971
        %v4410 = vrot.slane %v534, 4
        %v4411 = vsel %vm925, %v4410, %v1974
        %v4412 = vrot.slane %v541, 4
        %v4413 = vsel %vm925, %v4412, %v1977
        %v4414 = vrot.slane %v548, 4
        %v4415 = vsel %vm925, %v4414, %v1980
        %v4416 = vrot.slane %v555, 4
        %v4417 = vsel %vm925, %v4416, %v1983
        %v4418 = vrot.slane %v562, 4
        %v4419 = vsel %vm925, %v4418, %v1986
        %4420 = vrot.lane.b32.xlu0 %v4020, 16
        %v4421 = vpop.permute.xlu0 %4420
        %4422 = vrot.lane.b32.xlu0 %v4021, 16
        %v4423 = vpop.permute.xlu0 %4422
        %4424 = vrot.lane.b32.xlu0 %v1465, 16
        %v4425 = vpop.permute.xlu0 %4424
        %4426 = vrot.lane.b32.xlu0 %v4022, 16
        %v4427 = vpop.permute.xlu0 %4426
        %4428 = vrot.lane.b32.xlu0 %v4023, 16
        %v4429 = vpop.permute.xlu0 %4428
        %4430 = vrot.lane.b32.xlu0 %v1468, 16
        %v4431 = vpop.permute.xlu0 %4430
        %4432 = vrot.lane.b32.xlu0 %v4024, 16
        %v4433 = vpop.permute.xlu0 %4432
        %4434 = vrot.lane.b32.xlu0 %v4025, 16
        %v4435 = vpop.permute.xlu0 %4434
        %4436 = vrot.lane.b32.xlu0 %v1471, 16
        %v4437 = vpop.permute.xlu0 %4436
        %4438 = vrot.lane.b32.xlu0 %v4026, 16
        %v4439 = vpop.permute.xlu0 %4438
        %4440 = vrot.lane.b32.xlu0 %v4027, 16
        %v4441 = vpop.permute.xlu0 %4440
        %4442 = vrot.lane.b32.xlu0 %v1474, 16
        %v4443 = vpop.permute.xlu0 %4442
        %4444 = vrot.lane.b32.xlu0 %v4396, 16
        %v4445 = vpop.permute.xlu0 %4444
        %4446 = vrot.lane.b32.xlu0 %v4397, 16
        %v4447 = vpop.permute.xlu0 %4446
        %4448 = vrot.lane.b32.xlu0 %v1477, 16
        %v4449 = vpop.permute.xlu0 %4448
        %4450 = vrot.lane.b32.xlu0 %v4398, 16
        %v4451 = vpop.permute.xlu0 %4450
        %4452 = vrot.lane.b32.xlu0 %v4399, 16
        %v4453 = vpop.permute.xlu0 %4452
        %4454 = vrot.lane.b32.xlu0 %v1480, 16
        %v4455 = vpop.permute.xlu0 %4454
        %4456 = vrot.lane.b32.xlu0 %v4400, 16
        %v4457 = vpop.permute.xlu0 %4456
        %4458 = vrot.lane.b32.xlu0 %v4401, 16
        %v4459 = vpop.permute.xlu0 %4458
        %4460 = vrot.lane.b32.xlu0 %v1483, 16
        %v4461 = vpop.permute.xlu0 %4460
        %4462 = vrot.lane.b32.xlu0 %v4402, 16
        %v4463 = vpop.permute.xlu0 %4462
        %4464 = vrot.lane.b32.xlu0 %v4403, 16
        %v4465 = vpop.permute.xlu0 %4464
        %4466 = vrot.lane.b32.xlu0 %v1486, 16
        %v4467 = vpop.permute.xlu0 %4466
        %4468 = vrot.lane.b32.xlu0 %v4404, 16
        %v4469 = vpop.permute.xlu0 %4468
        %4470 = vrot.lane.b32.xlu0 %v4405, 16
        %v4471 = vpop.permute.xlu0 %4470
        %4472 = vrot.lane.b32.xlu0 %v1489, 16
        %v4473 = vpop.permute.xlu0 %4472
        %4474 = vrot.lane.b32.xlu0 %v4406, 16
        %v4475 = vpop.permute.xlu0 %4474
        %4476 = vrot.lane.b32.xlu0 %v4407, 16
        %v4477 = vpop.permute.xlu0 %4476
        %4478 = vrot.lane.b32.xlu0 %v1492, 16
        %v4479 = vpop.permute.xlu0 %4478
        %4480 = vrot.lane.b32.xlu0 %v4408, 16
        %v4481 = vpop.permute.xlu0 %4480
        %4482 = vrot.lane.b32.xlu0 %v4409, 16
        %v4483 = vpop.permute.xlu0 %4482
        %4484 = vrot.lane.b32.xlu0 %v1973, 16
        %v4485 = vpop.permute.xlu0 %4484
        %4486 = vrot.lane.b32.xlu0 %v4410, 16
        %v4487 = vpop.permute.xlu0 %4486
        %4488 = vrot.lane.b32.xlu0 %v4411, 16
        %v4489 = vpop.permute.xlu0 %4488
        %4490 = vrot.lane.b32.xlu0 %v1976, 16
        %v4491 = vpop.permute.xlu0 %4490
        %4492 = vrot.lane.b32.xlu0 %v4412, 16
        %v4493 = vpop.permute.xlu0 %4492
        %4494 = vrot.lane.b32.xlu0 %v4413, 16
        %v4495 = vpop.permute.xlu0 %4494
        %4496 = vrot.lane.b32.xlu0 %v1979, 16
        %v4497 = vpop.permute.xlu0 %4496
        %4498 = vrot.lane.b32.xlu0 %v4414, 16
        %v4499 = vpop.permute.xlu0 %4498
        %4500 = vrot.lane.b32.xlu0 %v4415, 16
        %v4501 = vpop.permute.xlu0 %4500
        %4502 = vrot.lane.b32.xlu0 %v1982, 16
        %v4503 = vpop.permute.xlu0 %4502
        %4504 = vrot.lane.b32.xlu0 %v4416, 16
        %v4505 = vpop.permute.xlu0 %4504
        %4506 = vrot.lane.b32.xlu0 %v4417, 16
        %v4507 = vpop.permute.xlu0 %4506
        %4508 = vrot.lane.b32.xlu0 %v1985, 16
        %v4509 = vpop.permute.xlu0 %4508
        %4510 = vrot.lane.b32.xlu0 %v4418, 16
        %v4511 = vpop.permute.xlu0 %4510
        %4512 = vrot.lane.b32.xlu0 %v4419, 16
        %v4513 = vpop.permute.xlu0 %4512
        %4514 = vrot.lane.b32.xlu0 %v1988, 16
        %v4515 = vpop.permute.xlu0 %4514
        %4576 = vrot.lane.b32.xlu0 %v458, 20
        %v4577 = vpop.permute.xlu0 %4576
        %4578 = vrot.lane.b32.xlu0 %v459, 20
        %v4579 = vpop.permute.xlu0 %4578
        %4580 = vrot.lane.b32.xlu0 %v460, 20
        %v4581 = vpop.permute.xlu0 %4580
        %4582 = vrot.lane.b32.xlu0 %v465, 20
        %v4583 = vpop.permute.xlu0 %4582
        %4584 = vrot.lane.b32.xlu0 %v466, 20
        %v4585 = vpop.permute.xlu0 %4584
        %4586 = vrot.lane.b32.xlu0 %v467, 20
        %v4587 = vpop.permute.xlu0 %4586
        %4588 = vrot.lane.b32.xlu0 %v472, 20
        %v4589 = vpop.permute.xlu0 %4588
        %4590 = vrot.lane.b32.xlu0 %v473, 20
        %v4591 = vpop.permute.xlu0 %4590
        %4592 = vrot.lane.b32.xlu0 %v474, 20
        %v4593 = vpop.permute.xlu0 %4592
        %4594 = vrot.lane.b32.xlu0 %v479, 20
        %v4595 = vpop.permute.xlu0 %4594
        %4596 = vrot.lane.b32.xlu0 %v480, 20
        %v4597 = vpop.permute.xlu0 %4596
        %4598 = vrot.lane.b32.xlu0 %v481, 20
        %v4599 = vpop.permute.xlu0 %4598
        %4600 = vrot.lane.b32.xlu0 %v486, 20
        %v4601 = vpop.permute.xlu0 %4600
        %4602 = vrot.lane.b32.xlu0 %v487, 20
        %v4603 = vpop.permute.xlu0 %4602
        %4604 = vrot.lane.b32.xlu0 %v488, 20
        %v4605 = vpop.permute.xlu0 %4604
        %4606 = vrot.lane.b32.xlu0 %v493, 20
        %v4607 = vpop.permute.xlu0 %4606
        %4608 = vrot.lane.b32.xlu0 %v494, 20
        %v4609 = vpop.permute.xlu0 %4608
        %4610 = vrot.lane.b32.xlu0 %v495, 20
        %v4611 = vpop.permute.xlu0 %4610
        %4612 = vrot.lane.b32.xlu0 %v500, 20
        %v4613 = vpop.permute.xlu0 %4612
        %4614 = vrot.lane.b32.xlu0 %v501, 20
        %v4615 = vpop.permute.xlu0 %4614
        %4616 = vrot.lane.b32.xlu0 %v502, 20
        %v4617 = vpop.permute.xlu0 %4616
        %4618 = vrot.lane.b32.xlu0 %v507, 20
        %v4619 = vpop.permute.xlu0 %4618
        %4620 = vrot.lane.b32.xlu0 %v508, 20
        %v4621 = vpop.permute.xlu0 %4620
        %4622 = vrot.lane.b32.xlu0 %v509, 20
        %v4623 = vpop.permute.xlu0 %4622
        %4624 = vrot.lane.b32.xlu0 %v514, 20
        %v4625 = vpop.permute.xlu0 %4624
        %4626 = vrot.lane.b32.xlu0 %v515, 20
        %v4627 = vpop.permute.xlu0 %4626
        %4628 = vrot.lane.b32.xlu0 %v516, 20
        %v4629 = vpop.permute.xlu0 %4628
        %4630 = vrot.lane.b32.xlu0 %v521, 20
        %v4631 = vpop.permute.xlu0 %4630
        %4632 = vrot.lane.b32.xlu0 %v522, 20
        %v4633 = vpop.permute.xlu0 %4632
        %4634 = vrot.lane.b32.xlu0 %v523, 20
        %v4635 = vpop.permute.xlu0 %4634
        %4636 = vrot.lane.b32.xlu0 %v528, 20
        %v4637 = vpop.permute.xlu0 %4636
        %4638 = vrot.lane.b32.xlu0 %v529, 20
        %v4639 = vpop.permute.xlu0 %4638
        %4640 = vrot.lane.b32.xlu0 %v530, 20
        %v4641 = vpop.permute.xlu0 %4640
        %4642 = vrot.lane.b32.xlu0 %v535, 20
        %v4643 = vpop.permute.xlu0 %4642
        %4644 = vrot.lane.b32.xlu0 %v536, 20
        %v4645 = vpop.permute.xlu0 %4644
        %4646 = vrot.lane.b32.xlu0 %v537, 20
        %v4647 = vpop.permute.xlu0 %4646
        %4648 = vrot.lane.b32.xlu0 %v542, 20
        %v4649 = vpop.permute.xlu0 %4648
        %4650 = vrot.lane.b32.xlu0 %v543, 20
        %v4651 = vpop.permute.xlu0 %4650
        %4652 = vrot.lane.b32.xlu0 %v544, 20
        %v4653 = vpop.permute.xlu0 %4652
        %4654 = vrot.lane.b32.xlu0 %v549, 20
        %v4655 = vpop.permute.xlu0 %4654
        %4656 = vrot.lane.b32.xlu0 %v550, 20
        %v4657 = vpop.permute.xlu0 %4656
        %4658 = vrot.lane.b32.xlu0 %v551, 20
        %v4659 = vpop.permute.xlu0 %4658
        %4660 = vrot.lane.b32.xlu0 %v556, 20
        %v4661 = vpop.permute.xlu0 %4660
        %4662 = vrot.lane.b32.xlu0 %v557, 20
        %v4663 = vpop.permute.xlu0 %4662
        %4664 = vrot.lane.b32.xlu0 %v558, 20
        %v4665 = vpop.permute.xlu0 %4664
        %4666 = vrot.lane.b32.xlu0 %v563, 20
        %v4667 = vpop.permute.xlu0 %4666
        %4668 = vrot.lane.b32.xlu0 %v564, 20
        %v4669 = vpop.permute.xlu0 %4668
        %4670 = vrot.lane.b32.xlu0 %v565, 20
        %v4671 = vpop.permute.xlu0 %4670
        %4744 = vrot.lane.b32.xlu0 %v539, 24
        %v4745 = vpop.permute.xlu0 %4744
        %4746 = vrot.lane.b32.xlu0 %v546, 24
        %v4747 = vpop.permute.xlu0 %4746
        %4748 = vrot.lane.b32.xlu0 %v553, 24
        %v4749 = vpop.permute.xlu0 %4748
        %4750 = vrot.lane.b32.xlu0 %v560, 24
        %v4751 = vpop.permute.xlu0 %4750
        %4752 = vrot.lane.b32.xlu0 %v567, 24
        %v4753 = vpop.permute.xlu0 %4752
        %4754 = vrot.lane.b32.xlu0 %v573, 24
        %v4755 = vpop.permute.xlu0 %4754
        %4756 = vrot.lane.b32.xlu0 %v579, 24
        %v4757 = vpop.permute.xlu0 %4756
        %4758 = vrot.lane.b32.xlu0 %v586, 24
        %v4759 = vpop.permute.xlu0 %4758
        %4760 = vrot.lane.b32.xlu0 %v593, 24
        %v4761 = vpop.permute.xlu0 %4760
        %4762 = vrot.lane.b32.xlu0 %v600, 24
        %v4763 = vpop.permute.xlu0 %4762
        %4764 = vrot.lane.b32.xlu0 %v607, 24
        %v4765 = vpop.permute.xlu0 %4764
        %4766 = vrot.lane.b32.xlu0 %v608, 24
        %v4767 = vpop.permute.xlu0 %4766
        %4768 = vrot.lane.b32.xlu0 %v609, 24
        %v4769 = vpop.permute.xlu0 %4768
        %4770 = vrot.lane.b32.xlu0 %v614, 24
        %v4771 = vpop.permute.xlu0 %4770
        %4772 = vrot.lane.b32.xlu0 %v615, 24
        %v4773 = vpop.permute.xlu0 %4772
        %4774 = vrot.lane.b32.xlu0 %v616, 24
        %v4775 = vpop.permute.xlu0 %4774
        %4776 = vrot.lane.b32.xlu0 %v621, 24
        %v4777 = vpop.permute.xlu0 %4776
        %4778 = vrot.lane.b32.xlu0 %v622, 24
        %v4779 = vpop.permute.xlu0 %4778
        %4780 = vrot.lane.b32.xlu0 %v623, 24
        %v4781 = vpop.permute.xlu0 %4780
        %4782 = vrot.lane.b32.xlu0 %v628, 24
        %v4783 = vpop.permute.xlu0 %4782
        %4784 = vrot.lane.b32.xlu0 %v629, 24
        %v4785 = vpop.permute.xlu0 %4784
        %4786 = vrot.lane.b32.xlu0 %v630, 24
        %v4787 = vpop.permute.xlu0 %4786
        %4788 = vrot.lane.b32.xlu0 %v635, 24
        %v4789 = vpop.permute.xlu0 %4788
        %4790 = vrot.lane.b32.xlu0 %v636, 24
        %v4791 = vpop.permute.xlu0 %4790
        %4792 = vrot.lane.b32.xlu0 %v637, 24
        %v4793 = vpop.permute.xlu0 %4792
        %4794 = vrot.lane.b32.xlu0 %v642, 24
        %v4795 = vpop.permute.xlu0 %4794
        %4796 = vrot.lane.b32.xlu0 %v643, 24
        %v4797 = vpop.permute.xlu0 %4796
        %4798 = vrot.lane.b32.xlu0 %v644, 24
        %v4799 = vpop.permute.xlu0 %4798
        %v4840 = vrot.slane %v569, 4
        %v4841 = vsel %vm925, %v4840, %v2475
        %v4842 = vrot.slane %v575, 4
        %v4843 = vsel %vm925, %v4842, %v2478
        %v4844 = vrot.slane %v581, 4
        %v4845 = vsel %vm925, %v4844, %v2481
        %v4846 = vrot.slane %v588, 4
        %v4847 = vsel %vm925, %v4846, %v2484
        %v4848 = vrot.slane %v595, 4
        %v4849 = vsel %vm925, %v4848, %v2487
        %v4850 = vrot.slane %v602, 4
        %v4851 = vsel %vm925, %v4850, %v2490
        %v4852 = vrot.slane %v609, 4
        %v4853 = vrot.slane %v610, 4
        %v4854 = vsel %vm925, %v4852, %v4853
        %v4855 = vrot.slane %v611, 4
        %v4856 = vsel %vm925, %v4853, %v4855
        %v4857 = vrot.slane %v616, 4
        %v4858 = vrot.slane %v617, 4
        %v4859 = vsel %vm925, %v4857, %v4858
        %v4860 = vrot.slane %v618, 4
        %v4861 = vsel %vm925, %v4858, %v4860
        %v4862 = vrot.slane %v623, 4
        %v4863 = vrot.slane %v624, 4
        %v4864 = vsel %vm925, %v4862, %v4863
        %v4865 = vrot.slane %v625, 4
        %v4866 = vsel %vm925, %v4863, %v4865
        %v4867 = vrot.slane %v630, 4
        %v4868 = vrot.slane %v631, 4
        %v4869 = vsel %vm925, %v4867, %v4868
        %v4870 = vrot.slane %v632, 4
        %v4871 = vsel %vm925, %v4868, %v4870
        %v4872 = vrot.slane %v637, 4
        %v4873 = vrot.slane %v638, 4
        %v4874 = vsel %vm925, %v4872, %v4873
        %v4875 = vrot.slane %v639, 4
        %v4876 = vsel %vm925, %v4873, %v4875
        %v4877 = vrot.slane %v644, 4
        %v4878 = vrot.slane %v645, 4
        %v4879 = vsel %vm925, %v4877, %v4878
        %v4880 = vrot.slane %v646, 4
        %v4881 = vsel %vm925, %v4878, %v4880
        %4882 = vrot.lane.b32.xlu0 %v4412, 28
        %v4883 = vpop.permute.xlu0 %4882
        %4884 = vrot.lane.b32.xlu0 %v4413, 28
        %v4885 = vpop.permute.xlu0 %4884
        %4886 = vrot.lane.b32.xlu0 %v1979, 28
        %v4887 = vpop.permute.xlu0 %4886
        %4888 = vrot.lane.b32.xlu0 %v4414, 28
        %v4889 = vpop.permute.xlu0 %4888
        %4890 = vrot.lane.b32.xlu0 %v4415, 28
        %v4891 = vpop.permute.xlu0 %4890
        %4892 = vrot.lane.b32.xlu0 %v1982, 28
        %v4893 = vpop.permute.xlu0 %4892
        %4894 = vrot.lane.b32.xlu0 %v4416, 28
        %v4895 = vpop.permute.xlu0 %4894
        %4896 = vrot.lane.b32.xlu0 %v4417, 28
        %v4897 = vpop.permute.xlu0 %4896
        %4898 = vrot.lane.b32.xlu0 %v1985, 28
        %v4899 = vpop.permute.xlu0 %4898
        %4900 = vrot.lane.b32.xlu0 %v4418, 28
        %v4901 = vpop.permute.xlu0 %4900
        %4902 = vrot.lane.b32.xlu0 %v4419, 28
        %v4903 = vpop.permute.xlu0 %4902
        %4904 = vrot.lane.b32.xlu0 %v1988, 28
        %v4905 = vpop.permute.xlu0 %4904
        %4906 = vrot.lane.b32.xlu0 %v4840, 28
        %v4907 = vpop.permute.xlu0 %4906
        %4908 = vrot.lane.b32.xlu0 %v4841, 28
        %v4909 = vpop.permute.xlu0 %4908
        %4910 = vrot.lane.b32.xlu0 %v2477, 28
        %v4911 = vpop.permute.xlu0 %4910
        %4912 = vrot.lane.b32.xlu0 %v4842, 28
        %v4913 = vpop.permute.xlu0 %4912
        %4914 = vrot.lane.b32.xlu0 %v4843, 28
        %v4915 = vpop.permute.xlu0 %4914
        %4916 = vrot.lane.b32.xlu0 %v2480, 28
        %v4917 = vpop.permute.xlu0 %4916
        %4918 = vrot.lane.b32.xlu0 %v4844, 28
        %v4919 = vpop.permute.xlu0 %4918
        %4920 = vrot.lane.b32.xlu0 %v4845, 28
        %v4921 = vpop.permute.xlu0 %4920
        %4922 = vrot.lane.b32.xlu0 %v2483, 28
        %v4923 = vpop.permute.xlu0 %4922
        %4924 = vrot.lane.b32.xlu0 %v4846, 28
        %v4925 = vpop.permute.xlu0 %4924
        %4926 = vrot.lane.b32.xlu0 %v4847, 28
        %v4927 = vpop.permute.xlu0 %4926
        %4928 = vrot.lane.b32.xlu0 %v2486, 28
        %v4929 = vpop.permute.xlu0 %4928
        %4930 = vrot.lane.b32.xlu0 %v4848, 28
        %v4931 = vpop.permute.xlu0 %4930
        %4932 = vrot.lane.b32.xlu0 %v4849, 28
        %v4933 = vpop.permute.xlu0 %4932
        %4934 = vrot.lane.b32.xlu0 %v2489, 28
        %v4935 = vpop.permute.xlu0 %4934
        %4936 = vrot.lane.b32.xlu0 %v4850, 28
        %v4937 = vpop.permute.xlu0 %4936
        %4938 = vrot.lane.b32.xlu0 %v4851, 28
        %v4939 = vpop.permute.xlu0 %4938
        %4940 = vrot.lane.b32.xlu0 %v2492, 28
        %v4941 = vpop.permute.xlu0 %4940
        %4942 = vrot.lane.b32.xlu0 %v4852, 28
        %v4943 = vpop.permute.xlu0 %4942
        %4944 = vrot.lane.b32.xlu0 %v4854, 28
        %v4945 = vpop.permute.xlu0 %4944
        %4946 = vrot.lane.b32.xlu0 %v4856, 28
        %v4947 = vpop.permute.xlu0 %4946
        %4948 = vrot.lane.b32.xlu0 %v4857, 28
        %v4949 = vpop.permute.xlu0 %4948
        %4950 = vrot.lane.b32.xlu0 %v4859, 28
        %v4951 = vpop.permute.xlu0 %4950
        %4952 = vrot.lane.b32.xlu0 %v4861, 28
        %v4953 = vpop.permute.xlu0 %4952
        %4954 = vrot.lane.b32.xlu0 %v4862, 28
        %v4955 = vpop.permute.xlu0 %4954
        %4956 = vrot.lane.b32.xlu0 %v4864, 28
        %v4957 = vpop.permute.xlu0 %4956
        %4958 = vrot.lane.b32.xlu0 %v4866, 28
        %v4959 = vpop.permute.xlu0 %4958
        %4960 = vrot.lane.b32.xlu0 %v4867, 28
        %v4961 = vpop.permute.xlu0 %4960
        %4962 = vrot.lane.b32.xlu0 %v4869, 28
        %v4963 = vpop.permute.xlu0 %4962
        %4964 = vrot.lane.b32.xlu0 %v4871, 28
        %v4965 = vpop.permute.xlu0 %4964
        %4966 = vrot.lane.b32.xlu0 %v4872, 28
        %v4967 = vpop.permute.xlu0 %4966
        %4968 = vrot.lane.b32.xlu0 %v4874, 28
        %v4969 = vpop.permute.xlu0 %4968
        %4970 = vrot.lane.b32.xlu0 %v4876, 28
        %v4971 = vpop.permute.xlu0 %4970
        %4972 = vrot.lane.b32.xlu0 %v4877, 28
        %v4973 = vpop.permute.xlu0 %4972
        %4974 = vrot.lane.b32.xlu0 %v4879, 28
        %v4975 = vpop.permute.xlu0 %4974
        %4976 = vrot.lane.b32.xlu0 %v4881, 28
        %v4977 = vpop.permute.xlu0 %4976
        %5038 = vrot.lane.b32.xlu0 %v542, 32
        %v5039 = vpop.permute.xlu0 %5038
        %5040 = vrot.lane.b32.xlu0 %v543, 32
        %v5041 = vpop.permute.xlu0 %5040
        %5042 = vrot.lane.b32.xlu0 %v544, 32
        %v5043 = vpop.permute.xlu0 %5042
        %5044 = vrot.lane.b32.xlu0 %v549, 32
        %v5045 = vpop.permute.xlu0 %5044
        %5046 = vrot.lane.b32.xlu0 %v550, 32
        %v5047 = vpop.permute.xlu0 %5046
        %5048 = vrot.lane.b32.xlu0 %v551, 32
        %v5049 = vpop.permute.xlu0 %5048
        %5050 = vrot.lane.b32.xlu0 %v556, 32
        %v5051 = vpop.permute.xlu0 %5050
        %5052 = vrot.lane.b32.xlu0 %v557, 32
        %v5053 = vpop.permute.xlu0 %5052
        %5054 = vrot.lane.b32.xlu0 %v558, 32
        %v5055 = vpop.permute.xlu0 %5054
        %5056 = vrot.lane.b32.xlu0 %v563, 32
        %v5057 = vpop.permute.xlu0 %5056
        %5058 = vrot.lane.b32.xlu0 %v564, 32
        %v5059 = vpop.permute.xlu0 %5058
        %5060 = vrot.lane.b32.xlu0 %v565, 32
        %v5061 = vpop.permute.xlu0 %5060
        %5062 = vrot.lane.b32.xlu0 %v570, 32
        %v5063 = vpop.permute.xlu0 %5062
        %5064 = vrot.lane.b32.xlu0 %v571, 32
        %v5065 = vpop.permute.xlu0 %5064
        %5066 = vrot.lane.b32.xlu0 %v572, 32
        %v5067 = vpop.permute.xlu0 %5066
        %5068 = vrot.lane.b32.xlu0 %v576, 32
        %v5069 = vpop.permute.xlu0 %5068
        %5070 = vrot.lane.b32.xlu0 %v577, 32
        %v5071 = vpop.permute.xlu0 %5070
        %5072 = vrot.lane.b32.xlu0 %v578, 32
        %v5073 = vpop.permute.xlu0 %5072
        %5074 = vrot.lane.b32.xlu0 %v582, 32
        %v5075 = vpop.permute.xlu0 %5074
        %5076 = vrot.lane.b32.xlu0 %v583, 32
        %v5077 = vpop.permute.xlu0 %5076
        %5078 = vrot.lane.b32.xlu0 %v584, 32
        %v5079 = vpop.permute.xlu0 %5078
        %5080 = vrot.lane.b32.xlu0 %v589, 32
        %v5081 = vpop.permute.xlu0 %5080
        %5082 = vrot.lane.b32.xlu0 %v590, 32
        %v5083 = vpop.permute.xlu0 %5082
        %5084 = vrot.lane.b32.xlu0 %v591, 32
        %v5085 = vpop.permute.xlu0 %5084
        %5086 = vrot.lane.b32.xlu0 %v596, 32
        %v5087 = vpop.permute.xlu0 %5086
        %5088 = vrot.lane.b32.xlu0 %v597, 32
        %v5089 = vpop.permute.xlu0 %5088
        %5090 = vrot.lane.b32.xlu0 %v598, 32
        %v5091 = vpop.permute.xlu0 %5090
        %5092 = vrot.lane.b32.xlu0 %v603, 32
        %v5093 = vpop.permute.xlu0 %5092
        %5094 = vrot.lane.b32.xlu0 %v604, 32
        %v5095 = vpop.permute.xlu0 %5094
        %5096 = vrot.lane.b32.xlu0 %v605, 32
        %v5097 = vpop.permute.xlu0 %5096
        %5098 = vrot.lane.b32.xlu0 %v610, 32
        %v5099 = vpop.permute.xlu0 %5098
        %5100 = vrot.lane.b32.xlu0 %v611, 32
        %v5101 = vpop.permute.xlu0 %5100
        %5102 = vrot.lane.b32.xlu0 %v612, 32
        %v5103 = vpop.permute.xlu0 %5102
        %5104 = vrot.lane.b32.xlu0 %v617, 32
        %v5105 = vpop.permute.xlu0 %5104
        %5106 = vrot.lane.b32.xlu0 %v618, 32
        %v5107 = vpop.permute.xlu0 %5106
        %5108 = vrot.lane.b32.xlu0 %v619, 32
        %v5109 = vpop.permute.xlu0 %5108
        %5110 = vrot.lane.b32.xlu0 %v624, 32
        %v5111 = vpop.permute.xlu0 %5110
        %5112 = vrot.lane.b32.xlu0 %v625, 32
        %v5113 = vpop.permute.xlu0 %5112
        %5114 = vrot.lane.b32.xlu0 %v626, 32
        %v5115 = vpop.permute.xlu0 %5114
        %5116 = vrot.lane.b32.xlu0 %v631, 32
        %v5117 = vpop.permute.xlu0 %5116
        %5118 = vrot.lane.b32.xlu0 %v632, 32
        %v5119 = vpop.permute.xlu0 %5118
        %5120 = vrot.lane.b32.xlu0 %v633, 32
        %v5121 = vpop.permute.xlu0 %5120
        %5122 = vrot.lane.b32.xlu0 %v638, 32
        %v5123 = vpop.permute.xlu0 %5122
        %5124 = vrot.lane.b32.xlu0 %v639, 32
        %v5125 = vpop.permute.xlu0 %5124
        %5126 = vrot.lane.b32.xlu0 %v640, 32
        %v5127 = vpop.permute.xlu0 %5126
        %5128 = vrot.lane.b32.xlu0 %v645, 32
        %v5129 = vpop.permute.xlu0 %5128
        %5130 = vrot.lane.b32.xlu0 %v646, 32
        %v5131 = vpop.permute.xlu0 %5130
        %5132 = vrot.lane.b32.xlu0 %v647, 32
        %v5133 = vpop.permute.xlu0 %5132
        %v5182 = vsel %vm860, %v373, %v4029
        %v5183 = vsel %vm860, %v374, %v4031
        %v5184 = vsel %vm860, %v375, %v4033
        %v5185 = vsel %vm860, %v380, %v4035
        %v5186 = vsel %vm860, %v381, %v4037
        %v5187 = vsel %vm860, %v382, %v4039
        %v5188 = vsel %vm860, %v387, %v4041
        %v5189 = vsel %vm860, %v388, %v4043
        %v5190 = vsel %vm860, %v389, %v4045
        %v5191 = vsel %vm860, %v394, %v4047
        %v5192 = vsel %vm860, %v395, %v4049
        %v5193 = vsel %vm860, %v396, %v4051
        %v5194 = vsel %vm860, %v401, %v4053
        %v5195 = vsel %vm860, %v402, %v4055
        %v5196 = vsel %vm860, %v403, %v4057
        %v5197 = vsel %vm860, %v408, %v4059
        %v5198 = vsel %vm860, %v409, %v4061
        %v5199 = vsel %vm860, %v410, %v4063
        %v5200 = vsel %vm860, %v415, %v4065
        %v5201 = vsel %vm860, %v416, %v4067
        %v5202 = vsel %vm860, %v417, %v4069
        %v5203 = vsel %vm860, %v422, %v4071
        %v5204 = vsel %vm860, %v423, %v4073
        %v5205 = vsel %vm860, %v424, %v4075
        %v5206 = vsel %vm860, %v429, %v4077
        %v5207 = vsel %vm860, %v430, %v4079
        %v5208 = vsel %vm860, %v431, %v4081
        %v5209 = vsel %vm860, %v436, %v4083
        %v5210 = vsel %vm860, %v437, %v4085
        %v5211 = vsel %vm860, %v438, %v4087
        %v5212 = vsel %vm860, %v443, %v4089
        %v5213 = vsel %vm860, %v444, %v4091
        %v5214 = vsel %vm860, %v445, %v4093
        %v5215 = vsel %vm860, %v449, %v4095
        %v5216 = vsel %vm860, %v450, %v4097
        %v5217 = vsel %vm860, %v451, %v4099
        %v5218 = vsel %vm860, %v455, %v4101
        %v5219 = vsel %vm860, %v456, %v4103
        %v5220 = vsel %vm860, %v457, %v4105
        %v5221 = vsel %vm860, %v462, %v4107
        %v5222 = vsel %vm860, %v463, %v4109
        %v5223 = vsel %vm860, %v464, %v4111
        %v5224 = vsel %vm860, %v469, %v4113
        %v5225 = vsel %vm860, %v470, %v4115
        %v5226 = vsel %vm860, %v471, %v4117
        %v5227 = vsel %vm860, %v476, %v4119
        %v5228 = vsel %vm860, %v477, %v4121
        %v5229 = vsel %vm860, %v478, %v4123
        %v5230 = vsel %vm2685, %v5182, %v4189
        %v5231 = vsel %vm2685, %v5183, %v4191
        %v5232 = vsel %vm2685, %v5184, %v4193
        %v5233 = vsel %vm2685, %v5185, %v4195
        %v5234 = vsel %vm2685, %v5186, %v4197
        %v5235 = vsel %vm2685, %v5187, %v4199
        %v5236 = vsel %vm2685, %v5188, %v4201
        %v5237 = vsel %vm2685, %v5189, %v4203
        %v5238 = vsel %vm2685, %v5190, %v4205
        %v5239 = vsel %vm2685, %v5191, %v4207
        %v5240 = vsel %vm2685, %v5192, %v4209
        %v5241 = vsel %vm2685, %v5193, %v4211
        %v5242 = vsel %vm2685, %v5194, %v4213
        %v5243 = vsel %vm2685, %v5195, %v4215
        %v5244 = vsel %vm2685, %v5196, %v4217
        %v5245 = vsel %vm2685, %v5197, %v4219
        %v5246 = vsel %vm2685, %v5198, %v4221
        %v5247 = vsel %vm2685, %v5199, %v4223
        %v5248 = vsel %vm2685, %v5200, %v4225
        %v5249 = vsel %vm2685, %v5201, %v4227
        %v5250 = vsel %vm2685, %v5202, %v4229
        %v5251 = vsel %vm2685, %v5203, %v4231
        %v5252 = vsel %vm2685, %v5204, %v4233
        %v5253 = vsel %vm2685, %v5205, %v4235
        %v5254 = vsel %vm2685, %v5206, %v4237
        %v5255 = vsel %vm2685, %v5207, %v4239
        %v5256 = vsel %vm2685, %v5208, %v4241
        %v5257 = vsel %vm2685, %v5209, %v4243
        %v5258 = vsel %vm2685, %v5210, %v4245
        %v5259 = vsel %vm2685, %v5211, %v4247
        %v5260 = vsel %vm2685, %v5212, %v4249
        %v5261 = vsel %vm2685, %v5213, %v4251
        %v5262 = vsel %vm2685, %v5214, %v4253
        %v5263 = vsel %vm2685, %v5215, %v4255
        %v5264 = vsel %vm2685, %v5216, %v4257
        %v5265 = vsel %vm2685, %v5217, %v4259
        %v5266 = vsel %vm2685, %v5218, %v4261
        %v5267 = vsel %vm2685, %v5219, %v4263
        %v5268 = vsel %vm2685, %v5220, %v4265
        %v5269 = vsel %vm2685, %v5221, %v4267
        %v5270 = vsel %vm2685, %v5222, %v4269
        %v5271 = vsel %vm2685, %v5223, %v4271
        %v5272 = vsel %vm2685, %v5224, %v4273
        %v5273 = vsel %vm2685, %v5225, %v4275
        %v5274 = vsel %vm2685, %v5226, %v4277
        %v5275 = vsel %vm2685, %v5227, %v4279
        %v5276 = vsel %vm2685, %v5228, %v4281
        %v5277 = vsel %vm2685, %v5229, %v4283
        %v5278 = vsel %vm2734, %v5230, %v4349
        %v5279 = vsel %vm2734, %v5231, %v1654
        %v5280 = vsel %vm2734, %v5232, %v1656
        %v5281 = vsel %vm2734, %v5233, %v4351
        %v5282 = vsel %vm2734, %v5234, %v1660
        %v5283 = vsel %vm2734, %v5235, %v1662
        %v5284 = vsel %vm2734, %v5236, %v4353
        %v5285 = vsel %vm2734, %v5237, %v1666
        %v5286 = vsel %vm2734, %v5238, %v1668
        %v5287 = vsel %vm2734, %v5239, %v4355
        %v5288 = vsel %vm2734, %v5240, %v1672
        %v5289 = vsel %vm2734, %v5241, %v1674
        %v5290 = vsel %vm2734, %v5242, %v4357
        %v5291 = vsel %vm2734, %v5243, %v1678
        %v5292 = vsel %vm2734, %v5244, %v1680
        %v5293 = vsel %vm2734, %v5245, %v4359
        %v5294 = vsel %vm2734, %v5246, %v1684
        %v5295 = vsel %vm2734, %v5247, %v1686
        %v5296 = vsel %vm2734, %v5248, %v4361
        %v5297 = vsel %vm2734, %v5249, %v1690
        %v5298 = vsel %vm2734, %v5250, %v1692
        %v5299 = vsel %vm2734, %v5251, %v4363
        %v5300 = vsel %vm2734, %v5252, %v1696
        %v5301 = vsel %vm2734, %v5253, %v1698
        %v5302 = vsel %vm2734, %v5254, %v4365
        %v5303 = vsel %vm2734, %v5255, %v1702
        %v5304 = vsel %vm2734, %v5256, %v1704
        %v5305 = vsel %vm2734, %v5257, %v4367
        %v5306 = vsel %vm2734, %v5258, %v1708
        %v5307 = vsel %vm2734, %v5259, %v1710
        %v5308 = vsel %vm2734, %v5260, %v4369
        %v5309 = vsel %vm2734, %v5261, %v1714
        %v5310 = vsel %vm2734, %v5262, %v1716
        %v5311 = vsel %vm2734, %v5263, %v4371
        %v5312 = vsel %vm2734, %v5264, %v1720
        %v5313 = vsel %vm2734, %v5265, %v1722
        %v5314 = vsel %vm2734, %v5266, %v4373
        %v5315 = vsel %vm2734, %v5267, %v1726
        %v5316 = vsel %vm2734, %v5268, %v1728
        %v5317 = vsel %vm2734, %v5269, %v4375
        %v5318 = vsel %vm2734, %v5270, %v1732
        %v5319 = vsel %vm2734, %v5271, %v1734
        %v5320 = vsel %vm2734, %v5272, %v4377
        %v5321 = vsel %vm2734, %v5273, %v1738
        %v5322 = vsel %vm2734, %v5274, %v1740
        %v5323 = vsel %vm2734, %v5275, %v4379
        %v5324 = vsel %vm2734, %v5276, %v1744
        %v5325 = vsel %vm2734, %v5277, %v1746
        %v5326 = vsel %vm2783, %v5278, %v4421
        %v5327 = vsel %vm2783, %v5279, %v4423
        %v5328 = vsel %vm2783, %v5280, %v4425
        %v5329 = vsel %vm2783, %v5281, %v4427
        %v5330 = vsel %vm2783, %v5282, %v4429
        %v5331 = vsel %vm2783, %v5283, %v4431
        %v5332 = vsel %vm2783, %v5284, %v4433
        %v5333 = vsel %vm2783, %v5285, %v4435
        %v5334 = vsel %vm2783, %v5286, %v4437
        %v5335 = vsel %vm2783, %v5287, %v4439
        %v5336 = vsel %vm2783, %v5288, %v4441
        %v5337 = vsel %vm2783, %v5289, %v4443
        %v5338 = vsel %vm2783, %v5290, %v4445
        %v5339 = vsel %vm2783, %v5291, %v4447
        %v5340 = vsel %vm2783, %v5292, %v4449
        %v5341 = vsel %vm2783, %v5293, %v4451
        %v5342 = vsel %vm2783, %v5294, %v4453
        %v5343 = vsel %vm2783, %v5295, %v4455
        %v5344 = vsel %vm2783, %v5296, %v4457
        %v5345 = vsel %vm2783, %v5297, %v4459
        %v5346 = vsel %vm2783, %v5298, %v4461
        %v5347 = vsel %vm2783, %v5299, %v4463
        %v5348 = vsel %vm2783, %v5300, %v4465
        %v5349 = vsel %vm2783, %v5301, %v4467
        %v5350 = vsel %vm2783, %v5302, %v4469
        %v5351 = vsel %vm2783, %v5303, %v4471
        %v5352 = vsel %vm2783, %v5304, %v4473
        %v5353 = vsel %vm2783, %v5305, %v4475
        %v5354 = vsel %vm2783, %v5306, %v4477
        %v5355 = vsel %vm2783, %v5307, %v4479
        %v5356 = vsel %vm2783, %v5308, %v4481
        %v5357 = vsel %vm2783, %v5309, %v4483
        %v5358 = vsel %vm2783, %v5310, %v4485
        %v5359 = vsel %vm2783, %v5311, %v4487
        %v5360 = vsel %vm2783, %v5312, %v4489
        %v5361 = vsel %vm2783, %v5313, %v4491
        %v5362 = vsel %vm2783, %v5314, %v4493
        %v5363 = vsel %vm2783, %v5315, %v4495
        %v5364 = vsel %vm2783, %v5316, %v4497
        %v5365 = vsel %vm2783, %v5317, %v4499
        %v5366 = vsel %vm2783, %v5318, %v4501
        %v5367 = vsel %vm2783, %v5319, %v4503
        %v5368 = vsel %vm2783, %v5320, %v4505
        %v5369 = vsel %vm2783, %v5321, %v4507
        %v5370 = vsel %vm2783, %v5322, %v4509
        %v5371 = vsel %vm2783, %v5323, %v4511
        %v5372 = vsel %vm2783, %v5324, %v4513
        %v5373 = vsel %vm2783, %v5325, %v4515
        %v5374 = vsel %vm2832, %v5326, %v4577
        %v5375 = vsel %vm2832, %v5327, %v4579
        %v5376 = vsel %vm2832, %v5328, %v4581
        %v5377 = vsel %vm2832, %v5329, %v4583
        %v5378 = vsel %vm2832, %v5330, %v4585
        %v5379 = vsel %vm2832, %v5331, %v4587
        %v5380 = vsel %vm2832, %v5332, %v4589
        %v5381 = vsel %vm2832, %v5333, %v4591
        %v5382 = vsel %vm2832, %v5334, %v4593
        %v5383 = vsel %vm2832, %v5335, %v4595
        %v5384 = vsel %vm2832, %v5336, %v4597
        %v5385 = vsel %vm2832, %v5337, %v4599
        %v5386 = vsel %vm2832, %v5338, %v4601
        %v5387 = vsel %vm2832, %v5339, %v4603
        %v5388 = vsel %vm2832, %v5340, %v4605
        %v5389 = vsel %vm2832, %v5341, %v4607
        %v5390 = vsel %vm2832, %v5342, %v4609
        %v5391 = vsel %vm2832, %v5343, %v4611
        %v5392 = vsel %vm2832, %v5344, %v4613
        %v5393 = vsel %vm2832, %v5345, %v4615
        %v5394 = vsel %vm2832, %v5346, %v4617
        %v5395 = vsel %vm2832, %v5347, %v4619
        %v5396 = vsel %vm2832, %v5348, %v4621
        %v5397 = vsel %vm2832, %v5349, %v4623
        %v5398 = vsel %vm2832, %v5350, %v4625
        %v5399 = vsel %vm2832, %v5351, %v4627
        %v5400 = vsel %vm2832, %v5352, %v4629
        %v5401 = vsel %vm2832, %v5353, %v4631
        %v5402 = vsel %vm2832, %v5354, %v4633
        %v5403 = vsel %vm2832, %v5355, %v4635
        %v5404 = vsel %vm2832, %v5356, %v4637
        %v5405 = vsel %vm2832, %v5357, %v4639
        %v5406 = vsel %vm2832, %v5358, %v4641
        %v5407 = vsel %vm2832, %v5359, %v4643
        %v5408 = vsel %vm2832, %v5360, %v4645
        %v5409 = vsel %vm2832, %v5361, %v4647
        %v5410 = vsel %vm2832, %v5362, %v4649
        %v5411 = vsel %vm2832, %v5363, %v4651
        %v5412 = vsel %vm2832, %v5364, %v4653
        %v5413 = vsel %vm2832, %v5365, %v4655
        %v5414 = vsel %vm2832, %v5366, %v4657
        %v5415 = vsel %vm2832, %v5367, %v4659
        %v5416 = vsel %vm2832, %v5368, %v4661
        %v5417 = vsel %vm2832, %v5369, %v4663
        %v5418 = vsel %vm2832, %v5370, %v4665
        %v5419 = vsel %vm2832, %v5371, %v4667
        %v5420 = vsel %vm2832, %v5372, %v4669
        %v5421 = vsel %vm2832, %v5373, %v4671
        %v5422 = vsel %vm2881, %v5374, %v4745
        %v5423 = vsel %vm2881, %v5375, %v2188
        %v5424 = vsel %vm2881, %v5376, %v2190
        %v5425 = vsel %vm2881, %v5377, %v4747
        %v5426 = vsel %vm2881, %v5378, %v2194
        %v5427 = vsel %vm2881, %v5379, %v2196
        %v5428 = vsel %vm2881, %v5380, %v4749
        %v5429 = vsel %vm2881, %v5381, %v2200
        %v5430 = vsel %vm2881, %v5382, %v2202
        %v5431 = vsel %vm2881, %v5383, %v4751
        %v5432 = vsel %vm2881, %v5384, %v2206
        %v5433 = vsel %vm2881, %v5385, %v2208
        %v5434 = vsel %vm2881, %v5386, %v4753
        %v5435 = vsel %vm2881, %v5387, %v2212
        %v5436 = vsel %vm2881, %v5388, %v2214
        %v5437 = vsel %vm2881, %v5389, %v4755
        %v5438 = vsel %vm2881, %v5390, %v2218
        %v5439 = vsel %vm2881, %v5391, %v2220
        %v5440 = vsel %vm2881, %v5392, %v4757
        %v5441 = vsel %vm2881, %v5393, %v2224
        %v5442 = vsel %vm2881, %v5394, %v2226
        %v5443 = vsel %vm2881, %v5395, %v4759
        %v5444 = vsel %vm2881, %v5396, %v2230
        %v5445 = vsel %vm2881, %v5397, %v2232
        %v5446 = vsel %vm2881, %v5398, %v4761
        %v5447 = vsel %vm2881, %v5399, %v2236
        %v5448 = vsel %vm2881, %v5400, %v2238
        %v5449 = vsel %vm2881, %v5401, %v4763
        %v5450 = vsel %vm2881, %v5402, %v2242
        %v5451 = vsel %vm2881, %v5403, %v2244
        %v5452 = vsel %vm2881, %v5404, %v4765
        %v5453 = vsel %vm2881, %v5405, %v4767
        %v5454 = vsel %vm2881, %v5406, %v4769
        %v5455 = vsel %vm2881, %v5407, %v4771
        %v5456 = vsel %vm2881, %v5408, %v4773
        %v5457 = vsel %vm2881, %v5409, %v4775
        %v5458 = vsel %vm2881, %v5410, %v4777
        %v5459 = vsel %vm2881, %v5411, %v4779
        %v5460 = vsel %vm2881, %v5412, %v4781
        %v5461 = vsel %vm2881, %v5413, %v4783
        %v5462 = vsel %vm2881, %v5414, %v4785
        %v5463 = vsel %vm2881, %v5415, %v4787
        %v5464 = vsel %vm2881, %v5416, %v4789
        %v5465 = vsel %vm2881, %v5417, %v4791
        %v5466 = vsel %vm2881, %v5418, %v4793
        %v5467 = vsel %vm2881, %v5419, %v4795
        %v5468 = vsel %vm2881, %v5420, %v4797
        %v5469 = vsel %vm2881, %v5421, %v4799
        %v5470 = vsel %vm2930, %v5422, %v4883
        %v5471 = vsel %vm2930, %v5423, %v4885
        %v5472 = vsel %vm2930, %v5424, %v4887
        %v5473 = vsel %vm2930, %v5425, %v4889
        %v5474 = vsel %vm2930, %v5426, %v4891
        %v5475 = vsel %vm2930, %v5427, %v4893
        %v5476 = vsel %vm2930, %v5428, %v4895
        %v5477 = vsel %vm2930, %v5429, %v4897
        %v5478 = vsel %vm2930, %v5430, %v4899
        %v5479 = vsel %vm2930, %v5431, %v4901
        %v5480 = vsel %vm2930, %v5432, %v4903
        %v5481 = vsel %vm2930, %v5433, %v4905
        %v5482 = vsel %vm2930, %v5434, %v4907
        %v5483 = vsel %vm2930, %v5435, %v4909
        %v5484 = vsel %vm2930, %v5436, %v4911
        %v5485 = vsel %vm2930, %v5437, %v4913
        %v5486 = vsel %vm2930, %v5438, %v4915
        %v5487 = vsel %vm2930, %v5439, %v4917
        %v5488 = vsel %vm2930, %v5440, %v4919
        %v5489 = vsel %vm2930, %v5441, %v4921
        %v5490 = vsel %vm2930, %v5442, %v4923
        %v5491 = vsel %vm2930, %v5443, %v4925
        %v5492 = vsel %vm2930, %v5444, %v4927
        %v5493 = vsel %vm2930, %v5445, %v4929
        %v5494 = vsel %vm2930, %v5446, %v4931
        %v5495 = vsel %vm2930, %v5447, %v4933
        %v5496 = vsel %vm2930, %v5448, %v4935
        %v5497 = vsel %vm2930, %v5449, %v4937
        %v5498 = vsel %vm2930, %v5450, %v4939
        %v5499 = vsel %vm2930, %v5451, %v4941
        %v5500 = vsel %vm2930, %v5452, %v4943
        %v5501 = vsel %vm2930, %v5453, %v4945
        %v5502 = vsel %vm2930, %v5454, %v4947
        %v5503 = vsel %vm2930, %v5455, %v4949
        %v5504 = vsel %vm2930, %v5456, %v4951
        %v5505 = vsel %vm2930, %v5457, %v4953
        %v5506 = vsel %vm2930, %v5458, %v4955
        %v5507 = vsel %vm2930, %v5459, %v4957
        %v5508 = vsel %vm2930, %v5460, %v4959
        %v5509 = vsel %vm2930, %v5461, %v4961
        %v5510 = vsel %vm2930, %v5462, %v4963
        %v5511 = vsel %vm2930, %v5463, %v4965
        %v5512 = vsel %vm2930, %v5464, %v4967
        %v5513 = vsel %vm2930, %v5465, %v4969
        %v5514 = vsel %vm2930, %v5466, %v4971
        %v5515 = vsel %vm2930, %v5467, %v4973
        %v5516 = vsel %vm2930, %v5468, %v4975
        %v5517 = vsel %vm2930, %v5469, %v4977
        %v5518 = vsel %vm2979, %v5470, %v5039
        %v5519 = vsel %vm2979, %v5471, %v5041
        %v5520 = vsel %vm2979, %v5472, %v5043
        %v5521 = vsel %vm2979, %v5473, %v5045
        %v5522 = vsel %vm2979, %v5474, %v5047
        %v5523 = vsel %vm2979, %v5475, %v5049
        %v5524 = vsel %vm2979, %v5476, %v5051
        %v5525 = vsel %vm2979, %v5477, %v5053
        %v5526 = vsel %vm2979, %v5478, %v5055
        %v5527 = vsel %vm2979, %v5479, %v5057
        %v5528 = vsel %vm2979, %v5480, %v5059
        %v5529 = vsel %vm2979, %v5481, %v5061
        %v5530 = vsel %vm2979, %v5482, %v5063
        %v5531 = vsel %vm2979, %v5483, %v5065
        %v5532 = vsel %vm2979, %v5484, %v5067
        %v5533 = vsel %vm2979, %v5485, %v5069
        %v5534 = vsel %vm2979, %v5486, %v5071
        %v5535 = vsel %vm2979, %v5487, %v5073
        %v5536 = vsel %vm2979, %v5488, %v5075
        %v5537 = vsel %vm2979, %v5489, %v5077
        %v5538 = vsel %vm2979, %v5490, %v5079
        %v5539 = vsel %vm2979, %v5491, %v5081
        %v5540 = vsel %vm2979, %v5492, %v5083
        %v5541 = vsel %vm2979, %v5493, %v5085
        %v5542 = vsel %vm2979, %v5494, %v5087
        %v5543 = vsel %vm2979, %v5495, %v5089
        %v5544 = vsel %vm2979, %v5496, %v5091
        %v5545 = vsel %vm2979, %v5497, %v5093
        %v5546 = vsel %vm2979, %v5498, %v5095
        %v5547 = vsel %vm2979, %v5499, %v5097
        %v5548 = vsel %vm2979, %v5500, %v5099
        %v5549 = vsel %vm2979, %v5501, %v5101
        %v5550 = vsel %vm2979, %v5502, %v5103
        %v5551 = vsel %vm2979, %v5503, %v5105
        %v5552 = vsel %vm2979, %v5504, %v5107
        %v5553 = vsel %vm2979, %v5505, %v5109
        %v5554 = vsel %vm2979, %v5506, %v5111
        %v5555 = vsel %vm2979, %v5507, %v5113
        %v5556 = vsel %vm2979, %v5508, %v5115
        %v5557 = vsel %vm2979, %v5509, %v5117
        %v5558 = vsel %vm2979, %v5510, %v5119
        %v5559 = vsel %vm2979, %v5511, %v5121
        %v5560 = vsel %vm2979, %v5512, %v5123
        %v5561 = vsel %vm2979, %v5513, %v5125
        %v5562 = vsel %vm2979, %v5514, %v5127
        %v5563 = vsel %vm2979, %v5515, %v5129
        %v5564 = vsel %vm2979, %v5516, %v5131
        %v5565 = vsel %vm2979, %v5517, %v5133
        %v5614 = vrot.slane %v5518, 6
        %v5615 = vrot.slane %v5519, 6
        %v5616 = vsel %vm1220, %v5614, %v5615
        %v5617 = vrot.slane %v5520, 6
        %v5618 = vsel %vm1220, %v5615, %v5617
        %v5619 = vrot.slane %v5521, 6
        %v5620 = vrot.slane %v5522, 6
        %v5621 = vsel %vm1220, %v5619, %v5620
        %v5622 = vrot.slane %v5523, 6
        %v5623 = vsel %vm1220, %v5620, %v5622
        %v5624 = vrot.slane %v5524, 6
        %v5625 = vrot.slane %v5525, 6
        %v5626 = vsel %vm1220, %v5624, %v5625
        %v5627 = vrot.slane %v5526, 6
        %v5628 = vsel %vm1220, %v5625, %v5627
        %v5629 = vrot.slane %v5527, 6
        %v5630 = vrot.slane %v5528, 6
        %v5631 = vsel %vm1220, %v5629, %v5630
        %v5632 = vrot.slane %v5529, 6
        %v5633 = vsel %vm1220, %v5630, %v5632
        %v5634 = vrot.slane %v5530, 6
        %v5635 = vrot.slane %v5531, 6
        %v5636 = vsel %vm1220, %v5634, %v5635
        %v5637 = vrot.slane %v5532, 6
        %v5638 = vsel %vm1220, %v5635, %v5637
        %v5639 = vrot.slane %v5533, 6
        %v5640 = vrot.slane %v5534, 6
        %v5641 = vsel %vm1220, %v5639, %v5640
        %v5642 = vrot.slane %v5535, 6
        %v5643 = vsel %vm1220, %v5640, %v5642
        %v5644 = vrot.slane %v5536, 6
        %v5645 = vrot.slane %v5537, 6
        %v5646 = vsel %vm1220, %v5644, %v5645
        %v5647 = vrot.slane %v5538, 6
        %v5648 = vsel %vm1220, %v5645, %v5647
        %v5649 = vrot.slane %v5539, 6
        %v5650 = vrot.slane %v5540, 6
        %v5651 = vsel %vm1220, %v5649, %v5650
        %v5652 = vrot.slane %v5541, 6
        %v5653 = vsel %vm1220, %v5650, %v5652
        %v5654 = vrot.slane %v5542, 6
        %v5655 = vrot.slane %v5543, 6
        %v5656 = vsel %vm1220, %v5654, %v5655
        %v5657 = vrot.slane %v5544, 6
        %v5658 = vsel %vm1220, %v5655, %v5657
        %v5659 = vrot.slane %v5545, 6
        %v5660 = vrot.slane %v5546, 6
        %v5661 = vsel %vm1220, %v5659, %v5660
        %v5662 = vrot.slane %v5547, 6
        %v5663 = vsel %vm1220, %v5660, %v5662
        %v5664 = vrot.slane %v5548, 6
        %v5665 = vrot.slane %v5549, 6
        %v5666 = vsel %vm1220, %v5664, %v5665
        %v5667 = vrot.slane %v5550, 6
        %v5668 = vsel %vm1220, %v5665, %v5667
        %v5669 = vrot.slane %v5551, 6
        %v5670 = vrot.slane %v5552, 6
        %v5671 = vsel %vm1220, %v5669, %v5670
        %v5672 = vrot.slane %v5553, 6
        %v5673 = vsel %vm1220, %v5670, %v5672
        %v5674 = vrot.slane %v5554, 6
        %v5675 = vrot.slane %v5555, 6
        %v5676 = vsel %vm1220, %v5674, %v5675
        %v5677 = vrot.slane %v5556, 6
        %v5678 = vsel %vm1220, %v5675, %v5677
        %v5679 = vrot.slane %v5557, 6
        %v5680 = vrot.slane %v5558, 6
        %v5681 = vsel %vm1220, %v5679, %v5680
        %v5682 = vrot.slane %v5559, 6
        %v5683 = vsel %vm1220, %v5680, %v5682
        %v5684 = vrot.slane %v5560, 6
        %v5685 = vrot.slane %v5561, 6
        %v5686 = vsel %vm1220, %v5684, %v5685
        %v5687 = vrot.slane %v5562, 6
        %v5688 = vsel %vm1220, %v5685, %v5687
        %v5689 = vrot.slane %v5563, 6
        %v5690 = vrot.slane %v5564, 6
        %v5691 = vsel %vm1220, %v5689, %v5690
        %v5692 = vrot.slane %v5565, 6
        %v5693 = vsel %vm1220, %v5690, %v5692
        %s5694 = scalar_lea.vmem %s3, 40
        %v5695 = vld [vmem:[%s5694] sm:$0xff]
        %v5696 = vld [vmem:[%s5694 + $0x8] sm:$0xff]
        %v5697 = vld [vmem:[%s5694 + $0x10] sm:$0xff]
        %v5698 = vld [vmem:[%s5694 + $0x18] sm:$0xff]
        %v5699 = vld [vmem:[%s5694 + $0x20] sm:$0xf]
        %s5700 = scalar_lea.vmem %s4, 1
        %v5701 = vld [vmem:[%s5700] sm:$0x1]
        %v5703 = vlaneseq
        %v5704 = vshrl.u32 %v5703, 7
        %v5705 = vsub.s32 0, %v5704
        %v5706 = vrot.slane %v5701, %v5705
        %v5708 = vsel %vm3168, %v5616, 0
        %v5710 = vsel %vm3168, %v5618, 0
        %v5712 = vsel %vm3168, %v5621, 0
        %v5714 = vsel %vm3168, %v5623, 0
        %v5716 = vsel %vm3168, %v5626, 0
        %v5718 = vsel %vm3168, %v5628, 0
        %v5720 = vsel %vm3168, %v5631, 0
        %v5722 = vsel %vm3168, %v5633, 0
        %v5724 = vsel %vm3168, %v5636, 0
        %v5726 = vsel %vm3168, %v5638, 0
        %v5728 = vsel %vm3168, %v5641, 0
        %v5730 = vsel %vm3168, %v5643, 0
        %v5732 = vsel %vm3168, %v5646, 0
        %v5734 = vsel %vm3168, %v5648, 0
        %v5736 = vsel %vm3168, %v5651, 0
        %v5738 = vsel %vm3168, %v5653, 0
        %v5740 = vsel %vm3168, %v5656, 0
        %v5742 = vsel %vm3168, %v5658, 0
        %v5744 = vsel %vm3168, %v5661, 0
        %v5746 = vsel %vm3168, %v5663, 0
        %v5748 = vsel %vm3168, %v5666, 0
        %v5750 = vsel %vm3168, %v5668, 0
        %v5752 = vsel %vm3168, %v5671, 0
        %v5754 = vsel %vm3168, %v5673, 0
        %v5756 = vsel %vm3168, %v5676, 0
        %v5758 = vsel %vm3168, %v5678, 0
        %v5760 = vsel %vm3168, %v5681, 0
        %v5762 = vsel %vm3168, %v5683, 0
        %v5764 = vsel %vm3168, %v5686, 0
        %v5766 = vsel %vm3168, %v5688, 0
        %v5768 = vsel %vm3168, %v5691, 0
        %v5770 = vsel %vm3168, %v5693, 0
        %v5773 = vsel %vm925, %v5699, 0
        %5775 = vmatprep.subr.mxu0 0.0
        %5776 = vmatpush1.msra.mxu0 %v5695
        %5777 = vmatprep.subr.mxu0 0.0
        %5778 = vmatpush1.msra.mxu0 %v5696
        %5779 = vmatprep.subr.mxu0 0.0
        %5780 = vmatpush1.msra.mxu0 %v5697
        %5781 = vmatprep.subr.mxu0 0.0
        %5782 = vmatpush1.msra.mxu0 %v5698
        %5783 = vmatprep.subr.mxu0 0.0
        %5784 = vmatpush1.msra.mxu0 %v5773
        %5785 = vmatprep.subr.mxu0 0.0
        %5786 = vmatpush1.msra.mxu0 0.0
        %5787 = vmatprep.subr.mxu0 0.0
        %5788 = vmatpush1.msra.mxu0 0.0
        %5789 = vmatprep.subr.mxu0 0.0
        %5790 = vmatpush1.msra.mxu0 0.0
        %5791 = vmatprep.subr.mxu0 0.0
        %5792 = vmatpush1.msra.mxu0 0.0
        %5793 = vmatprep.subr.mxu0 0.0
        %5794 = vmatpush1.msra.mxu0 0.0
        %5795 = vmatprep.subr.mxu0 0.0
        %5796 = vmatpush1.msra.mxu0 0.0
        %5797 = vmatprep.subr.mxu0 0.0
        %5798 = vmatpush1.msra.mxu0 0.0
        %5799 = vmatprep.subr.mxu0 0.0
        %5800 = vmatpush1.msra.mxu0 0.0
        %5801 = vmatprep.subr.mxu0 0.0
        %5802 = vmatpush1.msra.mxu0 0.0
        %5803 = vmatprep.subr.mxu0 0.0
        %5804 = vmatpush1.msra.mxu0 0.0
        %5805 = vmatprep.subr.mxu0 0.0
        %5806 = vmatpush1.msra.mxu0 0.0
        %5807 = vmatprep.subr.mxu0 0.0
        %5808 = vmatpush1.msra.mxu0 0.0
        %5809 = vmatprep.subr.mxu0 0.0
        %5810 = vmatpush1.msra.mxu0 0.0
        %5811 = vmatprep.subr.mxu0 0.0
        %5812 = vmatpush1.msra.mxu0 0.0
        %5813 = vmatprep.subr.mxu0 0.0
        %5814 = vmatpush1.msra.mxu0 0.0
        %5815 = vmatprep.subr.mxu0 0.0
        %5816 = vmatpush1.msra.mxu0 0.0
        %5817 = vmatprep.subr.mxu0 0.0
        %5818 = vmatpush1.msra.mxu0 0.0
        %5819 = vmatprep.subr.mxu0 0.0
        %5820 = vmatpush1.msra.mxu0 0.0
        %5821 = vmatprep.subr.mxu0 0.0
        %5822 = vmatpush1.msra.mxu0 0.0
        %5823 = vmatprep.subr.mxu0 0.0
        %5824 = vmatpush1.msra.mxu0 0.0
        %5825 = vmatprep.subr.mxu0 0.0
        %5826 = vmatpush1.msra.mxu0 0.0
        %5827 = vmatprep.subr.mxu0 0.0
        %5828 = vmatpush1.msra.mxu0 0.0
        %5829 = vmatprep.subr.mxu0 0.0
        %5830 = vmatpush1.msra.mxu0 0.0
        %5831 = vmatprep.subr.mxu0 0.0
        %5832 = vmatpush1.msra.mxu0 0.0
        %5833 = vmatprep.subr.mxu0 0.0
        %5834 = vmatpush1.msra.mxu0 0.0
        %5835 = vmatprep.subr.mxu0 0.0
        %5836 = vmatpush1.msra.mxu0 0.0
        %5837 = vmatprep.subr.mxu0 0.0
        %5838 = vmatpush1.msra.mxu0 0.0
        %5839 = vmatprep.mubr.f32.mxu0 0.0
        %5840 = vmatmul.mubr.f32.gmra.mrb[0].mxu0 %v5708
        %v5841 = vpop.f32.mrb[0].mxu0
        %v5842 = vadd.f32 %v5706, %v5841
        %v5843 = vpop.f32.mrb[0].mxu0
        %5844 = vmatprep.mubr.f32.mxu0 0.0
        %5845 = vmatmul.mubr.f32.gmra.mrb[0].mxu0 %v5710
        %v5846 = vpop.f32.mrb[0].mxu0
        %v5847 = vadd.f32 %v5706, %v5846
        %v5848 = vpop.f32.mrb[0].mxu0
        %5849 = vmatprep.mubr.f32.mxu0 0.0
        %5850 = vmatmul.mubr.f32.gmra.mrb[0].mxu0 %v5712
        %v5851 = vpop.f32.mrb[0].mxu0
        %v5852 = vadd.f32 %v5706, %v5851
        %v5853 = vpop.f32.mrb[0].mxu0
        %5854 = vmatprep.mubr.f32.mxu0 0.0
        %5855 = vmatmul.mubr.f32.gmra.mrb[0].mxu0 %v5714
        %v5856 = vpop.f32.mrb[0].mxu0
        %v5857 = vadd.f32 %v5706, %v5856
        %v5858 = vpop.f32.mrb[0].mxu0
        %5859 = vmatprep.mubr.f32.mxu0 0.0
        %5860 = vmatmul.mubr.f32.gmra.mrb[0].mxu0 %v5716
        %v5861 = vpop.f32.mrb[0].mxu0
        %v5862 = vadd.f32 %v5706, %v5861
        %v5863 = vpop.f32.mrb[0].mxu0
        %5864 = vmatprep.mubr.f32.mxu0 0.0
        %5865 = vmatmul.mubr.f32.gmra.mrb[0].mxu0 %v5718
        %v5866 = vpop.f32.mrb[0].mxu0
        %v5867 = vadd.f32 %v5706, %v5866
        %v5868 = vpop.f32.mrb[0].mxu0
        %5869 = vmatprep.mubr.f32.mxu0 0.0
        %5870 = vmatmul.mubr.f32.gmra.mrb[0].mxu0 %v5720
        %v5871 = vpop.f32.mrb[0].mxu0
        %v5872 = vadd.f32 %v5706, %v5871
        %v5873 = vpop.f32.mrb[0].mxu0
        %5874 = vmatprep.mubr.f32.mxu0 0.0
        %5875 = vmatmul.mubr.f32.gmra.mrb[0].mxu0 %v5722
        %v5876 = vpop.f32.mrb[0].mxu0
        %v5877 = vadd.f32 %v5706, %v5876
        %v5878 = vpop.f32.mrb[0].mxu0
        %5879 = vmatprep.mubr.f32.mxu0 0.0
        %5880 = vmatmul.mubr.f32.gmra.mrb[0].mxu0 %v5724
        %v5881 = vpop.f32.mrb[0].mxu0
        %v5882 = vadd.f32 %v5706, %v5881
        %v5883 = vpop.f32.mrb[0].mxu0
        %5884 = vmatprep.mubr.f32.mxu0 0.0
        %5885 = vmatmul.mubr.f32.gmra.mrb[0].mxu0 %v5726
        %v5886 = vpop.f32.mrb[0].mxu0
        %v5887 = vadd.f32 %v5706, %v5886
        %v5888 = vpop.f32.mrb[0].mxu0
        %5889 = vmatprep.mubr.f32.mxu0 0.0
        %5890 = vmatmul.mubr.f32.gmra.mrb[0].mxu0 %v5728
        %v5891 = vpop.f32.mrb[0].mxu0
        %v5892 = vadd.f32 %v5706, %v5891
        %v5893 = vpop.f32.mrb[0].mxu0
        %5894 = vmatprep.mubr.f32.mxu0 0.0
        %5895 = vmatmul.mubr.f32.gmra.mrb[0].mxu0 %v5730
        %v5896 = vpop.f32.mrb[0].mxu0
        %v5897 = vadd.f32 %v5706, %v5896
        %v5898 = vpop.f32.mrb[0].mxu0
        %5899 = vmatprep.mubr.f32.mxu0 0.0
        %5900 = vmatmul.mubr.f32.gmra.mrb[0].mxu0 %v5732
        %v5901 = vpop.f32.mrb[0].mxu0
        %v5902 = vadd.f32 %v5706, %v5901
        %v5903 = vpop.f32.mrb[0].mxu0
        %5904 = vmatprep.mubr.f32.mxu0 0.0
        %5905 = vmatmul.mubr.f32.gmra.mrb[0].mxu0 %v5734
        %v5906 = vpop.f32.mrb[0].mxu0
        %v5907 = vadd.f32 %v5706, %v5906
        %v5908 = vpop.f32.mrb[0].mxu0
        %5909 = vmatprep.mubr.f32.mxu0 0.0
        %5910 = vmatmul.mubr.f32.gmra.mrb[0].mxu0 %v5736
        %v5911 = vpop.f32.mrb[0].mxu0
        %v5912 = vadd.f32 %v5706, %v5911
        %v5913 = vpop.f32.mrb[0].mxu0
        %5914 = vmatprep.mubr.f32.mxu0 0.0
        %5915 = vmatmul.mubr.f32.gmra.mrb[0].mxu0 %v5738
        %v5916 = vpop.f32.mrb[0].mxu0
        %v5917 = vadd.f32 %v5706, %v5916
        %v5918 = vpop.f32.mrb[0].mxu0
        %5919 = vmatprep.mubr.f32.mxu0 0.0
        %5920 = vmatmul.mubr.f32.gmra.mrb[0].mxu0 %v5740
        %v5921 = vpop.f32.mrb[0].mxu0
        %v5922 = vadd.f32 %v5706, %v5921
        %v5923 = vpop.f32.mrb[0].mxu0
        %5924 = vmatprep.mubr.f32.mxu0 0.0
        %5925 = vmatmul.mubr.f32.gmra.mrb[0].mxu0 %v5742
        %v5926 = vpop.f32.mrb[0].mxu0
        %v5927 = vadd.f32 %v5706, %v5926
        %v5928 = vpop.f32.mrb[0].mxu0
        %5929 = vmatprep.mubr.f32.mxu0 0.0
        %5930 = vmatmul.mubr.f32.gmra.mrb[0].mxu0 %v5744
        %v5931 = vpop.f32.mrb[0].mxu0
        %v5932 = vadd.f32 %v5706, %v5931
        %v5933 = vpop.f32.mrb[0].mxu0
        %5934 = vmatprep.mubr.f32.mxu0 0.0
        %5935 = vmatmul.mubr.f32.gmra.mrb[0].mxu0 %v5746
        %v5936 = vpop.f32.mrb[0].mxu0
        %v5937 = vadd.f32 %v5706, %v5936
        %v5938 = vpop.f32.mrb[0].mxu0
        %5939 = vmatprep.mubr.f32.mxu0 0.0
        %5940 = vmatmul.mubr.f32.gmra.mrb[0].mxu0 %v5748
        %v5941 = vpop.f32.mrb[0].mxu0
        %v5942 = vadd.f32 %v5706, %v5941
        %v5943 = vpop.f32.mrb[0].mxu0
        %5944 = vmatprep.mubr.f32.mxu0 0.0
        %5945 = vmatmul.mubr.f32.gmra.mrb[0].mxu0 %v5750
        %v5946 = vpop.f32.mrb[0].mxu0
        %v5947 = vadd.f32 %v5706, %v5946
        %v5948 = vpop.f32.mrb[0].mxu0
        %5949 = vmatprep.mubr.f32.mxu0 0.0
        %5950 = vmatmul.mubr.f32.gmra.mrb[0].mxu0 %v5752
        %v5951 = vpop.f32.mrb[0].mxu0
        %v5952 = vadd.f32 %v5706, %v5951
        %v5953 = vpop.f32.mrb[0].mxu0
        %5954 = vmatprep.mubr.f32.mxu0 0.0
        %5955 = vmatmul.mubr.f32.gmra.mrb[0].mxu0 %v5754
        %v5956 = vpop.f32.mrb[0].mxu0
        %v5957 = vadd.f32 %v5706, %v5956
        %v5958 = vpop.f32.mrb[0].mxu0
        %5959 = vmatprep.mubr.f32.mxu0 0.0
        %5960 = vmatmul.mubr.f32.gmra.mrb[0].mxu0 %v5756
        %v5961 = vpop.f32.mrb[0].mxu0
        %v5962 = vadd.f32 %v5706, %v5961
        %v5963 = vpop.f32.mrb[0].mxu0
        %5964 = vmatprep.mubr.f32.mxu0 0.0
        %5965 = vmatmul.mubr.f32.gmra.mrb[0].mxu0 %v5758
        %v5966 = vpop.f32.mrb[0].mxu0
        %v5967 = vadd.f32 %v5706, %v5966
        %v5968 = vpop.f32.mrb[0].mxu0
        %5969 = vmatprep.mubr.f32.mxu0 0.0
        %5970 = vmatmul.mubr.f32.gmra.mrb[0].mxu0 %v5760
        %v5971 = vpop.f32.mrb[0].mxu0
        %v5972 = vadd.f32 %v5706, %v5971
        %v5973 = vpop.f32.mrb[0].mxu0
        %5974 = vmatprep.mubr.f32.mxu0 0.0
        %5975 = vmatmul.mubr.f32.gmra.mrb[0].mxu0 %v5762
        %v5976 = vpop.f32.mrb[0].mxu0
        %v5977 = vadd.f32 %v5706, %v5976
        %v5978 = vpop.f32.mrb[0].mxu0
        %5979 = vmatprep.mubr.f32.mxu0 0.0
        %5980 = vmatmul.mubr.f32.gmra.mrb[0].mxu0 %v5764
        %v5981 = vpop.f32.mrb[0].mxu0
        %v5982 = vadd.f32 %v5706, %v5981
        %v5983 = vpop.f32.mrb[0].mxu0
        %5984 = vmatprep.mubr.f32.mxu0 0.0
        %5985 = vmatmul.mubr.f32.gmra.mrb[0].mxu0 %v5766
        %v5986 = vpop.f32.mrb[0].mxu0
        %v5987 = vadd.f32 %v5706, %v5986
        %v5988 = vpop.f32.mrb[0].mxu0
        %5989 = vmatprep.mubr.f32.mxu0 0.0
        %5990 = vmatmul.mubr.f32.gmra.mrb[0].mxu0 %v5768
        %v5991 = vpop.f32.mrb[0].mxu0
        %v5992 = vadd.f32 %v5706, %v5991
        %v5993 = vpop.f32.mrb[0].mxu0
        %5994 = vmatprep.mubr.f32.mxu0 0.0
        %5995 = vmatmul.mubr.f32.gmra.mrb[0].mxu0 %v5770
        %v5996 = vpop.f32.mrb[0].mxu0
        %v5997 = vadd.f32 %v5706, %v5996
        %v5998 = vpop.f32.mrb[0].mxu0
        %5999 = vdwg.mxu0
        %v6000 = vmax.f32 %v5842, 0.0
        %v6001 = vmax.f32 %v5847, 0.0
        %v6002 = vmax.f32 %v5852, 0.0
        %v6003 = vmax.f32 %v5857, 0.0
        %v6004 = vmax.f32 %v5862, 0.0
        %v6005 = vmax.f32 %v5867, 0.0
        %v6006 = vmax.f32 %v5872, 0.0
        %v6007 = vmax.f32 %v5877, 0.0
        %v6008 = vmax.f32 %v5882, 0.0
        %v6009 = vmax.f32 %v5887, 0.0
        %v6010 = vmax.f32 %v5892, 0.0
        %v6011 = vmax.f32 %v5897, 0.0
        %v6012 = vmax.f32 %v5902, 0.0
        %v6013 = vmax.f32 %v5907, 0.0
        %v6014 = vmax.f32 %v5912, 0.0
        %v6015 = vmax.f32 %v5917, 0.0
        %v6016 = vmax.f32 %v5922, 0.0
        %v6017 = vmax.f32 %v5927, 0.0
        %v6018 = vmax.f32 %v5932, 0.0
        %v6019 = vmax.f32 %v5937, 0.0
        %v6020 = vmax.f32 %v5942, 0.0
        %v6021 = vmax.f32 %v5947, 0.0
        %v6022 = vmax.f32 %v5952, 0.0
        %v6023 = vmax.f32 %v5957, 0.0
        %v6024 = vmax.f32 %v5962, 0.0
        %v6025 = vmax.f32 %v5967, 0.0
        %v6026 = vmax.f32 %v5972, 0.0
        %v6027 = vmax.f32 %v5977, 0.0
        %v6028 = vmax.f32 %v5982, 0.0
        %v6029 = vmax.f32 %v5987, 0.0
        %v6030 = vmax.f32 %v5992, 0.0
        %v6031 = vmax.f32 %v5997, 0.0
        %s6032 = scalar_lea.vmem %s7, 256
        %v6033 = vld [vmem:[%s6032] sm:$0xff]
        %v6034 = vld [vmem:[%s6032 + $0x8] sm:$0xff]
        %v6035 = vld [vmem:[%s6032 + $0x10] sm:$0xff]
        %v6036 = vld [vmem:[%s6032 + $0x18] sm:$0xff]
        %v6037 = vld [vmem:[%s6032 + $0x20] sm:$0xff]
        %v6038 = vld [vmem:[%s6032 + $0x28] sm:$0xff]
        %v6039 = vld [vmem:[%s6032 + $0x30] sm:$0xff]
        %v6040 = vld [vmem:[%s6032 + $0x38] sm:$0xff]
        %v6041 = vld [vmem:[%s6032 + $0x40] sm:$0xff]
        %v6042 = vld [vmem:[%s6032 + $0x48] sm:$0xff]
        %v6043 = vld [vmem:[%s6032 + $0x50] sm:$0xff]
        %v6044 = vld [vmem:[%s6032 + $0x58] sm:$0xff]
        %v6045 = vld [vmem:[%s6032 + $0x60] sm:$0xff]
        %v6046 = vld [vmem:[%s6032 + $0x68] sm:$0xff]
        %v6047 = vld [vmem:[%s6032 + $0x70] sm:$0xff]
        %v6048 = vld [vmem:[%s6032 + $0x78] sm:$0xff]
        %6049 = vmatprep.subr.mxu0 0.0
        %6050 = vmatpush1.msra.mxu0 %v6033
        %6051 = vmatprep.subr.mxu0 0.0
        %6052 = vmatpush1.msra.mxu0 %v6034
        %6053 = vmatprep.subr.mxu0 0.0
        %6054 = vmatpush1.msra.mxu0 %v6035
        %6055 = vmatprep.subr.mxu0 0.0
        %6056 = vmatpush1.msra.mxu0 %v6036
        %6057 = vmatprep.subr.mxu0 0.0
        %6058 = vmatpush1.msra.mxu0 %v6037
        %6059 = vmatprep.subr.mxu0 0.0
        %6060 = vmatpush1.msra.mxu0 %v6038
        %6061 = vmatprep.subr.mxu0 0.0
        %6062 = vmatpush1.msra.mxu0 %v6039
        %6063 = vmatprep.subr.mxu0 0.0
        %6064 = vmatpush1.msra.mxu0 %v6040
        %6065 = vmatprep.subr.mxu0 0.0
        %6066 = vmatpush1.msra.mxu0 %v6041
        %6067 = vmatprep.subr.mxu0 0.0
        %6068 = vmatpush1.msra.mxu0 %v6042
        %6069 = vmatprep.subr.mxu0 0.0
        %6070 = vmatpush1.msra.mxu0 %v6043
        %6071 = vmatprep.subr.mxu0 0.0
        %6072 = vmatpush1.msra.mxu0 %v6044
        %6073 = vmatprep.subr.mxu0 0.0
        %6074 = vmatpush1.msra.mxu0 %v6045
        %6075 = vmatprep.subr.mxu0 0.0
        %6076 = vmatpush1.msra.mxu0 %v6046
        %6077 = vmatprep.subr.mxu0 0.0
        %6078 = vmatpush1.msra.mxu0 %v6047
        %6079 = vmatprep.subr.mxu0 0.0
        %6080 = vmatpush1.msra.mxu0 %v6048
        %6081 = vmatprep.subr.mxu0 0.0
        %6082 = vmatpush1.msra.mxu0 0.0
        %6083 = vmatprep.subr.mxu0 0.0
        %6084 = vmatpush1.msra.mxu0 0.0
        %6085 = vmatprep.subr.mxu0 0.0
        %6086 = vmatpush1.msra.mxu0 0.0
        %6087 = vmatprep.subr.mxu0 0.0
        %6088 = vmatpush1.msra.mxu0 0.0
        %6089 = vmatprep.subr.mxu0 0.0
        %6090 = vmatpush1.msra.mxu0 0.0
        %6091 = vmatprep.subr.mxu0 0.0
        %6092 = vmatpush1.msra.mxu0 0.0
        %6093 = vmatprep.subr.mxu0 0.0
        %6094 = vmatpush1.msra.mxu0 0.0
        %6095 = vmatprep.subr.mxu0 0.0
        %6096 = vmatpush1.msra.mxu0 0.0
        %6097 = vmatprep.subr.mxu0 0.0
        %6098 = vmatpush1.msra.mxu0 0.0
        %6099 = vmatprep.subr.mxu0 0.0
        %6100 = vmatpush1.msra.mxu0 0.0
        %6101 = vmatprep.subr.mxu0 0.0
        %6102 = vmatpush1.msra.mxu0 0.0
        %6103 = vmatprep.subr.mxu0 0.0
        %6104 = vmatpush1.msra.mxu0 0.0
        %6105 = vmatprep.subr.mxu0 0.0
        %6106 = vmatpush1.msra.mxu0 0.0
        %6107 = vmatprep.subr.mxu0 0.0
        %6108 = vmatpush1.msra.mxu0 0.0
        %6109 = vmatprep.subr.mxu0 0.0
        %6110 = vmatpush1.msra.mxu0 0.0
        %6111 = vmatprep.subr.mxu0 0.0
        %6112 = vmatpush1.msra.mxu0 0.0
        %6113 = vmatprep.mubr.f32.mxu0 0.0
        %6114 = vmatmul.mubr.f32.gmra.mrb[0].mxu0 %v6000
        %v6115 = vpop.f32.mrb[0].mxu0
        %v6116 = vadd.f32 0.0, %v6115
        %v6117 = vpop.f32.mrb[0].mxu0
        %6118 = vmatprep.mubr.f32.mxu0 0.0
        %6119 = vmatmul.mubr.f32.gmra.mrb[0].mxu0 %v6001
        %v6120 = vpop.f32.mrb[0].mxu0
        %v6121 = vadd.f32 0.0, %v6120
        %v6122 = vpop.f32.mrb[0].mxu0
        %6123 = vmatprep.mubr.f32.mxu0 0.0
        %6124 = vmatmul.mubr.f32.gmra.mrb[0].mxu0 %v6002
        %v6125 = vpop.f32.mrb[0].mxu0
        %v6126 = vadd.f32 0.0, %v6125
        %v6127 = vpop.f32.mrb[0].mxu0
        %6128 = vmatprep.mubr.f32.mxu0 0.0
        %6129 = vmatmul.mubr.f32.gmra.mrb[0].mxu0 %v6003
        %v6130 = vpop.f32.mrb[0].mxu0
        %v6131 = vadd.f32 0.0, %v6130
        %v6132 = vpop.f32.mrb[0].mxu0
        %6133 = vmatprep.mubr.f32.mxu0 0.0
        %6134 = vmatmul.mubr.f32.gmra.mrb[0].mxu0 %v6004
        %v6135 = vpop.f32.mrb[0].mxu0
        %v6136 = vadd.f32 0.0, %v6135
        %v6137 = vpop.f32.mrb[0].mxu0
        %6138 = vmatprep.mubr.f32.mxu0 0.0
        %6139 = vmatmul.mubr.f32.gmra.mrb[0].mxu0 %v6005
        %v6140 = vpop.f32.mrb[0].mxu0
        %v6141 = vadd.f32 0.0, %v6140
        %v6142 = vpop.f32.mrb[0].mxu0
        %6143 = vmatprep.mubr.f32.mxu0 0.0
        %6144 = vmatmul.mubr.f32.gmra.mrb[0].mxu0 %v6006
        %v6145 = vpop.f32.mrb[0].mxu0
        %v6146 = vadd.f32 0.0, %v6145
        %v6147 = vpop.f32.mrb[0].mxu0
        %6148 = vmatprep.mubr.f32.mxu0 0.0
        %6149 = vmatmul.mubr.f32.gmra.mrb[0].mxu0 %v6007
        %v6150 = vpop.f32.mrb[0].mxu0
        %v6151 = vadd.f32 0.0, %v6150
        %v6152 = vpop.f32.mrb[0].mxu0
        %6153 = vmatprep.mubr.f32.mxu0 0.0
        %6154 = vmatmul.mubr.f32.gmra.mrb[0].mxu0 %v6008
        %v6155 = vpop.f32.mrb[0].mxu0
        %v6156 = vadd.f32 0.0, %v6155
        %v6157 = vpop.f32.mrb[0].mxu0
        %6158 = vmatprep.mubr.f32.mxu0 0.0
        %6159 = vmatmul.mubr.f32.gmra.mrb[0].mxu0 %v6009
        %v6160 = vpop.f32.mrb[0].mxu0
        %v6161 = vadd.f32 0.0, %v6160
        %v6162 = vpop.f32.mrb[0].mxu0
        %6163 = vmatprep.mubr.f32.mxu0 0.0
        %6164 = vmatmul.mubr.f32.gmra.mrb[0].mxu0 %v6010
        %v6165 = vpop.f32.mrb[0].mxu0
        %v6166 = vadd.f32 0.0, %v6165
        %v6167 = vpop.f32.mrb[0].mxu0
        %6168 = vmatprep.mubr.f32.mxu0 0.0
        %6169 = vmatmul.mubr.f32.gmra.mrb[0].mxu0 %v6011
        %v6170 = vpop.f32.mrb[0].mxu0
        %v6171 = vadd.f32 0.0, %v6170
        %v6172 = vpop.f32.mrb[0].mxu0
        %6173 = vmatprep.mubr.f32.mxu0 0.0
        %6174 = vmatmul.mubr.f32.gmra.mrb[0].mxu0 %v6012
        %v6175 = vpop.f32.mrb[0].mxu0
        %v6176 = vadd.f32 0.0, %v6175
        %v6177 = vpop.f32.mrb[0].mxu0
        %6178 = vmatprep.mubr.f32.mxu0 0.0
        %6179 = vmatmul.mubr.f32.gmra.mrb[0].mxu0 %v6013
        %v6180 = vpop.f32.mrb[0].mxu0
        %v6181 = vadd.f32 0.0, %v6180
        %v6182 = vpop.f32.mrb[0].mxu0
        %6183 = vmatprep.mubr.f32.mxu0 0.0
        %6184 = vmatmul.mubr.f32.gmra.mrb[0].mxu0 %v6014
        %v6185 = vpop.f32.mrb[0].mxu0
        %v6186 = vadd.f32 0.0, %v6185
        %v6187 = vpop.f32.mrb[0].mxu0
        %6188 = vmatprep.mubr.f32.mxu0 0.0
        %6189 = vmatmul.mubr.f32.gmra.mrb[0].mxu0 %v6015
        %v6190 = vpop.f32.mrb[0].mxu0
        %v6191 = vadd.f32 0.0, %v6190
        %v6192 = vpop.f32.mrb[0].mxu0
        %6193 = vmatprep.mubr.f32.mxu0 0.0
        %6194 = vmatmul.mubr.f32.gmra.mrb[0].mxu0 %v6016
        %v6195 = vpop.f32.mrb[0].mxu0
        %v6196 = vadd.f32 0.0, %v6195
        %v6197 = vpop.f32.mrb[0].mxu0
        %6198 = vmatprep.mubr.f32.mxu0 0.0
        %6199 = vmatmul.mubr.f32.gmra.mrb[0].mxu0 %v6017
        %v6200 = vpop.f32.mrb[0].mxu0
        %v6201 = vadd.f32 0.0, %v6200
        %v6202 = vpop.f32.mrb[0].mxu0
        %6203 = vmatprep.mubr.f32.mxu0 0.0
        %6204 = vmatmul.mubr.f32.gmra.mrb[0].mxu0 %v6018
        %v6205 = vpop.f32.mrb[0].mxu0
        %v6206 = vadd.f32 0.0, %v6205
        %v6207 = vpop.f32.mrb[0].mxu0
        %6208 = vmatprep.mubr.f32.mxu0 0.0
        %6209 = vmatmul.mubr.f32.gmra.mrb[0].mxu0 %v6019
        %v6210 = vpop.f32.mrb[0].mxu0
        %v6211 = vadd.f32 0.0, %v6210
        %v6212 = vpop.f32.mrb[0].mxu0
        %6213 = vmatprep.mubr.f32.mxu0 0.0
        %6214 = vmatmul.mubr.f32.gmra.mrb[0].mxu0 %v6020
        %v6215 = vpop.f32.mrb[0].mxu0
        %v6216 = vadd.f32 0.0, %v6215
        %v6217 = vpop.f32.mrb[0].mxu0
        %6218 = vmatprep.mubr.f32.mxu0 0.0
        %6219 = vmatmul.mubr.f32.gmra.mrb[0].mxu0 %v6021
        %v6220 = vpop.f32.mrb[0].mxu0
        %v6221 = vadd.f32 0.0, %v6220
        %v6222 = vpop.f32.mrb[0].mxu0
        %6223 = vmatprep.mubr.f32.mxu0 0.0
        %6224 = vmatmul.mubr.f32.gmra.mrb[0].mxu0 %v6022
        %v6225 = vpop.f32.mrb[0].mxu0
        %v6226 = vadd.f32 0.0, %v6225
        %v6227 = vpop.f32.mrb[0].mxu0
        %6228 = vmatprep.mubr.f32.mxu0 0.0
        %6229 = vmatmul.mubr.f32.gmra.mrb[0].mxu0 %v6023
        %v6230 = vpop.f32.mrb[0].mxu0
        %v6231 = vadd.f32 0.0, %v6230
        %v6232 = vpop.f32.mrb[0].mxu0
        %6233 = vmatprep.mubr.f32.mxu0 0.0
        %6234 = vmatmul.mubr.f32.gmra.mrb[0].mxu0 %v6024
        %v6235 = vpop.f32.mrb[0].mxu0
        %v6236 = vadd.f32 0.0, %v6235
        %v6237 = vpop.f32.mrb[0].mxu0
        %6238 = vmatprep.mubr.f32.mxu0 0.0
        %6239 = vmatmul.mubr.f32.gmra.mrb[0].mxu0 %v6025
        %v6240 = vpop.f32.mrb[0].mxu0
        %v6241 = vadd.f32 0.0, %v6240
        %v6242 = vpop.f32.mrb[0].mxu0
        %6243 = vmatprep.mubr.f32.mxu0 0.0
        %6244 = vmatmul.mubr.f32.gmra.mrb[0].mxu0 %v6026
        %v6245 = vpop.f32.mrb[0].mxu0
        %v6246 = vadd.f32 0.0, %v6245
        %v6247 = vpop.f32.mrb[0].mxu0
        %6248 = vmatprep.mubr.f32.mxu0 0.0
        %6249 = vmatmul.mubr.f32.gmra.mrb[0].mxu0 %v6027
        %v6250 = vpop.f32.mrb[0].mxu0
        %v6251 = vadd.f32 0.0, %v6250
        %v6252 = vpop.f32.mrb[0].mxu0
        %6253 = vmatprep.mubr.f32.mxu0 0.0
        %6254 = vmatmul.mubr.f32.gmra.mrb[0].mxu0 %v6028
        %v6255 = vpop.f32.mrb[0].mxu0
        %v6256 = vadd.f32 0.0, %v6255
        %v6257 = vpop.f32.mrb[0].mxu0
        %6258 = vmatprep.mubr.f32.mxu0 0.0
        %6259 = vmatmul.mubr.f32.gmra.mrb[0].mxu0 %v6029
        %v6260 = vpop.f32.mrb[0].mxu0
        %v6261 = vadd.f32 0.0, %v6260
        %v6262 = vpop.f32.mrb[0].mxu0
        %6263 = vmatprep.mubr.f32.mxu0 0.0
        %6264 = vmatmul.mubr.f32.gmra.mrb[0].mxu0 %v6030
        %v6265 = vpop.f32.mrb[0].mxu0
        %v6266 = vadd.f32 0.0, %v6265
        %v6267 = vpop.f32.mrb[0].mxu0
        %6268 = vmatprep.mubr.f32.mxu0 0.0
        %6269 = vmatmul.mubr.f32.gmra.mrb[0].mxu0 %v6031
        %v6270 = vpop.f32.mrb[0].mxu0
        %v6271 = vadd.f32 0.0, %v6270
        %v6272 = vpop.f32.mrb[0].mxu0
        %6273 = vdwg.mxu0
        %v6274 = vadd.f32 %v3802, %v6116
        %v6275 = vadd.f32 %v3807, %v6121
        %v6276 = vadd.f32 %v3812, %v6126
        %v6277 = vadd.f32 %v3817, %v6131
        %v6278 = vadd.f32 %v3822, %v6136
        %v6279 = vadd.f32 %v3827, %v6141
        %v6280 = vadd.f32 %v3832, %v6146
        %v6281 = vadd.f32 %v3837, %v6151
        %v6282 = vadd.f32 %v3842, %v6156
        %v6283 = vadd.f32 %v3847, %v6161
        %v6284 = vadd.f32 %v3852, %v6166
        %v6285 = vadd.f32 %v3857, %v6171
        %v6286 = vadd.f32 %v3862, %v6176
        %v6287 = vadd.f32 %v3867, %v6181
        %v6288 = vadd.f32 %v3872, %v6186
        %v6289 = vadd.f32 %v3877, %v6191
        %v6290 = vadd.f32 %v3882, %v6196
        %v6291 = vadd.f32 %v3887, %v6201
        %v6292 = vadd.f32 %v3892, %v6206
        %v6293 = vadd.f32 %v3897, %v6211
        %v6294 = vadd.f32 %v3902, %v6216
        %v6295 = vadd.f32 %v3907, %v6221
        %v6296 = vadd.f32 %v3912, %v6226
        %v6297 = vadd.f32 %v3917, %v6231
        %v6298 = vadd.f32 %v3922, %v6236
        %v6299 = vadd.f32 %v3927, %v6241
        %v6300 = vadd.f32 %v3932, %v6246
        %v6301 = vadd.f32 %v3937, %v6251
        %v6302 = vadd.f32 %v3942, %v6256
        %v6303 = vadd.f32 %v3947, %v6261
        %v6304 = vadd.f32 %v3952, %v6266
        %v6305 = vadd.f32 %v3957, %v6271
        %v6324 = vrot.slane %v333, 2
        %v6325 = vrot.slane %v334, 2
        %v6326 = vsel %vm739, %v6324, %v6325
        %v6327 = vrot.slane %v335, 2
        %v6328 = vsel %vm739, %v6325, %v6327
        %v6329 = vrot.slane %v340, 2
        %v6330 = vrot.slane %v341, 2
        %v6331 = vsel %vm739, %v6329, %v6330
        %v6332 = vrot.slane %v342, 2
        %v6333 = vsel %vm739, %v6330, %v6332
        %v6334 = vrot.slane %v347, 2
        %v6335 = vrot.slane %v348, 2
        %v6336 = vsel %vm739, %v6334, %v6335
        %v6337 = vrot.slane %v349, 2
        %v6338 = vsel %vm739, %v6335, %v6337
        %v6339 = vrot.slane %v354, 2
        %v6340 = vrot.slane %v355, 2
        %v6341 = vsel %vm739, %v6339, %v6340
        %v6342 = vrot.slane %v356, 2
        %v6343 = vsel %vm739, %v6340, %v6342
        %v6344 = vrot.slane %v361, 2
        %v6345 = vrot.slane %v362, 2
        %v6346 = vsel %vm739, %v6344, %v6345
        %v6347 = vrot.slane %v363, 2
        %v6348 = vsel %vm739, %v6345, %v6347
        %v6349 = vrot.slane %v368, 2
        %v6350 = vrot.slane %v369, 2
        %v6351 = vsel %vm739, %v6349, %v6350
        %v6352 = vrot.slane %v370, 2
        %v6353 = vsel %vm739, %v6350, %v6352
        %v6354 = vrot.slane %v375, 2
        %v6355 = vrot.slane %v376, 2
        %v6356 = vsel %vm739, %v6354, %v6355
        %v6357 = vrot.slane %v377, 2
        %v6358 = vsel %vm739, %v6355, %v6357
        %v6359 = vrot.slane %v382, 2
        %v6360 = vrot.slane %v383, 2
        %v6361 = vsel %vm739, %v6359, %v6360
        %v6362 = vrot.slane %v384, 2
        %v6363 = vsel %vm739, %v6360, %v6362
        %v6364 = vrot.slane %v389, 2
        %v6365 = vrot.slane %v390, 2
        %v6366 = vsel %vm739, %v6364, %v6365
        %v6367 = vrot.slane %v391, 2
        %v6368 = vsel %vm739, %v6365, %v6367
        %v6369 = vrot.slane %v396, 2
        %v6370 = vrot.slane %v397, 2
        %v6371 = vsel %vm739, %v6369, %v6370
        %v6372 = vrot.slane %v398, 2
        %v6373 = vsel %vm739, %v6370, %v6372
        %v6374 = vrot.slane %v403, 2
        %v6375 = vrot.slane %v404, 2
        %v6376 = vsel %vm739, %v6374, %v6375
        %v6377 = vrot.slane %v405, 2
        %v6378 = vsel %vm739, %v6375, %v6377
        %v6379 = vrot.slane %v410, 2
        %v6380 = vrot.slane %v411, 2
        %v6381 = vsel %vm739, %v6379, %v6380
        %v6382 = vrot.slane %v412, 2
        %v6383 = vsel %vm739, %v6380, %v6382
        %v6384 = vrot.slane %v417, 2
        %v6385 = vrot.slane %v418, 2
        %v6386 = vsel %vm739, %v6384, %v6385
        %v6387 = vrot.slane %v419, 2
        %v6388 = vsel %vm739, %v6385, %v6387
        %v6389 = vrot.slane %v424, 2
        %v6390 = vrot.slane %v425, 2
        %v6391 = vsel %vm739, %v6389, %v6390
        %v6392 = vrot.slane %v426, 2
        %v6393 = vsel %vm739, %v6390, %v6392
        %v6394 = vrot.slane %v431, 2
        %v6395 = vrot.slane %v432, 2
        %v6396 = vsel %vm739, %v6394, %v6395
        %v6397 = vrot.slane %v433, 2
        %v6398 = vsel %vm739, %v6395, %v6397
        %v6399 = vrot.slane %v438, 2
        %v6400 = vrot.slane %v439, 2
        %v6401 = vsel %vm739, %v6399, %v6400
        %v6402 = vrot.slane %v440, 2
        %v6403 = vsel %vm739, %v6400, %v6402
        %6404 = vrot.lane.b32.xlu0 %v6326, 4
        %v6405 = vpop.permute.xlu0 %6404
        %6406 = vrot.lane.b32.xlu0 %v6328, 4
        %v6407 = vpop.permute.xlu0 %6406
        %6408 = vrot.lane.b32.xlu0 %v6331, 4
        %v6409 = vpop.permute.xlu0 %6408
        %6410 = vrot.lane.b32.xlu0 %v6333, 4
        %v6411 = vpop.permute.xlu0 %6410
        %6412 = vrot.lane.b32.xlu0 %v6336, 4
        %v6413 = vpop.permute.xlu0 %6412
        %6414 = vrot.lane.b32.xlu0 %v6338, 4
        %v6415 = vpop.permute.xlu0 %6414
        %6416 = vrot.lane.b32.xlu0 %v6341, 4
        %v6417 = vpop.permute.xlu0 %6416
        %6418 = vrot.lane.b32.xlu0 %v6343, 4
        %v6419 = vpop.permute.xlu0 %6418
        %6420 = vrot.lane.b32.xlu0 %v6346, 4
        %v6421 = vpop.permute.xlu0 %6420
        %6422 = vrot.lane.b32.xlu0 %v6348, 4
        %v6423 = vpop.permute.xlu0 %6422
        %6424 = vrot.lane.b32.xlu0 %v6351, 4
        %v6425 = vpop.permute.xlu0 %6424
        %6426 = vrot.lane.b32.xlu0 %v6353, 4
        %v6427 = vpop.permute.xlu0 %6426
        %6428 = vrot.lane.b32.xlu0 %v6356, 4
        %v6429 = vpop.permute.xlu0 %6428
        %6430 = vrot.lane.b32.xlu0 %v6358, 4
        %v6431 = vpop.permute.xlu0 %6430
        %6432 = vrot.lane.b32.xlu0 %v6361, 4
        %v6433 = vpop.permute.xlu0 %6432
        %6434 = vrot.lane.b32.xlu0 %v6363, 4
        %v6435 = vpop.permute.xlu0 %6434
        %6436 = vrot.lane.b32.xlu0 %v6366, 4
        %v6437 = vpop.permute.xlu0 %6436
        %6438 = vrot.lane.b32.xlu0 %v6368, 4
        %v6439 = vpop.permute.xlu0 %6438
        %6440 = vrot.lane.b32.xlu0 %v6371, 4
        %v6441 = vpop.permute.xlu0 %6440
        %6442 = vrot.lane.b32.xlu0 %v6373, 4
        %v6443 = vpop.permute.xlu0 %6442
        %6444 = vrot.lane.b32.xlu0 %v6376, 4
        %v6445 = vpop.permute.xlu0 %6444
        %6446 = vrot.lane.b32.xlu0 %v6378, 4
        %v6447 = vpop.permute.xlu0 %6446
        %6448 = vrot.lane.b32.xlu0 %v6381, 4
        %v6449 = vpop.permute.xlu0 %6448
        %6450 = vrot.lane.b32.xlu0 %v6383, 4
        %v6451 = vpop.permute.xlu0 %6450
        %6452 = vrot.lane.b32.xlu0 %v6386, 4
        %v6453 = vpop.permute.xlu0 %6452
        %6454 = vrot.lane.b32.xlu0 %v6388, 4
        %v6455 = vpop.permute.xlu0 %6454
        %6456 = vrot.lane.b32.xlu0 %v6391, 4
        %v6457 = vpop.permute.xlu0 %6456
        %6458 = vrot.lane.b32.xlu0 %v6393, 4
        %v6459 = vpop.permute.xlu0 %6458
        %6460 = vrot.lane.b32.xlu0 %v6396, 4
        %v6461 = vpop.permute.xlu0 %6460
        %6462 = vrot.lane.b32.xlu0 %v6398, 4
        %v6463 = vpop.permute.xlu0 %6462
        %6464 = vrot.lane.b32.xlu0 %v6401, 4
        %v6465 = vpop.permute.xlu0 %6464
        %6466 = vrot.lane.b32.xlu0 %v6403, 4
        %v6467 = vpop.permute.xlu0 %6466
        %v6522 = vrot.slane %v335, 4
        %v6523 = vrot.slane %v336, 4
        %v6524 = vsel %vm925, %v6522, %v6523
        %v6525 = vrot.slane %v337, 4
        %v6526 = vsel %vm925, %v6523, %v6525
        %v6527 = vrot.slane %v342, 4
        %v6528 = vrot.slane %v343, 4
        %v6529 = vsel %vm925, %v6527, %v6528
        %v6530 = vrot.slane %v344, 4
        %v6531 = vsel %vm925, %v6528, %v6530
        %v6532 = vrot.slane %v349, 4
        %v6533 = vrot.slane %v350, 4
        %v6534 = vsel %vm925, %v6532, %v6533
        %v6535 = vrot.slane %v351, 4
        %v6536 = vsel %vm925, %v6533, %v6535
        %v6537 = vrot.slane %v356, 4
        %v6538 = vrot.slane %v357, 4
        %v6539 = vsel %vm925, %v6537, %v6538
        %v6540 = vrot.slane %v358, 4
        %v6541 = vsel %vm925, %v6538, %v6540
        %v6542 = vrot.slane %v363, 4
        %v6543 = vrot.slane %v364, 4
        %v6544 = vsel %vm925, %v6542, %v6543
        %v6545 = vrot.slane %v365, 4
        %v6546 = vsel %vm925, %v6543, %v6545
        %v6547 = vrot.slane %v370, 4
        %v6548 = vrot.slane %v371, 4
        %v6549 = vsel %vm925, %v6547, %v6548
        %v6550 = vrot.slane %v372, 4
        %v6551 = vsel %vm925, %v6548, %v6550
        %v6552 = vrot.slane %v378, 4
        %v6553 = vsel %vm925, %v3981, %v6552
        %v6554 = vrot.slane %v379, 4
        %v6555 = vsel %vm925, %v6552, %v6554
        %v6556 = vrot.slane %v385, 4
        %v6557 = vsel %vm925, %v3986, %v6556
        %v6558 = vrot.slane %v386, 4
        %v6559 = vsel %vm925, %v6556, %v6558
        %v6560 = vrot.slane %v392, 4
        %v6561 = vsel %vm925, %v3991, %v6560
        %v6562 = vrot.slane %v393, 4
        %v6563 = vsel %vm925, %v6560, %v6562
        %v6564 = vrot.slane %v399, 4
        %v6565 = vsel %vm925, %v3996, %v6564
        %v6566 = vrot.slane %v400, 4
        %v6567 = vsel %vm925, %v6564, %v6566
        %v6568 = vrot.slane %v406, 4
        %v6569 = vsel %vm925, %v4001, %v6568
        %v6570 = vrot.slane %v407, 4
        %v6571 = vsel %vm925, %v6568, %v6570
        %v6572 = vrot.slane %v413, 4
        %v6573 = vsel %vm925, %v4006, %v6572
        %v6574 = vrot.slane %v414, 4
        %v6575 = vsel %vm925, %v6572, %v6574
        %v6576 = vrot.slane %v420, 4
        %v6577 = vsel %vm925, %v1446, %v6576
        %v6578 = vrot.slane %v421, 4
        %v6579 = vsel %vm925, %v6576, %v6578
        %v6580 = vrot.slane %v427, 4
        %v6581 = vsel %vm925, %v1449, %v6580
        %v6582 = vrot.slane %v428, 4
        %v6583 = vsel %vm925, %v6580, %v6582
        %v6584 = vrot.slane %v434, 4
        %v6585 = vsel %vm925, %v1452, %v6584
        %v6586 = vrot.slane %v435, 4
        %v6587 = vsel %vm925, %v6584, %v6586
        %v6588 = vrot.slane %v441, 4
        %v6589 = vsel %vm925, %v1455, %v6588
        %v6590 = vrot.slane %v442, 4
        %v6591 = vsel %vm925, %v6588, %v6590
        %6592 = vrot.lane.b32.xlu0 %v6524, 8
        %v6593 = vpop.permute.xlu0 %6592
        %6594 = vrot.lane.b32.xlu0 %v6526, 8
        %v6595 = vpop.permute.xlu0 %6594
        %6596 = vrot.lane.b32.xlu0 %v6529, 8
        %v6597 = vpop.permute.xlu0 %6596
        %6598 = vrot.lane.b32.xlu0 %v6531, 8
        %v6599 = vpop.permute.xlu0 %6598
        %6600 = vrot.lane.b32.xlu0 %v6534, 8
        %v6601 = vpop.permute.xlu0 %6600
        %6602 = vrot.lane.b32.xlu0 %v6536, 8
        %v6603 = vpop.permute.xlu0 %6602
        %6604 = vrot.lane.b32.xlu0 %v6539, 8
        %v6605 = vpop.permute.xlu0 %6604
        %6606 = vrot.lane.b32.xlu0 %v6541, 8
        %v6607 = vpop.permute.xlu0 %6606
        %6608 = vrot.lane.b32.xlu0 %v6544, 8
        %v6609 = vpop.permute.xlu0 %6608
        %6610 = vrot.lane.b32.xlu0 %v6546, 8
        %v6611 = vpop.permute.xlu0 %6610
        %6612 = vrot.lane.b32.xlu0 %v6549, 8
        %v6613 = vpop.permute.xlu0 %6612
        %6614 = vrot.lane.b32.xlu0 %v6551, 8
        %v6615 = vpop.permute.xlu0 %6614
        %6616 = vrot.lane.b32.xlu0 %v6553, 8
        %v6617 = vpop.permute.xlu0 %6616
        %6618 = vrot.lane.b32.xlu0 %v6555, 8
        %v6619 = vpop.permute.xlu0 %6618
        %6620 = vrot.lane.b32.xlu0 %v6557, 8
        %v6621 = vpop.permute.xlu0 %6620
        %6622 = vrot.lane.b32.xlu0 %v6559, 8
        %v6623 = vpop.permute.xlu0 %6622
        %6624 = vrot.lane.b32.xlu0 %v6561, 8
        %v6625 = vpop.permute.xlu0 %6624
        %6626 = vrot.lane.b32.xlu0 %v6563, 8
        %v6627 = vpop.permute.xlu0 %6626
        %6628 = vrot.lane.b32.xlu0 %v6565, 8
        %v6629 = vpop.permute.xlu0 %6628
        %6630 = vrot.lane.b32.xlu0 %v6567, 8
        %v6631 = vpop.permute.xlu0 %6630
        %6632 = vrot.lane.b32.xlu0 %v6569, 8
        %v6633 = vpop.permute.xlu0 %6632
        %6634 = vrot.lane.b32.xlu0 %v6571, 8
        %v6635 = vpop.permute.xlu0 %6634
        %6636 = vrot.lane.b32.xlu0 %v6573, 8
        %v6637 = vpop.permute.xlu0 %6636
        %6638 = vrot.lane.b32.xlu0 %v6575, 8
        %v6639 = vpop.permute.xlu0 %6638
        %6640 = vrot.lane.b32.xlu0 %v6577, 8
        %v6641 = vpop.permute.xlu0 %6640
        %6642 = vrot.lane.b32.xlu0 %v6579, 8
        %v6643 = vpop.permute.xlu0 %6642
        %6644 = vrot.lane.b32.xlu0 %v6581, 8
        %v6645 = vpop.permute.xlu0 %6644
        %6646 = vrot.lane.b32.xlu0 %v6583, 8
        %v6647 = vpop.permute.xlu0 %6646
        %6648 = vrot.lane.b32.xlu0 %v6585, 8
        %v6649 = vpop.permute.xlu0 %6648
        %6650 = vrot.lane.b32.xlu0 %v6587, 8
        %v6651 = vpop.permute.xlu0 %6650
        %6652 = vrot.lane.b32.xlu0 %v6589, 8
        %v6653 = vpop.permute.xlu0 %6652
        %6654 = vrot.lane.b32.xlu0 %v6591, 8
        %v6655 = vpop.permute.xlu0 %6654
        %6688 = vrot.lane.b32.xlu0 %v742, 16
        %v6689 = vpop.permute.xlu0 %6688
        %6690 = vrot.lane.b32.xlu0 %v744, 16
        %v6691 = vpop.permute.xlu0 %6690
        %6692 = vrot.lane.b32.xlu0 %v747, 16
        %v6693 = vpop.permute.xlu0 %6692
        %6694 = vrot.lane.b32.xlu0 %v749, 16
        %v6695 = vpop.permute.xlu0 %6694
        %6696 = vrot.lane.b32.xlu0 %v752, 16
        %v6697 = vpop.permute.xlu0 %6696
        %6698 = vrot.lane.b32.xlu0 %v754, 16
        %v6699 = vpop.permute.xlu0 %6698
        %6700 = vrot.lane.b32.xlu0 %v757, 16
        %v6701 = vpop.permute.xlu0 %6700
        %6702 = vrot.lane.b32.xlu0 %v759, 16
        %v6703 = vpop.permute.xlu0 %6702
        %6704 = vrot.lane.b32.xlu0 %v762, 16
        %v6705 = vpop.permute.xlu0 %6704
        %6706 = vrot.lane.b32.xlu0 %v764, 16
        %v6707 = vpop.permute.xlu0 %6706
        %6708 = vrot.lane.b32.xlu0 %v767, 16
        %v6709 = vpop.permute.xlu0 %6708
        %6710 = vrot.lane.b32.xlu0 %v769, 16
        %v6711 = vpop.permute.xlu0 %6710
        %6712 = vrot.lane.b32.xlu0 %v772, 16
        %v6713 = vpop.permute.xlu0 %6712
        %6714 = vrot.lane.b32.xlu0 %v774, 16
        %v6715 = vpop.permute.xlu0 %6714
        %6716 = vrot.lane.b32.xlu0 %v777, 16
        %v6717 = vpop.permute.xlu0 %6716
        %6718 = vrot.lane.b32.xlu0 %v779, 16
        %v6719 = vpop.permute.xlu0 %6718
        %6720 = vrot.lane.b32.xlu0 %v782, 16
        %v6721 = vpop.permute.xlu0 %6720
        %6722 = vrot.lane.b32.xlu0 %v784, 16
        %v6723 = vpop.permute.xlu0 %6722
        %6724 = vrot.lane.b32.xlu0 %v787, 16
        %v6725 = vpop.permute.xlu0 %6724
        %6726 = vrot.lane.b32.xlu0 %v789, 16
        %v6727 = vpop.permute.xlu0 %6726
        %6728 = vrot.lane.b32.xlu0 %v792, 16
        %v6729 = vpop.permute.xlu0 %6728
        %6730 = vrot.lane.b32.xlu0 %v794, 16
        %v6731 = vpop.permute.xlu0 %6730
        %6732 = vrot.lane.b32.xlu0 %v797, 16
        %v6733 = vpop.permute.xlu0 %6732
        %6734 = vrot.lane.b32.xlu0 %v799, 16
        %v6735 = vpop.permute.xlu0 %6734
        %6736 = vrot.lane.b32.xlu0 %v802, 16
        %v6737 = vpop.permute.xlu0 %6736
        %6738 = vrot.lane.b32.xlu0 %v804, 16
        %v6739 = vpop.permute.xlu0 %6738
        %6740 = vrot.lane.b32.xlu0 %v807, 16
        %v6741 = vpop.permute.xlu0 %6740
        %6742 = vrot.lane.b32.xlu0 %v809, 16
        %v6743 = vpop.permute.xlu0 %6742
        %6744 = vrot.lane.b32.xlu0 %v812, 16
        %v6745 = vpop.permute.xlu0 %6744
        %6746 = vrot.lane.b32.xlu0 %v814, 16
        %v6747 = vpop.permute.xlu0 %6746
        %6748 = vrot.lane.b32.xlu0 %v817, 16
        %v6749 = vpop.permute.xlu0 %6748
        %6750 = vrot.lane.b32.xlu0 %v819, 16
        %v6751 = vpop.permute.xlu0 %6750
        %v6800 = vrot.slane %v460, 4
        %v6801 = vsel %vm925, %v1464, %v6800
        %v6802 = vrot.slane %v461, 4
        %v6803 = vsel %vm925, %v6800, %v6802
        %v6804 = vrot.slane %v467, 4
        %v6805 = vsel %vm925, %v1467, %v6804
        %v6806 = vrot.slane %v468, 4
        %v6807 = vsel %vm925, %v6804, %v6806
        %v6808 = vrot.slane %v474, 4
        %v6809 = vsel %vm925, %v1470, %v6808
        %v6810 = vrot.slane %v475, 4
        %v6811 = vsel %vm925, %v6808, %v6810
        %v6812 = vrot.slane %v481, 4
        %v6813 = vsel %vm925, %v1473, %v6812
        %v6814 = vrot.slane %v482, 4
        %v6815 = vsel %vm925, %v6812, %v6814
        %v6816 = vrot.slane %v488, 4
        %v6817 = vsel %vm925, %v1476, %v6816
        %v6818 = vrot.slane %v489, 4
        %v6819 = vsel %vm925, %v6816, %v6818
        %v6820 = vrot.slane %v495, 4
        %v6821 = vsel %vm925, %v1479, %v6820
        %v6822 = vrot.slane %v496, 4
        %v6823 = vsel %vm925, %v6820, %v6822
        %v6824 = vrot.slane %v502, 4
        %v6825 = vsel %vm925, %v1482, %v6824
        %v6826 = vrot.slane %v503, 4
        %v6827 = vsel %vm925, %v6824, %v6826
        %v6828 = vrot.slane %v509, 4
        %v6829 = vsel %vm925, %v1485, %v6828
        %v6830 = vrot.slane %v510, 4
        %v6831 = vsel %vm925, %v6828, %v6830
        %v6832 = vrot.slane %v516, 4
        %v6833 = vsel %vm925, %v1488, %v6832
        %v6834 = vrot.slane %v517, 4
        %v6835 = vsel %vm925, %v6832, %v6834
        %v6836 = vrot.slane %v523, 4
        %v6837 = vsel %vm925, %v1491, %v6836
        %v6838 = vrot.slane %v524, 4
        %v6839 = vsel %vm925, %v6836, %v6838
        %v6840 = vrot.slane %v530, 4
        %v6841 = vsel %vm925, %v1972, %v6840
        %v6842 = vrot.slane %v531, 4
        %v6843 = vsel %vm925, %v6840, %v6842
        %v6844 = vrot.slane %v537, 4
        %v6845 = vsel %vm925, %v1975, %v6844
        %v6846 = vrot.slane %v538, 4
        %v6847 = vsel %vm925, %v6844, %v6846
        %v6848 = vrot.slane %v544, 4
        %v6849 = vsel %vm925, %v1978, %v6848
        %v6850 = vrot.slane %v545, 4
        %v6851 = vsel %vm925, %v6848, %v6850
        %v6852 = vrot.slane %v551, 4
        %v6853 = vsel %vm925, %v1981, %v6852
        %v6854 = vrot.slane %v552, 4
        %v6855 = vsel %vm925, %v6852, %v6854
        %v6856 = vrot.slane %v558, 4
        %v6857 = vsel %vm925, %v1984, %v6856
        %v6858 = vrot.slane %v559, 4
        %v6859 = vsel %vm925, %v6856, %v6858
        %v6860 = vrot.slane %v565, 4
        %v6861 = vsel %vm925, %v1987, %v6860
        %v6862 = vrot.slane %v566, 4
        %v6863 = vsel %vm925, %v6860, %v6862
        %6864 = vrot.lane.b32.xlu0 %v6801, 20
        %v6865 = vpop.permute.xlu0 %6864
        %6866 = vrot.lane.b32.xlu0 %v6803, 20
        %v6867 = vpop.permute.xlu0 %6866
        %6868 = vrot.lane.b32.xlu0 %v6805, 20
        %v6869 = vpop.permute.xlu0 %6868
        %6870 = vrot.lane.b32.xlu0 %v6807, 20
        %v6871 = vpop.permute.xlu0 %6870
        %6872 = vrot.lane.b32.xlu0 %v6809, 20
        %v6873 = vpop.permute.xlu0 %6872
        %6874 = vrot.lane.b32.xlu0 %v6811, 20
        %v6875 = vpop.permute.xlu0 %6874
        %6876 = vrot.lane.b32.xlu0 %v6813, 20
        %v6877 = vpop.permute.xlu0 %6876
        %6878 = vrot.lane.b32.xlu0 %v6815, 20
        %v6879 = vpop.permute.xlu0 %6878
        %6880 = vrot.lane.b32.xlu0 %v6817, 20
        %v6881 = vpop.permute.xlu0 %6880
        %6882 = vrot.lane.b32.xlu0 %v6819, 20
        %v6883 = vpop.permute.xlu0 %6882
        %6884 = vrot.lane.b32.xlu0 %v6821, 20
        %v6885 = vpop.permute.xlu0 %6884
        %6886 = vrot.lane.b32.xlu0 %v6823, 20
        %v6887 = vpop.permute.xlu0 %6886
        %6888 = vrot.lane.b32.xlu0 %v6825, 20
        %v6889 = vpop.permute.xlu0 %6888
        %6890 = vrot.lane.b32.xlu0 %v6827, 20
        %v6891 = vpop.permute.xlu0 %6890
        %6892 = vrot.lane.b32.xlu0 %v6829, 20
        %v6893 = vpop.permute.xlu0 %6892
        %6894 = vrot.lane.b32.xlu0 %v6831, 20
        %v6895 = vpop.permute.xlu0 %6894
        %6896 = vrot.lane.b32.xlu0 %v6833, 20
        %v6897 = vpop.permute.xlu0 %6896
        %6898 = vrot.lane.b32.xlu0 %v6835, 20
        %v6899 = vpop.permute.xlu0 %6898
        %6900 = vrot.lane.b32.xlu0 %v6837, 20
        %v6901 = vpop.permute.xlu0 %6900
        %6902 = vrot.lane.b32.xlu0 %v6839, 20
        %v6903 = vpop.permute.xlu0 %6902
        %6904 = vrot.lane.b32.xlu0 %v6841, 20
        %v6905 = vpop.permute.xlu0 %6904
        %6906 = vrot.lane.b32.xlu0 %v6843, 20
        %v6907 = vpop.permute.xlu0 %6906
        %6908 = vrot.lane.b32.xlu0 %v6845, 20
        %v6909 = vpop.permute.xlu0 %6908
        %6910 = vrot.lane.b32.xlu0 %v6847, 20
        %v6911 = vpop.permute.xlu0 %6910
        %6912 = vrot.lane.b32.xlu0 %v6849, 20
        %v6913 = vpop.permute.xlu0 %6912
        %6914 = vrot.lane.b32.xlu0 %v6851, 20
        %v6915 = vpop.permute.xlu0 %6914
        %6916 = vrot.lane.b32.xlu0 %v6853, 20
        %v6917 = vpop.permute.xlu0 %6916
        %6918 = vrot.lane.b32.xlu0 %v6855, 20
        %v6919 = vpop.permute.xlu0 %6918
        %6920 = vrot.lane.b32.xlu0 %v6857, 20
        %v6921 = vpop.permute.xlu0 %6920
        %6922 = vrot.lane.b32.xlu0 %v6859, 20
        %v6923 = vpop.permute.xlu0 %6922
        %6924 = vrot.lane.b32.xlu0 %v6861, 20
        %v6925 = vpop.permute.xlu0 %6924
        %6926 = vrot.lane.b32.xlu0 %v6863, 20
        %v6927 = vpop.permute.xlu0 %6926
        %6972 = vrot.lane.b32.xlu0 %v649, 24
        %v6973 = vpop.permute.xlu0 %6972
        %6974 = vrot.lane.b32.xlu0 %v650, 24
        %v6975 = vpop.permute.xlu0 %6974
        %6976 = vrot.lane.b32.xlu0 %v656, 24
        %v6977 = vpop.permute.xlu0 %6976
        %6978 = vrot.lane.b32.xlu0 %v657, 24
        %v6979 = vpop.permute.xlu0 %6978
        %6980 = vrot.lane.b32.xlu0 %v663, 24
        %v6981 = vpop.permute.xlu0 %6980
        %6982 = vrot.lane.b32.xlu0 %v664, 24
        %v6983 = vpop.permute.xlu0 %6982
        %6984 = vrot.lane.b32.xlu0 %v670, 24
        %v6985 = vpop.permute.xlu0 %6984
        %6986 = vrot.lane.b32.xlu0 %v671, 24
        %v6987 = vpop.permute.xlu0 %6986
        %6988 = vrot.lane.b32.xlu0 %v677, 24
        %v6989 = vpop.permute.xlu0 %6988
        %6990 = vrot.lane.b32.xlu0 %v678, 24
        %v6991 = vpop.permute.xlu0 %6990
        %6992 = vrot.lane.b32.xlu0 %v684, 24
        %v6993 = vpop.permute.xlu0 %6992
        %6994 = vrot.lane.b32.xlu0 %v685, 24
        %v6995 = vpop.permute.xlu0 %6994
        %v7026 = vrot.slane %v581, 2
        %v7027 = vrot.slane %v582, 2
        %v7028 = vsel %vm739, %v7026, %v7027
        %v7029 = vrot.slane %v583, 2
        %v7030 = vsel %vm739, %v7027, %v7029
        %v7031 = vrot.slane %v588, 2
        %v7032 = vrot.slane %v589, 2
        %v7033 = vsel %vm739, %v7031, %v7032
        %v7034 = vrot.slane %v590, 2
        %v7035 = vsel %vm739, %v7032, %v7034
        %v7036 = vrot.slane %v595, 2
        %v7037 = vrot.slane %v596, 2
        %v7038 = vsel %vm739, %v7036, %v7037
        %v7039 = vrot.slane %v597, 2
        %v7040 = vsel %vm739, %v7037, %v7039
        %v7041 = vrot.slane %v602, 2
        %v7042 = vrot.slane %v603, 2
        %v7043 = vsel %vm739, %v7041, %v7042
        %v7044 = vrot.slane %v604, 2
        %v7045 = vsel %vm739, %v7042, %v7044
        %v7046 = vrot.slane %v609, 2
        %v7047 = vrot.slane %v610, 2
        %v7048 = vsel %vm739, %v7046, %v7047
        %v7049 = vrot.slane %v611, 2
        %v7050 = vsel %vm739, %v7047, %v7049
        %v7051 = vrot.slane %v616, 2
        %v7052 = vrot.slane %v617, 2
        %v7053 = vsel %vm739, %v7051, %v7052
        %v7054 = vrot.slane %v618, 2
        %v7055 = vsel %vm739, %v7052, %v7054
        %v7056 = vrot.slane %v623, 2
        %v7057 = vrot.slane %v624, 2
        %v7058 = vsel %vm739, %v7056, %v7057
        %v7059 = vrot.slane %v625, 2
        %v7060 = vsel %vm739, %v7057, %v7059
        %v7061 = vrot.slane %v630, 2
        %v7062 = vrot.slane %v631, 2
        %v7063 = vsel %vm739, %v7061, %v7062
        %v7064 = vrot.slane %v632, 2
        %v7065 = vsel %vm739, %v7062, %v7064
        %v7066 = vrot.slane %v637, 2
        %v7067 = vrot.slane %v638, 2
        %v7068 = vsel %vm739, %v7066, %v7067
        %v7069 = vrot.slane %v639, 2
        %v7070 = vsel %vm739, %v7067, %v7069
        %v7071 = vrot.slane %v644, 2
        %v7072 = vrot.slane %v645, 2
        %v7073 = vsel %vm739, %v7071, %v7072
        %v7074 = vrot.slane %v646, 2
        %v7075 = vsel %vm739, %v7072, %v7074
        %v7076 = vrot.slane %v651, 2
        %v7077 = vrot.slane %v652, 2
        %v7078 = vsel %vm739, %v7076, %v7077
        %v7079 = vrot.slane %v653, 2
        %v7080 = vsel %vm739, %v7077, %v7079
        %v7081 = vrot.slane %v658, 2
        %v7082 = vrot.slane %v659, 2
        %v7083 = vsel %vm739, %v7081, %v7082
        %v7084 = vrot.slane %v660, 2
        %v7085 = vsel %vm739, %v7082, %v7084
        %v7086 = vrot.slane %v665, 2
        %v7087 = vrot.slane %v666, 2
        %v7088 = vsel %vm739, %v7086, %v7087
        %v7089 = vrot.slane %v667, 2
        %v7090 = vsel %vm739, %v7087, %v7089
        %v7091 = vrot.slane %v672, 2
        %v7092 = vrot.slane %v673, 2
        %v7093 = vsel %vm739, %v7091, %v7092
        %v7094 = vrot.slane %v674, 2
        %v7095 = vsel %vm739, %v7092, %v7094
        %v7096 = vrot.slane %v679, 2
        %v7097 = vrot.slane %v680, 2
        %v7098 = vsel %vm739, %v7096, %v7097
        %v7099 = vrot.slane %v681, 2
        %v7100 = vsel %vm739, %v7097, %v7099
        %v7101 = vrot.slane %v686, 2
        %v7102 = vrot.slane %v687, 2
        %v7103 = vsel %vm739, %v7101, %v7102
        %v7104 = vrot.slane %v688, 2
        %v7105 = vsel %vm739, %v7102, %v7104
        %7106 = vrot.lane.b32.xlu0 %v7028, 28
        %v7107 = vpop.permute.xlu0 %7106
        %7108 = vrot.lane.b32.xlu0 %v7030, 28
        %v7109 = vpop.permute.xlu0 %7108
        %7110 = vrot.lane.b32.xlu0 %v7033, 28
        %v7111 = vpop.permute.xlu0 %7110
        %7112 = vrot.lane.b32.xlu0 %v7035, 28
        %v7113 = vpop.permute.xlu0 %7112
        %7114 = vrot.lane.b32.xlu0 %v7038, 28
        %v7115 = vpop.permute.xlu0 %7114
        %7116 = vrot.lane.b32.xlu0 %v7040, 28
        %v7117 = vpop.permute.xlu0 %7116
        %7118 = vrot.lane.b32.xlu0 %v7043, 28
        %v7119 = vpop.permute.xlu0 %7118
        %7120 = vrot.lane.b32.xlu0 %v7045, 28
        %v7121 = vpop.permute.xlu0 %7120
        %7122 = vrot.lane.b32.xlu0 %v7048, 28
        %v7123 = vpop.permute.xlu0 %7122
        %7124 = vrot.lane.b32.xlu0 %v7050, 28
        %v7125 = vpop.permute.xlu0 %7124
        %7126 = vrot.lane.b32.xlu0 %v7053, 28
        %v7127 = vpop.permute.xlu0 %7126
        %7128 = vrot.lane.b32.xlu0 %v7055, 28
        %v7129 = vpop.permute.xlu0 %7128
        %7130 = vrot.lane.b32.xlu0 %v7058, 28
        %v7131 = vpop.permute.xlu0 %7130
        %7132 = vrot.lane.b32.xlu0 %v7060, 28
        %v7133 = vpop.permute.xlu0 %7132
        %7134 = vrot.lane.b32.xlu0 %v7063, 28
        %v7135 = vpop.permute.xlu0 %7134
        %7136 = vrot.lane.b32.xlu0 %v7065, 28
        %v7137 = vpop.permute.xlu0 %7136
        %7138 = vrot.lane.b32.xlu0 %v7068, 28
        %v7139 = vpop.permute.xlu0 %7138
        %7140 = vrot.lane.b32.xlu0 %v7070, 28
        %v7141 = vpop.permute.xlu0 %7140
        %7142 = vrot.lane.b32.xlu0 %v7073, 28
        %v7143 = vpop.permute.xlu0 %7142
        %7144 = vrot.lane.b32.xlu0 %v7075, 28
        %v7145 = vpop.permute.xlu0 %7144
        %7146 = vrot.lane.b32.xlu0 %v7078, 28
        %v7147 = vpop.permute.xlu0 %7146
        %7148 = vrot.lane.b32.xlu0 %v7080, 28
        %v7149 = vpop.permute.xlu0 %7148
        %7150 = vrot.lane.b32.xlu0 %v7083, 28
        %v7151 = vpop.permute.xlu0 %7150
        %7152 = vrot.lane.b32.xlu0 %v7085, 28
        %v7153 = vpop.permute.xlu0 %7152
        %7154 = vrot.lane.b32.xlu0 %v7088, 28
        %v7155 = vpop.permute.xlu0 %7154
        %7156 = vrot.lane.b32.xlu0 %v7090, 28
        %v7157 = vpop.permute.xlu0 %7156
        %7158 = vrot.lane.b32.xlu0 %v7093, 28
        %v7159 = vpop.permute.xlu0 %7158
        %7160 = vrot.lane.b32.xlu0 %v7095, 28
        %v7161 = vpop.permute.xlu0 %7160
        %7162 = vrot.lane.b32.xlu0 %v7098, 28
        %v7163 = vpop.permute.xlu0 %7162
        %7164 = vrot.lane.b32.xlu0 %v7100, 28
        %v7165 = vpop.permute.xlu0 %7164
        %7166 = vrot.lane.b32.xlu0 %v7103, 28
        %v7167 = vpop.permute.xlu0 %7166
        %7168 = vrot.lane.b32.xlu0 %v7105, 28
        %v7169 = vpop.permute.xlu0 %7168
        %v7224 = vrot.slane %v584, 4
        %v7225 = vsel %vm925, %v2482, %v7224
        %v7226 = vrot.slane %v585, 4
        %v7227 = vsel %vm925, %v7224, %v7226
        %v7228 = vrot.slane %v591, 4
        %v7229 = vsel %vm925, %v2485, %v7228
        %v7230 = vrot.slane %v592, 4
        %v7231 = vsel %vm925, %v7228, %v7230
        %v7232 = vrot.slane %v598, 4
        %v7233 = vsel %vm925, %v2488, %v7232
        %v7234 = vrot.slane %v599, 4
        %v7235 = vsel %vm925, %v7232, %v7234
        %v7236 = vrot.slane %v605, 4
        %v7237 = vsel %vm925, %v2491, %v7236
        %v7238 = vrot.slane %v606, 4
        %v7239 = vsel %vm925, %v7236, %v7238
        %v7240 = vrot.slane %v612, 4
        %v7241 = vsel %vm925, %v4855, %v7240
        %v7242 = vrot.slane %v613, 4
        %v7243 = vsel %vm925, %v7240, %v7242
        %v7244 = vrot.slane %v619, 4
        %v7245 = vsel %vm925, %v4860, %v7244
        %v7246 = vrot.slane %v620, 4
        %v7247 = vsel %vm925, %v7244, %v7246
        %v7248 = vrot.slane %v626, 4
        %v7249 = vsel %vm925, %v4865, %v7248
        %v7250 = vrot.slane %v627, 4
        %v7251 = vsel %vm925, %v7248, %v7250
        %v7252 = vrot.slane %v633, 4
        %v7253 = vsel %vm925, %v4870, %v7252
        %v7254 = vrot.slane %v634, 4
        %v7255 = vsel %vm925, %v7252, %v7254
        %v7256 = vrot.slane %v640, 4
        %v7257 = vsel %vm925, %v4875, %v7256
        %v7258 = vrot.slane %v641, 4
        %v7259 = vsel %vm925, %v7256, %v7258
        %v7260 = vrot.slane %v647, 4
        %v7261 = vsel %vm925, %v4880, %v7260
        %v7262 = vrot.slane %v648, 4
        %v7263 = vsel %vm925, %v7260, %v7262
        %v7264 = vrot.slane %v653, 4
        %v7265 = vrot.slane %v654, 4
        %v7266 = vsel %vm925, %v7264, %v7265
        %v7267 = vrot.slane %v655, 4
        %v7268 = vsel %vm925, %v7265, %v7267
        %v7269 = vrot.slane %v660, 4
        %v7270 = vrot.slane %v661, 4
        %v7271 = vsel %vm925, %v7269, %v7270
        %v7272 = vrot.slane %v662, 4
        %v7273 = vsel %vm925, %v7270, %v7272
        %v7274 = vrot.slane %v667, 4
        %v7275 = vrot.slane %v668, 4
        %v7276 = vsel %vm925, %v7274, %v7275
        %v7277 = vrot.slane %v669, 4
        %v7278 = vsel %vm925, %v7275, %v7277
        %v7279 = vrot.slane %v674, 4
        %v7280 = vrot.slane %v675, 4
        %v7281 = vsel %vm925, %v7279, %v7280
        %v7282 = vrot.slane %v676, 4
        %v7283 = vsel %vm925, %v7280, %v7282
        %v7284 = vrot.slane %v681, 4
        %v7285 = vrot.slane %v682, 4
        %v7286 = vsel %vm925, %v7284, %v7285
        %v7287 = vrot.slane %v683, 4
        %v7288 = vsel %vm925, %v7285, %v7287
        %v7289 = vrot.slane %v688, 4
        %v7290 = vrot.slane %v689, 4
        %v7291 = vsel %vm925, %v7289, %v7290
        %v7292 = vrot.slane %v690, 4
        %v7293 = vsel %vm925, %v7290, %v7292
        %7294 = vrot.lane.b32.xlu0 %v7225, 32
        %v7295 = vpop.permute.xlu0 %7294
        %7296 = vrot.lane.b32.xlu0 %v7227, 32
        %v7297 = vpop.permute.xlu0 %7296
        %7298 = vrot.lane.b32.xlu0 %v7229, 32
        %v7299 = vpop.permute.xlu0 %7298
        %7300 = vrot.lane.b32.xlu0 %v7231, 32
        %v7301 = vpop.permute.xlu0 %7300
        %7302 = vrot.lane.b32.xlu0 %v7233, 32
        %v7303 = vpop.permute.xlu0 %7302
        %7304 = vrot.lane.b32.xlu0 %v7235, 32
        %v7305 = vpop.permute.xlu0 %7304
        %7306 = vrot.lane.b32.xlu0 %v7237, 32
        %v7307 = vpop.permute.xlu0 %7306
        %7308 = vrot.lane.b32.xlu0 %v7239, 32
        %v7309 = vpop.permute.xlu0 %7308
        %7310 = vrot.lane.b32.xlu0 %v7241, 32
        %v7311 = vpop.permute.xlu0 %7310
        %7312 = vrot.lane.b32.xlu0 %v7243, 32
        %v7313 = vpop.permute.xlu0 %7312
        %7314 = vrot.lane.b32.xlu0 %v7245, 32
        %v7315 = vpop.permute.xlu0 %7314
        %7316 = vrot.lane.b32.xlu0 %v7247, 32
        %v7317 = vpop.permute.xlu0 %7316
        %7318 = vrot.lane.b32.xlu0 %v7249, 32
        %v7319 = vpop.permute.xlu0 %7318
        %7320 = vrot.lane.b32.xlu0 %v7251, 32
        %v7321 = vpop.permute.xlu0 %7320
        %7322 = vrot.lane.b32.xlu0 %v7253, 32
        %v7323 = vpop.permute.xlu0 %7322
        %7324 = vrot.lane.b32.xlu0 %v7255, 32
        %v7325 = vpop.permute.xlu0 %7324
        %7326 = vrot.lane.b32.xlu0 %v7257, 32
        %v7327 = vpop.permute.xlu0 %7326
        %7328 = vrot.lane.b32.xlu0 %v7259, 32
        %v7329 = vpop.permute.xlu0 %7328
        %7330 = vrot.lane.b32.xlu0 %v7261, 32
        %v7331 = vpop.permute.xlu0 %7330
        %7332 = vrot.lane.b32.xlu0 %v7263, 32
        %v7333 = vpop.permute.xlu0 %7332
        %7334 = vrot.lane.b32.xlu0 %v7266, 32
        %v7335 = vpop.permute.xlu0 %7334
        %7336 = vrot.lane.b32.xlu0 %v7268, 32
        %v7337 = vpop.permute.xlu0 %7336
        %7338 = vrot.lane.b32.xlu0 %v7271, 32
        %v7339 = vpop.permute.xlu0 %7338
        %7340 = vrot.lane.b32.xlu0 %v7273, 32
        %v7341 = vpop.permute.xlu0 %7340
        %7342 = vrot.lane.b32.xlu0 %v7276, 32
        %v7343 = vpop.permute.xlu0 %7342
        %7344 = vrot.lane.b32.xlu0 %v7278, 32
        %v7345 = vpop.permute.xlu0 %7344
        %7346 = vrot.lane.b32.xlu0 %v7281, 32
        %v7347 = vpop.permute.xlu0 %7346
        %7348 = vrot.lane.b32.xlu0 %v7283, 32
        %v7349 = vpop.permute.xlu0 %7348
        %7350 = vrot.lane.b32.xlu0 %v7286, 32
        %v7351 = vpop.permute.xlu0 %7350
        %7352 = vrot.lane.b32.xlu0 %v7288, 32
        %v7353 = vpop.permute.xlu0 %7352
        %7354 = vrot.lane.b32.xlu0 %v7291, 32
        %v7355 = vpop.permute.xlu0 %7354
        %7356 = vrot.lane.b32.xlu0 %v7293, 32
        %v7357 = vpop.permute.xlu0 %7356
        %v7390 = vsel %vm860, %v331, %v6405
        %v7391 = vsel %vm860, %v332, %v6407
        %v7392 = vsel %vm860, %v338, %v6409
        %v7393 = vsel %vm860, %v339, %v6411
        %v7394 = vsel %vm860, %v345, %v6413
        %v7395 = vsel %vm860, %v346, %v6415
        %v7396 = vsel %vm860, %v352, %v6417
        %v7397 = vsel %vm860, %v353, %v6419
        %v7398 = vsel %vm860, %v359, %v6421
        %v7399 = vsel %vm860, %v360, %v6423
        %v7400 = vsel %vm860, %v366, %v6425
        %v7401 = vsel %vm860, %v367, %v6427
        %v7402 = vsel %vm860, %v373, %v6429
        %v7403 = vsel %vm860, %v374, %v6431
        %v7404 = vsel %vm860, %v380, %v6433
        %v7405 = vsel %vm860, %v381, %v6435
        %v7406 = vsel %vm860, %v387, %v6437
        %v7407 = vsel %vm860, %v388, %v6439
        %v7408 = vsel %vm860, %v394, %v6441
        %v7409 = vsel %vm860, %v395, %v6443
        %v7410 = vsel %vm860, %v401, %v6445
        %v7411 = vsel %vm860, %v402, %v6447
        %v7412 = vsel %vm860, %v408, %v6449
        %v7413 = vsel %vm860, %v409, %v6451
        %v7414 = vsel %vm860, %v415, %v6453
        %v7415 = vsel %vm860, %v416, %v6455
        %v7416 = vsel %vm860, %v422, %v6457
        %v7417 = vsel %vm860, %v423, %v6459
        %v7418 = vsel %vm860, %v429, %v6461
        %v7419 = vsel %vm860, %v430, %v6463
        %v7420 = vsel %vm860, %v436, %v6465
        %v7421 = vsel %vm860, %v437, %v6467
        %v7422 = vsel %vm2685, %v7390, %v6593
        %v7423 = vsel %vm2685, %v7391, %v6595
        %v7424 = vsel %vm2685, %v7392, %v6597
        %v7425 = vsel %vm2685, %v7393, %v6599
        %v7426 = vsel %vm2685, %v7394, %v6601
        %v7427 = vsel %vm2685, %v7395, %v6603
        %v7428 = vsel %vm2685, %v7396, %v6605
        %v7429 = vsel %vm2685, %v7397, %v6607
        %v7430 = vsel %vm2685, %v7398, %v6609
        %v7431 = vsel %vm2685, %v7399, %v6611
        %v7432 = vsel %vm2685, %v7400, %v6613
        %v7433 = vsel %vm2685, %v7401, %v6615
        %v7434 = vsel %vm2685, %v7402, %v6617
        %v7435 = vsel %vm2685, %v7403, %v6619
        %v7436 = vsel %vm2685, %v7404, %v6621
        %v7437 = vsel %vm2685, %v7405, %v6623
        %v7438 = vsel %vm2685, %v7406, %v6625
        %v7439 = vsel %vm2685, %v7407, %v6627
        %v7440 = vsel %vm2685, %v7408, %v6629
        %v7441 = vsel %vm2685, %v7409, %v6631
        %v7442 = vsel %vm2685, %v7410, %v6633
        %v7443 = vsel %vm2685, %v7411, %v6635
        %v7444 = vsel %vm2685, %v7412, %v6637
        %v7445 = vsel %vm2685, %v7413, %v6639
        %v7446 = vsel %vm2685, %v7414, %v6641
        %v7447 = vsel %vm2685, %v7415, %v6643
        %v7448 = vsel %vm2685, %v7416, %v6645
        %v7449 = vsel %vm2685, %v7417, %v6647
        %v7450 = vsel %vm2685, %v7418, %v6649
        %v7451 = vsel %vm2685, %v7419, %v6651
        %v7452 = vsel %vm2685, %v7420, %v6653
        %v7453 = vsel %vm2685, %v7421, %v6655
        %v7454 = vsel %vm2734, %v7422, %v4349
        %v7455 = vsel %vm2734, %v7423, %v1654
        %v7456 = vsel %vm2734, %v7424, %v4351
        %v7457 = vsel %vm2734, %v7425, %v1660
        %v7458 = vsel %vm2734, %v7426, %v4353
        %v7459 = vsel %vm2734, %v7427, %v1666
        %v7460 = vsel %vm2734, %v7428, %v4355
        %v7461 = vsel %vm2734, %v7429, %v1672
        %v7462 = vsel %vm2734, %v7430, %v4357
        %v7463 = vsel %vm2734, %v7431, %v1678
        %v7464 = vsel %vm2734, %v7432, %v4359
        %v7465 = vsel %vm2734, %v7433, %v1684
        %v7466 = vsel %vm2734, %v7434, %v4361
        %v7467 = vsel %vm2734, %v7435, %v1690
        %v7468 = vsel %vm2734, %v7436, %v4363
        %v7469 = vsel %vm2734, %v7437, %v1696
        %v7470 = vsel %vm2734, %v7438, %v4365
        %v7471 = vsel %vm2734, %v7439, %v1702
        %v7472 = vsel %vm2734, %v7440, %v4367
        %v7473 = vsel %vm2734, %v7441, %v1708
        %v7474 = vsel %vm2734, %v7442, %v4369
        %v7475 = vsel %vm2734, %v7443, %v1714
        %v7476 = vsel %vm2734, %v7444, %v4371
        %v7477 = vsel %vm2734, %v7445, %v1720
        %v7478 = vsel %vm2734, %v7446, %v4373
        %v7479 = vsel %vm2734, %v7447, %v1726
        %v7480 = vsel %vm2734, %v7448, %v4375
        %v7481 = vsel %vm2734, %v7449, %v1732
        %v7482 = vsel %vm2734, %v7450, %v4377
        %v7483 = vsel %vm2734, %v7451, %v1738
        %v7484 = vsel %vm2734, %v7452, %v4379
        %v7485 = vsel %vm2734, %v7453, %v1744
        %v7486 = vsel %vm2783, %v7454, %v6689
        %v7487 = vsel %vm2783, %v7455, %v6691
        %v7488 = vsel %vm2783, %v7456, %v6693
        %v7489 = vsel %vm2783, %v7457, %v6695
        %v7490 = vsel %vm2783, %v7458, %v6697
        %v7491 = vsel %vm2783, %v7459, %v6699
        %v7492 = vsel %vm2783, %v7460, %v6701
        %v7493 = vsel %vm2783, %v7461, %v6703
        %v7494 = vsel %vm2783, %v7462, %v6705
        %v7495 = vsel %vm2783, %v7463, %v6707
        %v7496 = vsel %vm2783, %v7464, %v6709
        %v7497 = vsel %vm2783, %v7465, %v6711
        %v7498 = vsel %vm2783, %v7466, %v6713
        %v7499 = vsel %vm2783, %v7467, %v6715
        %v7500 = vsel %vm2783, %v7468, %v6717
        %v7501 = vsel %vm2783, %v7469, %v6719
        %v7502 = vsel %vm2783, %v7470, %v6721
        %v7503 = vsel %vm2783, %v7471, %v6723
        %v7504 = vsel %vm2783, %v7472, %v6725
        %v7505 = vsel %vm2783, %v7473, %v6727
        %v7506 = vsel %vm2783, %v7474, %v6729
        %v7507 = vsel %vm2783, %v7475, %v6731
        %v7508 = vsel %vm2783, %v7476, %v6733
        %v7509 = vsel %vm2783, %v7477, %v6735
        %v7510 = vsel %vm2783, %v7478, %v6737
        %v7511 = vsel %vm2783, %v7479, %v6739
        %v7512 = vsel %vm2783, %v7480, %v6741
        %v7513 = vsel %vm2783, %v7481, %v6743
        %v7514 = vsel %vm2783, %v7482, %v6745
        %v7515 = vsel %vm2783, %v7483, %v6747
        %v7516 = vsel %vm2783, %v7484, %v6749
        %v7517 = vsel %vm2783, %v7485, %v6751
        %v7518 = vsel %vm2832, %v7486, %v6865
        %v7519 = vsel %vm2832, %v7487, %v6867
        %v7520 = vsel %vm2832, %v7488, %v6869
        %v7521 = vsel %vm2832, %v7489, %v6871
        %v7522 = vsel %vm2832, %v7490, %v6873
        %v7523 = vsel %vm2832, %v7491, %v6875
        %v7524 = vsel %vm2832, %v7492, %v6877
        %v7525 = vsel %vm2832, %v7493, %v6879
        %v7526 = vsel %vm2832, %v7494, %v6881
        %v7527 = vsel %vm2832, %v7495, %v6883
        %v7528 = vsel %vm2832, %v7496, %v6885
        %v7529 = vsel %vm2832, %v7497, %v6887
        %v7530 = vsel %vm2832, %v7498, %v6889
        %v7531 = vsel %vm2832, %v7499, %v6891
        %v7532 = vsel %vm2832, %v7500, %v6893
        %v7533 = vsel %vm2832, %v7501, %v6895
        %v7534 = vsel %vm2832, %v7502, %v6897
        %v7535 = vsel %vm2832, %v7503, %v6899
        %v7536 = vsel %vm2832, %v7504, %v6901
        %v7537 = vsel %vm2832, %v7505, %v6903
        %v7538 = vsel %vm2832, %v7506, %v6905
        %v7539 = vsel %vm2832, %v7507, %v6907
        %v7540 = vsel %vm2832, %v7508, %v6909
        %v7541 = vsel %vm2832, %v7509, %v6911
        %v7542 = vsel %vm2832, %v7510, %v6913
        %v7543 = vsel %vm2832, %v7511, %v6915
        %v7544 = vsel %vm2832, %v7512, %v6917
        %v7545 = vsel %vm2832, %v7513, %v6919
        %v7546 = vsel %vm2832, %v7514, %v6921
        %v7547 = vsel %vm2832, %v7515, %v6923
        %v7548 = vsel %vm2832, %v7516, %v6925
        %v7549 = vsel %vm2832, %v7517, %v6927
        %v7550 = vsel %vm2881, %v7518, %v4757
        %v7551 = vsel %vm2881, %v7519, %v2224
        %v7552 = vsel %vm2881, %v7520, %v4759
        %v7553 = vsel %vm2881, %v7521, %v2230
        %v7554 = vsel %vm2881, %v7522, %v4761
        %v7555 = vsel %vm2881, %v7523, %v2236
        %v7556 = vsel %vm2881, %v7524, %v4763
        %v7557 = vsel %vm2881, %v7525, %v2242
        %v7558 = vsel %vm2881, %v7526, %v4765
        %v7559 = vsel %vm2881, %v7527, %v4767
        %v7560 = vsel %vm2881, %v7528, %v4771
        %v7561 = vsel %vm2881, %v7529, %v4773
        %v7562 = vsel %vm2881, %v7530, %v4777
        %v7563 = vsel %vm2881, %v7531, %v4779
        %v7564 = vsel %vm2881, %v7532, %v4783
        %v7565 = vsel %vm2881, %v7533, %v4785
        %v7566 = vsel %vm2881, %v7534, %v4789
        %v7567 = vsel %vm2881, %v7535, %v4791
        %v7568 = vsel %vm2881, %v7536, %v4795
        %v7569 = vsel %vm2881, %v7537, %v4797
        %v7570 = vsel %vm2881, %v7538, %v6973
        %v7571 = vsel %vm2881, %v7539, %v6975
        %v7572 = vsel %vm2881, %v7540, %v6977
        %v7573 = vsel %vm2881, %v7541, %v6979
        %v7574 = vsel %vm2881, %v7542, %v6981
        %v7575 = vsel %vm2881, %v7543, %v6983
        %v7576 = vsel %vm2881, %v7544, %v6985
        %v7577 = vsel %vm2881, %v7545, %v6987
        %v7578 = vsel %vm2881, %v7546, %v6989
        %v7579 = vsel %vm2881, %v7547, %v6991
        %v7580 = vsel %vm2881, %v7548, %v6993
        %v7581 = vsel %vm2881, %v7549, %v6995
        %v7582 = vsel %vm2930, %v7550, %v7107
        %v7583 = vsel %vm2930, %v7551, %v7109
        %v7584 = vsel %vm2930, %v7552, %v7111
        %v7585 = vsel %vm2930, %v7553, %v7113
        %v7586 = vsel %vm2930, %v7554, %v7115
        %v7587 = vsel %vm2930, %v7555, %v7117
        %v7588 = vsel %vm2930, %v7556, %v7119
        %v7589 = vsel %vm2930, %v7557, %v7121
        %v7590 = vsel %vm2930, %v7558, %v7123
        %v7591 = vsel %vm2930, %v7559, %v7125
        %v7592 = vsel %vm2930, %v7560, %v7127
        %v7593 = vsel %vm2930, %v7561, %v7129
        %v7594 = vsel %vm2930, %v7562, %v7131
        %v7595 = vsel %vm2930, %v7563, %v7133
        %v7596 = vsel %vm2930, %v7564, %v7135
        %v7597 = vsel %vm2930, %v7565, %v7137
        %v7598 = vsel %vm2930, %v7566, %v7139
        %v7599 = vsel %vm2930, %v7567, %v7141
        %v7600 = vsel %vm2930, %v7568, %v7143
        %v7601 = vsel %vm2930, %v7569, %v7145
        %v7602 = vsel %vm2930, %v7570, %v7147
        %v7603 = vsel %vm2930, %v7571, %v7149
        %v7604 = vsel %vm2930, %v7572, %v7151
        %v7605 = vsel %vm2930, %v7573, %v7153
        %v7606 = vsel %vm2930, %v7574, %v7155
        %v7607 = vsel %vm2930, %v7575, %v7157
        %v7608 = vsel %vm2930, %v7576, %v7159
        %v7609 = vsel %vm2930, %v7577, %v7161
        %v7610 = vsel %vm2930, %v7578, %v7163
        %v7611 = vsel %vm2930, %v7579, %v7165
        %v7612 = vsel %vm2930, %v7580, %v7167
        %v7613 = vsel %vm2930, %v7581, %v7169
        %v7614 = vsel %vm2979, %v7582, %v7295
        %v7615 = vsel %vm2979, %v7583, %v7297
        %v7616 = vsel %vm2979, %v7584, %v7299
        %v7617 = vsel %vm2979, %v7585, %v7301
        %v7618 = vsel %vm2979, %v7586, %v7303
        %v7619 = vsel %vm2979, %v7587, %v7305
        %v7620 = vsel %vm2979, %v7588, %v7307
        %v7621 = vsel %vm2979, %v7589, %v7309
        %v7622 = vsel %vm2979, %v7590, %v7311
        %v7623 = vsel %vm2979, %v7591, %v7313
        %v7624 = vsel %vm2979, %v7592, %v7315
        %v7625 = vsel %vm2979, %v7593, %v7317
        %v7626 = vsel %vm2979, %v7594, %v7319
        %v7627 = vsel %vm2979, %v7595, %v7321
        %v7628 = vsel %vm2979, %v7596, %v7323
        %v7629 = vsel %vm2979, %v7597, %v7325
        %v7630 = vsel %vm2979, %v7598, %v7327
        %v7631 = vsel %vm2979, %v7599, %v7329
        %v7632 = vsel %vm2979, %v7600, %v7331
        %v7633 = vsel %vm2979, %v7601, %v7333
        %v7634 = vsel %vm2979, %v7602, %v7335
        %v7635 = vsel %vm2979, %v7603, %v7337
        %v7636 = vsel %vm2979, %v7604, %v7339
        %v7637 = vsel %vm2979, %v7605, %v7341
        %v7638 = vsel %vm2979, %v7606, %v7343
        %v7639 = vsel %vm2979, %v7607, %v7345
        %v7640 = vsel %vm2979, %v7608, %v7347
        %v7641 = vsel %vm2979, %v7609, %v7349
        %v7642 = vsel %vm2979, %v7610, %v7351
        %v7643 = vsel %vm2979, %v7611, %v7353
        %v7644 = vsel %vm2979, %v7612, %v7355
        %v7645 = vsel %vm2979, %v7613, %v7357
        %s7646 = scalar_lea.vmem %s3, 80
        %v7647 = vld [vmem:[%s7646] sm:$0xff]
        %v7648 = vld [vmem:[%s7646 + $0x8] sm:$0xff]
        %v7649 = vld [vmem:[%s7646 + $0x10] sm:$0xff]
        %v7650 = vld [vmem:[%s7646 + $0x18] sm:$0xff]
        %v7651 = vld [vmem:[%s7646 + $0x20] sm:$0xf]
        %s7652 = scalar_lea.vmem %s4, 2
        %v7653 = vld [vmem:[%s7652] sm:$0x1]
        %v7655 = vlaneseq
        %v7656 = vshrl.u32 %v7655, 7
        %v7657 = vsub.s32 0, %v7656
        %v7658 = vrot.slane %v7653, %v7657
        %v7661 = vsel %vm3168, %v7614, 0
        %v7664 = vsel %vm3168, %v7615, 0
        %v7667 = vsel %vm3168, %v7616, 0
        %v7670 = vsel %vm3168, %v7617, 0
        %v7673 = vsel %vm3168, %v7618, 0
        %v7676 = vsel %vm3168, %v7619, 0
        %v7679 = vsel %vm3168, %v7620, 0
        %v7682 = vsel %vm3168, %v7621, 0
        %v7685 = vsel %vm3168, %v7622, 0
        %v7688 = vsel %vm3168, %v7623, 0
        %v7691 = vsel %vm3168, %v7624, 0
        %v7694 = vsel %vm3168, %v7625, 0
        %v7697 = vsel %vm3168, %v7626, 0
        %v7700 = vsel %vm3168, %v7627, 0
        %v7703 = vsel %vm3168, %v7628, 0
        %v7706 = vsel %vm3168, %v7629, 0
        %v7709 = vsel %vm3168, %v7630, 0
        %v7712 = vsel %vm3168, %v7631, 0
        %v7715 = vsel %vm3168, %v7632, 0
        %v7718 = vsel %vm3168, %v7633, 0
        %v7721 = vsel %vm3168, %v7634, 0
        %v7724 = vsel %vm3168, %v7635, 0
        %v7727 = vsel %vm3168, %v7636, 0
        %v7730 = vsel %vm3168, %v7637, 0
        %v7733 = vsel %vm3168, %v7638, 0
        %v7736 = vsel %vm3168, %v7639, 0
        %v7739 = vsel %vm3168, %v7640, 0
        %v7742 = vsel %vm3168, %v7641, 0
        %v7745 = vsel %vm3168, %v7642, 0
        %v7748 = vsel %vm3168, %v7643, 0
        %v7751 = vsel %vm3168, %v7644, 0
        %v7754 = vsel %vm3168, %v7645, 0
        %v7757 = vsel %vm925, %v7651, 0
        %7759 = vmatprep.subr.mxu0 0.0
        %7760 = vmatpush1.msra.mxu0 %v7647
        %7761 = vmatprep.subr.mxu0 0.0
        %7762 = vmatpush1.msra.mxu0 %v7648
        %7763 = vmatprep.subr.mxu0 0.0
        %7764 = vmatpush1.msra.mxu0 %v7649
        %7765 = vmatprep.subr.mxu0 0.0
        %7766 = vmatpush1.msra.mxu0 %v7650
        %7767 = vmatprep.subr.mxu0 0.0
        %7768 = vmatpush1.msra.mxu0 %v7757
        %7769 = vmatprep.subr.mxu0 0.0
        %7770 = vmatpush1.msra.mxu0 0.0
        %7771 = vmatprep.subr.mxu0 0.0
        %7772 = vmatpush1.msra.mxu0 0.0
        %7773 = vmatprep.subr.mxu0 0.0
        %7774 = vmatpush1.msra.mxu0 0.0
        %7775 = vmatprep.subr.mxu0 0.0
        %7776 = vmatpush1.msra.mxu0 0.0
        %7777 = vmatprep.subr.mxu0 0.0
        %7778 = vmatpush1.msra.mxu0 0.0
        %7779 = vmatprep.subr.mxu0 0.0
        %7780 = vmatpush1.msra.mxu0 0.0
        %7781 = vmatprep.subr.mxu0 0.0
        %7782 = vmatpush1.msra.mxu0 0.0
        %7783 = vmatprep.subr.mxu0 0.0
        %7784 = vmatpush1.msra.mxu0 0.0
        %7785 = vmatprep.subr.mxu0 0.0
        %7786 = vmatpush1.msra.mxu0 0.0
        %7787 = vmatprep.subr.mxu0 0.0
        %7788 = vmatpush1.msra.mxu0 0.0
        %7789 = vmatprep.subr.mxu0 0.0
        %7790 = vmatpush1.msra.mxu0 0.0
        %7791 = vmatprep.subr.mxu0 0.0
        %7792 = vmatpush1.msra.mxu0 0.0
        %7793 = vmatprep.subr.mxu0 0.0
        %7794 = vmatpush1.msra.mxu0 0.0
        %7795 = vmatprep.subr.mxu0 0.0
        %7796 = vmatpush1.msra.mxu0 0.0
        %7797 = vmatprep.subr.mxu0 0.0
        %7798 = vmatpush1.msra.mxu0 0.0
        %7799 = vmatprep.subr.mxu0 0.0
        %7800 = vmatpush1.msra.mxu0 0.0
        %7801 = vmatprep.subr.mxu0 0.0
        %7802 = vmatpush1.msra.mxu0 0.0
        %7803 = vmatprep.subr.mxu0 0.0
        %7804 = vmatpush1.msra.mxu0 0.0
        %7805 = vmatprep.subr.mxu0 0.0
        %7806 = vmatpush1.msra.mxu0 0.0
        %7807 = vmatprep.subr.mxu0 0.0
        %7808 = vmatpush1.msra.mxu0 0.0
        %7809 = vmatprep.subr.mxu0 0.0
        %7810 = vmatpush1.msra.mxu0 0.0
        %7811 = vmatprep.subr.mxu0 0.0
        %7812 = vmatpush1.msra.mxu0 0.0
        %7813 = vmatprep.subr.mxu0 0.0
        %7814 = vmatpush1.msra.mxu0 0.0
        %7815 = vmatprep.subr.mxu0 0.0
        %7816 = vmatpush1.msra.mxu0 0.0
        %7817 = vmatprep.subr.mxu0 0.0
        %7818 = vmatpush1.msra.mxu0 0.0
        %7819 = vmatprep.subr.mxu0 0.0
        %7820 = vmatpush1.msra.mxu0 0.0
        %7821 = vmatprep.subr.mxu0 0.0
        %7822 = vmatpush1.msra.mxu0 0.0
        %7823 = vmatprep.mubr.f32.mxu0 0.0
        %7824 = vmatmul.mubr.f32.gmra.mrb[0].mxu0 %v7661
        %v7825 = vpop.f32.mrb[0].mxu0
        %v7826 = vadd.f32 %v7658, %v7825
        %v7827 = vpop.f32.mrb[0].mxu0
        %7828 = vmatprep.mubr.f32.mxu0 0.0
        %7829 = vmatmul.mubr.f32.gmra.mrb[0].mxu0 %v7664
        %v7830 = vpop.f32.mrb[0].mxu0
        %v7831 = vadd.f32 %v7658, %v7830
        %v7832 = vpop.f32.mrb[0].mxu0
        %7833 = vmatprep.mubr.f32.mxu0 0.0
        %7834 = vmatmul.mubr.f32.gmra.mrb[0].mxu0 %v7667
        %v7835 = vpop.f32.mrb[0].mxu0
        %v7836 = vadd.f32 %v7658, %v7835
        %v7837 = vpop.f32.mrb[0].mxu0
        %7838 = vmatprep.mubr.f32.mxu0 0.0
        %7839 = vmatmul.mubr.f32.gmra.mrb[0].mxu0 %v7670
        %v7840 = vpop.f32.mrb[0].mxu0
        %v7841 = vadd.f32 %v7658, %v7840
        %v7842 = vpop.f32.mrb[0].mxu0
        %7843 = vmatprep.mubr.f32.mxu0 0.0
        %7844 = vmatmul.mubr.f32.gmra.mrb[0].mxu0 %v7673
        %v7845 = vpop.f32.mrb[0].mxu0
        %v7846 = vadd.f32 %v7658, %v7845
        %v7847 = vpop.f32.mrb[0].mxu0
        %7848 = vmatprep.mubr.f32.mxu0 0.0
        %7849 = vmatmul.mubr.f32.gmra.mrb[0].mxu0 %v7676
        %v7850 = vpop.f32.mrb[0].mxu0
        %v7851 = vadd.f32 %v7658, %v7850
        %v7852 = vpop.f32.mrb[0].mxu0
        %7853 = vmatprep.mubr.f32.mxu0 0.0
        %7854 = vmatmul.mubr.f32.gmra.mrb[0].mxu0 %v7679
        %v7855 = vpop.f32.mrb[0].mxu0
        %v7856 = vadd.f32 %v7658, %v7855
        %v7857 = vpop.f32.mrb[0].mxu0
        %7858 = vmatprep.mubr.f32.mxu0 0.0
        %7859 = vmatmul.mubr.f32.gmra.mrb[0].mxu0 %v7682
        %v7860 = vpop.f32.mrb[0].mxu0
        %v7861 = vadd.f32 %v7658, %v7860
        %v7862 = vpop.f32.mrb[0].mxu0
        %7863 = vmatprep.mubr.f32.mxu0 0.0
        %7864 = vmatmul.mubr.f32.gmra.mrb[0].mxu0 %v7685
        %v7865 = vpop.f32.mrb[0].mxu0
        %v7866 = vadd.f32 %v7658, %v7865
        %v7867 = vpop.f32.mrb[0].mxu0
        %7868 = vmatprep.mubr.f32.mxu0 0.0
        %7869 = vmatmul.mubr.f32.gmra.mrb[0].mxu0 %v7688
        %v7870 = vpop.f32.mrb[0].mxu0
        %v7871 = vadd.f32 %v7658, %v7870
        %v7872 = vpop.f32.mrb[0].mxu0
        %7873 = vmatprep.mubr.f32.mxu0 0.0
        %7874 = vmatmul.mubr.f32.gmra.mrb[0].mxu0 %v7691
        %v7875 = vpop.f32.mrb[0].mxu0
        %v7876 = vadd.f32 %v7658, %v7875
        %v7877 = vpop.f32.mrb[0].mxu0
        %7878 = vmatprep.mubr.f32.mxu0 0.0
        %7879 = vmatmul.mubr.f32.gmra.mrb[0].mxu0 %v7694
        %v7880 = vpop.f32.mrb[0].mxu0
        %v7881 = vadd.f32 %v7658, %v7880
        %v7882 = vpop.f32.mrb[0].mxu0
        %7883 = vmatprep.mubr.f32.mxu0 0.0
        %7884 = vmatmul.mubr.f32.gmra.mrb[0].mxu0 %v7697
        %v7885 = vpop.f32.mrb[0].mxu0
        %v7886 = vadd.f32 %v7658, %v7885
        %v7887 = vpop.f32.mrb[0].mxu0
        %7888 = vmatprep.mubr.f32.mxu0 0.0
        %7889 = vmatmul.mubr.f32.gmra.mrb[0].mxu0 %v7700
        %v7890 = vpop.f32.mrb[0].mxu0
        %v7891 = vadd.f32 %v7658, %v7890
        %v7892 = vpop.f32.mrb[0].mxu0
        %7893 = vmatprep.mubr.f32.mxu0 0.0
        %7894 = vmatmul.mubr.f32.gmra.mrb[0].mxu0 %v7703
        %v7895 = vpop.f32.mrb[0].mxu0
        %v7896 = vadd.f32 %v7658, %v7895
        %v7897 = vpop.f32.mrb[0].mxu0
        %7898 = vmatprep.mubr.f32.mxu0 0.0
        %7899 = vmatmul.mubr.f32.gmra.mrb[0].mxu0 %v7706
        %v7900 = vpop.f32.mrb[0].mxu0
        %v7901 = vadd.f32 %v7658, %v7900
        %v7902 = vpop.f32.mrb[0].mxu0
        %7903 = vmatprep.mubr.f32.mxu0 0.0
        %7904 = vmatmul.mubr.f32.gmra.mrb[0].mxu0 %v7709
        %v7905 = vpop.f32.mrb[0].mxu0
        %v7906 = vadd.f32 %v7658, %v7905
        %v7907 = vpop.f32.mrb[0].mxu0
        %7908 = vmatprep.mubr.f32.mxu0 0.0
        %7909 = vmatmul.mubr.f32.gmra.mrb[0].mxu0 %v7712
        %v7910 = vpop.f32.mrb[0].mxu0
        %v7911 = vadd.f32 %v7658, %v7910
        %v7912 = vpop.f32.mrb[0].mxu0
        %7913 = vmatprep.mubr.f32.mxu0 0.0
        %7914 = vmatmul.mubr.f32.gmra.mrb[0].mxu0 %v7715
        %v7915 = vpop.f32.mrb[0].mxu0
        %v7916 = vadd.f32 %v7658, %v7915
        %v7917 = vpop.f32.mrb[0].mxu0
        %7918 = vmatprep.mubr.f32.mxu0 0.0
        %7919 = vmatmul.mubr.f32.gmra.mrb[0].mxu0 %v7718
        %v7920 = vpop.f32.mrb[0].mxu0
        %v7921 = vadd.f32 %v7658, %v7920
        %v7922 = vpop.f32.mrb[0].mxu0
        %7923 = vmatprep.mubr.f32.mxu0 0.0
        %7924 = vmatmul.mubr.f32.gmra.mrb[0].mxu0 %v7721
        %v7925 = vpop.f32.mrb[0].mxu0
        %v7926 = vadd.f32 %v7658, %v7925
        %v7927 = vpop.f32.mrb[0].mxu0
        %7928 = vmatprep.mubr.f32.mxu0 0.0
        %7929 = vmatmul.mubr.f32.gmra.mrb[0].mxu0 %v7724
        %v7930 = vpop.f32.mrb[0].mxu0
        %v7931 = vadd.f32 %v7658, %v7930
        %v7932 = vpop.f32.mrb[0].mxu0
        %7933 = vmatprep.mubr.f32.mxu0 0.0
        %7934 = vmatmul.mubr.f32.gmra.mrb[0].mxu0 %v7727
        %v7935 = vpop.f32.mrb[0].mxu0
        %v7936 = vadd.f32 %v7658, %v7935
        %v7937 = vpop.f32.mrb[0].mxu0
        %7938 = vmatprep.mubr.f32.mxu0 0.0
        %7939 = vmatmul.mubr.f32.gmra.mrb[0].mxu0 %v7730
        %v7940 = vpop.f32.mrb[0].mxu0
        %v7941 = vadd.f32 %v7658, %v7940
        %v7942 = vpop.f32.mrb[0].mxu0
        %7943 = vmatprep.mubr.f32.mxu0 0.0
        %7944 = vmatmul.mubr.f32.gmra.mrb[0].mxu0 %v7733
        %v7945 = vpop.f32.mrb[0].mxu0
        %v7946 = vadd.f32 %v7658, %v7945
        %v7947 = vpop.f32.mrb[0].mxu0
        %7948 = vmatprep.mubr.f32.mxu0 0.0
        %7949 = vmatmul.mubr.f32.gmra.mrb[0].mxu0 %v7736
        %v7950 = vpop.f32.mrb[0].mxu0
        %v7951 = vadd.f32 %v7658, %v7950
        %v7952 = vpop.f32.mrb[0].mxu0
        %7953 = vmatprep.mubr.f32.mxu0 0.0
        %7954 = vmatmul.mubr.f32.gmra.mrb[0].mxu0 %v7739
        %v7955 = vpop.f32.mrb[0].mxu0
        %v7956 = vadd.f32 %v7658, %v7955
        %v7957 = vpop.f32.mrb[0].mxu0
        %7958 = vmatprep.mubr.f32.mxu0 0.0
        %7959 = vmatmul.mubr.f32.gmra.mrb[0].mxu0 %v7742
        %v7960 = vpop.f32.mrb[0].mxu0
        %v7961 = vadd.f32 %v7658, %v7960
        %v7962 = vpop.f32.mrb[0].mxu0
        %7963 = vmatprep.mubr.f32.mxu0 0.0
        %7964 = vmatmul.mubr.f32.gmra.mrb[0].mxu0 %v7745
        %v7965 = vpop.f32.mrb[0].mxu0
        %v7966 = vadd.f32 %v7658, %v7965
        %v7967 = vpop.f32.mrb[0].mxu0
        %7968 = vmatprep.mubr.f32.mxu0 0.0
        %7969 = vmatmul.mubr.f32.gmra.mrb[0].mxu0 %v7748
        %v7970 = vpop.f32.mrb[0].mxu0
        %v7971 = vadd.f32 %v7658, %v7970
        %v7972 = vpop.f32.mrb[0].mxu0
        %7973 = vmatprep.mubr.f32.mxu0 0.0
        %7974 = vmatmul.mubr.f32.gmra.mrb[0].mxu0 %v7751
        %v7975 = vpop.f32.mrb[0].mxu0
        %v7976 = vadd.f32 %v7658, %v7975
        %v7977 = vpop.f32.mrb[0].mxu0
        %7978 = vmatprep.mubr.f32.mxu0 0.0
        %7979 = vmatmul.mubr.f32.gmra.mrb[0].mxu0 %v7754
        %v7980 = vpop.f32.mrb[0].mxu0
        %v7981 = vadd.f32 %v7658, %v7980
        %v7982 = vpop.f32.mrb[0].mxu0
        %7983 = vdwg.mxu0
        %v7984 = vmax.f32 %v7826, 0.0
        %v7985 = vmax.f32 %v7831, 0.0
        %v7986 = vmax.f32 %v7836, 0.0
        %v7987 = vmax.f32 %v7841, 0.0
        %v7988 = vmax.f32 %v7846, 0.0
        %v7989 = vmax.f32 %v7851, 0.0
        %v7990 = vmax.f32 %v7856, 0.0
        %v7991 = vmax.f32 %v7861, 0.0
        %v7992 = vmax.f32 %v7866, 0.0
        %v7993 = vmax.f32 %v7871, 0.0
        %v7994 = vmax.f32 %v7876, 0.0
        %v7995 = vmax.f32 %v7881, 0.0
        %v7996 = vmax.f32 %v7886, 0.0
        %v7997 = vmax.f32 %v7891, 0.0
        %v7998 = vmax.f32 %v7896, 0.0
        %v7999 = vmax.f32 %v7901, 0.0
        %v8000 = vmax.f32 %v7906, 0.0
        %v8001 = vmax.f32 %v7911, 0.0
        %v8002 = vmax.f32 %v7916, 0.0
        %v8003 = vmax.f32 %v7921, 0.0
        %v8004 = vmax.f32 %v7926, 0.0
        %v8005 = vmax.f32 %v7931, 0.0
        %v8006 = vmax.f32 %v7936, 0.0
        %v8007 = vmax.f32 %v7941, 0.0
        %v8008 = vmax.f32 %v7946, 0.0
        %v8009 = vmax.f32 %v7951, 0.0
        %v8010 = vmax.f32 %v7956, 0.0
        %v8011 = vmax.f32 %v7961, 0.0
        %v8012 = vmax.f32 %v7966, 0.0
        %v8013 = vmax.f32 %v7971, 0.0
        %v8014 = vmax.f32 %v7976, 0.0
        %v8015 = vmax.f32 %v7981, 0.0
        %s8016 = scalar_lea.vmem %s7, 384
        %v8017 = vld [vmem:[%s8016] sm:$0xff]
        %v8018 = vld [vmem:[%s8016 + $0x8] sm:$0xff]
        %v8019 = vld [vmem:[%s8016 + $0x10] sm:$0xff]
        %v8020 = vld [vmem:[%s8016 + $0x18] sm:$0xff]
        %v8021 = vld [vmem:[%s8016 + $0x20] sm:$0xff]
        %v8022 = vld [vmem:[%s8016 + $0x28] sm:$0xff]
        %v8023 = vld [vmem:[%s8016 + $0x30] sm:$0xff]
        %v8024 = vld [vmem:[%s8016 + $0x38] sm:$0xff]
        %v8025 = vld [vmem:[%s8016 + $0x40] sm:$0xff]
        %v8026 = vld [vmem:[%s8016 + $0x48] sm:$0xff]
        %v8027 = vld [vmem:[%s8016 + $0x50] sm:$0xff]
        %v8028 = vld [vmem:[%s8016 + $0x58] sm:$0xff]
        %v8029 = vld [vmem:[%s8016 + $0x60] sm:$0xff]
        %v8030 = vld [vmem:[%s8016 + $0x68] sm:$0xff]
        %v8031 = vld [vmem:[%s8016 + $0x70] sm:$0xff]
        %v8032 = vld [vmem:[%s8016 + $0x78] sm:$0xff]
        %8033 = vmatprep.subr.mxu0 0.0
        %8034 = vmatpush1.msra.mxu0 %v8017
        %8035 = vmatprep.subr.mxu0 0.0
        %8036 = vmatpush1.msra.mxu0 %v8018
        %8037 = vmatprep.subr.mxu0 0.0
        %8038 = vmatpush1.msra.mxu0 %v8019
        %8039 = vmatprep.subr.mxu0 0.0
        %8040 = vmatpush1.msra.mxu0 %v8020
        %8041 = vmatprep.subr.mxu0 0.0
        %8042 = vmatpush1.msra.mxu0 %v8021
        %8043 = vmatprep.subr.mxu0 0.0
        %8044 = vmatpush1.msra.mxu0 %v8022
        %8045 = vmatprep.subr.mxu0 0.0
        %8046 = vmatpush1.msra.mxu0 %v8023
        %8047 = vmatprep.subr.mxu0 0.0
        %8048 = vmatpush1.msra.mxu0 %v8024
        %8049 = vmatprep.subr.mxu0 0.0
        %8050 = vmatpush1.msra.mxu0 %v8025
        %8051 = vmatprep.subr.mxu0 0.0
        %8052 = vmatpush1.msra.mxu0 %v8026
        %8053 = vmatprep.subr.mxu0 0.0
        %8054 = vmatpush1.msra.mxu0 %v8027
        %8055 = vmatprep.subr.mxu0 0.0
        %8056 = vmatpush1.msra.mxu0 %v8028
        %8057 = vmatprep.subr.mxu0 0.0
        %8058 = vmatpush1.msra.mxu0 %v8029
        %8059 = vmatprep.subr.mxu0 0.0
        %8060 = vmatpush1.msra.mxu0 %v8030
        %8061 = vmatprep.subr.mxu0 0.0
        %8062 = vmatpush1.msra.mxu0 %v8031
        %8063 = vmatprep.subr.mxu0 0.0
        %8064 = vmatpush1.msra.mxu0 %v8032
        %8065 = vmatprep.subr.mxu0 0.0
        %8066 = vmatpush1.msra.mxu0 0.0
        %8067 = vmatprep.subr.mxu0 0.0
        %8068 = vmatpush1.msra.mxu0 0.0
        %8069 = vmatprep.subr.mxu0 0.0
        %8070 = vmatpush1.msra.mxu0 0.0
        %8071 = vmatprep.subr.mxu0 0.0
        %8072 = vmatpush1.msra.mxu0 0.0
        %8073 = vmatprep.subr.mxu0 0.0
        %8074 = vmatpush1.msra.mxu0 0.0
        %8075 = vmatprep.subr.mxu0 0.0
        %8076 = vmatpush1.msra.mxu0 0.0
        %8077 = vmatprep.subr.mxu0 0.0
        %8078 = vmatpush1.msra.mxu0 0.0
        %8079 = vmatprep.subr.mxu0 0.0
        %8080 = vmatpush1.msra.mxu0 0.0
        %8081 = vmatprep.subr.mxu0 0.0
        %8082 = vmatpush1.msra.mxu0 0.0
        %8083 = vmatprep.subr.mxu0 0.0
        %8084 = vmatpush1.msra.mxu0 0.0
        %8085 = vmatprep.subr.mxu0 0.0
        %8086 = vmatpush1.msra.mxu0 0.0
        %8087 = vmatprep.subr.mxu0 0.0
        %8088 = vmatpush1.msra.mxu0 0.0
        %8089 = vmatprep.subr.mxu0 0.0
        %8090 = vmatpush1.msra.mxu0 0.0
        %8091 = vmatprep.subr.mxu0 0.0
        %8092 = vmatpush1.msra.mxu0 0.0
        %8093 = vmatprep.subr.mxu0 0.0
        %8094 = vmatpush1.msra.mxu0 0.0
        %8095 = vmatprep.subr.mxu0 0.0
        %8096 = vmatpush1.msra.mxu0 0.0
        %8097 = vmatprep.mubr.f32.mxu0 0.0
        %8098 = vmatmul.mubr.f32.gmra.mrb[0].mxu0 %v7984
        %v8099 = vpop.f32.mrb[0].mxu0
        %v8100 = vadd.f32 0.0, %v8099
        %v8101 = vpop.f32.mrb[0].mxu0
        %8102 = vmatprep.mubr.f32.mxu0 0.0
        %8103 = vmatmul.mubr.f32.gmra.mrb[0].mxu0 %v7985
        %v8104 = vpop.f32.mrb[0].mxu0
        %v8105 = vadd.f32 0.0, %v8104
        %v8106 = vpop.f32.mrb[0].mxu0
        %8107 = vmatprep.mubr.f32.mxu0 0.0
        %8108 = vmatmul.mubr.f32.gmra.mrb[0].mxu0 %v7986
        %v8109 = vpop.f32.mrb[0].mxu0
        %v8110 = vadd.f32 0.0, %v8109
        %v8111 = vpop.f32.mrb[0].mxu0
        %8112 = vmatprep.mubr.f32.mxu0 0.0
        %8113 = vmatmul.mubr.f32.gmra.mrb[0].mxu0 %v7987
        %v8114 = vpop.f32.mrb[0].mxu0
        %v8115 = vadd.f32 0.0, %v8114
        %v8116 = vpop.f32.mrb[0].mxu0
        %8117 = vmatprep.mubr.f32.mxu0 0.0
        %8118 = vmatmul.mubr.f32.gmra.mrb[0].mxu0 %v7988
        %v8119 = vpop.f32.mrb[0].mxu0
        %v8120 = vadd.f32 0.0, %v8119
        %v8121 = vpop.f32.mrb[0].mxu0
        %8122 = vmatprep.mubr.f32.mxu0 0.0
        %8123 = vmatmul.mubr.f32.gmra.mrb[0].mxu0 %v7989
        %v8124 = vpop.f32.mrb[0].mxu0
        %v8125 = vadd.f32 0.0, %v8124
        %v8126 = vpop.f32.mrb[0].mxu0
        %8127 = vmatprep.mubr.f32.mxu0 0.0
        %8128 = vmatmul.mubr.f32.gmra.mrb[0].mxu0 %v7990
        %v8129 = vpop.f32.mrb[0].mxu0
        %v8130 = vadd.f32 0.0, %v8129
        %v8131 = vpop.f32.mrb[0].mxu0
        %8132 = vmatprep.mubr.f32.mxu0 0.0
        %8133 = vmatmul.mubr.f32.gmra.mrb[0].mxu0 %v7991
        %v8134 = vpop.f32.mrb[0].mxu0
        %v8135 = vadd.f32 0.0, %v8134
        %v8136 = vpop.f32.mrb[0].mxu0
        %8137 = vmatprep.mubr.f32.mxu0 0.0
        %8138 = vmatmul.mubr.f32.gmra.mrb[0].mxu0 %v7992
        %v8139 = vpop.f32.mrb[0].mxu0
        %v8140 = vadd.f32 0.0, %v8139
        %v8141 = vpop.f32.mrb[0].mxu0
        %8142 = vmatprep.mubr.f32.mxu0 0.0
        %8143 = vmatmul.mubr.f32.gmra.mrb[0].mxu0 %v7993
        %v8144 = vpop.f32.mrb[0].mxu0
        %v8145 = vadd.f32 0.0, %v8144
        %v8146 = vpop.f32.mrb[0].mxu0
        %8147 = vmatprep.mubr.f32.mxu0 0.0
        %8148 = vmatmul.mubr.f32.gmra.mrb[0].mxu0 %v7994
        %v8149 = vpop.f32.mrb[0].mxu0
        %v8150 = vadd.f32 0.0, %v8149
        %v8151 = vpop.f32.mrb[0].mxu0
        %8152 = vmatprep.mubr.f32.mxu0 0.0
        %8153 = vmatmul.mubr.f32.gmra.mrb[0].mxu0 %v7995
        %v8154 = vpop.f32.mrb[0].mxu0
        %v8155 = vadd.f32 0.0, %v8154
        %v8156 = vpop.f32.mrb[0].mxu0
        %8157 = vmatprep.mubr.f32.mxu0 0.0
        %8158 = vmatmul.mubr.f32.gmra.mrb[0].mxu0 %v7996
        %v8159 = vpop.f32.mrb[0].mxu0
        %v8160 = vadd.f32 0.0, %v8159
        %v8161 = vpop.f32.mrb[0].mxu0
        %8162 = vmatprep.mubr.f32.mxu0 0.0
        %8163 = vmatmul.mubr.f32.gmra.mrb[0].mxu0 %v7997
        %v8164 = vpop.f32.mrb[0].mxu0
        %v8165 = vadd.f32 0.0, %v8164
        %v8166 = vpop.f32.mrb[0].mxu0
        %8167 = vmatprep.mubr.f32.mxu0 0.0
        %8168 = vmatmul.mubr.f32.gmra.mrb[0].mxu0 %v7998
        %v8169 = vpop.f32.mrb[0].mxu0
        %v8170 = vadd.f32 0.0, %v8169
        %v8171 = vpop.f32.mrb[0].mxu0
        %8172 = vmatprep.mubr.f32.mxu0 0.0
        %8173 = vmatmul.mubr.f32.gmra.mrb[0].mxu0 %v7999
        %v8174 = vpop.f32.mrb[0].mxu0
        %v8175 = vadd.f32 0.0, %v8174
        %v8176 = vpop.f32.mrb[0].mxu0
        %8177 = vmatprep.mubr.f32.mxu0 0.0
        %8178 = vmatmul.mubr.f32.gmra.mrb[0].mxu0 %v8000
        %v8179 = vpop.f32.mrb[0].mxu0
        %v8180 = vadd.f32 0.0, %v8179
        %v8181 = vpop.f32.mrb[0].mxu0
        %8182 = vmatprep.mubr.f32.mxu0 0.0
        %8183 = vmatmul.mubr.f32.gmra.mrb[0].mxu0 %v8001
        %v8184 = vpop.f32.mrb[0].mxu0
        %v8185 = vadd.f32 0.0, %v8184
        %v8186 = vpop.f32.mrb[0].mxu0
        %8187 = vmatprep.mubr.f32.mxu0 0.0
        %8188 = vmatmul.mubr.f32.gmra.mrb[0].mxu0 %v8002
        %v8189 = vpop.f32.mrb[0].mxu0
        %v8190 = vadd.f32 0.0, %v8189
        %v8191 = vpop.f32.mrb[0].mxu0
        %8192 = vmatprep.mubr.f32.mxu0 0.0
        %8193 = vmatmul.mubr.f32.gmra.mrb[0].mxu0 %v8003
        %v8194 = vpop.f32.mrb[0].mxu0
        %v8195 = vadd.f32 0.0, %v8194
        %v8196 = vpop.f32.mrb[0].mxu0
        %8197 = vmatprep.mubr.f32.mxu0 0.0
        %8198 = vmatmul.mubr.f32.gmra.mrb[0].mxu0 %v8004
        %v8199 = vpop.f32.mrb[0].mxu0
        %v8200 = vadd.f32 0.0, %v8199
        %v8201 = vpop.f32.mrb[0].mxu0
        %8202 = vmatprep.mubr.f32.mxu0 0.0
        %8203 = vmatmul.mubr.f32.gmra.mrb[0].mxu0 %v8005
        %v8204 = vpop.f32.mrb[0].mxu0
        %v8205 = vadd.f32 0.0, %v8204
        %v8206 = vpop.f32.mrb[0].mxu0
        %8207 = vmatprep.mubr.f32.mxu0 0.0
        %8208 = vmatmul.mubr.f32.gmra.mrb[0].mxu0 %v8006
        %v8209 = vpop.f32.mrb[0].mxu0
        %v8210 = vadd.f32 0.0, %v8209
        %v8211 = vpop.f32.mrb[0].mxu0
        %8212 = vmatprep.mubr.f32.mxu0 0.0
        %8213 = vmatmul.mubr.f32.gmra.mrb[0].mxu0 %v8007
        %v8214 = vpop.f32.mrb[0].mxu0
        %v8215 = vadd.f32 0.0, %v8214
        %v8216 = vpop.f32.mrb[0].mxu0
        %8217 = vmatprep.mubr.f32.mxu0 0.0
        %8218 = vmatmul.mubr.f32.gmra.mrb[0].mxu0 %v8008
        %v8219 = vpop.f32.mrb[0].mxu0
        %v8220 = vadd.f32 0.0, %v8219
        %v8221 = vpop.f32.mrb[0].mxu0
        %8222 = vmatprep.mubr.f32.mxu0 0.0
        %8223 = vmatmul.mubr.f32.gmra.mrb[0].mxu0 %v8009
        %v8224 = vpop.f32.mrb[0].mxu0
        %v8225 = vadd.f32 0.0, %v8224
        %v8226 = vpop.f32.mrb[0].mxu0
        %8227 = vmatprep.mubr.f32.mxu0 0.0
        %8228 = vmatmul.mubr.f32.gmra.mrb[0].mxu0 %v8010
        %v8229 = vpop.f32.mrb[0].mxu0
        %v8230 = vadd.f32 0.0, %v8229
        %v8231 = vpop.f32.mrb[0].mxu0
        %8232 = vmatprep.mubr.f32.mxu0 0.0
        %8233 = vmatmul.mubr.f32.gmra.mrb[0].mxu0 %v8011
        %v8234 = vpop.f32.mrb[0].mxu0
        %v8235 = vadd.f32 0.0, %v8234
        %v8236 = vpop.f32.mrb[0].mxu0
        %8237 = vmatprep.mubr.f32.mxu0 0.0
        %8238 = vmatmul.mubr.f32.gmra.mrb[0].mxu0 %v8012
        %v8239 = vpop.f32.mrb[0].mxu0
        %v8240 = vadd.f32 0.0, %v8239
        %v8241 = vpop.f32.mrb[0].mxu0
        %8242 = vmatprep.mubr.f32.mxu0 0.0
        %8243 = vmatmul.mubr.f32.gmra.mrb[0].mxu0 %v8013
        %v8244 = vpop.f32.mrb[0].mxu0
        %v8245 = vadd.f32 0.0, %v8244
        %v8246 = vpop.f32.mrb[0].mxu0
        %8247 = vmatprep.mubr.f32.mxu0 0.0
        %8248 = vmatmul.mubr.f32.gmra.mrb[0].mxu0 %v8014
        %v8249 = vpop.f32.mrb[0].mxu0
        %v8250 = vadd.f32 0.0, %v8249
        %v8251 = vpop.f32.mrb[0].mxu0
        %8252 = vmatprep.mubr.f32.mxu0 0.0
        %8253 = vmatmul.mubr.f32.gmra.mrb[0].mxu0 %v8015
        %v8254 = vpop.f32.mrb[0].mxu0
        %v8255 = vadd.f32 0.0, %v8254
        %v8256 = vpop.f32.mrb[0].mxu0
        %8257 = vdwg.mxu0
        %v8258 = vadd.f32 %v6274, %v8100
        %v8259 = vadd.f32 %v6275, %v8105
        %v8260 = vadd.f32 %v6276, %v8110
        %v8261 = vadd.f32 %v6277, %v8115
        %v8262 = vadd.f32 %v6278, %v8120
        %v8263 = vadd.f32 %v6279, %v8125
        %v8264 = vadd.f32 %v6280, %v8130
        %v8265 = vadd.f32 %v6281, %v8135
        %v8266 = vadd.f32 %v6282, %v8140
        %v8267 = vadd.f32 %v6283, %v8145
        %v8268 = vadd.f32 %v6284, %v8150
        %v8269 = vadd.f32 %v6285, %v8155
        %v8270 = vadd.f32 %v6286, %v8160
        %v8271 = vadd.f32 %v6287, %v8165
        %v8272 = vadd.f32 %v6288, %v8170
        %v8273 = vadd.f32 %v6289, %v8175
        %v8274 = vadd.f32 %v6290, %v8180
        %v8275 = vadd.f32 %v6291, %v8185
        %v8276 = vadd.f32 %v6292, %v8190
        %v8277 = vadd.f32 %v6293, %v8195
        %v8278 = vadd.f32 %v6294, %v8200
        %v8279 = vadd.f32 %v6295, %v8205
        %v8280 = vadd.f32 %v6296, %v8210
        %v8281 = vadd.f32 %v6297, %v8215
        %v8282 = vadd.f32 %v6298, %v8220
        %v8283 = vadd.f32 %v6299, %v8225
        %v8284 = vadd.f32 %v6300, %v8230
        %v8285 = vadd.f32 %v6301, %v8235
        %v8286 = vadd.f32 %v6302, %v8240
        %v8287 = vadd.f32 %v6303, %v8245
        %v8288 = vadd.f32 %v6304, %v8250
        %v8289 = vadd.f32 %v6305, %v8255
        %v8290 = vsel %vm860, %v742, 0.0
        %v8291 = vsel %vm860, %v744, 0.0
        %v8292 = vadd.f32 %v8290, %v8291
        %v8293 = vsel %vm860, %v747, 0.0
        %v8294 = vadd.f32 %v8292, %v8293
        %v8295 = vsel %vm860, %v749, 0.0
        %v8296 = vadd.f32 %v8294, %v8295
        %v8297 = vsel %vm860, %v752, 0.0
        %v8298 = vadd.f32 %v8296, %v8297
        %v8299 = vsel %vm860, %v754, 0.0
        %v8300 = vadd.f32 %v8298, %v8299
        %v8301 = vsel %vm860, %v757, 0.0
        %v8302 = vadd.f32 %v8300, %v8301
        %v8303 = vsel %vm860, %v759, 0.0
        %v8304 = vadd.f32 %v8302, %v8303
        %v8305 = vsel %vm860, %v762, 0.0
        %v8306 = vadd.f32 %v8304, %v8305
        %v8307 = vsel %vm860, %v764, 0.0
        %v8308 = vadd.f32 %v8306, %v8307
        %v8309 = vsel %vm860, %v767, 0.0
        %v8310 = vadd.f32 %v8308, %v8309
        %v8311 = vsel %vm860, %v769, 0.0
        %v8312 = vadd.f32 %v8310, %v8311
        %v8313 = vsel %vm860, %v772, 0.0
        %v8314 = vadd.f32 %v8312, %v8313
        %v8315 = vsel %vm860, %v774, 0.0
        %v8316 = vadd.f32 %v8314, %v8315
        %v8317 = vsel %vm860, %v777, 0.0
        %v8318 = vadd.f32 %v8316, %v8317
        %v8319 = vsel %vm860, %v779, 0.0
        %v8320 = vadd.f32 %v8318, %v8319
        %v8321 = vsel %vm860, %v782, 0.0
        %v8322 = vadd.f32 %v8320, %v8321
        %v8323 = vsel %vm860, %v784, 0.0
        %v8324 = vadd.f32 %v8322, %v8323
        %v8325 = vsel %vm860, %v787, 0.0
        %v8326 = vadd.f32 %v8324, %v8325
        %v8327 = vsel %vm860, %v789, 0.0
        %v8328 = vadd.f32 %v8326, %v8327
        %v8329 = vsel %vm860, %v792, 0.0
        %v8330 = vadd.f32 %v8328, %v8329
        %v8331 = vsel %vm860, %v794, 0.0
        %v8332 = vadd.f32 %v8330, %v8331
        %v8333 = vsel %vm860, %v797, 0.0
        %v8334 = vadd.f32 %v8332, %v8333
        %v8335 = vsel %vm860, %v799, 0.0
        %v8336 = vadd.f32 %v8334, %v8335
        %v8337 = vsel %vm860, %v802, 0.0
        %v8338 = vadd.f32 %v8336, %v8337
        %v8339 = vsel %vm860, %v804, 0.0
        %v8340 = vadd.f32 %v8338, %v8339
        %v8341 = vsel %vm860, %v807, 0.0
        %v8342 = vadd.f32 %v8340, %v8341
        %v8343 = vsel %vm860, %v809, 0.0
        %v8344 = vadd.f32 %v8342, %v8343
        %v8345 = vsel %vm860, %v812, 0.0
        %v8346 = vadd.f32 %v8344, %v8345
        %v8347 = vsel %vm860, %v814, 0.0
        %v8348 = vadd.f32 %v8346, %v8347
        %v8349 = vsel %vm860, %v817, 0.0
        %v8350 = vadd.f32 %v8348, %v8349
        %v8351 = vsel %vm860, %v819, 0.0
        %v8352 = vadd.f32 %v8350, %v8351
        %v8353 = vrot.slane %v8352, 4
        %v8354 = vadd.f32 %v8352, %v8353
        %v8355 = vrot.slane %v8354, 2
        %v8356 = vadd.f32 %v8354, %v8355
        %v8357 = vrot.slane %v8356, 1
        %v8358 = vadd.f32 %v8356, %v8357
        %v8359 = vmul.f32 %v8358, 0.00390625
        %v8360 = vld [vmem:[%s5] sm:$0xf]
        %v8361 = vld [vmem:[%s6] sm:$0x1]
        %v8363 = vsel %vm860, %v8359, 0
        %v8366 = vsel %vm925, %v8360, 0
        %8368 = vmatprep.subr.mxu0 0.0
        %8369 = vmatpush1.msra.mxu0 %v8366
        %8370 = vmatprep.subr.mxu0 0.0
        %8371 = vmatpush1.msra.mxu0 0.0
        %8372 = vmatprep.subr.mxu0 0.0
        %8373 = vmatpush1.msra.mxu0 0.0
        %8374 = vmatprep.subr.mxu0 0.0
        %8375 = vmatpush1.msra.mxu0 0.0
        %8376 = vmatprep.subr.mxu0 0.0
        %8377 = vmatpush1.msra.mxu0 0.0
        %8378 = vmatprep.subr.mxu0 0.0
        %8379 = vmatpush1.msra.mxu0 0.0
        %8380 = vmatprep.subr.mxu0 0.0
        %8381 = vmatpush1.msra.mxu0 0.0
        %8382 = vmatprep.subr.mxu0 0.0
        %8383 = vmatpush1.msra.mxu0 0.0
        %8384 = vmatprep.subr.mxu0 0.0
        %8385 = vmatpush1.msra.mxu0 0.0
        %8386 = vmatprep.subr.mxu0 0.0
        %8387 = vmatpush1.msra.mxu0 0.0
        %8388 = vmatprep.subr.mxu0 0.0
        %8389 = vmatpush1.msra.mxu0 0.0
        %8390 = vmatprep.subr.mxu0 0.0
        %8391 = vmatpush1.msra.mxu0 0.0
        %8392 = vmatprep.subr.mxu0 0.0
        %8393 = vmatpush1.msra.mxu0 0.0
        %8394 = vmatprep.subr.mxu0 0.0
        %8395 = vmatpush1.msra.mxu0 0.0
        %8396 = vmatprep.subr.mxu0 0.0
        %8397 = vmatpush1.msra.mxu0 0.0
        %8398 = vmatprep.subr.mxu0 0.0
        %8399 = vmatpush1.msra.mxu0 0.0
        %8400 = vmatprep.subr.mxu0 0.0
        %8401 = vmatpush1.msra.mxu0 0.0
        %8402 = vmatprep.subr.mxu0 0.0
        %8403 = vmatpush1.msra.mxu0 0.0
        %8404 = vmatprep.subr.mxu0 0.0
        %8405 = vmatpush1.msra.mxu0 0.0
        %8406 = vmatprep.subr.mxu0 0.0
        %8407 = vmatpush1.msra.mxu0 0.0
        %8408 = vmatprep.subr.mxu0 0.0
        %8409 = vmatpush1.msra.mxu0 0.0
        %8410 = vmatprep.subr.mxu0 0.0
        %8411 = vmatpush1.msra.mxu0 0.0
        %8412 = vmatprep.subr.mxu0 0.0
        %8413 = vmatpush1.msra.mxu0 0.0
        %8414 = vmatprep.subr.mxu0 0.0
        %8415 = vmatpush1.msra.mxu0 0.0
        %8416 = vmatprep.subr.mxu0 0.0
        %8417 = vmatpush1.msra.mxu0 0.0
        %8418 = vmatprep.subr.mxu0 0.0
        %8419 = vmatpush1.msra.mxu0 0.0
        %8420 = vmatprep.subr.mxu0 0.0
        %8421 = vmatpush1.msra.mxu0 0.0
        %8422 = vmatprep.subr.mxu0 0.0
        %8423 = vmatpush1.msra.mxu0 0.0
        %8424 = vmatprep.subr.mxu0 0.0
        %8425 = vmatpush1.msra.mxu0 0.0
        %8426 = vmatprep.subr.mxu0 0.0
        %8427 = vmatpush1.msra.mxu0 0.0
        %8428 = vmatprep.subr.mxu0 0.0
        %8429 = vmatpush1.msra.mxu0 0.0
        %8430 = vmatprep.subr.mxu0 0.0
        %8431 = vmatpush1.msra.mxu0 0.0
        %8432 = vmatprep.mubr.f32.mxu0 0.0
        %8433 = vmatmul.mubr.f32.gmra.mrb[0].mxu0 %v8363
        %v8434 = vpop.f32.mrb[0].mxu0
        %v8435 = vadd.f32 %v8361, %v8434
        %v8436 = vpop.f32.mrb[0].mxu0
        %8437 = vdwg.mxu0
        %v8438 = vmax.f32 %v8435, 0.0
        %s8439 = scalar_lea.vmem %s7, 512
        %v8440 = vld [vmem:[%s8439] sm:$0xff]
        %v8441 = vld [vmem:[%s8439 + $0x8] sm:$0xff]
        %v8442 = vld [vmem:[%s8439 + $0x10] sm:$0xff]
        %v8443 = vld [vmem:[%s8439 + $0x18] sm:$0xff]
        %v8444 = vld [vmem:[%s8439 + $0x20] sm:$0xff]
        %v8445 = vld [vmem:[%s8439 + $0x28] sm:$0xff]
        %v8446 = vld [vmem:[%s8439 + $0x30] sm:$0xff]
        %v8447 = vld [vmem:[%s8439 + $0x38] sm:$0xff]
        %v8448 = vld [vmem:[%s8439 + $0x40] sm:$0xff]
        %v8449 = vld [vmem:[%s8439 + $0x48] sm:$0xff]
        %v8450 = vld [vmem:[%s8439 + $0x50] sm:$0xff]
        %v8451 = vld [vmem:[%s8439 + $0x58] sm:$0xff]
        %v8452 = vld [vmem:[%s8439 + $0x60] sm:$0xff]
        %v8453 = vld [vmem:[%s8439 + $0x68] sm:$0xff]
        %v8454 = vld [vmem:[%s8439 + $0x70] sm:$0xff]
        %v8455 = vld [vmem:[%s8439 + $0x78] sm:$0xff]
        %8456 = vmatprep.subr.mxu0 0.0
        %8457 = vmatpush1.msra.mxu0 %v8440
        %8458 = vmatprep.subr.mxu0 0.0
        %8459 = vmatpush1.msra.mxu0 %v8441
        %8460 = vmatprep.subr.mxu0 0.0
        %8461 = vmatpush1.msra.mxu0 %v8442
        %8462 = vmatprep.subr.mxu0 0.0
        %8463 = vmatpush1.msra.mxu0 %v8443
        %8464 = vmatprep.subr.mxu0 0.0
        %8465 = vmatpush1.msra.mxu0 %v8444
        %8466 = vmatprep.subr.mxu0 0.0
        %8467 = vmatpush1.msra.mxu0 %v8445
        %8468 = vmatprep.subr.mxu0 0.0
        %8469 = vmatpush1.msra.mxu0 %v8446
        %8470 = vmatprep.subr.mxu0 0.0
        %8471 = vmatpush1.msra.mxu0 %v8447
        %8472 = vmatprep.subr.mxu0 0.0
        %8473 = vmatpush1.msra.mxu0 %v8448
        %8474 = vmatprep.subr.mxu0 0.0
        %8475 = vmatpush1.msra.mxu0 %v8449
        %8476 = vmatprep.subr.mxu0 0.0
        %8477 = vmatpush1.msra.mxu0 %v8450
        %8478 = vmatprep.subr.mxu0 0.0
        %8479 = vmatpush1.msra.mxu0 %v8451
        %8480 = vmatprep.subr.mxu0 0.0
        %8481 = vmatpush1.msra.mxu0 %v8452
        %8482 = vmatprep.subr.mxu0 0.0
        %8483 = vmatpush1.msra.mxu0 %v8453
        %8484 = vmatprep.subr.mxu0 0.0
        %8485 = vmatpush1.msra.mxu0 %v8454
        %8486 = vmatprep.subr.mxu0 0.0
        %8487 = vmatpush1.msra.mxu0 %v8455
        %8488 = vmatprep.subr.mxu0 0.0
        %8489 = vmatpush1.msra.mxu0 0.0
        %8490 = vmatprep.subr.mxu0 0.0
        %8491 = vmatpush1.msra.mxu0 0.0
        %8492 = vmatprep.subr.mxu0 0.0
        %8493 = vmatpush1.msra.mxu0 0.0
        %8494 = vmatprep.subr.mxu0 0.0
        %8495 = vmatpush1.msra.mxu0 0.0
        %8496 = vmatprep.subr.mxu0 0.0
        %8497 = vmatpush1.msra.mxu0 0.0
        %8498 = vmatprep.subr.mxu0 0.0
        %8499 = vmatpush1.msra.mxu0 0.0
        %8500 = vmatprep.subr.mxu0 0.0
        %8501 = vmatpush1.msra.mxu0 0.0
        %8502 = vmatprep.subr.mxu0 0.0
        %8503 = vmatpush1.msra.mxu0 0.0
        %8504 = vmatprep.subr.mxu0 0.0
        %8505 = vmatpush1.msra.mxu0 0.0
        %8506 = vmatprep.subr.mxu0 0.0
        %8507 = vmatpush1.msra.mxu0 0.0
        %8508 = vmatprep.subr.mxu0 0.0
        %8509 = vmatpush1.msra.mxu0 0.0
        %8510 = vmatprep.subr.mxu0 0.0
        %8511 = vmatpush1.msra.mxu0 0.0
        %8512 = vmatprep.subr.mxu0 0.0
        %8513 = vmatpush1.msra.mxu0 0.0
        %8514 = vmatprep.subr.mxu0 0.0
        %8515 = vmatpush1.msra.mxu0 0.0
        %8516 = vmatprep.subr.mxu0 0.0
        %8517 = vmatpush1.msra.mxu0 0.0
        %8518 = vmatprep.subr.mxu0 0.0
        %8519 = vmatpush1.msra.mxu0 0.0
        %8520 = vmatprep.mubr.f32.mxu0 0.0
        %8521 = vmatmul.mubr.f32.gmra.mrb[0].mxu0 %v8438
        %v8522 = vpop.f32.mrb[0].mxu0
        %v8523 = vadd.f32 0.0, %v8522
        %v8524 = vpop.f32.mrb[0].mxu0
        %8525 = vdwg.mxu0
        %v8526 = vld [vmem:[%s8] sm:$0x1]
        %v8528 = vlaneseq
        %v8529 = vshrl.u32 %v8528, 7
        %v8530 = vsub.s32 0, %v8529
        %v8531 = vrot.slane %v8526, %v8530
        %v8533 = vadd.f32 %v8258, %v8531
        %v8534 = vadd.f32 %v8259, %v8531
        %v8535 = vadd.f32 %v8260, %v8531
        %v8536 = vadd.f32 %v8261, %v8531
        %v8537 = vadd.f32 %v8262, %v8531
        %v8538 = vadd.f32 %v8263, %v8531
        %v8539 = vadd.f32 %v8264, %v8531
        %v8540 = vadd.f32 %v8265, %v8531
        %v8541 = vadd.f32 %v8266, %v8531
        %v8542 = vadd.f32 %v8267, %v8531
        %v8543 = vadd.f32 %v8268, %v8531
        %v8544 = vadd.f32 %v8269, %v8531
        %v8545 = vadd.f32 %v8270, %v8531
        %v8546 = vadd.f32 %v8271, %v8531
        %v8547 = vadd.f32 %v8272, %v8531
        %v8548 = vadd.f32 %v8273, %v8531
        %v8549 = vadd.f32 %v8274, %v8531
        %v8550 = vadd.f32 %v8275, %v8531
        %v8551 = vadd.f32 %v8276, %v8531
        %v8552 = vadd.f32 %v8277, %v8531
        %v8553 = vadd.f32 %v8278, %v8531
        %v8554 = vadd.f32 %v8279, %v8531
        %v8555 = vadd.f32 %v8280, %v8531
        %v8556 = vadd.f32 %v8281, %v8531
        %v8557 = vadd.f32 %v8282, %v8531
        %v8558 = vadd.f32 %v8283, %v8531
        %v8559 = vadd.f32 %v8284, %v8531
        %v8560 = vadd.f32 %v8285, %v8531
        %v8561 = vadd.f32 %v8286, %v8531
        %v8562 = vadd.f32 %v8287, %v8531
        %v8563 = vadd.f32 %v8288, %v8531
        %v8564 = vadd.f32 %v8289, %v8531
        %v8565 = vlaneseq
        %v8566 = vshrl.u32 %v8565, 7
        %v8567 = vsub.s32 0, %v8566
        %v8568 = vrot.slane %v8523, %v8567
        %v8569 = vadd.f32 %v8533, %v8568
        %v8570 = vadd.f32 %v8534, %v8568
        %v8571 = vadd.f32 %v8535, %v8568
        %v8572 = vadd.f32 %v8536, %v8568
        %v8573 = vadd.f32 %v8537, %v8568
        %v8574 = vadd.f32 %v8538, %v8568
        %v8575 = vadd.f32 %v8539, %v8568
        %v8576 = vadd.f32 %v8540, %v8568
        %v8577 = vadd.f32 %v8541, %v8568
        %v8578 = vadd.f32 %v8542, %v8568
        %v8579 = vadd.f32 %v8543, %v8568
        %v8580 = vadd.f32 %v8544, %v8568
        %v8581 = vadd.f32 %v8545, %v8568
        %v8582 = vadd.f32 %v8546, %v8568
        %v8583 = vadd.f32 %v8547, %v8568
        %v8584 = vadd.f32 %v8548, %v8568
        %v8585 = vadd.f32 %v8549, %v8568
        %v8586 = vadd.f32 %v8550, %v8568
        %v8587 = vadd.f32 %v8551, %v8568
        %v8588 = vadd.f32 %v8552, %v8568
        %v8589 = vadd.f32 %v8553, %v8568
        %v8590 = vadd.f32 %v8554, %v8568
        %v8591 = vadd.f32 %v8555, %v8568
        %v8592 = vadd.f32 %v8556, %v8568
        %v8593 = vadd.f32 %v8557, %v8568
        %v8594 = vadd.f32 %v8558, %v8568
        %v8595 = vadd.f32 %v8559, %v8568
        %v8596 = vadd.f32 %v8560, %v8568
        %v8597 = vadd.f32 %v8561, %v8568
        %v8598 = vadd.f32 %v8562, %v8568
        %v8599 = vadd.f32 %v8563, %v8568
        %v8600 = vadd.f32 %v8564, %v8568
        %v8601 = vmax.f32 %v8569, 0.0
        %v8602 = vmax.f32 %v8570, 0.0
        %v8603 = vmax.f32 %v8571, 0.0
        %v8604 = vmax.f32 %v8572, 0.0
        %v8605 = vmax.f32 %v8573, 0.0
        %v8606 = vmax.f32 %v8574, 0.0
        %v8607 = vmax.f32 %v8575, 0.0
        %v8608 = vmax.f32 %v8576, 0.0
        %v8609 = vmax.f32 %v8577, 0.0
        %v8610 = vmax.f32 %v8578, 0.0
        %v8611 = vmax.f32 %v8579, 0.0
        %v8612 = vmax.f32 %v8580, 0.0
        %v8613 = vmax.f32 %v8581, 0.0
        %v8614 = vmax.f32 %v8582, 0.0
        %v8615 = vmax.f32 %v8583, 0.0
        %v8616 = vmax.f32 %v8584, 0.0
        %v8617 = vmax.f32 %v8585, 0.0
        %v8618 = vmax.f32 %v8586, 0.0
        %v8619 = vmax.f32 %v8587, 0.0
        %v8620 = vmax.f32 %v8588, 0.0
        %v8621 = vmax.f32 %v8589, 0.0
        %v8622 = vmax.f32 %v8590, 0.0
        %v8623 = vmax.f32 %v8591, 0.0
        %v8624 = vmax.f32 %v8592, 0.0
        %v8625 = vmax.f32 %v8593, 0.0
        %v8626 = vmax.f32 %v8594, 0.0
        %v8627 = vmax.f32 %v8595, 0.0
        %v8628 = vmax.f32 %v8596, 0.0
        %v8629 = vmax.f32 %v8597, 0.0
        %v8630 = vmax.f32 %v8598, 0.0
        %v8631 = vmax.f32 %v8599, 0.0
        %v8632 = vmax.f32 %v8600, 0.0
        %8633 = vst [vmem:[%s325] sm:$0xff] %v8601
        %8634 = vst [vmem:[%s325 + $0x8] sm:$0xff] %v8602
        %8635 = vst [vmem:[%s325 + $0x10] sm:$0xff] %v8603
        %8636 = vst [vmem:[%s325 + $0x18] sm:$0xff] %v8604
        %8637 = vst [vmem:[%s325 + $0x20] sm:$0xff] %v8605
        %8638 = vst [vmem:[%s325 + $0x28] sm:$0xff] %v8606
        %8639 = vst [vmem:[%s325 + $0x30] sm:$0xff] %v8607
        %8640 = vst [vmem:[%s325 + $0x38] sm:$0xff] %v8608
        %8641 = vst [vmem:[%s325 + $0x40] sm:$0xff] %v8609
        %8642 = vst [vmem:[%s325 + $0x48] sm:$0xff] %v8610
        %8643 = vst [vmem:[%s325 + $0x50] sm:$0xff] %v8611
        %8644 = vst [vmem:[%s325 + $0x58] sm:$0xff] %v8612
        %8645 = vst [vmem:[%s325 + $0x60] sm:$0xff] %v8613
        %8646 = vst [vmem:[%s325 + $0x68] sm:$0xff] %v8614
        %8647 = vst [vmem:[%s325 + $0x70] sm:$0xff] %v8615
        %8648 = vst [vmem:[%s325 + $0x78] sm:$0xff] %v8616
        %8649 = vst [vmem:[%s325 + $0x80] sm:$0xff] %v8617
        %8650 = vst [vmem:[%s325 + $0x88] sm:$0xff] %v8618
        %8651 = vst [vmem:[%s325 + $0x90] sm:$0xff] %v8619
        %8652 = vst [vmem:[%s325 + $0x98] sm:$0xff] %v8620
        %8653 = vst [vmem:[%s325 + $0xa0] sm:$0xff] %v8621
        %8654 = vst [vmem:[%s325 + $0xa8] sm:$0xff] %v8622
        %8655 = vst [vmem:[%s325 + $0xb0] sm:$0xff] %v8623
        %8656 = vst [vmem:[%s325 + $0xb8] sm:$0xff] %v8624
        %8657 = vst [vmem:[%s325 + $0xc0] sm:$0xff] %v8625
        %8658 = vst [vmem:[%s325 + $0xc8] sm:$0xff] %v8626
        %8659 = vst [vmem:[%s325 + $0xd0] sm:$0xff] %v8627
        %8660 = vst [vmem:[%s325 + $0xd8] sm:$0xff] %v8628
        %8661 = vst [vmem:[%s325 + $0xe0] sm:$0xff] %v8629
        %8662 = vst [vmem:[%s325 + $0xe8] sm:$0xff] %v8630
        %8663 = vst [vmem:[%s325 + $0xf0] sm:$0xff] %v8631
        %8664 = vst [vmem:[%s325 + $0xf8] sm:$0xff] %v8632
        %s8665 = sand.u32 %s225, 1
        %s8666 = scalar_lea.sflag [#allocation3], %s8665
        %s8667 = sand.u32 %s225, 1
        %s8668 = smul.addr %s8667, 256
        %s8669 = scalar_lea.vmem [#allocation2], %s8668
        // Predicated region
        $region57: #{tpu_custom_call.1} parent=55 // pred_check
          %p8670 = pneg %p235
        $region58: #{tpu_custom_call.1} parent=55 // pred_check_branch
          %8672 = sbr.rel (%p8670) target = $region60
        $region59: #{tpu_custom_call.1} parent=55 // pred_region
          %s8674 = ssub.s32 4096, 4096
          %8675 = vsyncadd %s8666, %s8674
          %s8676 = smul.addr %s23, 32
          %s8677 = smul.addr %s8676, 128
          %s8678 = scalar_lea.hbm %s9, %s8677
          %s8679 = sshll.u32 %s8669, 4
          %s8680 = int_to_ptr.vmem [resolvable:$true] %s8679
          %8685 = dma.vmem_to_hbm [thread:$0]  %s8680, 4096, %s8678, %s8666, 128, 128, 8
        $region60: #{tpu_custom_call.1} parent=55 // pred_fallthru
          _
      $region56: #{tpu_custom_call.1} parent=5 // pred_fallthru
        _
      %p8686 = scmp.le.s32.totalorder 2, %s18
      // Predicated region
      $region61: #{tpu_custom_call.1} parent=5 // pred_check
        %p8687 = pneg %p8686
      $region62: #{tpu_custom_call.1} parent=5 // pred_check_branch
        %8689 = sbr.rel (%p8687) target = $region64
      $region63: #{tpu_custom_call.1} parent=5 // pred_region
        %s8690 = ssub.s32 %s18, 2
        // Predicated region
        $region65: #{tpu_custom_call.1} parent=63 // pred_check
          %p8691 = pneg %p241
        $region66: #{tpu_custom_call.1} parent=63 // pred_check_branch
          %8693 = sbr.rel (%p8691) target = $region68
        $region67: #{tpu_custom_call.1} parent=63 // pred_region
          %s8694 = sand.u32 %s226, 1
          %s8695 = scalar_lea.sflag [#allocation3], %s8694
          %s8696 = sand.u32 %s226, 1
          %s8697 = smul.addr %s8696, 256
          %s8698 = scalar_lea.vmem [#allocation2], %s8697
          %8699 = dma.done %s8695, 4096
        $region68: #{tpu_custom_call.1} parent=63 // pred_fallthru
          _
      $region64: #{tpu_custom_call.1} parent=5 // pred_fallthru
        _
    $region6: #{tpu_custom_call.1} parent=1 // loop_footer
      %s22 = sadd.s32 1, %s18
    $region7: #{tpu_custom_call.1} parent=1 // loop_footer_branch
      %17 = sbr.rel target = $region3
    $region8: #{tpu_custom_call.1} parent=1 // loop_exit
      _
    %8700 = vsyncpa [#allocation3], 1
    %s8701 = scalar_lea.sflag [#allocation3], 1
    %8702 = vsyncpa %s8701, 1

</llo_original>
